<compile_context>
chip_gen: v5e
topology: v5e:2x2
jax: 0.10.0
libtpu: 0.0.40
codegen_flags: <defaults>
</compile_context>

<pallas_src>
import functools

import jax
import jax.numpy as jnp
from jax import lax
from jax.experimental import pallas as pl
from jax.experimental.pallas import tpu as pltpu


# ----------------------------------------------------------------------------
# Fused kernel: stem + 4 residual blocks + avg-pool + fused linear heads.
# One grid step per Bt-image batch block.
# ----------------------------------------------------------------------------
def fused_forward_kernel(x_ref, w0_ref, wb_ref, sc_ref, sh_ref, wh_ref, bh_ref,
                         out_ref, xs_ref, *, emb_dim):
    Bt, HW, K0 = x_ref.shape                       # (Bt, H*W, 9*Cin)
    _, Hp2, W, C3 = xs_ref.shape                   # (Bt, H+2, W, 3*C)
    C = C3 // 3
    H = Hp2 - 2
    HEADW = wh_ref.shape[1]
    M = Bt * HW

    # Zero the two H-halo rows of the scratch.  Done every step (not only on the
    # first): with a "parallel" grid axis sharded across 2 TensorCores, the
    # second core never executes step 0; cost is negligible (~6 vector stores).
    zrow = jnp.zeros((Bt, 1, W, C3), jnp.float32)
    xs_ref[:, pl.ds(0, 1), :, :] = zrow
    xs_ref[:, pl.ds(Hp2 - 1, 1), :, :] = zrow

    # Column index j of every flattened (b, i, j) row; hoisted, reused by all
    # 4 blocks (edge masks for the +-1 W-shifts).
    jcol = lax.broadcasted_iota(jnp.int32, (M, C), 0) % W
    left_ok = jcol > 0
    right_ok = jcol < (W - 1)

    def write_xs(yflat):
        # kx-stacked slab: xs[b, 1+i, j, kx*C + c] = y[b, i, j+kx-1, c], zero off
        # the W edges.  A +-1 shift along the flattened (b,i,j) row axis moves j
        # by +-1 (the row-wrap values land only on masked j==0 / j==W-1 rows);
        # pltpu.roll puts the shift on the XLU.  One lane-dense 192-wide store.
        left = jnp.where(left_ok, pltpu.roll(yflat, shift=1, axis=0), 0.0)
        right = jnp.where(right_ok, pltpu.roll(yflat, shift=M - 1, axis=0), 0.0)
        slab = jnp.concatenate([left, yflat, right], axis=-1)        # (M, 3C)
        xs_ref[:, pl.ds(1, H), :, :] = slab.reshape(Bt, H, W, C3)

    # ---- stem: Conv(Cin->64, 3x3, pad=1) + folded BN + ReLU ------------------
    # im2col was done in the wrapper; only the K=9*Cin matmul stays in-kernel.
    col0 = x_ref[...].reshape(M, K0)
    y = jnp.dot(col0, w0_ref[...], preferred_element_type=jnp.float32)
    y = jnp.maximum(y * sc_ref[0] + sh_ref[0], 0.0)                  # (M, C)

    # ---- 4x SimpleResNetBlock(64, stride=1): relu(bn(conv(x)) + x) ----------
    for blk in range(4):
        write_xs(y)
        # ONE matmul per block: M = Bt*(H+2)*W, K = 3C = 192, N = 3C = 192
        # (three ky-tap weights stacked along N).
        p = jnp.dot(xs_ref[...].reshape(Bt * Hp2 * W, C3), wb_ref[blk],
                    preferred_element_type=jnp.float32)
        p = p.reshape(Bt, Hp2 * W, C3)
        # Combine the three ky output groups with sublane-aligned row shifts
        # of 0 / W / 2W (W is a multiple of 8).
        conv = (p[:, 0:HW, 0:C]
                + p[:, W:W + HW, C:2 * C]
                + p[:, 2 * W:2 * W + HW, 2 * C:3 * C]).reshape(M, C)
        y = jnp.maximum(conv * sc_ref[blk + 1] + sh_ref[blk + 1] + y, 0.0)

    # ---- AdaptiveAvgPool2d((1,1)) + Flatten + fused linear heads ------------
    pooled = jnp.mean(y.reshape(Bt, HW, C), axis=1)                  # (Bt, C)
    h = jnp.dot(pooled, wh_ref[...],
                preferred_element_type=jnp.float32) + bh_ref[...]    # (Bt, 128)
    col_ids = lax.broadcasted_iota(jnp.int32, (Bt, HEADW), 1)
    # ReLU only on the embedding columns [0, emb_dim); logits columns untouched.
    h = jnp.where(col_ids < emb_dim, jnp.maximum(h, 0.0), h)
    out_ref[...] = h.reshape(1, Bt, HEADW)


def fused_forward(x_col, w0, wb, scales, shifts, wh, bh, *, emb_dim, H, W, Bt):
    B, HW, K0 = x_col.shape
    C = w0.shape[1]
    HEADW = wh.shape[1]
    nsteps = B // Bt
    kernel = functools.partial(fused_forward_kernel, emb_dim=emb_dim)
    out = pl.pallas_call(
        kernel,
        out_shape=jax.ShapeDtypeStruct((nsteps, Bt, HEADW), jnp.float32),
        grid=(nsteps,),
        in_specs=[
            pl.BlockSpec((Bt, HW, K0), lambda b: (b, 0, 0)),    # pre-im2col'd input
            pl.BlockSpec((K0, C), lambda b: (0, 0)),            # stem weight
            pl.BlockSpec((4, 3 * C, 3 * C), lambda b: (0, 0, 0)),  # block weights (3C,3C)
            pl.BlockSpec((5, 1, C), lambda b: (0, 0, 0)),       # folded BN scales
            pl.BlockSpec((5, 1, C), lambda b: (0, 0, 0)),       # folded BN shifts
            pl.BlockSpec((C, HEADW), lambda b: (0, 0)),         # fused head weight
            pl.BlockSpec((1, HEADW), lambda b: (0, 0)),         # fused head bias
        ],
        out_specs=pl.BlockSpec((1, Bt, HEADW), lambda b: (b, 0, 0)),
        scratch_shapes=[pltpu.VMEM((Bt, H + 2, W, 3 * C), jnp.float32)],
        compiler_params=pltpu.CompilerParams(
            dimension_semantics=("parallel",)),
    )(x_col, w0, wb, scales, shifts, wh, bh)
    return out.reshape(B, HEADW)


# ----------------------------------------------------------------------------
# Wrapper-side glue: im2col, BN folding, weight packing, batch blocking.
# ----------------------------------------------------------------------------
def _im2col3x3(x_nhwc):
    B, H, W, Cin = x_nhwc.shape
    xp = jnp.pad(x_nhwc, ((0, 0), (1, 1), (1, 1), (0, 0)))
    taps = [xp[:, ky:ky + H, kx:kx + W, :] for ky in range(3) for kx in range(3)]
    return jnp.concatenate(taps, axis=-1).reshape(B, H * W, 9 * Cin)


def _fold_bn(b, gamma, beta, rmean, rvar, eps=1e-5):
    # Eval-mode BN folded with conv bias into per-channel scale/shift.
    scale = gamma / jnp.sqrt(rvar + eps)
    shift = (b - rmean) * scale + beta
    return scale, shift


def _pick_bt(B):
    # Largest Bt in {8,4,2} that divides B while keeping the grid axis >= 2
    # (v7x megacore); Bt <= 8 respects v5e's 16MiB scoped-VMEM default.
    for bt in (8, 4, 2):
        if B % bt == 0 and B // bt >= 2:
            return bt
    return 1


def classification_network_forward(x_nchw, convs, lin, return_embedding=False):
    # x_nchw: (B, Cin, H, W) PyTorch layout; kernel uses NHWC-derived layouts.
    C = 64
    x = jnp.transpose(x_nchw, (0, 2, 3, 1)).astype(jnp.float32)
    B, H, W, Cin = x.shape
    x_col = _im2col3x3(x)                                   # (B, H*W, 9*Cin)

    # stem: im2col weight [(ky,kx,c), o] + folded BN
    w, b, gamma, beta, rmean, rvar = convs[0]
    w0 = jnp.transpose(w, (2, 3, 1, 0)).reshape(9 * Cin, C)
    s0, t0 = _fold_bn(b, gamma, beta, rmean, rvar)
    scales, shifts = [s0.reshape(1, C)], [t0.reshape(1, C)]

    # residual-block weights packed as (3C, 3C): rows = (kx, c), cols = (ky, o)
    wbs = []
    for i in range(1, 5):
        w, b, gamma, beta, rmean, rvar = convs[i]
        wbs.append(jnp.transpose(w, (3, 1, 2, 0)).reshape(3 * C, 3 * C))
        si, ti = _fold_bn(b, gamma, beta, rmean, rvar)
        scales.append(si.reshape(1, C))
        shifts.append(ti.reshape(1, C))
    wb = jnp.stack(wbs)                                     # (4, 3C, 3C)
    scales = jnp.stack(scales)                              # (5, 1, C)
    shifts = jnp.stack(shifts)                              # (5, 1, C)

    # fused head: both heads read the *pooled* 64-d features (as in PyTorch:
    # output = linear_out(embedding), embedding_out = relu(linear(embedding))).
    w1, b1, w2, b2 = lin
    E, N = w1.shape[0], w2.shape[0]
    HEADW = max(128, ((E + N + 127) // 128) * 128)
    pad = HEADW - E - N
    wh = jnp.concatenate([w1.T, w2.T, jnp.zeros((C, pad), jnp.float32)], axis=1)
    bh = jnp.concatenate([b1, b2, jnp.zeros((pad,), jnp.float32)]).reshape(1, HEADW)

    Bt = _pick_bt(B)
    out = fused_forward(x_col, w0, wb, scales, shifts, wh, bh,
                        emb_dim=E, H=H, W=W, Bt=Bt)         # (B, HEADW)
    emb_out = out[:, :E]            # relu(linear(pooled))  (ReLU applied in-kernel)
    logits = out[:, E:E + N]        # linear_out(pooled)
    if return_embedding:
        return emb_out, logits
    return logits


# ----------------------------------------------------------------------------
# Parameter setup (deterministic, synthetic)
# ----------------------------------------------------------------------------
def init_params(key, in_channels, num_classes, embedding_dim):
    convs = []
    cin = in_channels
    k = key
    for _ in range(5):  # stem conv + 4 SimpleResNetBlock convs (all -> 64 ch)
        k, k1, k2, k3, k4, k5, k6 = jax.random.split(k, 7)
        w = jax.random.normal(k1, (64, cin, 3, 3), jnp.float32) * 0.1  # (Cout,Cin,kh,kw)
        b = jax.random.normal(k2, (64,), jnp.float32) * 0.1
        gamma = 1.0 + 0.1 * jax.random.normal(k3, (64,), jnp.float32)
        beta = 0.1 * jax.random.normal(k4, (64,), jnp.float32)
        rmean = 0.1 * jax.random.normal(k5, (64,), jnp.float32)
        rvar = jax.random.uniform(k6, (64,), jnp.float32, 0.5, 1.5)
        convs.append((w, b, gamma, beta, rmean, rvar))
        cin = 64
    k, k1, k2, k3, k4 = jax.random.split(k, 5)
    w1 = jax.random.normal(k1, (embedding_dim, 64), jnp.float32) * 0.1  # nn.Linear(64, E)
    b1 = jax.random.normal(k2, (embedding_dim,), jnp.float32) * 0.1
    w2 = jax.random.normal(k3, (num_classes, 64), jnp.float32) * 0.1    # nn.Linear(64, N)
    b2 = jax.random.normal(k4, (num_classes,), jnp.float32) * 0.1
    return convs, (w1, b1, w2, b2)


# ----------------------------------------------------------------------------
# Pure-JAX reference (correctness check for both heads)
# ----------------------------------------------------------------------------
def reference_forward(x_nchw, convs, lin):
    x = jnp.transpose(x_nchw, (0, 2, 3, 1)).astype(jnp.float32)

    def conv_bn_relu(x, p, res):
        w, b, gamma, beta, rmean, rvar = p
        wh = jnp.transpose(w, (2, 3, 1, 0))  # HWIO
        y = lax.conv_general_dilated(
            x, wh, (1, 1), "SAME", dimension_numbers=("NHWC", "HWIO", "NHWC")) + b
        y = (y - rmean) / jnp.sqrt(rvar + 1e-5) * gamma + beta
        return jnp.maximum(y + res, 0.0)

    y = conv_bn_relu(x, convs[0], 0.0)
    for i in range(1, 5):
        y = conv_bn_relu(y, convs[i], y)
    pooled = jnp.mean(y, axis=(1, 2))
    w1, b1, w2, b2 = lin
    emb = jnp.maximum(pooled @ w1.T + b1, 0.0)
    logits = pooled @ w2.T + b2
    return emb, logits


if __name__ == "__main__":
    key = jax.random.PRNGKey(0)
    kx_, kp = jax.random.split(key)
    B, Cin, H, W = 2, 4, 16, 16
    num_classes, embedding_dim = 10, 8

    x = jax.random.normal(kx_, (B, Cin, H, W), jnp.float32)
    convs, lin = init_params(kp, Cin, num_classes, embedding_dim)

    fwd = jax.jit(classification_network_forward,
                  static_argnames=("return_embedding",))
    emb, out = fwd(x, convs, lin, return_embedding=True)
    out = jax.block_until_ready(out)
    emb = jax.block_until_ready(emb)

    ref_emb, ref_out = reference_forward(x, convs, lin)
    assert out.shape == (B, num_classes), out.shape
    assert emb.shape == (B, embedding_dim), emb.shape
    assert jnp.allclose(out, ref_out, atol=2e-3, rtol=2e-3), (out, ref_out)
    assert jnp.allclose(emb, ref_emb, atol=2e-3, rtol=2e-3), (emb, ref_emb)

    print("KERNEL_OK")
</pallas_src>

<mosaic_0001>
module attributes {stable_mosaic.version = 11 : i64} {
  func.func @fused_forward_kernel(%arg0: i32, %arg1: memref<1x256x36xf32, #tpu.memory_space<vmem>>, %arg2: memref<36x64xf32, #tpu.memory_space<vmem>>, %arg3: memref<4x192x192xf32, #tpu.memory_space<vmem>>, %arg4: memref<5x1x64xf32, #tpu.memory_space<vmem>>, %arg5: memref<5x1x64xf32, #tpu.memory_space<vmem>>, %arg6: memref<64x128xf32, #tpu.memory_space<vmem>>, %arg7: memref<1x128xf32, #tpu.memory_space<vmem>>, %arg8: memref<1x1x128xf32, #tpu.memory_space<vmem>>, %arg9: memref<1x18x16x192xf32, #tpu.memory_space<vmem>>) attributes {dimension_semantics = [#tpu.dimension_semantics<parallel>], iteration_bounds = array<i64: 2>, scalar_prefetch = 0 : i64, scratch_operands = 1 : i64, tpu.core_type = #tpu.core_type<tc>, window_params = [{transform_indices = @transform_0, window_bounds = array<i64: 1, 256, 36>}, {pipeline_mode = #tpu.pipeline_mode<synchronous>, transform_indices = @transform_1, window_bounds = array<i64: 36, 64>}, {pipeline_mode = #tpu.pipeline_mode<synchronous>, transform_indices = @transform_2, window_bounds = array<i64: 4, 192, 192>}, {pipeline_mode = #tpu.pipeline_mode<synchronous>, transform_indices = @transform_3, window_bounds = array<i64: 5, 1, 64>}, {pipeline_mode = #tpu.pipeline_mode<synchronous>, transform_indices = @transform_4, window_bounds = array<i64: 5, 1, 64>}, {pipeline_mode = #tpu.pipeline_mode<synchronous>, transform_indices = @transform_5, window_bounds = array<i64: 64, 128>}, {pipeline_mode = #tpu.pipeline_mode<synchronous>, transform_indices = @transform_6, window_bounds = array<i64: 1, 128>}, {transform_indices = @transform_7, window_bounds = array<i64: 1, 1, 128>}]} {
    %cst = arith.constant 0.000000e+00 : f32
    %0 = vector.broadcast %cst : f32 to vector<1x1x16x192xf32>
    %c0 = arith.constant 0 : index
    %c0_0 = arith.constant 0 : index
    %c0_1 = arith.constant 0 : index
    %c0_2 = arith.constant 0 : index
    %1 = vector.load %arg9[%c0, %c0_0, %c0_1, %c0_2] : memref<1x18x16x192xf32, #tpu.memory_space<vmem>>, vector<1x1x16x192xf32>
    tpu.vector_store %arg9[%c0, %c0_0, %c0_1, %c0_2], %0 {strides = array<i32>} : memref<1x18x16x192xf32, #tpu.memory_space<vmem>>, vector<1x1x16x192xf32>,
    %c0_3 = arith.constant 0 : index
    %c17 = arith.constant 17 : index
    %c0_4 = arith.constant 0 : index
    %c0_5 = arith.constant 0 : index
    %2 = vector.load %arg9[%c0_3, %c17, %c0_4, %c0_5] : memref<1x18x16x192xf32, #tpu.memory_space<vmem>>, vector<1x1x16x192xf32>
    tpu.vector_store %arg9[%c0_3, %c17, %c0_4, %c0_5], %0 {strides = array<i32>} : memref<1x18x16x192xf32, #tpu.memory_space<vmem>>, vector<1x1x16x192xf32>,
    %3 = tpu.iota {dimensions = array<i32: 0>} : vector<256x64xi32>
    %c16_i32 = arith.constant 16 : i32
    %c0_i32 = arith.constant 0 : i32
    %4 = arith.cmpi eq, %c16_i32, %c0_i32 : i32
    %c1_i32 = arith.constant 1 : i32
    %5 = arith.select %4, %c1_i32, %c16_i32 : i32
    %6 = vector.broadcast %5 : i32 to vector<256x64xi32>
    %7 = arith.remsi %3, %6 : vector<256x64xi32>
    %c0_i32_6 = arith.constant 0 : i32
    %8 = vector.broadcast %c0_i32_6 : i32 to vector<256x64xi32>
    %9 = arith.cmpi ne, %7, %8 : vector<256x64xi32>
    %c0_i32_7 = arith.constant 0 : i32
    %10 = vector.broadcast %c0_i32_7 : i32 to vector<256x64xi32>
    %11 = arith.cmpi slt, %7, %10 : vector<256x64xi32>
    %c0_i32_8 = arith.constant 0 : i32
    %12 = arith.cmpi slt, %5, %c0_i32_8 : i32
    %13 = vector.broadcast %12 : i1 to vector<256x64xi1>
    %14 = vector.broadcast %13 : vector<256x64xi1> to vector<256x64xi1>
    %15 = arith.xori %11, %14 : vector<256x64xi1>
    %16 = arith.andi %15, %9 : vector<256x64xi1>
    %17 = vector.broadcast %5 : i32 to vector<256x64xi32>
    %18 = arith.addi %7, %17 : vector<256x64xi32>
    %19 = arith.select %16, %18, %7 : vector<256x64xi1>, vector<256x64xi32>
    %c0_i32_9 = arith.constant 0 : i32
    %20 = vector.broadcast %c0_i32_9 : i32 to vector<256x64xi32>
    %21 = arith.cmpi sgt, %19, %20 : vector<256x64xi32>
    %c15_i32 = arith.constant 15 : i32
    %22 = vector.broadcast %c15_i32 : i32 to vector<256x64xi32>
    %23 = arith.cmpi slt, %19, %22 : vector<256x64xi32>
    %c0_10 = arith.constant 0 : index
    %c0_11 = arith.constant 0 : index
    %c0_12 = arith.constant 0 : index
    %24 = vector.load %arg1[%c0_10, %c0_11, %c0_12] : memref<1x256x36xf32, #tpu.memory_space<vmem>>, vector<1x256x36xf32>
    %25 = vector.shape_cast %24 : vector<1x256x36xf32> to vector<256x36xf32>
    %c0_13 = arith.constant 0 : index
    %c0_14 = arith.constant 0 : index
    %26 = vector.load %arg2[%c0_13, %c0_14] : memref<36x64xf32, #tpu.memory_space<vmem>>, vector<36x64xf32>
    %cst_15 = arith.constant dense<0.000000e+00> : vector<256x64xf32>
    %27 = tpu.matmul %25, %26, %cst_15 {dimension_numbers = #tpu.dot_dimension_numbers<[1], [0], [0], [1], [0, 0, 1, 1], [], []>} : vector<256x36xf32>, vector<36x64xf32>, vector<256x64xf32> -> vector<256x64xf32>
    %c0_16 = arith.constant 0 : index
    %c0_17 = arith.constant 0 : index
    %c0_18 = arith.constant 0 : index
    %28 = vector.load %arg4[%c0_16, %c0_17, %c0_18] : memref<5x1x64xf32, #tpu.memory_space<vmem>>, vector<1x1x64xf32>
    %29 = vector.shape_cast %28 : vector<1x1x64xf32> to vector<1x64xf32>
    %30 = vector.broadcast %29 : vector<1x64xf32> to vector<256x64xf32>
    %31 = arith.mulf %27, %30 : vector<256x64xf32>
    %c0_19 = arith.constant 0 : index
    %c0_20 = arith.constant 0 : index
    %c0_21 = arith.constant 0 : index
    %32 = vector.load %arg5[%c0_19, %c0_20, %c0_21] : memref<5x1x64xf32, #tpu.memory_space<vmem>>, vector<1x1x64xf32>
    %33 = vector.shape_cast %32 : vector<1x1x64xf32> to vector<1x64xf32>
    %34 = vector.broadcast %33 : vector<1x64xf32> to vector<256x64xf32>
    %35 = arith.addf %31, %34 : vector<256x64xf32>
    %cst_22 = arith.constant 0.000000e+00 : f32
    %36 = vector.broadcast %cst_22 : f32 to vector<256x64xf32>
    %37 = arith.maximumf %35, %36 : vector<256x64xf32>
    %c1_i32_23 = arith.constant 1 : i32
    %38 = tpu.dynamic_rotate %37 by %c1_i32_23 dim 0 : vector<256x64xf32>, i32 -> vector<256x64xf32>
    %cst_24 = arith.constant 0.000000e+00 : f32
    %39 = vector.broadcast %cst_24 : f32 to vector<256x64xf32>
    %40 = arith.select %21, %38, %39 : vector<256x64xi1>, vector<256x64xf32>
    %c255_i32 = arith.constant 255 : i32
    %41 = tpu.dynamic_rotate %37 by %c255_i32 dim 0 : vector<256x64xf32>, i32 -> vector<256x64xf32>
    %cst_25 = arith.constant 0.000000e+00 : f32
    %42 = vector.broadcast %cst_25 : f32 to vector<256x64xf32>
    %43 = arith.select %23, %41, %42 : vector<256x64xi1>, vector<256x64xf32>
    %44 = tpu.concatenate %40, %37, %43 in 1 : vector<256x64xf32>, vector<256x64xf32>, vector<256x64xf32> -> vector<256x192xf32>
    %45 = vector.shape_cast %44 : vector<256x192xf32> to vector<1x16x16x192xf32>
    %c0_26 = arith.constant 0 : index
    %c1 = arith.constant 1 : index
    %c0_27 = arith.constant 0 : index
    %c0_28 = arith.constant 0 : index
    %46 = vector.load %arg9[%c0_26, %c1, %c0_27, %c0_28] : memref<1x18x16x192xf32, #tpu.memory_space<vmem>>, vector<1x16x16x192xf32>
    tpu.vector_store %arg9[%c0_26, %c1, %c0_27, %c0_28], %45 {strides = array<i32>} : memref<1x18x16x192xf32, #tpu.memory_space<vmem>>, vector<1x16x16x192xf32>,
    %c0_29 = arith.constant 0 : index
    %c0_30 = arith.constant 0 : index
    %c0_31 = arith.constant 0 : index
    %c0_32 = arith.constant 0 : index
    %47 = vector.load %arg9[%c0_29, %c0_30, %c0_31, %c0_32] : memref<1x18x16x192xf32, #tpu.memory_space<vmem>>, vector<1x18x16x192xf32>
    %48 = vector.shape_cast %47 : vector<1x18x16x192xf32> to vector<288x192xf32>
    %c0_33 = arith.constant 0 : index
    %c0_34 = arith.constant 0 : index
    %c0_35 = arith.constant 0 : index
    %49 = vector.load %arg3[%c0_33, %c0_34, %c0_35] : memref<4x192x192xf32, #tpu.memory_space<vmem>>, vector<1x192x192xf32>
    %50 = vector.shape_cast %49 : vector<1x192x192xf32> to vector<192x192xf32>
    %cst_36 = arith.constant dense<0.000000e+00> : vector<288x192xf32>
    %51 = tpu.matmul %48, %50, %cst_36 {dimension_numbers = #tpu.dot_dimension_numbers<[1], [0], [0], [1], [0, 0, 1, 1], [], []>} : vector<288x192xf32>, vector<192x192xf32>, vector<288x192xf32> -> vector<288x192xf32>
    %52 = vector.shape_cast %51 : vector<288x192xf32> to vector<1x288x192xf32>
    %53 = vector.extract_strided_slice %52 {offsets = [0, 0, 0], sizes = [1, 256, 64], strides = [1, 1, 1]} : vector<1x288x192xf32> to vector<1x256x64xf32>
    %54 = vector.extract_strided_slice %52 {offsets = [0, 16, 64], sizes = [1, 256, 64], strides = [1, 1, 1]} : vector<1x288x192xf32> to vector<1x256x64xf32>
    %55 = arith.addf %53, %54 : vector<1x256x64xf32>
    %56 = vector.extract_strided_slice %52 {offsets = [0, 32, 128], sizes = [1, 256, 64], strides = [1, 1, 1]} : vector<1x288x192xf32> to vector<1x256x64xf32>
    %57 = arith.addf %55, %56 : vector<1x256x64xf32>
    %58 = vector.shape_cast %57 : vector<1x256x64xf32> to vector<256x64xf32>
    %c1_37 = arith.constant 1 : index
    %c0_38 = arith.constant 0 : index
    %c0_39 = arith.constant 0 : index
    %59 = vector.load %arg4[%c1_37, %c0_38, %c0_39] : memref<5x1x64xf32, #tpu.memory_space<vmem>>, vector<1x1x64xf32>
    %60 = vector.shape_cast %59 : vector<1x1x64xf32> to vector<1x64xf32>
    %61 = vector.broadcast %60 : vector<1x64xf32> to vector<256x64xf32>
    %62 = arith.mulf %58, %61 : vector<256x64xf32>
    %c1_40 = arith.constant 1 : index
    %c0_41 = arith.constant 0 : index
    %c0_42 = arith.constant 0 : index
    %63 = vector.load %arg5[%c1_40, %c0_41, %c0_42] : memref<5x1x64xf32, #tpu.memory_space<vmem>>, vector<1x1x64xf32>
    %64 = vector.shape_cast %63 : vector<1x1x64xf32> to vector<1x64xf32>
    %65 = vector.broadcast %64 : vector<1x64xf32> to vector<256x64xf32>
    %66 = arith.addf %62, %65 : vector<256x64xf32>
    %67 = arith.addf %66, %37 : vector<256x64xf32>
    %cst_43 = arith.constant 0.000000e+00 : f32
    %68 = vector.broadcast %cst_43 : f32 to vector<256x64xf32>
    %69 = arith.maximumf %67, %68 : vector<256x64xf32>
    %c1_i32_44 = arith.constant 1 : i32
    %70 = tpu.dynamic_rotate %69 by %c1_i32_44 dim 0 : vector<256x64xf32>, i32 -> vector<256x64xf32>
    %cst_45 = arith.constant 0.000000e+00 : f32
    %71 = vector.broadcast %cst_45 : f32 to vector<256x64xf32>
    %72 = arith.select %21, %70, %71 : vector<256x64xi1>, vector<256x64xf32>
    %c255_i32_46 = arith.constant 255 : i32
    %73 = tpu.dynamic_rotate %69 by %c255_i32_46 dim 0 : vector<256x64xf32>, i32 -> vector<256x64xf32>
    %cst_47 = arith.constant 0.000000e+00 : f32
    %74 = vector.broadcast %cst_47 : f32 to vector<256x64xf32>
    %75 = arith.select %23, %73, %74 : vector<256x64xi1>, vector<256x64xf32>
    %76 = tpu.concatenate %72, %69, %75 in 1 : vector<256x64xf32>, vector<256x64xf32>, vector<256x64xf32> -> vector<256x192xf32>
    %77 = vector.shape_cast %76 : vector<256x192xf32> to vector<1x16x16x192xf32>
    %c0_48 = arith.constant 0 : index
    %c1_49 = arith.constant 1 : index
    %c0_50 = arith.constant 0 : index
    %c0_51 = arith.constant 0 : index
    %78 = vector.load %arg9[%c0_48, %c1_49, %c0_50, %c0_51] : memref<1x18x16x192xf32, #tpu.memory_space<vmem>>, vector<1x16x16x192xf32>
    tpu.vector_store %arg9[%c0_48, %c1_49, %c0_50, %c0_51], %77 {strides = array<i32>} : memref<1x18x16x192xf32, #tpu.memory_space<vmem>>, vector<1x16x16x192xf32>,
    %c0_52 = arith.constant 0 : index
    %c0_53 = arith.constant 0 : index
    %c0_54 = arith.constant 0 : index
    %c0_55 = arith.constant 0 : index
    %79 = vector.load %arg9[%c0_52, %c0_53, %c0_54, %c0_55] : memref<1x18x16x192xf32, #tpu.memory_space<vmem>>, vector<1x18x16x192xf32>
    %80 = vector.shape_cast %79 : vector<1x18x16x192xf32> to vector<288x192xf32>
    %c1_56 = arith.constant 1 : index
    %c0_57 = arith.constant 0 : index
    %c0_58 = arith.constant 0 : index
    %81 = vector.load %arg3[%c1_56, %c0_57, %c0_58] : memref<4x192x192xf32, #tpu.memory_space<vmem>>, vector<1x192x192xf32>
    %82 = vector.shape_cast %81 : vector<1x192x192xf32> to vector<192x192xf32>
    %cst_59 = arith.constant dense<0.000000e+00> : vector<288x192xf32>
    %83 = tpu.matmul %80, %82, %cst_59 {dimension_numbers = #tpu.dot_dimension_numbers<[1], [0], [0], [1], [0, 0, 1, 1], [], []>} : vector<288x192xf32>, vector<192x192xf32>, vector<288x192xf32> -> vector<288x192xf32>
    %84 = vector.shape_cast %83 : vector<288x192xf32> to vector<1x288x192xf32>
    %85 = vector.extract_strided_slice %84 {offsets = [0, 0, 0], sizes = [1, 256, 64], strides = [1, 1, 1]} : vector<1x288x192xf32> to vector<1x256x64xf32>
    %86 = vector.extract_strided_slice %84 {offsets = [0, 16, 64], sizes = [1, 256, 64], strides = [1, 1, 1]} : vector<1x288x192xf32> to vector<1x256x64xf32>
    %87 = arith.addf %85, %86 : vector<1x256x64xf32>
    %88 = vector.extract_strided_slice %84 {offsets = [0, 32, 128], sizes = [1, 256, 64], strides = [1, 1, 1]} : vector<1x288x192xf32> to vector<1x256x64xf32>
    %89 = arith.addf %87, %88 : vector<1x256x64xf32>
    %90 = vector.shape_cast %89 : vector<1x256x64xf32> to vector<256x64xf32>
    %c2 = arith.constant 2 : index
    %c0_60 = arith.constant 0 : index
    %c0_61 = arith.constant 0 : index
    %91 = vector.load %arg4[%c2, %c0_60, %c0_61] : memref<5x1x64xf32, #tpu.memory_space<vmem>>, vector<1x1x64xf32>
    %92 = vector.shape_cast %91 : vector<1x1x64xf32> to vector<1x64xf32>
    %93 = vector.broadcast %92 : vector<1x64xf32> to vector<256x64xf32>
    %94 = arith.mulf %90, %93 : vector<256x64xf32>
    %c2_62 = arith.constant 2 : index
    %c0_63 = arith.constant 0 : index
    %c0_64 = arith.constant 0 : index
    %95 = vector.load %arg5[%c2_62, %c0_63, %c0_64] : memref<5x1x64xf32, #tpu.memory_space<vmem>>, vector<1x1x64xf32>
    %96 = vector.shape_cast %95 : vector<1x1x64xf32> to vector<1x64xf32>
    %97 = vector.broadcast %96 : vector<1x64xf32> to vector<256x64xf32>
    %98 = arith.addf %94, %97 : vector<256x64xf32>
    %99 = arith.addf %98, %69 : vector<256x64xf32>
    %cst_65 = arith.constant 0.000000e+00 : f32
    %100 = vector.broadcast %cst_65 : f32 to vector<256x64xf32>
    %101 = arith.maximumf %99, %100 : vector<256x64xf32>
    %c1_i32_66 = arith.constant 1 : i32
    %102 = tpu.dynamic_rotate %101 by %c1_i32_66 dim 0 : vector<256x64xf32>, i32 -> vector<256x64xf32>
    %cst_67 = arith.constant 0.000000e+00 : f32
    %103 = vector.broadcast %cst_67 : f32 to vector<256x64xf32>
    %104 = arith.select %21, %102, %103 : vector<256x64xi1>, vector<256x64xf32>
    %c255_i32_68 = arith.constant 255 : i32
    %105 = tpu.dynamic_rotate %101 by %c255_i32_68 dim 0 : vector<256x64xf32>, i32 -> vector<256x64xf32>
    %cst_69 = arith.constant 0.000000e+00 : f32
    %106 = vector.broadcast %cst_69 : f32 to vector<256x64xf32>
    %107 = arith.select %23, %105, %106 : vector<256x64xi1>, vector<256x64xf32>
    %108 = tpu.concatenate %104, %101, %107 in 1 : vector<256x64xf32>, vector<256x64xf32>, vector<256x64xf32> -> vector<256x192xf32>
    %109 = vector.shape_cast %108 : vector<256x192xf32> to vector<1x16x16x192xf32>
    %c0_70 = arith.constant 0 : index
    %c1_71 = arith.constant 1 : index
    %c0_72 = arith.constant 0 : index
    %c0_73 = arith.constant 0 : index
    %110 = vector.load %arg9[%c0_70, %c1_71, %c0_72, %c0_73] : memref<1x18x16x192xf32, #tpu.memory_space<vmem>>, vector<1x16x16x192xf32>
    tpu.vector_store %arg9[%c0_70, %c1_71, %c0_72, %c0_73], %109 {strides = array<i32>} : memref<1x18x16x192xf32, #tpu.memory_space<vmem>>, vector<1x16x16x192xf32>,
    %c0_74 = arith.constant 0 : index
    %c0_75 = arith.constant 0 : index
    %c0_76 = arith.constant 0 : index
    %c0_77 = arith.constant 0 : index
    %111 = vector.load %arg9[%c0_74, %c0_75, %c0_76, %c0_77] : memref<1x18x16x192xf32, #tpu.memory_space<vmem>>, vector<1x18x16x192xf32>
    %112 = vector.shape_cast %111 : vector<1x18x16x192xf32> to vector<288x192xf32>
    %c2_78 = arith.constant 2 : index
    %c0_79 = arith.constant 0 : index
    %c0_80 = arith.constant 0 : index
    %113 = vector.load %arg3[%c2_78, %c0_79, %c0_80] : memref<4x192x192xf32, #tpu.memory_space<vmem>>, vector<1x192x192xf32>
    %114 = vector.shape_cast %113 : vector<1x192x192xf32> to vector<192x192xf32>
    %cst_81 = arith.constant dense<0.000000e+00> : vector<288x192xf32>
    %115 = tpu.matmul %112, %114, %cst_81 {dimension_numbers = #tpu.dot_dimension_numbers<[1], [0], [0], [1], [0, 0, 1, 1], [], []>} : vector<288x192xf32>, vector<192x192xf32>, vector<288x192xf32> -> vector<288x192xf32>
    %116 = vector.shape_cast %115 : vector<288x192xf32> to vector<1x288x192xf32>
    %117 = vector.extract_strided_slice %116 {offsets = [0, 0, 0], sizes = [1, 256, 64], strides = [1, 1, 1]} : vector<1x288x192xf32> to vector<1x256x64xf32>
    %118 = vector.extract_strided_slice %116 {offsets = [0, 16, 64], sizes = [1, 256, 64], strides = [1, 1, 1]} : vector<1x288x192xf32> to vector<1x256x64xf32>
    %119 = arith.addf %117, %118 : vector<1x256x64xf32>
    %120 = vector.extract_strided_slice %116 {offsets = [0, 32, 128], sizes = [1, 256, 64], strides = [1, 1, 1]} : vector<1x288x192xf32> to vector<1x256x64xf32>
    %121 = arith.addf %119, %120 : vector<1x256x64xf32>
    %122 = vector.shape_cast %121 : vector<1x256x64xf32> to vector<256x64xf32>
    %c3 = arith.constant 3 : index
    %c0_82 = arith.constant 0 : index
    %c0_83 = arith.constant 0 : index
    %123 = vector.load %arg4[%c3, %c0_82, %c0_83] : memref<5x1x64xf32, #tpu.memory_space<vmem>>, vector<1x1x64xf32>
    %124 = vector.shape_cast %123 : vector<1x1x64xf32> to vector<1x64xf32>
    %125 = vector.broadcast %124 : vector<1x64xf32> to vector<256x64xf32>
    %126 = arith.mulf %122, %125 : vector<256x64xf32>
    %c3_84 = arith.constant 3 : index
    %c0_85 = arith.constant 0 : index
    %c0_86 = arith.constant 0 : index
    %127 = vector.load %arg5[%c3_84, %c0_85, %c0_86] : memref<5x1x64xf32, #tpu.memory_space<vmem>>, vector<1x1x64xf32>
    %128 = vector.shape_cast %127 : vector<1x1x64xf32> to vector<1x64xf32>
    %129 = vector.broadcast %128 : vector<1x64xf32> to vector<256x64xf32>
    %130 = arith.addf %126, %129 : vector<256x64xf32>
    %131 = arith.addf %130, %101 : vector<256x64xf32>
    %cst_87 = arith.constant 0.000000e+00 : f32
    %132 = vector.broadcast %cst_87 : f32 to vector<256x64xf32>
    %133 = arith.maximumf %131, %132 : vector<256x64xf32>
    %c1_i32_88 = arith.constant 1 : i32
    %134 = tpu.dynamic_rotate %133 by %c1_i32_88 dim 0 : vector<256x64xf32>, i32 -> vector<256x64xf32>
    %cst_89 = arith.constant 0.000000e+00 : f32
    %135 = vector.broadcast %cst_89 : f32 to vector<256x64xf32>
    %136 = arith.select %21, %134, %135 : vector<256x64xi1>, vector<256x64xf32>
    %c255_i32_90 = arith.constant 255 : i32
    %137 = tpu.dynamic_rotate %133 by %c255_i32_90 dim 0 : vector<256x64xf32>, i32 -> vector<256x64xf32>
    %cst_91 = arith.constant 0.000000e+00 : f32
    %138 = vector.broadcast %cst_91 : f32 to vector<256x64xf32>
    %139 = arith.select %23, %137, %138 : vector<256x64xi1>, vector<256x64xf32>
    %140 = tpu.concatenate %136, %133, %139 in 1 : vector<256x64xf32>, vector<256x64xf32>, vector<256x64xf32> -> vector<256x192xf32>
    %141 = vector.shape_cast %140 : vector<256x192xf32> to vector<1x16x16x192xf32>
    %c0_92 = arith.constant 0 : index
    %c1_93 = arith.constant 1 : index
    %c0_94 = arith.constant 0 : index
    %c0_95 = arith.constant 0 : index
    %142 = vector.load %arg9[%c0_92, %c1_93, %c0_94, %c0_95] : memref<1x18x16x192xf32, #tpu.memory_space<vmem>>, vector<1x16x16x192xf32>
    tpu.vector_store %arg9[%c0_92, %c1_93, %c0_94, %c0_95], %141 {strides = array<i32>} : memref<1x18x16x192xf32, #tpu.memory_space<vmem>>, vector<1x16x16x192xf32>,
    %c0_96 = arith.constant 0 : index
    %c0_97 = arith.constant 0 : index
    %c0_98 = arith.constant 0 : index
    %c0_99 = arith.constant 0 : index
    %143 = vector.load %arg9[%c0_96, %c0_97, %c0_98, %c0_99] : memref<1x18x16x192xf32, #tpu.memory_space<vmem>>, vector<1x18x16x192xf32>
    %144 = vector.shape_cast %143 : vector<1x18x16x192xf32> to vector<288x192xf32>
    %c3_100 = arith.constant 3 : index
    %c0_101 = arith.constant 0 : index
    %c0_102 = arith.constant 0 : index
    %145 = vector.load %arg3[%c3_100, %c0_101, %c0_102] : memref<4x192x192xf32, #tpu.memory_space<vmem>>, vector<1x192x192xf32>
    %146 = vector.shape_cast %145 : vector<1x192x192xf32> to vector<192x192xf32>
    %cst_103 = arith.constant dense<0.000000e+00> : vector<288x192xf32>
    %147 = tpu.matmul %144, %146, %cst_103 {dimension_numbers = #tpu.dot_dimension_numbers<[1], [0], [0], [1], [0, 0, 1, 1], [], []>} : vector<288x192xf32>, vector<192x192xf32>, vector<288x192xf32> -> vector<288x192xf32>
    %148 = vector.shape_cast %147 : vector<288x192xf32> to vector<1x288x192xf32>
    %149 = vector.extract_strided_slice %148 {offsets = [0, 0, 0], sizes = [1, 256, 64], strides = [1, 1, 1]} : vector<1x288x192xf32> to vector<1x256x64xf32>
    %150 = vector.extract_strided_slice %148 {offsets = [0, 16, 64], sizes = [1, 256, 64], strides = [1, 1, 1]} : vector<1x288x192xf32> to vector<1x256x64xf32>
    %151 = arith.addf %149, %150 : vector<1x256x64xf32>
    %152 = vector.extract_strided_slice %148 {offsets = [0, 32, 128], sizes = [1, 256, 64], strides = [1, 1, 1]} : vector<1x288x192xf32> to vector<1x256x64xf32>
    %153 = arith.addf %151, %152 : vector<1x256x64xf32>
    %154 = vector.shape_cast %153 : vector<1x256x64xf32> to vector<256x64xf32>
    %c4 = arith.constant 4 : index
    %c0_104 = arith.constant 0 : index
    %c0_105 = arith.constant 0 : index
    %155 = vector.load %arg4[%c4, %c0_104, %c0_105] : memref<5x1x64xf32, #tpu.memory_space<vmem>>, vector<1x1x64xf32>
    %156 = vector.shape_cast %155 : vector<1x1x64xf32> to vector<1x64xf32>
    %157 = vector.broadcast %156 : vector<1x64xf32> to vector<256x64xf32>
    %158 = arith.mulf %154, %157 : vector<256x64xf32>
    %c4_106 = arith.constant 4 : index
    %c0_107 = arith.constant 0 : index
    %c0_108 = arith.constant 0 : index
    %159 = vector.load %arg5[%c4_106, %c0_107, %c0_108] : memref<5x1x64xf32, #tpu.memory_space<vmem>>, vector<1x1x64xf32>
    %160 = vector.shape_cast %159 : vector<1x1x64xf32> to vector<1x64xf32>
    %161 = vector.broadcast %160 : vector<1x64xf32> to vector<256x64xf32>
    %162 = arith.addf %158, %161 : vector<256x64xf32>
    %163 = arith.addf %162, %133 : vector<256x64xf32>
    %cst_109 = arith.constant 0.000000e+00 : f32
    %164 = vector.broadcast %cst_109 : f32 to vector<256x64xf32>
    %165 = arith.maximumf %163, %164 : vector<256x64xf32>
    %166 = vector.shape_cast %165 : vector<256x64xf32> to vector<1x256x64xf32>
    %cst_110 = arith.constant dense<0.000000e+00> : vector<1x64xf32>
    %167 = vector.multi_reduction <add>, %166, %cst_110 [1] : vector<1x256x64xf32> to vector<1x64xf32>
    %cst_111 = arith.constant 2.560000e+02 : f32
    %168 = vector.broadcast %cst_111 : f32 to vector<1x64xf32>
    %169 = arith.divf %167, %168 : vector<1x64xf32>
    %c0_112 = arith.constant 0 : index
    %c0_113 = arith.constant 0 : index
    %170 = vector.load %arg6[%c0_112, %c0_113] : memref<64x128xf32, #tpu.memory_space<vmem>>, vector<64x128xf32>
    %cst_114 = arith.constant dense<0.000000e+00> : vector<1x128xf32>
    %171 = tpu.matmul %169, %170, %cst_114 {dimension_numbers = #tpu.dot_dimension_numbers<[1], [0], [0], [1], [0, 0, 1, 1], [], []>} : vector<1x64xf32>, vector<64x128xf32>, vector<1x128xf32> -> vector<1x128xf32>
    %c0_115 = arith.constant 0 : index
    %c0_116 = arith.constant 0 : index
    %172 = vector.load %arg7[%c0_115, %c0_116] : memref<1x128xf32, #tpu.memory_space<vmem>>, vector<1x128xf32>
    %173 = arith.addf %171, %172 : vector<1x128xf32>
    %174 = tpu.iota {dimensions = array<i32: 1>} : vector<1x128xi32>
    %c8_i32 = arith.constant 8 : i32
    %175 = vector.broadcast %c8_i32 : i32 to vector<1x128xi32>
    %176 = arith.cmpi slt, %174, %175 : vector<1x128xi32>
    %cst_117 = arith.constant 0.000000e+00 : f32
    %177 = vector.broadcast %cst_117 : f32 to vector<1x128xf32>
    %178 = arith.maximumf %173, %177 : vector<1x128xf32>
    %179 = arith.select %176, %178, %173 : vector<1x128xi1>, vector<1x128xf32>
    %180 = vector.shape_cast %179 : vector<1x128xf32> to vector<1x1x128xf32>
    %c0_118 = arith.constant 0 : index
    %c0_119 = arith.constant 0 : index
    %c0_120 = arith.constant 0 : index
    %181 = vector.load %arg8[%c0_118, %c0_119, %c0_120] : memref<1x1x128xf32, #tpu.memory_space<vmem>>, vector<1x1x128xf32>
    tpu.vector_store %arg8[%c0_118, %c0_119, %c0_120], %180 {strides = array<i32>} : memref<1x1x128xf32, #tpu.memory_space<vmem>>, vector<1x1x128xf32>,
    return
  }
  func.func @transform_0(%arg0: i32) -> (i32, i32, i32) {
    %c0_i32 = arith.constant 0 : i32
    %c0_i32_0 = arith.constant 0 : i32
    %c0_i32_1 = arith.constant 0 : i32
    return %arg0, %c0_i32, %c0_i32_0 : i32, i32, i32
  }
  func.func @transform_1(%arg0: i32) -> (i32, i32) {
    %c0_i32 = arith.constant 0 : i32
    %c0_i32_0 = arith.constant 0 : i32
    %c0_i32_1 = arith.constant 0 : i32
    return %c0_i32, %c0_i32_0 : i32, i32
  }
  func.func @transform_2(%arg0: i32) -> (i32, i32, i32) {
    %c0_i32 = arith.constant 0 : i32
    %c0_i32_0 = arith.constant 0 : i32
    %c0_i32_1 = arith.constant 0 : i32
    %c0_i32_2 = arith.constant 0 : i32
    return %c0_i32, %c0_i32_0, %c0_i32_1 : i32, i32, i32
  }
  func.func @transform_3(%arg0: i32) -> (i32, i32, i32) {
    %c0_i32 = arith.constant 0 : i32
    %c0_i32_0 = arith.constant 0 : i32
    %c0_i32_1 = arith.constant 0 : i32
    %c0_i32_2 = arith.constant 0 : i32
    return %c0_i32, %c0_i32_0, %c0_i32_1 : i32, i32, i32
  }
  func.func @transform_4(%arg0: i32) -> (i32, i32, i32) {
    %c0_i32 = arith.constant 0 : i32
    %c0_i32_0 = arith.constant 0 : i32
    %c0_i32_1 = arith.constant 0 : i32
    %c0_i32_2 = arith.constant 0 : i32
    return %c0_i32, %c0_i32_0, %c0_i32_1 : i32, i32, i32
  }
  func.func @transform_5(%arg0: i32) -> (i32, i32) {
    %c0_i32 = arith.constant 0 : i32
    %c0_i32_0 = arith.constant 0 : i32
    %c0_i32_1 = arith.constant 0 : i32
    return %c0_i32, %c0_i32_0 : i32, i32
  }
  func.func @transform_6(%arg0: i32) -> (i32, i32) {
    %c0_i32 = arith.constant 0 : i32
    %c0_i32_0 = arith.constant 0 : i32
    %c0_i32_1 = arith.constant 0 : i32
    return %c0_i32, %c0_i32_0 : i32, i32
  }
  func.func @transform_7(%arg0: i32) -> (i32, i32, i32) {
    %c0_i32 = arith.constant 0 : i32
    %c0_i32_0 = arith.constant 0 : i32
    %c0_i32_1 = arith.constant 0 : i32
    return %arg0, %c0_i32, %c0_i32_0 : i32, i32, i32
  }
}

</mosaic_0001>

<llo_original>
// kernel: classification_network_forward.1
$region0: #{classification_network_forward.1}
  #allocation0 [shape = 'u32[]', space=smem, size = 0x4, offset = 0x4, fixed_abs, tag = 'smem constant byte address 0x4 - core index']
  #allocation1 [shape = 'u32[72,128]{1,0:T(1,128)}', space=vmem, size = 0x9000, scoped, tag = 'internal scratch']
  #allocation2 [shape = 'f32[1,18,16,192]{3,2,1,0:T(8,128)}', space=vmem, size = 0x48000, scoped, tag = 'scratch operand']
  %s0 = inlined_call_operand.vmem [shape: f32[2,256,36], index: 0, kind: input, shape index: {}]
  %s1 = inlined_call_operand.vmem [shape: f32[36,64], index: 1, kind: input, shape index: {}]
  %s2 = inlined_call_operand.vmem [shape: f32[4,192,192], index: 2, kind: input, shape index: {}]
  %s3 = inlined_call_operand.vmem [shape: f32[5,1,64], index: 3, kind: input, shape index: {}]
  %s4 = inlined_call_operand.vmem [shape: f32[5,1,64], index: 4, kind: input, shape index: {}]
  %s5 = inlined_call_operand.vmem [shape: f32[64,128], index: 5, kind: input, shape index: {}]
  %s6 = inlined_call_operand.vmem [shape: f32[1,128], index: 6, kind: input, shape index: {}]
  %s7 = inlined_call_operand.vmem [shape: f32[2,1,128], index: 7, kind: output, shape index: {}]
  %s8 = sld [smem:[#allocation0]]
  $region61: #{classification_network_forward.1} parent=0
    _
  %s10 = ssub.s32 1, %s8
  %s11 = scalar_select 0, %s10, %s8
  loop: start=0, step=1, limit=4
  $region2: #{classification_network_forward.1} parent=0 // loop_pre_header
    _
  $region3: #{classification_network_forward.1} parent=0 // loop_header
    %s13 = sphi 0, %s17
    %p14 = scmp.ge.s32.totalorder %s13, 4
    %s23 = sphi 0, %s25
    %s26 = sphi 0, %s23
    %s27 = sphi 0, %s26
    %s43 = sphi 0, %s27
    %s47 = sphi 0, %s47
    %s49 = sphi 0, %s47
    %s50 = sphi 0, %s49
    %s64 = sphi 0, %s50
    %s68 = sphi 0, %s68
    %s70 = sphi 0, %s68
    %s71 = sphi 0, %s70
    %s85 = sphi 0, %s71
    %s89 = sphi 0, %s89
    %s91 = sphi 0, %s89
    %s92 = sphi 0, %s91
    %s106 = sphi 0, %s92
    %s110 = sphi 0, %s110
    %s112 = sphi 0, %s110
    %s113 = sphi 0, %s112
    %s127 = sphi 0, %s113
    %s131 = sphi 0, %s131
    %s133 = sphi 0, %s131
    %s134 = sphi 0, %s133
    %s148 = sphi 0, %s134
    %s152 = sphi 0, %s152
    %s154 = sphi 0, %s152
    %s155 = sphi 0, %s154
    %s169 = sphi 0, %s155
    %s175 = sphi 0, %s177
    %s178 = sphi 0, %s175
    %s179 = sphi 0, %s178
    %s195 = sphi 0, %s179
  $region4: #{classification_network_forward.1} parent=0 // loop_header_branch
    %16 = sbr.rel (%p14) target = $region8
  $region5: #{classification_network_forward.1} parent=0 // loop_body
    %s18 = ssub.s32 %s13, 1
    %s19 = ssub.s32 %s13, 2
    %s20 = sadd.s32 %s13, 1
    %s21 = ssub.s32 %s13, %s20
    %p22 = scmp.eq.s32.totalorder %s21, 0
    %s24 = sadd.s32 %s23, 1
    %s25 = scalar_select %p22, %s23, %s24
    %p28 = pneg %p22
    %p29 = scmp.eq.s32.totalorder %s13, 1
    %p30 = por %p28, %p29
    %p31 = scmp.ne.s32.totalorder %s23, %s26
    %p32 = scmp.eq.s32.totalorder %s13, 0
    %p33 = por %p31, %p32
    %p34 = scmp.ne.s32.totalorder %s23, %s26
    %p35 = scmp.eq.s32.totalorder %s18, 1
    %p36 = por %p34, %p35
    %p37 = scmp.ne.s32.totalorder %s26, %s27
    %p38 = scmp.eq.s32.totalorder %s18, 0
    %p39 = por %p37, %p38
    %p40 = scmp.ne.s32.totalorder %s26, %s27
    %p41 = scmp.eq.s32.totalorder %s19, 1
    %p42 = por %p40, %p41
    %p44 = scmp.ne.s32.totalorder %s27, %s43
    %p45 = scmp.eq.s32.totalorder %s19, 0
    %p46 = por %p44, %p45
    %s48 = sadd.s32 %s47, 1
    %p51 = scmp.eq.s32.totalorder %s13, 1
    %p52 = scmp.ne.s32.totalorder %s47, %s49
    %p53 = scmp.eq.s32.totalorder %s13, 0
    %p54 = por %p52, %p53
    %p55 = scmp.ne.s32.totalorder %s47, %s49
    %p56 = scmp.eq.s32.totalorder %s18, 1
    %p57 = por %p55, %p56
    %p58 = scmp.ne.s32.totalorder %s49, %s50
    %p59 = scmp.eq.s32.totalorder %s18, 0
    %p60 = por %p58, %p59
    %p61 = scmp.ne.s32.totalorder %s49, %s50
    %p62 = scmp.eq.s32.totalorder %s19, 1
    %p63 = por %p61, %p62
    %p65 = scmp.ne.s32.totalorder %s50, %s64
    %p66 = scmp.eq.s32.totalorder %s19, 0
    %p67 = por %p65, %p66
    %s69 = sadd.s32 %s68, 1
    %p72 = scmp.eq.s32.totalorder %s13, 1
    %p73 = scmp.ne.s32.totalorder %s68, %s70
    %p74 = scmp.eq.s32.totalorder %s13, 0
    %p75 = por %p73, %p74
    %p76 = scmp.ne.s32.totalorder %s68, %s70
    %p77 = scmp.eq.s32.totalorder %s18, 1
    %p78 = por %p76, %p77
    %p79 = scmp.ne.s32.totalorder %s70, %s71
    %p80 = scmp.eq.s32.totalorder %s18, 0
    %p81 = por %p79, %p80
    %p82 = scmp.ne.s32.totalorder %s70, %s71
    %p83 = scmp.eq.s32.totalorder %s19, 1
    %p84 = por %p82, %p83
    %p86 = scmp.ne.s32.totalorder %s71, %s85
    %p87 = scmp.eq.s32.totalorder %s19, 0
    %p88 = por %p86, %p87
    %s90 = sadd.s32 %s89, 1
    %p93 = scmp.eq.s32.totalorder %s13, 1
    %p94 = scmp.ne.s32.totalorder %s89, %s91
    %p95 = scmp.eq.s32.totalorder %s13, 0
    %p96 = por %p94, %p95
    %p97 = scmp.ne.s32.totalorder %s89, %s91
    %p98 = scmp.eq.s32.totalorder %s18, 1
    %p99 = por %p97, %p98
    %p100 = scmp.ne.s32.totalorder %s91, %s92
    %p101 = scmp.eq.s32.totalorder %s18, 0
    %p102 = por %p100, %p101
    %p103 = scmp.ne.s32.totalorder %s91, %s92
    %p104 = scmp.eq.s32.totalorder %s19, 1
    %p105 = por %p103, %p104
    %p107 = scmp.ne.s32.totalorder %s92, %s106
    %p108 = scmp.eq.s32.totalorder %s19, 0
    %p109 = por %p107, %p108
    %s111 = sadd.s32 %s110, 1
    %p114 = scmp.eq.s32.totalorder %s13, 1
    %p115 = scmp.ne.s32.totalorder %s110, %s112
    %p116 = scmp.eq.s32.totalorder %s13, 0
    %p117 = por %p115, %p116
    %p118 = scmp.ne.s32.totalorder %s110, %s112
    %p119 = scmp.eq.s32.totalorder %s18, 1
    %p120 = por %p118, %p119
    %p121 = scmp.ne.s32.totalorder %s112, %s113
    %p122 = scmp.eq.s32.totalorder %s18, 0
    %p123 = por %p121, %p122
    %p124 = scmp.ne.s32.totalorder %s112, %s113
    %p125 = scmp.eq.s32.totalorder %s19, 1
    %p126 = por %p124, %p125
    %p128 = scmp.ne.s32.totalorder %s113, %s127
    %p129 = scmp.eq.s32.totalorder %s19, 0
    %p130 = por %p128, %p129
    %s132 = sadd.s32 %s131, 1
    %p135 = scmp.eq.s32.totalorder %s13, 1
    %p136 = scmp.ne.s32.totalorder %s131, %s133
    %p137 = scmp.eq.s32.totalorder %s13, 0
    %p138 = por %p136, %p137
    %p139 = scmp.ne.s32.totalorder %s131, %s133
    %p140 = scmp.eq.s32.totalorder %s18, 1
    %p141 = por %p139, %p140
    %p142 = scmp.ne.s32.totalorder %s133, %s134
    %p143 = scmp.eq.s32.totalorder %s18, 0
    %p144 = por %p142, %p143
    %p145 = scmp.ne.s32.totalorder %s133, %s134
    %p146 = scmp.eq.s32.totalorder %s19, 1
    %p147 = por %p145, %p146
    %p149 = scmp.ne.s32.totalorder %s134, %s148
    %p150 = scmp.eq.s32.totalorder %s19, 0
    %p151 = por %p149, %p150
    %s153 = sadd.s32 %s152, 1
    %p156 = scmp.eq.s32.totalorder %s13, 1
    %p157 = scmp.ne.s32.totalorder %s152, %s154
    %p158 = scmp.eq.s32.totalorder %s13, 0
    %p159 = por %p157, %p158
    %p160 = scmp.ne.s32.totalorder %s152, %s154
    %p161 = scmp.eq.s32.totalorder %s18, 1
    %p162 = por %p160, %p161
    %p163 = scmp.ne.s32.totalorder %s154, %s155
    %p164 = scmp.eq.s32.totalorder %s18, 0
    %p165 = por %p163, %p164
    %p166 = scmp.ne.s32.totalorder %s154, %s155
    %p167 = scmp.eq.s32.totalorder %s19, 1
    %p168 = por %p166, %p167
    %p170 = scmp.ne.s32.totalorder %s155, %s169
    %p171 = scmp.eq.s32.totalorder %s19, 0
    %p172 = por %p170, %p171
    %s173 = ssub.s32 %s13, %s20
    %p174 = scmp.eq.s32.totalorder %s173, 0
    %s176 = sadd.s32 %s175, 1
    %s177 = scalar_select %p174, %s175, %s176
    %p180 = pneg %p174
    %p181 = scmp.eq.s32.totalorder %s13, 1
    %p182 = por %p180, %p181
    %p183 = scmp.ne.s32.totalorder %s175, %s178
    %p184 = scmp.eq.s32.totalorder %s13, 0
    %p185 = por %p183, %p184
    %p186 = scmp.ne.s32.totalorder %s175, %s178
    %p187 = scmp.eq.s32.totalorder %s18, 1
    %p188 = por %p186, %p187
    %p189 = scmp.ne.s32.totalorder %s178, %s179
    %p190 = scmp.eq.s32.totalorder %s18, 0
    %p191 = por %p189, %p190
    %p192 = scmp.ne.s32.totalorder %s178, %s179
    %p193 = scmp.eq.s32.totalorder %s19, 1
    %p194 = por %p192, %p193
    %p196 = scmp.ne.s32.totalorder %s179, %s195
    %p197 = scmp.eq.s32.totalorder %s19, 0
    %p198 = por %p196, %p197
    %p199 = scmp.le.s32.totalorder 1, %s13
    %p200 = scmp.lt.s32.totalorder %s13, 3
    %p201 = pnand %p199, %p200
    %p202 = pneg %p201
    // Predicated region
    $region9: #{classification_network_forward.1} parent=5 // pred_check
      _
    $region10: #{classification_network_forward.1} parent=5 // pred_check_branch
      %204 = sbr.rel (%p201) target = $region12
    $region11: #{classification_network_forward.1} parent=5 // pred_region
      %s205 = ssub.s32 %s13, 1
      // Predicated region
      $region13: #{classification_network_forward.1} parent=11 // pred_check
        %p206 = pneg %p60
      $region14: #{classification_network_forward.1} parent=11 // pred_check_branch
        %208 = sbr.rel (%p206) target = $region16
      $region15: #{classification_network_forward.1} parent=11 // pred_region
        _
      $region16: #{classification_network_forward.1} parent=11 // pred_fallthru
        _
      // Predicated region
      $region17: #{classification_network_forward.1} parent=11 // pred_check
        %p209 = pneg %p81
      $region18: #{classification_network_forward.1} parent=11 // pred_check_branch
        %211 = sbr.rel (%p209) target = $region20
      $region19: #{classification_network_forward.1} parent=11 // pred_region
        _
      $region20: #{classification_network_forward.1} parent=11 // pred_fallthru
        _
      // Predicated region
      $region21: #{classification_network_forward.1} parent=11 // pred_check
        %p212 = pneg %p102
      $region22: #{classification_network_forward.1} parent=11 // pred_check_branch
        %214 = sbr.rel (%p212) target = $region24
      $region23: #{classification_network_forward.1} parent=11 // pred_region
        _
      $region24: #{classification_network_forward.1} parent=11 // pred_fallthru
        _
      // Predicated region
      $region25: #{classification_network_forward.1} parent=11 // pred_check
        %p215 = pneg %p123
      $region26: #{classification_network_forward.1} parent=11 // pred_check_branch
        %217 = sbr.rel (%p215) target = $region28
      $region27: #{classification_network_forward.1} parent=11 // pred_region
        _
      $region28: #{classification_network_forward.1} parent=11 // pred_fallthru
        _
      // Predicated region
      $region29: #{classification_network_forward.1} parent=11 // pred_check
        %p218 = pneg %p144
      $region30: #{classification_network_forward.1} parent=11 // pred_check_branch
        %220 = sbr.rel (%p218) target = $region32
      $region31: #{classification_network_forward.1} parent=11 // pred_region
        _
      $region32: #{classification_network_forward.1} parent=11 // pred_fallthru
        _
      // Predicated region
      $region33: #{classification_network_forward.1} parent=11 // pred_check
        %p221 = pneg %p165
      $region34: #{classification_network_forward.1} parent=11 // pred_check_branch
        %223 = sbr.rel (%p221) target = $region36
      $region35: #{classification_network_forward.1} parent=11 // pred_region
        _
      $region36: #{classification_network_forward.1} parent=11 // pred_fallthru
        _
    $region12: #{classification_network_forward.1} parent=5 // pred_fallthru
      _
    %p224 = scmp.lt.s32.totalorder %s13, 2
    // Predicated region
    $region37: #{classification_network_forward.1} parent=5 // pred_check
      %p225 = pneg %p224
    $region38: #{classification_network_forward.1} parent=5 // pred_check_branch
      %227 = sbr.rel (%p225) target = $region40
    $region39: #{classification_network_forward.1} parent=5 // pred_region
      // Predicated region
      $region41: #{classification_network_forward.1} parent=39 // pred_check
        %p228 = pneg %p33
      $region42: #{classification_network_forward.1} parent=39 // pred_check_branch
        %230 = sbr.rel (%p228) target = $region44
      $region43: #{classification_network_forward.1} parent=39 // pred_region
        %p231 = scmp.lt.s32.totalorder %s13, 1
        %s232 = scalar_select %p231, %s13, 1
        %s233 = smul.addr %s232, 32
        %s234 = smul.addr %s233, 8
        %s235 = scalar_lea.vmem %s0, %s234
      $region44: #{classification_network_forward.1} parent=39 // pred_fallthru
        _
    $region40: #{classification_network_forward.1} parent=5 // pred_fallthru
      _
    %p236 = scmp.le.s32.totalorder 1, %s13
    %p237 = scmp.lt.s32.totalorder %s13, 3
    %p238 = pnand %p236, %p237
    %p239 = pneg %p238
    // Predicated region
    $region45: #{classification_network_forward.1} parent=5 // pred_check
      _
    $region46: #{classification_network_forward.1} parent=5 // pred_check_branch
      %241 = sbr.rel (%p238) target = $region48
    $region47: #{classification_network_forward.1} parent=5 // pred_region
      %s242 = ssub.s32 %s13, 1
      %p243 = scmp.lt.s32.totalorder %s18, 1
      %s244 = scalar_select %p243, %s18, 1
      %s245 = smul.addr %s244, 32
      %s246 = smul.addr %s245, 8
      %s247 = scalar_lea.vmem %s0, %s246
      %p248 = pneg %p39
      %p249 = pneg %p36
      %p250 = pneg %p60
      %p251 = pneg %p57
      %p252 = pneg %p81
      %p253 = pneg %p78
      %p254 = pneg %p102
      %p255 = pneg %p99
      %p256 = pneg %p123
      %p257 = pneg %p120
      %p258 = pneg %p144
      %p259 = pneg %p141
      %p260 = pneg %p165
      %p261 = pneg %p162
      %p262 = pneg %p191
      %p263 = pneg %p188
      %p264 = scmp.lt.s32.totalorder %s18, 1
      %s265 = scalar_select %p264, %s18, 1
      %s266 = scalar_lea.vmem %s7, %s265
      %p267 = scmp.lt.s32.totalorder %s18, 1
      %s268 = scalar_select %p267, %s18, 1
      %s269 = smul.addr %s268, 32
      %s270 = smul.addr %s269, 8
      %s271 = scalar_lea.vmem %s0, %s270
      %p272 = scmp.lt.s32.totalorder %s18, 1
      %s273 = scalar_select %p272, %s18, 1
      %s274 = scalar_lea.vmem %s7, %s273
      %275 = vst [vmem:[#allocation2] sm:$0xff] 0.0
      %vm276 = vcmask 523264
      %277 = vst.msk [vmem:[#allocation2 + $0x8] sm:$0xff] %vm276, 0.0
      %278 = vst [vmem:[#allocation2 + $0x10] sm:$0xff] 0.0
      %279 = vst.msk [vmem:[#allocation2 + $0x18] sm:$0xff] %vm276, 0.0
      %s280 = scalar_lea.vmem [#allocation2], 544
      %281 = vst [vmem:[%s280] sm:$0xff] 0.0
      %282 = vst.msk [vmem:[%s280 + $0x8] sm:$0xff] %vm276, 0.0
      %283 = vst [vmem:[%s280 + $0x10] sm:$0xff] 0.0
      %284 = vst.msk [vmem:[%s280 + $0x18] sm:$0xff] %vm276, 0.0
      %v285 = vlaneseq
      %v286 = vshrl.u32 %v285, 7
      %v287 = vadd.s32 %v286, 8
      %v288 = vadd.s32 %v286, 16
      %v289 = vadd.s32 %v286, 24
      %v290 = vadd.s32 %v286, 32
      %v291 = vadd.s32 %v286, 40
      %v292 = vadd.s32 %v286, 48
      %v293 = vadd.s32 %v286, 56
      %v294 = vadd.s32 %v286, 64
      %v295 = vadd.s32 %v286, 72
      %v296 = vadd.s32 %v286, 80
      %v297 = vadd.s32 %v286, 88
      %v298 = vadd.s32 %v286, 96
      %v299 = vadd.s32 %v286, 104
      %v300 = vadd.s32 %v286, 112
      %v301 = vadd.s32 %v286, 120
      %v302 = vadd.s32 %v286, 128
      %v303 = vadd.s32 %v286, 136
      %v304 = vadd.s32 %v286, 144
      %v305 = vadd.s32 %v286, 152
      %v306 = vadd.s32 %v286, 160
      %v307 = vadd.s32 %v286, 168
      %v308 = vadd.s32 %v286, 176
      %v309 = vadd.s32 %v286, 184
      %v310 = vadd.s32 %v286, 192
      %v311 = vadd.s32 %v286, 200
      %v312 = vadd.s32 %v286, 208
      %v313 = vadd.s32 %v286, 216
      %v314 = vadd.s32 %v286, 224
      %v315 = vadd.s32 %v286, 232
      %v316 = vadd.s32 %v286, 240
      %v317 = vadd.s32 %v286, 248
      %vm318 = vcmp.lt.s32.totalorder %v286, 0
      %v319 = vsub.s32 0, %v286
      %v320 = vsel %vm318, %v319, %v286
      %v321 = vshrl.u32 %v320, 4
      %v322 = vand.u32 %v320, 15
      %v323 = vsub.s32 0, %v322
      %v324 = vsel %vm318, %v323, %v322
      %vm325 = vcmp.lt.s32.totalorder %v287, 0
      %v326 = vsub.s32 0, %v287
      %v327 = vsel %vm325, %v326, %v287
      %v328 = vshrl.u32 %v327, 4
      %v329 = vand.u32 %v327, 15
      %v330 = vsub.s32 0, %v329
      %v331 = vsel %vm325, %v330, %v329
      %vm332 = vcmp.lt.s32.totalorder %v288, 0
      %v333 = vsub.s32 0, %v288
      %v334 = vsel %vm332, %v333, %v288
      %v335 = vshrl.u32 %v334, 4
      %v336 = vand.u32 %v334, 15
      %v337 = vsub.s32 0, %v336
      %v338 = vsel %vm332, %v337, %v336
      %vm339 = vcmp.lt.s32.totalorder %v289, 0
      %v340 = vsub.s32 0, %v289
      %v341 = vsel %vm339, %v340, %v289
      %v342 = vshrl.u32 %v341, 4
      %v343 = vand.u32 %v341, 15
      %v344 = vsub.s32 0, %v343
      %v345 = vsel %vm339, %v344, %v343
      %vm346 = vcmp.lt.s32.totalorder %v290, 0
      %v347 = vsub.s32 0, %v290
      %v348 = vsel %vm346, %v347, %v290
      %v349 = vshrl.u32 %v348, 4
      %v350 = vand.u32 %v348, 15
      %v351 = vsub.s32 0, %v350
      %v352 = vsel %vm346, %v351, %v350
      %vm353 = vcmp.lt.s32.totalorder %v291, 0
      %v354 = vsub.s32 0, %v291
      %v355 = vsel %vm353, %v354, %v291
      %v356 = vshrl.u32 %v355, 4
      %v357 = vand.u32 %v355, 15
      %v358 = vsub.s32 0, %v357
      %v359 = vsel %vm353, %v358, %v357
      %vm360 = vcmp.lt.s32.totalorder %v292, 0
      %v361 = vsub.s32 0, %v292
      %v362 = vsel %vm360, %v361, %v292
      %v363 = vshrl.u32 %v362, 4
      %v364 = vand.u32 %v362, 15
      %v365 = vsub.s32 0, %v364
      %v366 = vsel %vm360, %v365, %v364
      %vm367 = vcmp.lt.s32.totalorder %v293, 0
      %v368 = vsub.s32 0, %v293
      %v369 = vsel %vm367, %v368, %v293
      %v370 = vshrl.u32 %v369, 4
      %v371 = vand.u32 %v369, 15
      %v372 = vsub.s32 0, %v371
      %v373 = vsel %vm367, %v372, %v371
      %vm374 = vcmp.lt.s32.totalorder %v294, 0
      %v375 = vsub.s32 0, %v294
      %v376 = vsel %vm374, %v375, %v294
      %v377 = vshrl.u32 %v376, 4
      %v378 = vand.u32 %v376, 15
      %v379 = vsub.s32 0, %v378
      %v380 = vsel %vm374, %v379, %v378
      %vm381 = vcmp.lt.s32.totalorder %v295, 0
      %v382 = vsub.s32 0, %v295
      %v383 = vsel %vm381, %v382, %v295
      %v384 = vshrl.u32 %v383, 4
      %v385 = vand.u32 %v383, 15
      %v386 = vsub.s32 0, %v385
      %v387 = vsel %vm381, %v386, %v385
      %vm388 = vcmp.lt.s32.totalorder %v296, 0
      %v389 = vsub.s32 0, %v296
      %v390 = vsel %vm388, %v389, %v296
      %v391 = vshrl.u32 %v390, 4
      %v392 = vand.u32 %v390, 15
      %v393 = vsub.s32 0, %v392
      %v394 = vsel %vm388, %v393, %v392
      %vm395 = vcmp.lt.s32.totalorder %v297, 0
      %v396 = vsub.s32 0, %v297
      %v397 = vsel %vm395, %v396, %v297
      %v398 = vshrl.u32 %v397, 4
      %v399 = vand.u32 %v397, 15
      %v400 = vsub.s32 0, %v399
      %v401 = vsel %vm395, %v400, %v399
      %vm402 = vcmp.lt.s32.totalorder %v298, 0
      %v403 = vsub.s32 0, %v298
      %v404 = vsel %vm402, %v403, %v298
      %v405 = vshrl.u32 %v404, 4
      %v406 = vand.u32 %v404, 15
      %v407 = vsub.s32 0, %v406
      %v408 = vsel %vm402, %v407, %v406
      %vm409 = vcmp.lt.s32.totalorder %v299, 0
      %v410 = vsub.s32 0, %v299
      %v411 = vsel %vm409, %v410, %v299
      %v412 = vshrl.u32 %v411, 4
      %v413 = vand.u32 %v411, 15
      %v414 = vsub.s32 0, %v413
      %v415 = vsel %vm409, %v414, %v413
      %vm416 = vcmp.lt.s32.totalorder %v300, 0
      %v417 = vsub.s32 0, %v300
      %v418 = vsel %vm416, %v417, %v300
      %v419 = vshrl.u32 %v418, 4
      %v420 = vand.u32 %v418, 15
      %v421 = vsub.s32 0, %v420
      %v422 = vsel %vm416, %v421, %v420
      %vm423 = vcmp.lt.s32.totalorder %v301, 0
      %v424 = vsub.s32 0, %v301
      %v425 = vsel %vm423, %v424, %v301
      %v426 = vshrl.u32 %v425, 4
      %v427 = vand.u32 %v425, 15
      %v428 = vsub.s32 0, %v427
      %v429 = vsel %vm423, %v428, %v427
      %vm430 = vcmp.lt.s32.totalorder %v302, 0
      %v431 = vsub.s32 0, %v302
      %v432 = vsel %vm430, %v431, %v302
      %v433 = vshrl.u32 %v432, 4
      %v434 = vand.u32 %v432, 15
      %v435 = vsub.s32 0, %v434
      %v436 = vsel %vm430, %v435, %v434
      %vm437 = vcmp.lt.s32.totalorder %v303, 0
      %v438 = vsub.s32 0, %v303
      %v439 = vsel %vm437, %v438, %v303
      %v440 = vshrl.u32 %v439, 4
      %v441 = vand.u32 %v439, 15
      %v442 = vsub.s32 0, %v441
      %v443 = vsel %vm437, %v442, %v441
      %vm444 = vcmp.lt.s32.totalorder %v304, 0
      %v445 = vsub.s32 0, %v304
      %v446 = vsel %vm444, %v445, %v304
      %v447 = vshrl.u32 %v446, 4
      %v448 = vand.u32 %v446, 15
      %v449 = vsub.s32 0, %v448
      %v450 = vsel %vm444, %v449, %v448
      %vm451 = vcmp.lt.s32.totalorder %v305, 0
      %v452 = vsub.s32 0, %v305
      %v453 = vsel %vm451, %v452, %v305
      %v454 = vshrl.u32 %v453, 4
      %v455 = vand.u32 %v453, 15
      %v456 = vsub.s32 0, %v455
      %v457 = vsel %vm451, %v456, %v455
      %vm458 = vcmp.lt.s32.totalorder %v306, 0
      %v459 = vsub.s32 0, %v306
      %v460 = vsel %vm458, %v459, %v306
      %v461 = vshrl.u32 %v460, 4
      %v462 = vand.u32 %v460, 15
      %v463 = vsub.s32 0, %v462
      %v464 = vsel %vm458, %v463, %v462
      %vm465 = vcmp.lt.s32.totalorder %v307, 0
      %v466 = vsub.s32 0, %v307
      %v467 = vsel %vm465, %v466, %v307
      %v468 = vshrl.u32 %v467, 4
      %v469 = vand.u32 %v467, 15
      %v470 = vsub.s32 0, %v469
      %v471 = vsel %vm465, %v470, %v469
      %vm472 = vcmp.lt.s32.totalorder %v308, 0
      %v473 = vsub.s32 0, %v308
      %v474 = vsel %vm472, %v473, %v308
      %v475 = vshrl.u32 %v474, 4
      %v476 = vand.u32 %v474, 15
      %v477 = vsub.s32 0, %v476
      %v478 = vsel %vm472, %v477, %v476
      %vm479 = vcmp.lt.s32.totalorder %v309, 0
      %v480 = vsub.s32 0, %v309
      %v481 = vsel %vm479, %v480, %v309
      %v482 = vshrl.u32 %v481, 4
      %v483 = vand.u32 %v481, 15
      %v484 = vsub.s32 0, %v483
      %v485 = vsel %vm479, %v484, %v483
      %vm486 = vcmp.lt.s32.totalorder %v310, 0
      %v487 = vsub.s32 0, %v310
      %v488 = vsel %vm486, %v487, %v310
      %v489 = vshrl.u32 %v488, 4
      %v490 = vand.u32 %v488, 15
      %v491 = vsub.s32 0, %v490
      %v492 = vsel %vm486, %v491, %v490
      %vm493 = vcmp.lt.s32.totalorder %v311, 0
      %v494 = vsub.s32 0, %v311
      %v495 = vsel %vm493, %v494, %v311
      %v496 = vshrl.u32 %v495, 4
      %v497 = vand.u32 %v495, 15
      %v498 = vsub.s32 0, %v497
      %v499 = vsel %vm493, %v498, %v497
      %vm500 = vcmp.lt.s32.totalorder %v312, 0
      %v501 = vsub.s32 0, %v312
      %v502 = vsel %vm500, %v501, %v312
      %v503 = vshrl.u32 %v502, 4
      %v504 = vand.u32 %v502, 15
      %v505 = vsub.s32 0, %v504
      %v506 = vsel %vm500, %v505, %v504
      %vm507 = vcmp.lt.s32.totalorder %v313, 0
      %v508 = vsub.s32 0, %v313
      %v509 = vsel %vm507, %v508, %v313
      %v510 = vshrl.u32 %v509, 4
      %v511 = vand.u32 %v509, 15
      %v512 = vsub.s32 0, %v511
      %v513 = vsel %vm507, %v512, %v511
      %vm514 = vcmp.lt.s32.totalorder %v314, 0
      %v515 = vsub.s32 0, %v314
      %v516 = vsel %vm514, %v515, %v314
      %v517 = vshrl.u32 %v516, 4
      %v518 = vand.u32 %v516, 15
      %v519 = vsub.s32 0, %v518
      %v520 = vsel %vm514, %v519, %v518
      %vm521 = vcmp.lt.s32.totalorder %v315, 0
      %v522 = vsub.s32 0, %v315
      %v523 = vsel %vm521, %v522, %v315
      %v524 = vshrl.u32 %v523, 4
      %v525 = vand.u32 %v523, 15
      %v526 = vsub.s32 0, %v525
      %v527 = vsel %vm521, %v526, %v525
      %vm528 = vcmp.lt.s32.totalorder %v316, 0
      %v529 = vsub.s32 0, %v316
      %v530 = vsel %vm528, %v529, %v316
      %v531 = vshrl.u32 %v530, 4
      %v532 = vand.u32 %v530, 15
      %v533 = vsub.s32 0, %v532
      %v534 = vsel %vm528, %v533, %v532
      %vm535 = vcmp.lt.s32.totalorder %v317, 0
      %v536 = vsub.s32 0, %v317
      %v537 = vsel %vm535, %v536, %v317
      %v538 = vshrl.u32 %v537, 4
      %v539 = vand.u32 %v537, 15
      %v540 = vsub.s32 0, %v539
      %v541 = vsel %vm535, %v540, %v539
      %vm542 = vcmp.ne.s32.totalorder %v324, 0
      %vm543 = vcmp.ne.s32.totalorder %v331, 0
      %vm544 = vcmp.ne.s32.totalorder %v338, 0
      %vm545 = vcmp.ne.s32.totalorder %v345, 0
      %vm546 = vcmp.ne.s32.totalorder %v352, 0
      %vm547 = vcmp.ne.s32.totalorder %v359, 0
      %vm548 = vcmp.ne.s32.totalorder %v366, 0
      %vm549 = vcmp.ne.s32.totalorder %v373, 0
      %vm550 = vcmp.ne.s32.totalorder %v380, 0
      %vm551 = vcmp.ne.s32.totalorder %v387, 0
      %vm552 = vcmp.ne.s32.totalorder %v394, 0
      %vm553 = vcmp.ne.s32.totalorder %v401, 0
      %vm554 = vcmp.ne.s32.totalorder %v408, 0
      %vm555 = vcmp.ne.s32.totalorder %v415, 0
      %vm556 = vcmp.ne.s32.totalorder %v422, 0
      %vm557 = vcmp.ne.s32.totalorder %v429, 0
      %vm558 = vcmp.ne.s32.totalorder %v436, 0
      %vm559 = vcmp.ne.s32.totalorder %v443, 0
      %vm560 = vcmp.ne.s32.totalorder %v450, 0
      %vm561 = vcmp.ne.s32.totalorder %v457, 0
      %vm562 = vcmp.ne.s32.totalorder %v464, 0
      %vm563 = vcmp.ne.s32.totalorder %v471, 0
      %vm564 = vcmp.ne.s32.totalorder %v478, 0
      %vm565 = vcmp.ne.s32.totalorder %v485, 0
      %vm566 = vcmp.ne.s32.totalorder %v492, 0
      %vm567 = vcmp.ne.s32.totalorder %v499, 0
      %vm568 = vcmp.ne.s32.totalorder %v506, 0
      %vm569 = vcmp.ne.s32.totalorder %v513, 0
      %vm570 = vcmp.ne.s32.totalorder %v520, 0
      %vm571 = vcmp.ne.s32.totalorder %v527, 0
      %vm572 = vcmp.ne.s32.totalorder %v534, 0
      %vm573 = vcmp.ne.s32.totalorder %v541, 0
      %vm574 = vcmp.lt.s32.totalorder %v324, 0
      %vm575 = vcmp.lt.s32.totalorder %v331, 0
      %vm576 = vcmp.lt.s32.totalorder %v338, 0
      %vm577 = vcmp.lt.s32.totalorder %v345, 0
      %vm578 = vcmp.lt.s32.totalorder %v352, 0
      %vm579 = vcmp.lt.s32.totalorder %v359, 0
      %vm580 = vcmp.lt.s32.totalorder %v366, 0
      %vm581 = vcmp.lt.s32.totalorder %v373, 0
      %vm582 = vcmp.lt.s32.totalorder %v380, 0
      %vm583 = vcmp.lt.s32.totalorder %v387, 0
      %vm584 = vcmp.lt.s32.totalorder %v394, 0
      %vm585 = vcmp.lt.s32.totalorder %v401, 0
      %vm586 = vcmp.lt.s32.totalorder %v408, 0
      %vm587 = vcmp.lt.s32.totalorder %v415, 0
      %vm588 = vcmp.lt.s32.totalorder %v422, 0
      %vm589 = vcmp.lt.s32.totalorder %v429, 0
      %vm590 = vcmp.lt.s32.totalorder %v436, 0
      %vm591 = vcmp.lt.s32.totalorder %v443, 0
      %vm592 = vcmp.lt.s32.totalorder %v450, 0
      %vm593 = vcmp.lt.s32.totalorder %v457, 0
      %vm594 = vcmp.lt.s32.totalorder %v464, 0
      %vm595 = vcmp.lt.s32.totalorder %v471, 0
      %vm596 = vcmp.lt.s32.totalorder %v478, 0
      %vm597 = vcmp.lt.s32.totalorder %v485, 0
      %vm598 = vcmp.lt.s32.totalorder %v492, 0
      %vm599 = vcmp.lt.s32.totalorder %v499, 0
      %vm600 = vcmp.lt.s32.totalorder %v506, 0
      %vm601 = vcmp.lt.s32.totalorder %v513, 0
      %vm602 = vcmp.lt.s32.totalorder %v520, 0
      %vm603 = vcmp.lt.s32.totalorder %v527, 0
      %vm604 = vcmp.lt.s32.totalorder %v534, 0
      %vm605 = vcmp.lt.s32.totalorder %v541, 0
      %vm606 = vmand %vm574, %vm542
      %vm607 = vmand %vm575, %vm543
      %vm608 = vmand %vm576, %vm544
      %vm609 = vmand %vm577, %vm545
      %vm610 = vmand %vm578, %vm546
      %vm611 = vmand %vm579, %vm547
      %vm612 = vmand %vm580, %vm548
      %vm613 = vmand %vm581, %vm549
      %vm614 = vmand %vm582, %vm550
      %vm615 = vmand %vm583, %vm551
      %vm616 = vmand %vm584, %vm552
      %vm617 = vmand %vm585, %vm553
      %vm618 = vmand %vm586, %vm554
      %vm619 = vmand %vm587, %vm555
      %vm620 = vmand %vm588, %vm556
      %vm621 = vmand %vm589, %vm557
      %vm622 = vmand %vm590, %vm558
      %vm623 = vmand %vm591, %vm559
      %vm624 = vmand %vm592, %vm560
      %vm625 = vmand %vm593, %vm561
      %vm626 = vmand %vm594, %vm562
      %vm627 = vmand %vm595, %vm563
      %vm628 = vmand %vm596, %vm564
      %vm629 = vmand %vm597, %vm565
      %vm630 = vmand %vm598, %vm566
      %vm631 = vmand %vm599, %vm567
      %vm632 = vmand %vm600, %vm568
      %vm633 = vmand %vm601, %vm569
      %vm634 = vmand %vm602, %vm570
      %vm635 = vmand %vm603, %vm571
      %vm636 = vmand %vm604, %vm572
      %vm637 = vmand %vm605, %vm573
      %v638 = vadd.s32 %v324, 16
      %v639 = vadd.s32 %v331, 16
      %v640 = vadd.s32 %v338, 16
      %v641 = vadd.s32 %v345, 16
      %v642 = vadd.s32 %v352, 16
      %v643 = vadd.s32 %v359, 16
      %v644 = vadd.s32 %v366, 16
      %v645 = vadd.s32 %v373, 16
      %v646 = vadd.s32 %v380, 16
      %v647 = vadd.s32 %v387, 16
      %v648 = vadd.s32 %v394, 16
      %v649 = vadd.s32 %v401, 16
      %v650 = vadd.s32 %v408, 16
      %v651 = vadd.s32 %v415, 16
      %v652 = vadd.s32 %v422, 16
      %v653 = vadd.s32 %v429, 16
      %v654 = vadd.s32 %v436, 16
      %v655 = vadd.s32 %v443, 16
      %v656 = vadd.s32 %v450, 16
      %v657 = vadd.s32 %v457, 16
      %v658 = vadd.s32 %v464, 16
      %v659 = vadd.s32 %v471, 16
      %v660 = vadd.s32 %v478, 16
      %v661 = vadd.s32 %v485, 16
      %v662 = vadd.s32 %v492, 16
      %v663 = vadd.s32 %v499, 16
      %v664 = vadd.s32 %v506, 16
      %v665 = vadd.s32 %v513, 16
      %v666 = vadd.s32 %v520, 16
      %v667 = vadd.s32 %v527, 16
      %v668 = vadd.s32 %v534, 16
      %v669 = vadd.s32 %v541, 16
      %v670 = vsel %vm606, %v638, %v324
      %v671 = vsel %vm607, %v639, %v331
      %v672 = vsel %vm608, %v640, %v338
      %v673 = vsel %vm609, %v641, %v345
      %v674 = vsel %vm610, %v642, %v352
      %v675 = vsel %vm611, %v643, %v359
      %v676 = vsel %vm612, %v644, %v366
      %v677 = vsel %vm613, %v645, %v373
      %v678 = vsel %vm614, %v646, %v380
      %v679 = vsel %vm615, %v647, %v387
      %v680 = vsel %vm616, %v648, %v394
      %v681 = vsel %vm617, %v649, %v401
      %v682 = vsel %vm618, %v650, %v408
      %v683 = vsel %vm619, %v651, %v415
      %v684 = vsel %vm620, %v652, %v422
      %v685 = vsel %vm621, %v653, %v429
      %v686 = vsel %vm622, %v654, %v436
      %v687 = vsel %vm623, %v655, %v443
      %v688 = vsel %vm624, %v656, %v450
      %v689 = vsel %vm625, %v657, %v457
      %v690 = vsel %vm626, %v658, %v464
      %v691 = vsel %vm627, %v659, %v471
      %v692 = vsel %vm628, %v660, %v478
      %v693 = vsel %vm629, %v661, %v485
      %v694 = vsel %vm630, %v662, %v492
      %v695 = vsel %vm631, %v663, %v499
      %v696 = vsel %vm632, %v664, %v506
      %v697 = vsel %vm633, %v665, %v513
      %v698 = vsel %vm634, %v666, %v520
      %v699 = vsel %vm635, %v667, %v527
      %v700 = vsel %vm636, %v668, %v534
      %v701 = vsel %vm637, %v669, %v541
      %vm702 = vcmp.gt.s32.totalorder %v670, 0
      %vm703 = vcmp.gt.s32.totalorder %v671, 0
      %vm704 = vcmp.gt.s32.totalorder %v672, 0
      %vm705 = vcmp.gt.s32.totalorder %v673, 0
      %vm706 = vcmp.gt.s32.totalorder %v674, 0
      %vm707 = vcmp.gt.s32.totalorder %v675, 0
      %vm708 = vcmp.gt.s32.totalorder %v676, 0
      %vm709 = vcmp.gt.s32.totalorder %v677, 0
      %vm710 = vcmp.gt.s32.totalorder %v678, 0
      %vm711 = vcmp.gt.s32.totalorder %v679, 0
      %vm712 = vcmp.gt.s32.totalorder %v680, 0
      %vm713 = vcmp.gt.s32.totalorder %v681, 0
      %vm714 = vcmp.gt.s32.totalorder %v682, 0
      %vm715 = vcmp.gt.s32.totalorder %v683, 0
      %vm716 = vcmp.gt.s32.totalorder %v684, 0
      %vm717 = vcmp.gt.s32.totalorder %v685, 0
      %vm718 = vcmp.gt.s32.totalorder %v686, 0
      %vm719 = vcmp.gt.s32.totalorder %v687, 0
      %vm720 = vcmp.gt.s32.totalorder %v688, 0
      %vm721 = vcmp.gt.s32.totalorder %v689, 0
      %vm722 = vcmp.gt.s32.totalorder %v690, 0
      %vm723 = vcmp.gt.s32.totalorder %v691, 0
      %vm724 = vcmp.gt.s32.totalorder %v692, 0
      %vm725 = vcmp.gt.s32.totalorder %v693, 0
      %vm726 = vcmp.gt.s32.totalorder %v694, 0
      %vm727 = vcmp.gt.s32.totalorder %v695, 0
      %vm728 = vcmp.gt.s32.totalorder %v696, 0
      %vm729 = vcmp.gt.s32.totalorder %v697, 0
      %vm730 = vcmp.gt.s32.totalorder %v698, 0
      %vm731 = vcmp.gt.s32.totalorder %v699, 0
      %vm732 = vcmp.gt.s32.totalorder %v700, 0
      %vm733 = vcmp.gt.s32.totalorder %v701, 0
      %vm734 = vcmp.lt.s32.totalorder %v670, 15
      %vm735 = vcmp.lt.s32.totalorder %v671, 15
      %vm736 = vcmp.lt.s32.totalorder %v672, 15
      %vm737 = vcmp.lt.s32.totalorder %v673, 15
      %vm738 = vcmp.lt.s32.totalorder %v674, 15
      %vm739 = vcmp.lt.s32.totalorder %v675, 15
      %vm740 = vcmp.lt.s32.totalorder %v676, 15
      %vm741 = vcmp.lt.s32.totalorder %v677, 15
      %vm742 = vcmp.lt.s32.totalorder %v678, 15
      %vm743 = vcmp.lt.s32.totalorder %v679, 15
      %vm744 = vcmp.lt.s32.totalorder %v680, 15
      %vm745 = vcmp.lt.s32.totalorder %v681, 15
      %vm746 = vcmp.lt.s32.totalorder %v682, 15
      %vm747 = vcmp.lt.s32.totalorder %v683, 15
      %vm748 = vcmp.lt.s32.totalorder %v684, 15
      %vm749 = vcmp.lt.s32.totalorder %v685, 15
      %vm750 = vcmp.lt.s32.totalorder %v686, 15
      %vm751 = vcmp.lt.s32.totalorder %v687, 15
      %vm752 = vcmp.lt.s32.totalorder %v688, 15
      %vm753 = vcmp.lt.s32.totalorder %v689, 15
      %vm754 = vcmp.lt.s32.totalorder %v690, 15
      %vm755 = vcmp.lt.s32.totalorder %v691, 15
      %vm756 = vcmp.lt.s32.totalorder %v692, 15
      %vm757 = vcmp.lt.s32.totalorder %v693, 15
      %vm758 = vcmp.lt.s32.totalorder %v694, 15
      %vm759 = vcmp.lt.s32.totalorder %v695, 15
      %vm760 = vcmp.lt.s32.totalorder %v696, 15
      %vm761 = vcmp.lt.s32.totalorder %v697, 15
      %vm762 = vcmp.lt.s32.totalorder %v698, 15
      %vm763 = vcmp.lt.s32.totalorder %v699, 15
      %vm764 = vcmp.lt.s32.totalorder %v700, 15
      %vm765 = vcmp.lt.s32.totalorder %v701, 15
      %v766 = vld [vmem:[%s271] sm:$0xff]
      %v767 = vld [vmem:[%s271 + $0x8] sm:$0xff]
      %v768 = vld [vmem:[%s271 + $0x10] sm:$0xff]
      %v769 = vld [vmem:[%s271 + $0x18] sm:$0xff]
      %v770 = vld [vmem:[%s271 + $0x20] sm:$0xff]
      %v771 = vld [vmem:[%s271 + $0x28] sm:$0xff]
      %v772 = vld [vmem:[%s271 + $0x30] sm:$0xff]
      %v773 = vld [vmem:[%s271 + $0x38] sm:$0xff]
      %v774 = vld [vmem:[%s271 + $0x40] sm:$0xff]
      %v775 = vld [vmem:[%s271 + $0x48] sm:$0xff]
      %v776 = vld [vmem:[%s271 + $0x50] sm:$0xff]
      %v777 = vld [vmem:[%s271 + $0x58] sm:$0xff]
      %v778 = vld [vmem:[%s271 + $0x60] sm:$0xff]
      %v779 = vld [vmem:[%s271 + $0x68] sm:$0xff]
      %v780 = vld [vmem:[%s271 + $0x70] sm:$0xff]
      %v781 = vld [vmem:[%s271 + $0x78] sm:$0xff]
      %v782 = vld [vmem:[%s271 + $0x80] sm:$0xff]
      %v783 = vld [vmem:[%s271 + $0x88] sm:$0xff]
      %v784 = vld [vmem:[%s271 + $0x90] sm:$0xff]
      %v785 = vld [vmem:[%s271 + $0x98] sm:$0xff]
      %v786 = vld [vmem:[%s271 + $0xa0] sm:$0xff]
      %v787 = vld [vmem:[%s271 + $0xa8] sm:$0xff]
      %v788 = vld [vmem:[%s271 + $0xb0] sm:$0xff]
      %v789 = vld [vmem:[%s271 + $0xb8] sm:$0xff]
      %v790 = vld [vmem:[%s271 + $0xc0] sm:$0xff]
      %v791 = vld [vmem:[%s271 + $0xc8] sm:$0xff]
      %v792 = vld [vmem:[%s271 + $0xd0] sm:$0xff]
      %v793 = vld [vmem:[%s271 + $0xd8] sm:$0xff]
      %v794 = vld [vmem:[%s271 + $0xe0] sm:$0xff]
      %v795 = vld [vmem:[%s271 + $0xe8] sm:$0xff]
      %v796 = vld [vmem:[%s271 + $0xf0] sm:$0xff]
      %v797 = vld [vmem:[%s271 + $0xf8] sm:$0xff]
      %v798 = vld [vmem:[%s1] sm:$0xff]
      %v799 = vld [vmem:[%s1 + $0x8] sm:$0xff]
      %v800 = vld [vmem:[%s1 + $0x10] sm:$0xff]
      %v801 = vld [vmem:[%s1 + $0x18] sm:$0xff]
      %v802 = vld [vmem:[%s1 + $0x20] sm:$0xf]
      %vm803 = vcmask 293888
      %v805 = vsel %vm803, %v766, 0
      %v808 = vsel %vm803, %v767, 0
      %v811 = vsel %vm803, %v768, 0
      %v814 = vsel %vm803, %v769, 0
      %v817 = vsel %vm803, %v770, 0
      %v820 = vsel %vm803, %v771, 0
      %v823 = vsel %vm803, %v772, 0
      %v826 = vsel %vm803, %v773, 0
      %v829 = vsel %vm803, %v774, 0
      %v832 = vsel %vm803, %v775, 0
      %v835 = vsel %vm803, %v776, 0
      %v838 = vsel %vm803, %v777, 0
      %v841 = vsel %vm803, %v778, 0
      %v844 = vsel %vm803, %v779, 0
      %v847 = vsel %vm803, %v780, 0
      %v850 = vsel %vm803, %v781, 0
      %v853 = vsel %vm803, %v782, 0
      %v856 = vsel %vm803, %v783, 0
      %v859 = vsel %vm803, %v784, 0
      %v862 = vsel %vm803, %v785, 0
      %v865 = vsel %vm803, %v786, 0
      %v868 = vsel %vm803, %v787, 0
      %v871 = vsel %vm803, %v788, 0
      %v874 = vsel %vm803, %v789, 0
      %v877 = vsel %vm803, %v790, 0
      %v880 = vsel %vm803, %v791, 0
      %v883 = vsel %vm803, %v792, 0
      %v886 = vsel %vm803, %v793, 0
      %v889 = vsel %vm803, %v794, 0
      %v892 = vsel %vm803, %v795, 0
      %v895 = vsel %vm803, %v796, 0
      %v898 = vsel %vm803, %v797, 0
      %vm900 = vcmask 1043456
      %v902 = vsel %vm900, %v802, 0
      %904 = vmatpush.msra.mxu0 0.0
      %905 = vmatpush.msra.mxu0 0.0
      %906 = vmatpush.msra.mxu0 0.0
      %907 = vmatpush.msra.mxu0 0.0
      %908 = vmatpush.msra.mxu0 0.0
      %909 = vmatpush.msra.mxu0 0.0
      %910 = vmatpush.msra.mxu0 0.0
      %911 = vmatpush.msra.mxu0 0.0
      %912 = vmatpush.msra.mxu0 0.0
      %913 = vmatpush.msra.mxu0 0.0
      %914 = vmatpush.msra.mxu0 0.0
      %915 = vmatpush.msra.mxu0 %v902
      %916 = vmatpush.msra.mxu0 %v801
      %917 = vmatpush.msra.mxu0 %v800
      %918 = vmatpush.msra.mxu0 %v799
      %919 = vmatpush.msra.mxu0 %v798
      %920 = vmatmul.f32.gmra.mxu0 %v805
      %v921 = vpop.f32.mrf.mxu0
      %v922 = vadd.f32 0.0, %v921
      %923 = vmatmul.f32.gmra.mxu0 %v808
      %v924 = vpop.f32.mrf.mxu0
      %v925 = vadd.f32 0.0, %v924
      %926 = vmatmul.f32.gmra.mxu0 %v811
      %v927 = vpop.f32.mrf.mxu0
      %v928 = vadd.f32 0.0, %v927
      %929 = vmatmul.f32.gmra.mxu0 %v814
      %v930 = vpop.f32.mrf.mxu0
      %v931 = vadd.f32 0.0, %v930
      %932 = vmatmul.f32.gmra.mxu0 %v817
      %v933 = vpop.f32.mrf.mxu0
      %v934 = vadd.f32 0.0, %v933
      %935 = vmatmul.f32.gmra.mxu0 %v820
      %v936 = vpop.f32.mrf.mxu0
      %v937 = vadd.f32 0.0, %v936
      %938 = vmatmul.f32.gmra.mxu0 %v823
      %v939 = vpop.f32.mrf.mxu0
      %v940 = vadd.f32 0.0, %v939
      %941 = vmatmul.f32.gmra.mxu0 %v826
      %v942 = vpop.f32.mrf.mxu0
      %v943 = vadd.f32 0.0, %v942
      %944 = vmatmul.f32.gmra.mxu0 %v829
      %v945 = vpop.f32.mrf.mxu0
      %v946 = vadd.f32 0.0, %v945
      %947 = vmatmul.f32.gmra.mxu0 %v832
      %v948 = vpop.f32.mrf.mxu0
      %v949 = vadd.f32 0.0, %v948
      %950 = vmatmul.f32.gmra.mxu0 %v835
      %v951 = vpop.f32.mrf.mxu0
      %v952 = vadd.f32 0.0, %v951
      %953 = vmatmul.f32.gmra.mxu0 %v838
      %v954 = vpop.f32.mrf.mxu0
      %v955 = vadd.f32 0.0, %v954
      %956 = vmatmul.f32.gmra.mxu0 %v841
      %v957 = vpop.f32.mrf.mxu0
      %v958 = vadd.f32 0.0, %v957
      %959 = vmatmul.f32.gmra.mxu0 %v844
      %v960 = vpop.f32.mrf.mxu0
      %v961 = vadd.f32 0.0, %v960
      %962 = vmatmul.f32.gmra.mxu0 %v847
      %v963 = vpop.f32.mrf.mxu0
      %v964 = vadd.f32 0.0, %v963
      %965 = vmatmul.f32.gmra.mxu0 %v850
      %v966 = vpop.f32.mrf.mxu0
      %v967 = vadd.f32 0.0, %v966
      %968 = vmatmul.f32.gmra.mxu0 %v853
      %v969 = vpop.f32.mrf.mxu0
      %v970 = vadd.f32 0.0, %v969
      %971 = vmatmul.f32.gmra.mxu0 %v856
      %v972 = vpop.f32.mrf.mxu0
      %v973 = vadd.f32 0.0, %v972
      %974 = vmatmul.f32.gmra.mxu0 %v859
      %v975 = vpop.f32.mrf.mxu0
      %v976 = vadd.f32 0.0, %v975
      %977 = vmatmul.f32.gmra.mxu0 %v862
      %v978 = vpop.f32.mrf.mxu0
      %v979 = vadd.f32 0.0, %v978
      %980 = vmatmul.f32.gmra.mxu0 %v865
      %v981 = vpop.f32.mrf.mxu0
      %v982 = vadd.f32 0.0, %v981
      %983 = vmatmul.f32.gmra.mxu0 %v868
      %v984 = vpop.f32.mrf.mxu0
      %v985 = vadd.f32 0.0, %v984
      %986 = vmatmul.f32.gmra.mxu0 %v871
      %v987 = vpop.f32.mrf.mxu0
      %v988 = vadd.f32 0.0, %v987
      %989 = vmatmul.f32.gmra.mxu0 %v874
      %v990 = vpop.f32.mrf.mxu0
      %v991 = vadd.f32 0.0, %v990
      %992 = vmatmul.f32.gmra.mxu0 %v877
      %v993 = vpop.f32.mrf.mxu0
      %v994 = vadd.f32 0.0, %v993
      %995 = vmatmul.f32.gmra.mxu0 %v880
      %v996 = vpop.f32.mrf.mxu0
      %v997 = vadd.f32 0.0, %v996
      %998 = vmatmul.f32.gmra.mxu0 %v883
      %v999 = vpop.f32.mrf.mxu0
      %v1000 = vadd.f32 0.0, %v999
      %1001 = vmatmul.f32.gmra.mxu0 %v886
      %v1002 = vpop.f32.mrf.mxu0
      %v1003 = vadd.f32 0.0, %v1002
      %1004 = vmatmul.f32.gmra.mxu0 %v889
      %v1005 = vpop.f32.mrf.mxu0
      %v1006 = vadd.f32 0.0, %v1005
      %1007 = vmatmul.f32.gmra.mxu0 %v892
      %v1008 = vpop.f32.mrf.mxu0
      %v1009 = vadd.f32 0.0, %v1008
      %1010 = vmatmul.f32.gmra.mxu0 %v895
      %v1011 = vpop.f32.mrf.mxu0
      %v1012 = vadd.f32 0.0, %v1011
      %1013 = vmatmul.f32.gmra.mxu0 %v898
      %v1014 = vpop.f32.mrf.mxu0
      %v1015 = vadd.f32 0.0, %v1014
      %1016 = vdwg.mxu0
      %v1017 = vld [vmem:[%s3] sm:$0x1]
      %v1019 = vperm.slane %v1017, 0
      %v1021 = vmul.f32 %v922, %v1019
      %v1022 = vmul.f32 %v925, %v1019
      %v1023 = vmul.f32 %v928, %v1019
      %v1024 = vmul.f32 %v931, %v1019
      %v1025 = vmul.f32 %v934, %v1019
      %v1026 = vmul.f32 %v937, %v1019
      %v1027 = vmul.f32 %v940, %v1019
      %v1028 = vmul.f32 %v943, %v1019
      %v1029 = vmul.f32 %v946, %v1019
      %v1030 = vmul.f32 %v949, %v1019
      %v1031 = vmul.f32 %v952, %v1019
      %v1032 = vmul.f32 %v955, %v1019
      %v1033 = vmul.f32 %v958, %v1019
      %v1034 = vmul.f32 %v961, %v1019
      %v1035 = vmul.f32 %v964, %v1019
      %v1036 = vmul.f32 %v967, %v1019
      %v1037 = vmul.f32 %v970, %v1019
      %v1038 = vmul.f32 %v973, %v1019
      %v1039 = vmul.f32 %v976, %v1019
      %v1040 = vmul.f32 %v979, %v1019
      %v1041 = vmul.f32 %v982, %v1019
      %v1042 = vmul.f32 %v985, %v1019
      %v1043 = vmul.f32 %v988, %v1019
      %v1044 = vmul.f32 %v991, %v1019
      %v1045 = vmul.f32 %v994, %v1019
      %v1046 = vmul.f32 %v997, %v1019
      %v1047 = vmul.f32 %v1000, %v1019
      %v1048 = vmul.f32 %v1003, %v1019
      %v1049 = vmul.f32 %v1006, %v1019
      %v1050 = vmul.f32 %v1009, %v1019
      %v1051 = vmul.f32 %v1012, %v1019
      %v1052 = vmul.f32 %v1015, %v1019
      %v1053 = vld [vmem:[%s4] sm:$0x1]
      %v1055 = vperm.slane %v1053, 0
      %v1057 = vadd.f32 %v1021, %v1055
      %v1058 = vadd.f32 %v1022, %v1055
      %v1059 = vadd.f32 %v1023, %v1055
      %v1060 = vadd.f32 %v1024, %v1055
      %v1061 = vadd.f32 %v1025, %v1055
      %v1062 = vadd.f32 %v1026, %v1055
      %v1063 = vadd.f32 %v1027, %v1055
      %v1064 = vadd.f32 %v1028, %v1055
      %v1065 = vadd.f32 %v1029, %v1055
      %v1066 = vadd.f32 %v1030, %v1055
      %v1067 = vadd.f32 %v1031, %v1055
      %v1068 = vadd.f32 %v1032, %v1055
      %v1069 = vadd.f32 %v1033, %v1055
      %v1070 = vadd.f32 %v1034, %v1055
      %v1071 = vadd.f32 %v1035, %v1055
      %v1072 = vadd.f32 %v1036, %v1055
      %v1073 = vadd.f32 %v1037, %v1055
      %v1074 = vadd.f32 %v1038, %v1055
      %v1075 = vadd.f32 %v1039, %v1055
      %v1076 = vadd.f32 %v1040, %v1055
      %v1077 = vadd.f32 %v1041, %v1055
      %v1078 = vadd.f32 %v1042, %v1055
      %v1079 = vadd.f32 %v1043, %v1055
      %v1080 = vadd.f32 %v1044, %v1055
      %v1081 = vadd.f32 %v1045, %v1055
      %v1082 = vadd.f32 %v1046, %v1055
      %v1083 = vadd.f32 %v1047, %v1055
      %v1084 = vadd.f32 %v1048, %v1055
      %v1085 = vadd.f32 %v1049, %v1055
      %v1086 = vadd.f32 %v1050, %v1055
      %v1087 = vadd.f32 %v1051, %v1055
      %v1088 = vadd.f32 %v1052, %v1055
      %v1089 = vmax.f32 %v1057, 0.0
      %v1090 = vmax.f32 %v1058, 0.0
      %v1091 = vmax.f32 %v1059, 0.0
      %v1092 = vmax.f32 %v1060, 0.0
      %v1093 = vmax.f32 %v1061, 0.0
      %v1094 = vmax.f32 %v1062, 0.0
      %v1095 = vmax.f32 %v1063, 0.0
      %v1096 = vmax.f32 %v1064, 0.0
      %v1097 = vmax.f32 %v1065, 0.0
      %v1098 = vmax.f32 %v1066, 0.0
      %v1099 = vmax.f32 %v1067, 0.0
      %v1100 = vmax.f32 %v1068, 0.0
      %v1101 = vmax.f32 %v1069, 0.0
      %v1102 = vmax.f32 %v1070, 0.0
      %v1103 = vmax.f32 %v1071, 0.0
      %v1104 = vmax.f32 %v1072, 0.0
      %v1105 = vmax.f32 %v1073, 0.0
      %v1106 = vmax.f32 %v1074, 0.0
      %v1107 = vmax.f32 %v1075, 0.0
      %v1108 = vmax.f32 %v1076, 0.0
      %v1109 = vmax.f32 %v1077, 0.0
      %v1110 = vmax.f32 %v1078, 0.0
      %v1111 = vmax.f32 %v1079, 0.0
      %v1112 = vmax.f32 %v1080, 0.0
      %v1113 = vmax.f32 %v1081, 0.0
      %v1114 = vmax.f32 %v1082, 0.0
      %v1115 = vmax.f32 %v1083, 0.0
      %v1116 = vmax.f32 %v1084, 0.0
      %v1117 = vmax.f32 %v1085, 0.0
      %v1118 = vmax.f32 %v1086, 0.0
      %v1119 = vmax.f32 %v1087, 0.0
      %v1120 = vmax.f32 %v1088, 0.0
      %v1121 = vrot.slane %v1089, 7
      %v1122 = vrot.slane %v1090, 7
      %v1123 = vrot.slane %v1091, 7
      %v1124 = vrot.slane %v1092, 7
      %v1125 = vrot.slane %v1093, 7
      %v1126 = vrot.slane %v1094, 7
      %v1127 = vrot.slane %v1095, 7
      %v1128 = vrot.slane %v1096, 7
      %v1129 = vrot.slane %v1097, 7
      %v1130 = vrot.slane %v1098, 7
      %v1131 = vrot.slane %v1099, 7
      %v1132 = vrot.slane %v1100, 7
      %v1133 = vrot.slane %v1101, 7
      %v1134 = vrot.slane %v1102, 7
      %v1135 = vrot.slane %v1103, 7
      %v1136 = vrot.slane %v1104, 7
      %v1137 = vrot.slane %v1105, 7
      %v1138 = vrot.slane %v1106, 7
      %v1139 = vrot.slane %v1107, 7
      %v1140 = vrot.slane %v1108, 7
      %v1141 = vrot.slane %v1109, 7
      %v1142 = vrot.slane %v1110, 7
      %v1143 = vrot.slane %v1111, 7
      %v1144 = vrot.slane %v1112, 7
      %v1145 = vrot.slane %v1113, 7
      %v1146 = vrot.slane %v1114, 7
      %v1147 = vrot.slane %v1115, 7
      %v1148 = vrot.slane %v1116, 7
      %v1149 = vrot.slane %v1117, 7
      %v1150 = vrot.slane %v1118, 7
      %v1151 = vrot.slane %v1119, 7
      %v1152 = vrot.slane %v1120, 7
      %vm1153 = vcmp.lt.s32.totalorder %v286, 1
      %v1154 = vsel %vm1153, %v1151, %v1152
      %v1155 = vsel %vm1153, %v1150, %v1151
      %v1156 = vsel %vm1153, %v1149, %v1150
      %v1157 = vsel %vm1153, %v1148, %v1149
      %v1158 = vsel %vm1153, %v1147, %v1148
      %v1159 = vsel %vm1153, %v1146, %v1147
      %v1160 = vsel %vm1153, %v1145, %v1146
      %v1161 = vsel %vm1153, %v1144, %v1145
      %v1162 = vsel %vm1153, %v1143, %v1144
      %v1163 = vsel %vm1153, %v1142, %v1143
      %v1164 = vsel %vm1153, %v1141, %v1142
      %v1165 = vsel %vm1153, %v1140, %v1141
      %v1166 = vsel %vm1153, %v1139, %v1140
      %v1167 = vsel %vm1153, %v1138, %v1139
      %v1168 = vsel %vm1153, %v1137, %v1138
      %v1169 = vsel %vm1153, %v1136, %v1137
      %v1170 = vsel %vm1153, %v1135, %v1136
      %v1171 = vsel %vm1153, %v1134, %v1135
      %v1172 = vsel %vm1153, %v1133, %v1134
      %v1173 = vsel %vm1153, %v1132, %v1133
      %v1174 = vsel %vm1153, %v1131, %v1132
      %v1175 = vsel %vm1153, %v1130, %v1131
      %v1176 = vsel %vm1153, %v1129, %v1130
      %v1177 = vsel %vm1153, %v1128, %v1129
      %v1178 = vsel %vm1153, %v1127, %v1128
      %v1179 = vsel %vm1153, %v1126, %v1127
      %v1180 = vsel %vm1153, %v1125, %v1126
      %v1181 = vsel %vm1153, %v1124, %v1125
      %v1182 = vsel %vm1153, %v1123, %v1124
      %v1183 = vsel %vm1153, %v1122, %v1123
      %v1184 = vsel %vm1153, %v1121, %v1122
      %v1185 = vsel %vm1153, %v1152, %v1121
      %v1186 = vsel %vm702, %v1185, 0.0
      %v1187 = vsel %vm703, %v1184, 0.0
      %v1188 = vsel %vm704, %v1183, 0.0
      %v1189 = vsel %vm705, %v1182, 0.0
      %v1190 = vsel %vm706, %v1181, 0.0
      %v1191 = vsel %vm707, %v1180, 0.0
      %v1192 = vsel %vm708, %v1179, 0.0
      %v1193 = vsel %vm709, %v1178, 0.0
      %v1194 = vsel %vm710, %v1177, 0.0
      %v1195 = vsel %vm711, %v1176, 0.0
      %v1196 = vsel %vm712, %v1175, 0.0
      %v1197 = vsel %vm713, %v1174, 0.0
      %v1198 = vsel %vm714, %v1173, 0.0
      %v1199 = vsel %vm715, %v1172, 0.0
      %v1200 = vsel %vm716, %v1171, 0.0
      %v1201 = vsel %vm717, %v1170, 0.0
      %v1202 = vsel %vm718, %v1169, 0.0
      %v1203 = vsel %vm719, %v1168, 0.0
      %v1204 = vsel %vm720, %v1167, 0.0
      %v1205 = vsel %vm721, %v1166, 0.0
      %v1206 = vsel %vm722, %v1165, 0.0
      %v1207 = vsel %vm723, %v1164, 0.0
      %v1208 = vsel %vm724, %v1163, 0.0
      %v1209 = vsel %vm725, %v1162, 0.0
      %v1210 = vsel %vm726, %v1161, 0.0
      %v1211 = vsel %vm727, %v1160, 0.0
      %v1212 = vsel %vm728, %v1159, 0.0
      %v1213 = vsel %vm729, %v1158, 0.0
      %v1214 = vsel %vm730, %v1157, 0.0
      %v1215 = vsel %vm731, %v1156, 0.0
      %v1216 = vsel %vm732, %v1155, 0.0
      %v1217 = vsel %vm733, %v1154, 0.0
      %v1218 = vrot.slane %v1089, 1
      %v1219 = vrot.slane %v1090, 1
      %v1220 = vrot.slane %v1091, 1
      %v1221 = vrot.slane %v1092, 1
      %v1222 = vrot.slane %v1093, 1
      %v1223 = vrot.slane %v1094, 1
      %v1224 = vrot.slane %v1095, 1
      %v1225 = vrot.slane %v1096, 1
      %v1226 = vrot.slane %v1097, 1
      %v1227 = vrot.slane %v1098, 1
      %v1228 = vrot.slane %v1099, 1
      %v1229 = vrot.slane %v1100, 1
      %v1230 = vrot.slane %v1101, 1
      %v1231 = vrot.slane %v1102, 1
      %v1232 = vrot.slane %v1103, 1
      %v1233 = vrot.slane %v1104, 1
      %v1234 = vrot.slane %v1105, 1
      %v1235 = vrot.slane %v1106, 1
      %v1236 = vrot.slane %v1107, 1
      %v1237 = vrot.slane %v1108, 1
      %v1238 = vrot.slane %v1109, 1
      %v1239 = vrot.slane %v1110, 1
      %v1240 = vrot.slane %v1111, 1
      %v1241 = vrot.slane %v1112, 1
      %v1242 = vrot.slane %v1113, 1
      %v1243 = vrot.slane %v1114, 1
      %v1244 = vrot.slane %v1115, 1
      %v1245 = vrot.slane %v1116, 1
      %v1246 = vrot.slane %v1117, 1
      %v1247 = vrot.slane %v1118, 1
      %v1248 = vrot.slane %v1119, 1
      %v1249 = vrot.slane %v1120, 1
      %vm1250 = vcmp.lt.s32.totalorder %v286, 7
      %v1251 = vsel %vm1250, %v1248, %v1249
      %v1252 = vsel %vm1250, %v1247, %v1248
      %v1253 = vsel %vm1250, %v1246, %v1247
      %v1254 = vsel %vm1250, %v1245, %v1246
      %v1255 = vsel %vm1250, %v1244, %v1245
      %v1256 = vsel %vm1250, %v1243, %v1244
      %v1257 = vsel %vm1250, %v1242, %v1243
      %v1258 = vsel %vm1250, %v1241, %v1242
      %v1259 = vsel %vm1250, %v1240, %v1241
      %v1260 = vsel %vm1250, %v1239, %v1240
      %v1261 = vsel %vm1250, %v1238, %v1239
      %v1262 = vsel %vm1250, %v1237, %v1238
      %v1263 = vsel %vm1250, %v1236, %v1237
      %v1264 = vsel %vm1250, %v1235, %v1236
      %v1265 = vsel %vm1250, %v1234, %v1235
      %v1266 = vsel %vm1250, %v1233, %v1234
      %v1267 = vsel %vm1250, %v1232, %v1233
      %v1268 = vsel %vm1250, %v1231, %v1232
      %v1269 = vsel %vm1250, %v1230, %v1231
      %v1270 = vsel %vm1250, %v1229, %v1230
      %v1271 = vsel %vm1250, %v1228, %v1229
      %v1272 = vsel %vm1250, %v1227, %v1228
      %v1273 = vsel %vm1250, %v1226, %v1227
      %v1274 = vsel %vm1250, %v1225, %v1226
      %v1275 = vsel %vm1250, %v1224, %v1225
      %v1276 = vsel %vm1250, %v1223, %v1224
      %v1277 = vsel %vm1250, %v1222, %v1223
      %v1278 = vsel %vm1250, %v1221, %v1222
      %v1279 = vsel %vm1250, %v1220, %v1221
      %v1280 = vsel %vm1250, %v1219, %v1220
      %v1281 = vsel %vm1250, %v1218, %v1219
      %v1282 = vsel %vm1250, %v1249, %v1218
      %v1283 = vsel %vm734, %v1281, 0.0
      %v1284 = vsel %vm735, %v1280, 0.0
      %v1285 = vsel %vm736, %v1279, 0.0
      %v1286 = vsel %vm737, %v1278, 0.0
      %v1287 = vsel %vm738, %v1277, 0.0
      %v1288 = vsel %vm739, %v1276, 0.0
      %v1289 = vsel %vm740, %v1275, 0.0
      %v1290 = vsel %vm741, %v1274, 0.0
      %v1291 = vsel %vm742, %v1273, 0.0
      %v1292 = vsel %vm743, %v1272, 0.0
      %v1293 = vsel %vm744, %v1271, 0.0
      %v1294 = vsel %vm745, %v1270, 0.0
      %v1295 = vsel %vm746, %v1269, 0.0
      %v1296 = vsel %vm747, %v1268, 0.0
      %v1297 = vsel %vm748, %v1267, 0.0
      %v1298 = vsel %vm749, %v1266, 0.0
      %v1299 = vsel %vm750, %v1265, 0.0
      %v1300 = vsel %vm751, %v1264, 0.0
      %v1301 = vsel %vm752, %v1263, 0.0
      %v1302 = vsel %vm753, %v1262, 0.0
      %v1303 = vsel %vm754, %v1261, 0.0
      %v1304 = vsel %vm755, %v1260, 0.0
      %v1305 = vsel %vm756, %v1259, 0.0
      %v1306 = vsel %vm757, %v1258, 0.0
      %v1307 = vsel %vm758, %v1257, 0.0
      %v1308 = vsel %vm759, %v1256, 0.0
      %v1309 = vsel %vm760, %v1255, 0.0
      %v1310 = vsel %vm761, %v1254, 0.0
      %v1311 = vsel %vm762, %v1253, 0.0
      %v1312 = vsel %vm763, %v1252, 0.0
      %v1313 = vsel %vm764, %v1251, 0.0
      %v1314 = vsel %vm765, %v1282, 0.0
      %1347 = vrot.lane.b32.xlu0 %v1089, 64
      %v1348 = vpop.permute.xlu0 %1347
      %1349 = vrot.lane.b32.xlu0 %v1090, 64
      %v1350 = vpop.permute.xlu0 %1349
      %1351 = vrot.lane.b32.xlu0 %v1091, 64
      %v1352 = vpop.permute.xlu0 %1351
      %1353 = vrot.lane.b32.xlu0 %v1092, 64
      %v1354 = vpop.permute.xlu0 %1353
      %1355 = vrot.lane.b32.xlu0 %v1093, 64
      %v1356 = vpop.permute.xlu0 %1355
      %1357 = vrot.lane.b32.xlu0 %v1094, 64
      %v1358 = vpop.permute.xlu0 %1357
      %1359 = vrot.lane.b32.xlu0 %v1095, 64
      %v1360 = vpop.permute.xlu0 %1359
      %1361 = vrot.lane.b32.xlu0 %v1096, 64
      %v1362 = vpop.permute.xlu0 %1361
      %1363 = vrot.lane.b32.xlu0 %v1097, 64
      %v1364 = vpop.permute.xlu0 %1363
      %1365 = vrot.lane.b32.xlu0 %v1098, 64
      %v1366 = vpop.permute.xlu0 %1365
      %1367 = vrot.lane.b32.xlu0 %v1099, 64
      %v1368 = vpop.permute.xlu0 %1367
      %1369 = vrot.lane.b32.xlu0 %v1100, 64
      %v1370 = vpop.permute.xlu0 %1369
      %1371 = vrot.lane.b32.xlu0 %v1101, 64
      %v1372 = vpop.permute.xlu0 %1371
      %1373 = vrot.lane.b32.xlu0 %v1102, 64
      %v1374 = vpop.permute.xlu0 %1373
      %1375 = vrot.lane.b32.xlu0 %v1103, 64
      %v1376 = vpop.permute.xlu0 %1375
      %1377 = vrot.lane.b32.xlu0 %v1104, 64
      %v1378 = vpop.permute.xlu0 %1377
      %1379 = vrot.lane.b32.xlu0 %v1105, 64
      %v1380 = vpop.permute.xlu0 %1379
      %1381 = vrot.lane.b32.xlu0 %v1106, 64
      %v1382 = vpop.permute.xlu0 %1381
      %1383 = vrot.lane.b32.xlu0 %v1107, 64
      %v1384 = vpop.permute.xlu0 %1383
      %1385 = vrot.lane.b32.xlu0 %v1108, 64
      %v1386 = vpop.permute.xlu0 %1385
      %1387 = vrot.lane.b32.xlu0 %v1109, 64
      %v1388 = vpop.permute.xlu0 %1387
      %1389 = vrot.lane.b32.xlu0 %v1110, 64
      %v1390 = vpop.permute.xlu0 %1389
      %1391 = vrot.lane.b32.xlu0 %v1111, 64
      %v1392 = vpop.permute.xlu0 %1391
      %1393 = vrot.lane.b32.xlu0 %v1112, 64
      %v1394 = vpop.permute.xlu0 %1393
      %1395 = vrot.lane.b32.xlu0 %v1113, 64
      %v1396 = vpop.permute.xlu0 %1395
      %1397 = vrot.lane.b32.xlu0 %v1114, 64
      %v1398 = vpop.permute.xlu0 %1397
      %1399 = vrot.lane.b32.xlu0 %v1115, 64
      %v1400 = vpop.permute.xlu0 %1399
      %1401 = vrot.lane.b32.xlu0 %v1116, 64
      %v1402 = vpop.permute.xlu0 %1401
      %1403 = vrot.lane.b32.xlu0 %v1117, 64
      %v1404 = vpop.permute.xlu0 %1403
      %1405 = vrot.lane.b32.xlu0 %v1118, 64
      %v1406 = vpop.permute.xlu0 %1405
      %1407 = vrot.lane.b32.xlu0 %v1119, 64
      %v1408 = vpop.permute.xlu0 %1407
      %1409 = vrot.lane.b32.xlu0 %v1120, 64
      %v1410 = vpop.permute.xlu0 %1409
      %v1443 = vsel %vm276, %v1186, %v1348
      %v1444 = vsel %vm276, %v1187, %v1350
      %v1445 = vsel %vm276, %v1188, %v1352
      %v1446 = vsel %vm276, %v1189, %v1354
      %v1447 = vsel %vm276, %v1190, %v1356
      %v1448 = vsel %vm276, %v1191, %v1358
      %v1449 = vsel %vm276, %v1192, %v1360
      %v1450 = vsel %vm276, %v1193, %v1362
      %v1451 = vsel %vm276, %v1194, %v1364
      %v1452 = vsel %vm276, %v1195, %v1366
      %v1453 = vsel %vm276, %v1196, %v1368
      %v1454 = vsel %vm276, %v1197, %v1370
      %v1455 = vsel %vm276, %v1198, %v1372
      %v1456 = vsel %vm276, %v1199, %v1374
      %v1457 = vsel %vm276, %v1200, %v1376
      %v1458 = vsel %vm276, %v1201, %v1378
      %v1459 = vsel %vm276, %v1202, %v1380
      %v1460 = vsel %vm276, %v1203, %v1382
      %v1461 = vsel %vm276, %v1204, %v1384
      %v1462 = vsel %vm276, %v1205, %v1386
      %v1463 = vsel %vm276, %v1206, %v1388
      %v1464 = vsel %vm276, %v1207, %v1390
      %v1465 = vsel %vm276, %v1208, %v1392
      %v1466 = vsel %vm276, %v1209, %v1394
      %v1467 = vsel %vm276, %v1210, %v1396
      %v1468 = vsel %vm276, %v1211, %v1398
      %v1469 = vsel %vm276, %v1212, %v1400
      %v1470 = vsel %vm276, %v1213, %v1402
      %v1471 = vsel %vm276, %v1214, %v1404
      %v1472 = vsel %vm276, %v1215, %v1406
      %v1473 = vsel %vm276, %v1216, %v1408
      %v1474 = vsel %vm276, %v1217, %v1410
      %s1475 = scalar_lea.vmem [#allocation2], 32
      %1476 = vst [vmem:[%s1475] sm:$0xff] %v1443
      %1477 = vst.msk [vmem:[%s1475 + $0x8] sm:$0xff] %vm276, %v1283
      %1478 = vst [vmem:[%s1475 + $0x10] sm:$0xff] %v1444
      %1479 = vst.msk [vmem:[%s1475 + $0x18] sm:$0xff] %vm276, %v1284
      %1480 = vst [vmem:[%s1475 + $0x20] sm:$0xff] %v1445
      %1481 = vst.msk [vmem:[%s1475 + $0x28] sm:$0xff] %vm276, %v1285
      %1482 = vst [vmem:[%s1475 + $0x30] sm:$0xff] %v1446
      %1483 = vst.msk [vmem:[%s1475 + $0x38] sm:$0xff] %vm276, %v1286
      %1484 = vst [vmem:[%s1475 + $0x40] sm:$0xff] %v1447
      %1485 = vst.msk [vmem:[%s1475 + $0x48] sm:$0xff] %vm276, %v1287
      %1486 = vst [vmem:[%s1475 + $0x50] sm:$0xff] %v1448
      %1487 = vst.msk [vmem:[%s1475 + $0x58] sm:$0xff] %vm276, %v1288
      %1488 = vst [vmem:[%s1475 + $0x60] sm:$0xff] %v1449
      %1489 = vst.msk [vmem:[%s1475 + $0x68] sm:$0xff] %vm276, %v1289
      %1490 = vst [vmem:[%s1475 + $0x70] sm:$0xff] %v1450
      %1491 = vst.msk [vmem:[%s1475 + $0x78] sm:$0xff] %vm276, %v1290
      %1492 = vst [vmem:[%s1475 + $0x80] sm:$0xff] %v1451
      %1493 = vst.msk [vmem:[%s1475 + $0x88] sm:$0xff] %vm276, %v1291
      %1494 = vst [vmem:[%s1475 + $0x90] sm:$0xff] %v1452
      %1495 = vst.msk [vmem:[%s1475 + $0x98] sm:$0xff] %vm276, %v1292
      %1496 = vst [vmem:[%s1475 + $0xa0] sm:$0xff] %v1453
      %1497 = vst.msk [vmem:[%s1475 + $0xa8] sm:$0xff] %vm276, %v1293
      %1498 = vst [vmem:[%s1475 + $0xb0] sm:$0xff] %v1454
      %1499 = vst.msk [vmem:[%s1475 + $0xb8] sm:$0xff] %vm276, %v1294
      %1500 = vst [vmem:[%s1475 + $0xc0] sm:$0xff] %v1455
      %1501 = vst.msk [vmem:[%s1475 + $0xc8] sm:$0xff] %vm276, %v1295
      %1502 = vst [vmem:[%s1475 + $0xd0] sm:$0xff] %v1456
      %1503 = vst.msk [vmem:[%s1475 + $0xd8] sm:$0xff] %vm276, %v1296
      %1504 = vst [vmem:[%s1475 + $0xe0] sm:$0xff] %v1457
      %1505 = vst.msk [vmem:[%s1475 + $0xe8] sm:$0xff] %vm276, %v1297
      %1506 = vst [vmem:[%s1475 + $0xf0] sm:$0xff] %v1458
      %1507 = vst.msk [vmem:[%s1475 + $0xf8] sm:$0xff] %vm276, %v1298
      %1508 = vst [vmem:[%s1475 + $0x100] sm:$0xff] %v1459
      %1509 = vst.msk [vmem:[%s1475 + $0x108] sm:$0xff] %vm276, %v1299
      %1510 = vst [vmem:[%s1475 + $0x110] sm:$0xff] %v1460
      %1511 = vst.msk [vmem:[%s1475 + $0x118] sm:$0xff] %vm276, %v1300
      %1512 = vst [vmem:[%s1475 + $0x120] sm:$0xff] %v1461
      %1513 = vst.msk [vmem:[%s1475 + $0x128] sm:$0xff] %vm276, %v1301
      %1514 = vst [vmem:[%s1475 + $0x130] sm:$0xff] %v1462
      %1515 = vst.msk [vmem:[%s1475 + $0x138] sm:$0xff] %vm276, %v1302
      %1516 = vst [vmem:[%s1475 + $0x140] sm:$0xff] %v1463
      %1517 = vst.msk [vmem:[%s1475 + $0x148] sm:$0xff] %vm276, %v1303
      %1518 = vst [vmem:[%s1475 + $0x150] sm:$0xff] %v1464
      %1519 = vst.msk [vmem:[%s1475 + $0x158] sm:$0xff] %vm276, %v1304
      %1520 = vst [vmem:[%s1475 + $0x160] sm:$0xff] %v1465
      %1521 = vst.msk [vmem:[%s1475 + $0x168] sm:$0xff] %vm276, %v1305
      %1522 = vst [vmem:[%s1475 + $0x170] sm:$0xff] %v1466
      %1523 = vst.msk [vmem:[%s1475 + $0x178] sm:$0xff] %vm276, %v1306
      %1524 = vst [vmem:[%s1475 + $0x180] sm:$0xff] %v1467
      %1525 = vst.msk [vmem:[%s1475 + $0x188] sm:$0xff] %vm276, %v1307
      %1526 = vst [vmem:[%s1475 + $0x190] sm:$0xff] %v1468
      %1527 = vst.msk [vmem:[%s1475 + $0x198] sm:$0xff] %vm276, %v1308
      %1528 = vst [vmem:[%s1475 + $0x1a0] sm:$0xff] %v1469
      %1529 = vst.msk [vmem:[%s1475 + $0x1a8] sm:$0xff] %vm276, %v1309
      %1530 = vst [vmem:[%s1475 + $0x1b0] sm:$0xff] %v1470
      %1531 = vst.msk [vmem:[%s1475 + $0x1b8] sm:$0xff] %vm276, %v1310
      %1532 = vst [vmem:[%s1475 + $0x1c0] sm:$0xff] %v1471
      %1533 = vst.msk [vmem:[%s1475 + $0x1c8] sm:$0xff] %vm276, %v1311
      %1534 = vst [vmem:[%s1475 + $0x1d0] sm:$0xff] %v1472
      %1535 = vst.msk [vmem:[%s1475 + $0x1d8] sm:$0xff] %vm276, %v1312
      %1536 = vst [vmem:[%s1475 + $0x1e0] sm:$0xff] %v1473
      %1537 = vst.msk [vmem:[%s1475 + $0x1e8] sm:$0xff] %vm276, %v1313
      %1538 = vst [vmem:[%s1475 + $0x1f0] sm:$0xff] %v1474
      %1539 = vst.msk [vmem:[%s1475 + $0x1f8] sm:$0xff] %vm276, %v1314
      %v1540 = vld [vmem:[#allocation2] sm:$0xff]
      %v1541 = vld [vmem:[#allocation2 + $0x8] sm:$0xff]
      %v1542 = vld [vmem:[#allocation2 + $0x10] sm:$0xff]
      %v1543 = vld [vmem:[#allocation2 + $0x18] sm:$0xff]
      %v1544 = vld [vmem:[#allocation2 + $0x20] sm:$0xff]
      %v1545 = vld [vmem:[#allocation2 + $0x28] sm:$0xff]
      %v1546 = vld [vmem:[#allocation2 + $0x30] sm:$0xff]
      %v1547 = vld [vmem:[#allocation2 + $0x38] sm:$0xff]
      %v1548 = vld [vmem:[#allocation2 + $0x40] sm:$0xff]
      %v1549 = vld [vmem:[#allocation2 + $0x48] sm:$0xff]
      %v1550 = vld [vmem:[#allocation2 + $0x50] sm:$0xff]
      %v1551 = vld [vmem:[#allocation2 + $0x58] sm:$0xff]
      %v1552 = vld [vmem:[#allocation2 + $0x60] sm:$0xff]
      %v1553 = vld [vmem:[#allocation2 + $0x68] sm:$0xff]
      %v1554 = vld [vmem:[#allocation2 + $0x70] sm:$0xff]
      %v1555 = vld [vmem:[#allocation2 + $0x78] sm:$0xff]
      %v1556 = vld [vmem:[#allocation2 + $0x80] sm:$0xff]
      %v1557 = vld [vmem:[#allocation2 + $0x88] sm:$0xff]
      %v1558 = vld [vmem:[#allocation2 + $0x90] sm:$0xff]
      %v1559 = vld [vmem:[#allocation2 + $0x98] sm:$0xff]
      %v1560 = vld [vmem:[#allocation2 + $0xa0] sm:$0xff]
      %v1561 = vld [vmem:[#allocation2 + $0xa8] sm:$0xff]
      %v1562 = vld [vmem:[#allocation2 + $0xb0] sm:$0xff]
      %v1563 = vld [vmem:[#allocation2 + $0xb8] sm:$0xff]
      %v1564 = vld [vmem:[#allocation2 + $0xc0] sm:$0xff]
      %v1565 = vld [vmem:[#allocation2 + $0xc8] sm:$0xff]
      %v1566 = vld [vmem:[#allocation2 + $0xd0] sm:$0xff]
      %v1567 = vld [vmem:[#allocation2 + $0xd8] sm:$0xff]
      %v1568 = vld [vmem:[#allocation2 + $0xe0] sm:$0xff]
      %v1569 = vld [vmem:[#allocation2 + $0xe8] sm:$0xff]
      %v1570 = vld [vmem:[#allocation2 + $0xf0] sm:$0xff]
      %v1571 = vld [vmem:[#allocation2 + $0xf8] sm:$0xff]
      %v1572 = vld [vmem:[#allocation2 + $0x100] sm:$0xff]
      %v1573 = vld [vmem:[#allocation2 + $0x108] sm:$0xff]
      %v1574 = vld [vmem:[#allocation2 + $0x110] sm:$0xff]
      %v1575 = vld [vmem:[#allocation2 + $0x118] sm:$0xff]
      %v1576 = vld [vmem:[#allocation2 + $0x120] sm:$0xff]
      %v1577 = vld [vmem:[#allocation2 + $0x128] sm:$0xff]
      %v1578 = vld [vmem:[#allocation2 + $0x130] sm:$0xff]
      %v1579 = vld [vmem:[#allocation2 + $0x138] sm:$0xff]
      %v1580 = vld [vmem:[#allocation2 + $0x140] sm:$0xff]
      %v1581 = vld [vmem:[#allocation2 + $0x148] sm:$0xff]
      %v1582 = vld [vmem:[#allocation2 + $0x150] sm:$0xff]
      %v1583 = vld [vmem:[#allocation2 + $0x158] sm:$0xff]
      %v1584 = vld [vmem:[#allocation2 + $0x160] sm:$0xff]
      %v1585 = vld [vmem:[#allocation2 + $0x168] sm:$0xff]
      %v1586 = vld [vmem:[#allocation2 + $0x170] sm:$0xff]
      %v1587 = vld [vmem:[#allocation2 + $0x178] sm:$0xff]
      %v1588 = vld [vmem:[#allocation2 + $0x180] sm:$0xff]
      %v1589 = vld [vmem:[#allocation2 + $0x188] sm:$0xff]
      %v1590 = vld [vmem:[#allocation2 + $0x190] sm:$0xff]
      %v1591 = vld [vmem:[#allocation2 + $0x198] sm:$0xff]
      %v1592 = vld [vmem:[#allocation2 + $0x1a0] sm:$0xff]
      %v1593 = vld [vmem:[#allocation2 + $0x1a8] sm:$0xff]
      %v1594 = vld [vmem:[#allocation2 + $0x1b0] sm:$0xff]
      %v1595 = vld [vmem:[#allocation2 + $0x1b8] sm:$0xff]
      %v1596 = vld [vmem:[#allocation2 + $0x1c0] sm:$0xff]
      %v1597 = vld [vmem:[#allocation2 + $0x1c8] sm:$0xff]
      %v1598 = vld [vmem:[#allocation2 + $0x1d0] sm:$0xff]
      %v1599 = vld [vmem:[#allocation2 + $0x1d8] sm:$0xff]
      %v1600 = vld [vmem:[#allocation2 + $0x1e0] sm:$0xff]
      %v1601 = vld [vmem:[#allocation2 + $0x1e8] sm:$0xff]
      %v1602 = vld [vmem:[#allocation2 + $0x1f0] sm:$0xff]
      %v1603 = vld [vmem:[#allocation2 + $0x1f8] sm:$0xff]
      %v1604 = vld [vmem:[#allocation2 + $0x200] sm:$0xff]
      %v1605 = vld [vmem:[#allocation2 + $0x208] sm:$0xff]
      %v1606 = vld [vmem:[#allocation2 + $0x210] sm:$0xff]
      %v1607 = vld [vmem:[#allocation2 + $0x218] sm:$0xff]
      %v1608 = vld [vmem:[#allocation2 + $0x220] sm:$0xff]
      %v1609 = vld [vmem:[#allocation2 + $0x228] sm:$0xff]
      %v1610 = vld [vmem:[#allocation2 + $0x230] sm:$0xff]
      %v1611 = vld [vmem:[#allocation2 + $0x238] sm:$0xff]
      %v1612 = vld [vmem:[%s2] sm:$0xff]
      %v1613 = vld [vmem:[%s2 + $0x8] sm:$0xff]
      %v1614 = vld [vmem:[%s2 + $0x10] sm:$0xff]
      %v1615 = vld [vmem:[%s2 + $0x18] sm:$0xff]
      %v1616 = vld [vmem:[%s2 + $0x20] sm:$0xff]
      %v1617 = vld [vmem:[%s2 + $0x28] sm:$0xff]
      %v1618 = vld [vmem:[%s2 + $0x30] sm:$0xff]
      %v1619 = vld [vmem:[%s2 + $0x38] sm:$0xff]
      %v1620 = vld [vmem:[%s2 + $0x40] sm:$0xff]
      %v1621 = vld [vmem:[%s2 + $0x48] sm:$0xff]
      %v1622 = vld [vmem:[%s2 + $0x50] sm:$0xff]
      %v1623 = vld [vmem:[%s2 + $0x58] sm:$0xff]
      %v1624 = vld [vmem:[%s2 + $0x60] sm:$0xff]
      %v1625 = vld [vmem:[%s2 + $0x68] sm:$0xff]
      %v1626 = vld [vmem:[%s2 + $0x70] sm:$0xff]
      %v1627 = vld [vmem:[%s2 + $0x78] sm:$0xff]
      %v1628 = vld [vmem:[%s2 + $0x80] sm:$0xff]
      %v1629 = vld [vmem:[%s2 + $0x88] sm:$0xff]
      %v1630 = vld [vmem:[%s2 + $0x90] sm:$0xff]
      %v1631 = vld [vmem:[%s2 + $0x98] sm:$0xff]
      %v1632 = vld [vmem:[%s2 + $0xa0] sm:$0xff]
      %v1633 = vld [vmem:[%s2 + $0xa8] sm:$0xff]
      %v1634 = vld [vmem:[%s2 + $0xb0] sm:$0xff]
      %v1635 = vld [vmem:[%s2 + $0xb8] sm:$0xff]
      %v1636 = vld [vmem:[%s2 + $0xc0] sm:$0xff]
      %v1637 = vld [vmem:[%s2 + $0xc8] sm:$0xff]
      %v1638 = vld [vmem:[%s2 + $0xd0] sm:$0xff]
      %v1639 = vld [vmem:[%s2 + $0xd8] sm:$0xff]
      %v1640 = vld [vmem:[%s2 + $0xe0] sm:$0xff]
      %v1641 = vld [vmem:[%s2 + $0xe8] sm:$0xff]
      %v1642 = vld [vmem:[%s2 + $0xf0] sm:$0xff]
      %v1643 = vld [vmem:[%s2 + $0xf8] sm:$0xff]
      %v1644 = vld [vmem:[%s2 + $0x100] sm:$0xff]
      %v1645 = vld [vmem:[%s2 + $0x108] sm:$0xff]
      %v1646 = vld [vmem:[%s2 + $0x110] sm:$0xff]
      %v1647 = vld [vmem:[%s2 + $0x118] sm:$0xff]
      %v1648 = vld [vmem:[%s2 + $0x120] sm:$0xff]
      %v1649 = vld [vmem:[%s2 + $0x128] sm:$0xff]
      %v1650 = vld [vmem:[%s2 + $0x130] sm:$0xff]
      %v1651 = vld [vmem:[%s2 + $0x138] sm:$0xff]
      %v1652 = vld [vmem:[%s2 + $0x140] sm:$0xff]
      %v1653 = vld [vmem:[%s2 + $0x148] sm:$0xff]
      %v1654 = vld [vmem:[%s2 + $0x150] sm:$0xff]
      %v1655 = vld [vmem:[%s2 + $0x158] sm:$0xff]
      %v1656 = vld [vmem:[%s2 + $0x160] sm:$0xff]
      %v1657 = vld [vmem:[%s2 + $0x168] sm:$0xff]
      %v1658 = vld [vmem:[%s2 + $0x170] sm:$0xff]
      %v1659 = vld [vmem:[%s2 + $0x178] sm:$0xff]
      %v1661 = vsel %vm276, %v1541, 0
      %v1664 = vsel %vm276, %v1543, 0
      %v1667 = vsel %vm276, %v1545, 0
      %v1670 = vsel %vm276, %v1547, 0
      %v1673 = vsel %vm276, %v1549, 0
      %v1676 = vsel %vm276, %v1551, 0
      %v1679 = vsel %vm276, %v1553, 0
      %v1682 = vsel %vm276, %v1555, 0
      %v1685 = vsel %vm276, %v1557, 0
      %v1688 = vsel %vm276, %v1559, 0
      %v1691 = vsel %vm276, %v1561, 0
      %v1694 = vsel %vm276, %v1563, 0
      %v1697 = vsel %vm276, %v1565, 0
      %v1700 = vsel %vm276, %v1567, 0
      %v1703 = vsel %vm276, %v1569, 0
      %v1706 = vsel %vm276, %v1571, 0
      %v1709 = vsel %vm276, %v1573, 0
      %v1712 = vsel %vm276, %v1575, 0
      %v1715 = vsel %vm276, %v1577, 0
      %v1718 = vsel %vm276, %v1579, 0
      %v1721 = vsel %vm276, %v1581, 0
      %v1724 = vsel %vm276, %v1583, 0
      %v1727 = vsel %vm276, %v1585, 0
      %v1730 = vsel %vm276, %v1587, 0
      %v1733 = vsel %vm276, %v1589, 0
      %v1736 = vsel %vm276, %v1591, 0
      %v1739 = vsel %vm276, %v1593, 0
      %v1742 = vsel %vm276, %v1595, 0
      %v1745 = vsel %vm276, %v1597, 0
      %v1748 = vsel %vm276, %v1599, 0
      %v1751 = vsel %vm276, %v1601, 0
      %v1754 = vsel %vm276, %v1603, 0
      %v1757 = vsel %vm276, %v1605, 0
      %v1760 = vsel %vm276, %v1607, 0
      %v1763 = vsel %vm276, %v1609, 0
      %v1766 = vsel %vm276, %v1611, 0
      %1768 = vmatpush.msra.mxu0 %v1642
      %1769 = vmatpush.msra.mxu0 %v1640
      %1770 = vmatpush.msra.mxu0 %v1638
      %1771 = vmatpush.msra.mxu0 %v1636
      %1772 = vmatpush.msra.mxu0 %v1634
      %1773 = vmatpush.msra.mxu0 %v1632
      %1774 = vmatpush.msra.mxu0 %v1630
      %1775 = vmatpush.msra.mxu0 %v1628
      %1776 = vmatpush.msra.mxu0 %v1626
      %1777 = vmatpush.msra.mxu0 %v1624
      %1778 = vmatpush.msra.mxu0 %v1622
      %1779 = vmatpush.msra.mxu0 %v1620
      %1780 = vmatpush.msra.mxu0 %v1618
      %1781 = vmatpush.msra.mxu0 %v1616
      %1782 = vmatpush.msra.mxu0 %v1614
      %1783 = vmatpush.msra.mxu0 %v1612
      %1784 = vmatmul.f32.gmra.mxu0 %v1540
      %v1785 = vpop.f32.mrf.mxu0
      %v1786 = vadd.f32 0.0, %v1785
      %1787 = vmatmul.f32.gmra.mxu0 %v1542
      %v1788 = vpop.f32.mrf.mxu0
      %v1789 = vadd.f32 0.0, %v1788
      %1790 = vmatmul.f32.gmra.mxu0 %v1544
      %v1791 = vpop.f32.mrf.mxu0
      %v1792 = vadd.f32 0.0, %v1791
      %1793 = vmatmul.f32.gmra.mxu0 %v1546
      %v1794 = vpop.f32.mrf.mxu0
      %v1795 = vadd.f32 0.0, %v1794
      %1796 = vmatmul.f32.gmra.mxu0 %v1548
      %v1797 = vpop.f32.mrf.mxu0
      %v1798 = vadd.f32 0.0, %v1797
      %1799 = vmatmul.f32.gmra.mxu0 %v1550
      %v1800 = vpop.f32.mrf.mxu0
      %v1801 = vadd.f32 0.0, %v1800
      %1802 = vmatmul.f32.gmra.mxu0 %v1552
      %v1803 = vpop.f32.mrf.mxu0
      %v1804 = vadd.f32 0.0, %v1803
      %1805 = vmatmul.f32.gmra.mxu0 %v1554
      %v1806 = vpop.f32.mrf.mxu0
      %v1807 = vadd.f32 0.0, %v1806
      %1808 = vmatmul.f32.gmra.mxu0 %v1556
      %v1809 = vpop.f32.mrf.mxu0
      %v1810 = vadd.f32 0.0, %v1809
      %1811 = vmatmul.f32.gmra.mxu0 %v1558
      %v1812 = vpop.f32.mrf.mxu0
      %v1813 = vadd.f32 0.0, %v1812
      %1814 = vmatmul.f32.gmra.mxu0 %v1560
      %v1815 = vpop.f32.mrf.mxu0
      %v1816 = vadd.f32 0.0, %v1815
      %1817 = vmatmul.f32.gmra.mxu0 %v1562
      %v1818 = vpop.f32.mrf.mxu0
      %v1819 = vadd.f32 0.0, %v1818
      %1820 = vmatmul.f32.gmra.mxu0 %v1564
      %v1821 = vpop.f32.mrf.mxu0
      %v1822 = vadd.f32 0.0, %v1821
      %1823 = vmatmul.f32.gmra.mxu0 %v1566
      %v1824 = vpop.f32.mrf.mxu0
      %v1825 = vadd.f32 0.0, %v1824
      %1826 = vmatmul.f32.gmra.mxu0 %v1568
      %v1827 = vpop.f32.mrf.mxu0
      %v1828 = vadd.f32 0.0, %v1827
      %1829 = vmatmul.f32.gmra.mxu0 %v1570
      %v1830 = vpop.f32.mrf.mxu0
      %v1831 = vadd.f32 0.0, %v1830
      %1832 = vmatmul.f32.gmra.mxu0 %v1572
      %v1833 = vpop.f32.mrf.mxu0
      %v1834 = vadd.f32 0.0, %v1833
      %1835 = vmatmul.f32.gmra.mxu0 %v1574
      %v1836 = vpop.f32.mrf.mxu0
      %v1837 = vadd.f32 0.0, %v1836
      %1838 = vmatmul.f32.gmra.mxu0 %v1576
      %v1839 = vpop.f32.mrf.mxu0
      %v1840 = vadd.f32 0.0, %v1839
      %1841 = vmatmul.f32.gmra.mxu0 %v1578
      %v1842 = vpop.f32.mrf.mxu0
      %v1843 = vadd.f32 0.0, %v1842
      %1844 = vmatmul.f32.gmra.mxu0 %v1580
      %v1845 = vpop.f32.mrf.mxu0
      %v1846 = vadd.f32 0.0, %v1845
      %1847 = vmatmul.f32.gmra.mxu0 %v1582
      %v1848 = vpop.f32.mrf.mxu0
      %v1849 = vadd.f32 0.0, %v1848
      %1850 = vmatmul.f32.gmra.mxu0 %v1584
      %v1851 = vpop.f32.mrf.mxu0
      %v1852 = vadd.f32 0.0, %v1851
      %1853 = vmatmul.f32.gmra.mxu0 %v1586
      %v1854 = vpop.f32.mrf.mxu0
      %v1855 = vadd.f32 0.0, %v1854
      %1856 = vmatmul.f32.gmra.mxu0 %v1588
      %v1857 = vpop.f32.mrf.mxu0
      %v1858 = vadd.f32 0.0, %v1857
      %1859 = vmatmul.f32.gmra.mxu0 %v1590
      %v1860 = vpop.f32.mrf.mxu0
      %v1861 = vadd.f32 0.0, %v1860
      %1862 = vmatmul.f32.gmra.mxu0 %v1592
      %v1863 = vpop.f32.mrf.mxu0
      %v1864 = vadd.f32 0.0, %v1863
      %1865 = vmatmul.f32.gmra.mxu0 %v1594
      %v1866 = vpop.f32.mrf.mxu0
      %v1867 = vadd.f32 0.0, %v1866
      %1868 = vmatmul.f32.gmra.mxu0 %v1596
      %v1869 = vpop.f32.mrf.mxu0
      %v1870 = vadd.f32 0.0, %v1869
      %1871 = vmatmul.f32.gmra.mxu0 %v1598
      %v1872 = vpop.f32.mrf.mxu0
      %v1873 = vadd.f32 0.0, %v1872
      %1874 = vmatmul.f32.gmra.mxu0 %v1600
      %v1875 = vpop.f32.mrf.mxu0
      %v1876 = vadd.f32 0.0, %v1875
      %1877 = vmatmul.f32.gmra.mxu0 %v1602
      %v1878 = vpop.f32.mrf.mxu0
      %v1879 = vadd.f32 0.0, %v1878
      %1880 = vmatmul.f32.gmra.mxu0 %v1604
      %v1881 = vpop.f32.mrf.mxu0
      %v1882 = vadd.f32 0.0, %v1881
      %1883 = vmatmul.f32.gmra.mxu0 %v1606
      %v1884 = vpop.f32.mrf.mxu0
      %v1885 = vadd.f32 0.0, %v1884
      %1886 = vmatmul.f32.gmra.mxu0 %v1608
      %v1887 = vpop.f32.mrf.mxu0
      %1888 = vmatmul.f32.gmra.mxu0 %v1610
      %v1889 = vpop.f32.mrf.mxu0
      %1890 = vdwg.mxu0
      %1891 = vmatpush.msra.mxu0 0.0
      %1892 = vmatpush.msra.mxu0 0.0
      %1893 = vmatpush.msra.mxu0 0.0
      %1894 = vmatpush.msra.mxu0 0.0
      %1895 = vmatpush.msra.mxu0 0.0
      %1896 = vmatpush.msra.mxu0 0.0
      %1897 = vmatpush.msra.mxu0 0.0
      %1898 = vmatpush.msra.mxu0 0.0
      %1899 = vmatpush.msra.mxu0 %v1658
      %1900 = vmatpush.msra.mxu0 %v1656
      %1901 = vmatpush.msra.mxu0 %v1654
      %1902 = vmatpush.msra.mxu0 %v1652
      %1903 = vmatpush.msra.mxu0 %v1650
      %1904 = vmatpush.msra.mxu0 %v1648
      %1905 = vmatpush.msra.mxu0 %v1646
      %1906 = vmatpush.msra.mxu0 %v1644
      %1907 = vmatmul.f32.gmra.mxu0 %v1661
      %v1908 = vpop.f32.mrf.mxu0
      %v1909 = vadd.f32 %v1786, %v1908
      %1910 = vmatmul.f32.gmra.mxu0 %v1664
      %v1911 = vpop.f32.mrf.mxu0
      %v1912 = vadd.f32 %v1789, %v1911
      %1913 = vmatmul.f32.gmra.mxu0 %v1667
      %v1914 = vpop.f32.mrf.mxu0
      %v1915 = vadd.f32 %v1792, %v1914
      %1916 = vmatmul.f32.gmra.mxu0 %v1670
      %v1917 = vpop.f32.mrf.mxu0
      %v1918 = vadd.f32 %v1795, %v1917
      %1919 = vmatmul.f32.gmra.mxu0 %v1673
      %v1920 = vpop.f32.mrf.mxu0
      %v1921 = vadd.f32 %v1798, %v1920
      %1922 = vmatmul.f32.gmra.mxu0 %v1676
      %v1923 = vpop.f32.mrf.mxu0
      %v1924 = vadd.f32 %v1801, %v1923
      %1925 = vmatmul.f32.gmra.mxu0 %v1679
      %v1926 = vpop.f32.mrf.mxu0
      %v1927 = vadd.f32 %v1804, %v1926
      %1928 = vmatmul.f32.gmra.mxu0 %v1682
      %v1929 = vpop.f32.mrf.mxu0
      %v1930 = vadd.f32 %v1807, %v1929
      %1931 = vmatmul.f32.gmra.mxu0 %v1685
      %v1932 = vpop.f32.mrf.mxu0
      %v1933 = vadd.f32 %v1810, %v1932
      %1934 = vmatmul.f32.gmra.mxu0 %v1688
      %v1935 = vpop.f32.mrf.mxu0
      %v1936 = vadd.f32 %v1813, %v1935
      %1937 = vmatmul.f32.gmra.mxu0 %v1691
      %v1938 = vpop.f32.mrf.mxu0
      %v1939 = vadd.f32 %v1816, %v1938
      %1940 = vmatmul.f32.gmra.mxu0 %v1694
      %v1941 = vpop.f32.mrf.mxu0
      %v1942 = vadd.f32 %v1819, %v1941
      %1943 = vmatmul.f32.gmra.mxu0 %v1697
      %v1944 = vpop.f32.mrf.mxu0
      %v1945 = vadd.f32 %v1822, %v1944
      %1946 = vmatmul.f32.gmra.mxu0 %v1700
      %v1947 = vpop.f32.mrf.mxu0
      %v1948 = vadd.f32 %v1825, %v1947
      %1949 = vmatmul.f32.gmra.mxu0 %v1703
      %v1950 = vpop.f32.mrf.mxu0
      %v1951 = vadd.f32 %v1828, %v1950
      %1952 = vmatmul.f32.gmra.mxu0 %v1706
      %v1953 = vpop.f32.mrf.mxu0
      %v1954 = vadd.f32 %v1831, %v1953
      %1955 = vmatmul.f32.gmra.mxu0 %v1709
      %v1956 = vpop.f32.mrf.mxu0
      %v1957 = vadd.f32 %v1834, %v1956
      %1958 = vmatmul.f32.gmra.mxu0 %v1712
      %v1959 = vpop.f32.mrf.mxu0
      %v1960 = vadd.f32 %v1837, %v1959
      %1961 = vmatmul.f32.gmra.mxu0 %v1715
      %v1962 = vpop.f32.mrf.mxu0
      %v1963 = vadd.f32 %v1840, %v1962
      %1964 = vmatmul.f32.gmra.mxu0 %v1718
      %v1965 = vpop.f32.mrf.mxu0
      %v1966 = vadd.f32 %v1843, %v1965
      %1967 = vmatmul.f32.gmra.mxu0 %v1721
      %v1968 = vpop.f32.mrf.mxu0
      %v1969 = vadd.f32 %v1846, %v1968
      %1970 = vmatmul.f32.gmra.mxu0 %v1724
      %v1971 = vpop.f32.mrf.mxu0
      %v1972 = vadd.f32 %v1849, %v1971
      %1973 = vmatmul.f32.gmra.mxu0 %v1727
      %v1974 = vpop.f32.mrf.mxu0
      %v1975 = vadd.f32 %v1852, %v1974
      %1976 = vmatmul.f32.gmra.mxu0 %v1730
      %v1977 = vpop.f32.mrf.mxu0
      %v1978 = vadd.f32 %v1855, %v1977
      %1979 = vmatmul.f32.gmra.mxu0 %v1733
      %v1980 = vpop.f32.mrf.mxu0
      %v1981 = vadd.f32 %v1858, %v1980
      %1982 = vmatmul.f32.gmra.mxu0 %v1736
      %v1983 = vpop.f32.mrf.mxu0
      %v1984 = vadd.f32 %v1861, %v1983
      %1985 = vmatmul.f32.gmra.mxu0 %v1739
      %v1986 = vpop.f32.mrf.mxu0
      %v1987 = vadd.f32 %v1864, %v1986
      %1988 = vmatmul.f32.gmra.mxu0 %v1742
      %v1989 = vpop.f32.mrf.mxu0
      %v1990 = vadd.f32 %v1867, %v1989
      %1991 = vmatmul.f32.gmra.mxu0 %v1745
      %v1992 = vpop.f32.mrf.mxu0
      %v1993 = vadd.f32 %v1870, %v1992
      %1994 = vmatmul.f32.gmra.mxu0 %v1748
      %v1995 = vpop.f32.mrf.mxu0
      %v1996 = vadd.f32 %v1873, %v1995
      %1997 = vmatmul.f32.gmra.mxu0 %v1751
      %v1998 = vpop.f32.mrf.mxu0
      %v1999 = vadd.f32 %v1876, %v1998
      %2000 = vmatmul.f32.gmra.mxu0 %v1754
      %v2001 = vpop.f32.mrf.mxu0
      %v2002 = vadd.f32 %v1879, %v2001
      %2003 = vmatmul.f32.gmra.mxu0 %v1757
      %v2004 = vpop.f32.mrf.mxu0
      %v2005 = vadd.f32 %v1882, %v2004
      %2006 = vmatmul.f32.gmra.mxu0 %v1760
      %v2007 = vpop.f32.mrf.mxu0
      %v2008 = vadd.f32 %v1885, %v2007
      %2009 = vmatmul.f32.gmra.mxu0 %v1763
      %v2010 = vpop.f32.mrf.mxu0
      %2011 = vmatmul.f32.gmra.mxu0 %v1766
      %v2012 = vpop.f32.mrf.mxu0
      %2013 = vdwg.mxu0
      %2014 = vmatpush.msra.mxu0 %v1643
      %2015 = vmatpush.msra.mxu0 %v1641
      %2016 = vmatpush.msra.mxu0 %v1639
      %2017 = vmatpush.msra.mxu0 %v1637
      %2018 = vmatpush.msra.mxu0 %v1635
      %2019 = vmatpush.msra.mxu0 %v1633
      %2020 = vmatpush.msra.mxu0 %v1631
      %2021 = vmatpush.msra.mxu0 %v1629
      %2022 = vmatpush.msra.mxu0 %v1627
      %2023 = vmatpush.msra.mxu0 %v1625
      %2024 = vmatpush.msra.mxu0 %v1623
      %2025 = vmatpush.msra.mxu0 %v1621
      %2026 = vmatpush.msra.mxu0 %v1619
      %2027 = vmatpush.msra.mxu0 %v1617
      %2028 = vmatpush.msra.mxu0 %v1615
      %2029 = vmatpush.msra.mxu0 %v1613
      %2030 = vmatmul.f32.gmra.mxu0 %v1540
      %v2031 = vpop.f32.mrf.mxu0
      %2032 = vmatmul.f32.gmra.mxu0 %v1542
      %v2033 = vpop.f32.mrf.mxu0
      %2034 = vmatmul.f32.gmra.mxu0 %v1544
      %v2035 = vpop.f32.mrf.mxu0
      %2036 = vmatmul.f32.gmra.mxu0 %v1546
      %v2037 = vpop.f32.mrf.mxu0
      %2038 = vmatmul.f32.gmra.mxu0 %v1548
      %v2039 = vpop.f32.mrf.mxu0
      %v2040 = vadd.f32 0.0, %v2039
      %2041 = vmatmul.f32.gmra.mxu0 %v1550
      %v2042 = vpop.f32.mrf.mxu0
      %v2043 = vadd.f32 0.0, %v2042
      %2044 = vmatmul.f32.gmra.mxu0 %v1552
      %v2045 = vpop.f32.mrf.mxu0
      %v2046 = vadd.f32 0.0, %v2045
      %2047 = vmatmul.f32.gmra.mxu0 %v1554
      %v2048 = vpop.f32.mrf.mxu0
      %v2049 = vadd.f32 0.0, %v2048
      %2050 = vmatmul.f32.gmra.mxu0 %v1556
      %v2051 = vpop.f32.mrf.mxu0
      %v2052 = vadd.f32 0.0, %v2051
      %2053 = vmatmul.f32.gmra.mxu0 %v1558
      %v2054 = vpop.f32.mrf.mxu0
      %v2055 = vadd.f32 0.0, %v2054
      %2056 = vmatmul.f32.gmra.mxu0 %v1560
      %v2057 = vpop.f32.mrf.mxu0
      %v2058 = vadd.f32 0.0, %v2057
      %2059 = vmatmul.f32.gmra.mxu0 %v1562
      %v2060 = vpop.f32.mrf.mxu0
      %v2061 = vadd.f32 0.0, %v2060
      %2062 = vmatmul.f32.gmra.mxu0 %v1564
      %v2063 = vpop.f32.mrf.mxu0
      %v2064 = vadd.f32 0.0, %v2063
      %2065 = vmatmul.f32.gmra.mxu0 %v1566
      %v2066 = vpop.f32.mrf.mxu0
      %v2067 = vadd.f32 0.0, %v2066
      %2068 = vmatmul.f32.gmra.mxu0 %v1568
      %v2069 = vpop.f32.mrf.mxu0
      %v2070 = vadd.f32 0.0, %v2069
      %2071 = vmatmul.f32.gmra.mxu0 %v1570
      %v2072 = vpop.f32.mrf.mxu0
      %v2073 = vadd.f32 0.0, %v2072
      %2074 = vmatmul.f32.gmra.mxu0 %v1572
      %v2075 = vpop.f32.mrf.mxu0
      %v2076 = vadd.f32 0.0, %v2075
      %2077 = vmatmul.f32.gmra.mxu0 %v1574
      %v2078 = vpop.f32.mrf.mxu0
      %v2079 = vadd.f32 0.0, %v2078
      %2080 = vmatmul.f32.gmra.mxu0 %v1576
      %v2081 = vpop.f32.mrf.mxu0
      %v2082 = vadd.f32 0.0, %v2081
      %2083 = vmatmul.f32.gmra.mxu0 %v1578
      %v2084 = vpop.f32.mrf.mxu0
      %v2085 = vadd.f32 0.0, %v2084
      %2086 = vmatmul.f32.gmra.mxu0 %v1580
      %v2087 = vpop.f32.mrf.mxu0
      %v2088 = vadd.f32 0.0, %v2087
      %2089 = vmatmul.f32.gmra.mxu0 %v1582
      %v2090 = vpop.f32.mrf.mxu0
      %v2091 = vadd.f32 0.0, %v2090
      %2092 = vmatmul.f32.gmra.mxu0 %v1584
      %v2093 = vpop.f32.mrf.mxu0
      %v2094 = vadd.f32 0.0, %v2093
      %2095 = vmatmul.f32.gmra.mxu0 %v1586
      %v2096 = vpop.f32.mrf.mxu0
      %v2097 = vadd.f32 0.0, %v2096
      %2098 = vmatmul.f32.gmra.mxu0 %v1588
      %v2099 = vpop.f32.mrf.mxu0
      %v2100 = vadd.f32 0.0, %v2099
      %2101 = vmatmul.f32.gmra.mxu0 %v1590
      %v2102 = vpop.f32.mrf.mxu0
      %v2103 = vadd.f32 0.0, %v2102
      %2104 = vmatmul.f32.gmra.mxu0 %v1592
      %v2105 = vpop.f32.mrf.mxu0
      %v2106 = vadd.f32 0.0, %v2105
      %2107 = vmatmul.f32.gmra.mxu0 %v1594
      %v2108 = vpop.f32.mrf.mxu0
      %v2109 = vadd.f32 0.0, %v2108
      %2110 = vmatmul.f32.gmra.mxu0 %v1596
      %v2111 = vpop.f32.mrf.mxu0
      %v2112 = vadd.f32 0.0, %v2111
      %2113 = vmatmul.f32.gmra.mxu0 %v1598
      %v2114 = vpop.f32.mrf.mxu0
      %v2115 = vadd.f32 0.0, %v2114
      %2116 = vmatmul.f32.gmra.mxu0 %v1600
      %v2117 = vpop.f32.mrf.mxu0
      %v2118 = vadd.f32 0.0, %v2117
      %2119 = vmatmul.f32.gmra.mxu0 %v1602
      %v2120 = vpop.f32.mrf.mxu0
      %v2121 = vadd.f32 0.0, %v2120
      %2122 = vmatmul.f32.gmra.mxu0 %v1604
      %v2123 = vpop.f32.mrf.mxu0
      %v2124 = vadd.f32 0.0, %v2123
      %2125 = vmatmul.f32.gmra.mxu0 %v1606
      %v2126 = vpop.f32.mrf.mxu0
      %v2127 = vadd.f32 0.0, %v2126
      %2128 = vmatmul.f32.gmra.mxu0 %v1608
      %v2129 = vpop.f32.mrf.mxu0
      %v2130 = vadd.f32 0.0, %v2129
      %2131 = vmatmul.f32.gmra.mxu0 %v1610
      %v2132 = vpop.f32.mrf.mxu0
      %v2133 = vadd.f32 0.0, %v2132
      %2134 = vdwg.mxu0
      %2135 = vmatpush.msra.mxu0 0.0
      %2136 = vmatpush.msra.mxu0 0.0
      %2137 = vmatpush.msra.mxu0 0.0
      %2138 = vmatpush.msra.mxu0 0.0
      %2139 = vmatpush.msra.mxu0 0.0
      %2140 = vmatpush.msra.mxu0 0.0
      %2141 = vmatpush.msra.mxu0 0.0
      %2142 = vmatpush.msra.mxu0 0.0
      %2143 = vmatpush.msra.mxu0 %v1659
      %2144 = vmatpush.msra.mxu0 %v1657
      %2145 = vmatpush.msra.mxu0 %v1655
      %2146 = vmatpush.msra.mxu0 %v1653
      %2147 = vmatpush.msra.mxu0 %v1651
      %2148 = vmatpush.msra.mxu0 %v1649
      %2149 = vmatpush.msra.mxu0 %v1647
      %2150 = vmatpush.msra.mxu0 %v1645
      %2151 = vmatmul.f32.gmra.mxu0 %v1661
      %v2152 = vpop.f32.mrf.mxu0
      %2153 = vmatmul.f32.gmra.mxu0 %v1664
      %v2154 = vpop.f32.mrf.mxu0
      %2155 = vmatmul.f32.gmra.mxu0 %v1667
      %v2156 = vpop.f32.mrf.mxu0
      %2157 = vmatmul.f32.gmra.mxu0 %v1670
      %v2158 = vpop.f32.mrf.mxu0
      %2159 = vmatmul.f32.gmra.mxu0 %v1673
      %v2160 = vpop.f32.mrf.mxu0
      %v2161 = vadd.f32 %v2040, %v2160
      %2162 = vmatmul.f32.gmra.mxu0 %v1676
      %v2163 = vpop.f32.mrf.mxu0
      %v2164 = vadd.f32 %v2043, %v2163
      %2165 = vmatmul.f32.gmra.mxu0 %v1679
      %v2166 = vpop.f32.mrf.mxu0
      %v2167 = vadd.f32 %v2046, %v2166
      %2168 = vmatmul.f32.gmra.mxu0 %v1682
      %v2169 = vpop.f32.mrf.mxu0
      %v2170 = vadd.f32 %v2049, %v2169
      %2171 = vmatmul.f32.gmra.mxu0 %v1685
      %v2172 = vpop.f32.mrf.mxu0
      %v2173 = vadd.f32 %v2052, %v2172
      %2174 = vmatmul.f32.gmra.mxu0 %v1688
      %v2175 = vpop.f32.mrf.mxu0
      %v2176 = vadd.f32 %v2055, %v2175
      %2177 = vmatmul.f32.gmra.mxu0 %v1691
      %v2178 = vpop.f32.mrf.mxu0
      %v2179 = vadd.f32 %v2058, %v2178
      %2180 = vmatmul.f32.gmra.mxu0 %v1694
      %v2181 = vpop.f32.mrf.mxu0
      %v2182 = vadd.f32 %v2061, %v2181
      %2183 = vmatmul.f32.gmra.mxu0 %v1697
      %v2184 = vpop.f32.mrf.mxu0
      %v2185 = vadd.f32 %v2064, %v2184
      %2186 = vmatmul.f32.gmra.mxu0 %v1700
      %v2187 = vpop.f32.mrf.mxu0
      %v2188 = vadd.f32 %v2067, %v2187
      %2189 = vmatmul.f32.gmra.mxu0 %v1703
      %v2190 = vpop.f32.mrf.mxu0
      %v2191 = vadd.f32 %v2070, %v2190
      %2192 = vmatmul.f32.gmra.mxu0 %v1706
      %v2193 = vpop.f32.mrf.mxu0
      %v2194 = vadd.f32 %v2073, %v2193
      %2195 = vmatmul.f32.gmra.mxu0 %v1709
      %v2196 = vpop.f32.mrf.mxu0
      %v2197 = vadd.f32 %v2076, %v2196
      %2198 = vmatmul.f32.gmra.mxu0 %v1712
      %v2199 = vpop.f32.mrf.mxu0
      %v2200 = vadd.f32 %v2079, %v2199
      %2201 = vmatmul.f32.gmra.mxu0 %v1715
      %v2202 = vpop.f32.mrf.mxu0
      %v2203 = vadd.f32 %v2082, %v2202
      %2204 = vmatmul.f32.gmra.mxu0 %v1718
      %v2205 = vpop.f32.mrf.mxu0
      %v2206 = vadd.f32 %v2085, %v2205
      %2207 = vmatmul.f32.gmra.mxu0 %v1721
      %v2208 = vpop.f32.mrf.mxu0
      %v2209 = vadd.f32 %v2088, %v2208
      %2210 = vmatmul.f32.gmra.mxu0 %v1724
      %v2211 = vpop.f32.mrf.mxu0
      %v2212 = vadd.f32 %v2091, %v2211
      %2213 = vmatmul.f32.gmra.mxu0 %v1727
      %v2214 = vpop.f32.mrf.mxu0
      %v2215 = vadd.f32 %v2094, %v2214
      %2216 = vmatmul.f32.gmra.mxu0 %v1730
      %v2217 = vpop.f32.mrf.mxu0
      %v2218 = vadd.f32 %v2097, %v2217
      %2219 = vmatmul.f32.gmra.mxu0 %v1733
      %v2220 = vpop.f32.mrf.mxu0
      %v2221 = vadd.f32 %v2100, %v2220
      %2222 = vmatmul.f32.gmra.mxu0 %v1736
      %v2223 = vpop.f32.mrf.mxu0
      %v2224 = vadd.f32 %v2103, %v2223
      %2225 = vmatmul.f32.gmra.mxu0 %v1739
      %v2226 = vpop.f32.mrf.mxu0
      %v2227 = vadd.f32 %v2106, %v2226
      %2228 = vmatmul.f32.gmra.mxu0 %v1742
      %v2229 = vpop.f32.mrf.mxu0
      %v2230 = vadd.f32 %v2109, %v2229
      %2231 = vmatmul.f32.gmra.mxu0 %v1745
      %v2232 = vpop.f32.mrf.mxu0
      %v2233 = vadd.f32 %v2112, %v2232
      %2234 = vmatmul.f32.gmra.mxu0 %v1748
      %v2235 = vpop.f32.mrf.mxu0
      %v2236 = vadd.f32 %v2115, %v2235
      %2237 = vmatmul.f32.gmra.mxu0 %v1751
      %v2238 = vpop.f32.mrf.mxu0
      %v2239 = vadd.f32 %v2118, %v2238
      %2240 = vmatmul.f32.gmra.mxu0 %v1754
      %v2241 = vpop.f32.mrf.mxu0
      %v2242 = vadd.f32 %v2121, %v2241
      %2243 = vmatmul.f32.gmra.mxu0 %v1757
      %v2244 = vpop.f32.mrf.mxu0
      %v2245 = vadd.f32 %v2124, %v2244
      %2246 = vmatmul.f32.gmra.mxu0 %v1760
      %v2247 = vpop.f32.mrf.mxu0
      %v2248 = vadd.f32 %v2127, %v2247
      %2249 = vmatmul.f32.gmra.mxu0 %v1763
      %v2250 = vpop.f32.mrf.mxu0
      %v2251 = vadd.f32 %v2130, %v2250
      %2252 = vmatmul.f32.gmra.mxu0 %v1766
      %v2253 = vpop.f32.mrf.mxu0
      %v2254 = vadd.f32 %v2133, %v2253
      %2255 = vdwg.mxu0
      %2288 = vrot.lane.b32.xlu0 %v1915, 64
      %v2289 = vpop.permute.xlu0 %2288
      %2290 = vrot.lane.b32.xlu0 %v1918, 64
      %v2291 = vpop.permute.xlu0 %2290
      %2292 = vrot.lane.b32.xlu0 %v1921, 64
      %v2293 = vpop.permute.xlu0 %2292
      %2294 = vrot.lane.b32.xlu0 %v1924, 64
      %v2295 = vpop.permute.xlu0 %2294
      %2296 = vrot.lane.b32.xlu0 %v1927, 64
      %v2297 = vpop.permute.xlu0 %2296
      %2298 = vrot.lane.b32.xlu0 %v1930, 64
      %v2299 = vpop.permute.xlu0 %2298
      %2300 = vrot.lane.b32.xlu0 %v1933, 64
      %v2301 = vpop.permute.xlu0 %2300
      %2302 = vrot.lane.b32.xlu0 %v1936, 64
      %v2303 = vpop.permute.xlu0 %2302
      %2304 = vrot.lane.b32.xlu0 %v1939, 64
      %v2305 = vpop.permute.xlu0 %2304
      %2306 = vrot.lane.b32.xlu0 %v1942, 64
      %v2307 = vpop.permute.xlu0 %2306
      %2308 = vrot.lane.b32.xlu0 %v1945, 64
      %v2309 = vpop.permute.xlu0 %2308
      %2310 = vrot.lane.b32.xlu0 %v1948, 64
      %v2311 = vpop.permute.xlu0 %2310
      %2312 = vrot.lane.b32.xlu0 %v1951, 64
      %v2313 = vpop.permute.xlu0 %2312
      %2314 = vrot.lane.b32.xlu0 %v1954, 64
      %v2315 = vpop.permute.xlu0 %2314
      %2316 = vrot.lane.b32.xlu0 %v1957, 64
      %v2317 = vpop.permute.xlu0 %2316
      %2318 = vrot.lane.b32.xlu0 %v1960, 64
      %v2319 = vpop.permute.xlu0 %2318
      %2320 = vrot.lane.b32.xlu0 %v1963, 64
      %v2321 = vpop.permute.xlu0 %2320
      %2322 = vrot.lane.b32.xlu0 %v1966, 64
      %v2323 = vpop.permute.xlu0 %2322
      %2324 = vrot.lane.b32.xlu0 %v1969, 64
      %v2325 = vpop.permute.xlu0 %2324
      %2326 = vrot.lane.b32.xlu0 %v1972, 64
      %v2327 = vpop.permute.xlu0 %2326
      %2328 = vrot.lane.b32.xlu0 %v1975, 64
      %v2329 = vpop.permute.xlu0 %2328
      %2330 = vrot.lane.b32.xlu0 %v1978, 64
      %v2331 = vpop.permute.xlu0 %2330
      %2332 = vrot.lane.b32.xlu0 %v1981, 64
      %v2333 = vpop.permute.xlu0 %2332
      %2334 = vrot.lane.b32.xlu0 %v1984, 64
      %v2335 = vpop.permute.xlu0 %2334
      %2336 = vrot.lane.b32.xlu0 %v1987, 64
      %v2337 = vpop.permute.xlu0 %2336
      %2338 = vrot.lane.b32.xlu0 %v1990, 64
      %v2339 = vpop.permute.xlu0 %2338
      %2340 = vrot.lane.b32.xlu0 %v1993, 64
      %v2341 = vpop.permute.xlu0 %2340
      %2342 = vrot.lane.b32.xlu0 %v1996, 64
      %v2343 = vpop.permute.xlu0 %2342
      %2344 = vrot.lane.b32.xlu0 %v1999, 64
      %v2345 = vpop.permute.xlu0 %2344
      %2346 = vrot.lane.b32.xlu0 %v2002, 64
      %v2347 = vpop.permute.xlu0 %2346
      %2348 = vrot.lane.b32.xlu0 %v2005, 64
      %v2349 = vpop.permute.xlu0 %2348
      %2350 = vrot.lane.b32.xlu0 %v2008, 64
      %v2351 = vpop.permute.xlu0 %2350
      %v2384 = vadd.f32 %v1909, %v2289
      %v2385 = vadd.f32 %v1912, %v2291
      %v2386 = vadd.f32 %v1915, %v2293
      %v2387 = vadd.f32 %v1918, %v2295
      %v2388 = vadd.f32 %v1921, %v2297
      %v2389 = vadd.f32 %v1924, %v2299
      %v2390 = vadd.f32 %v1927, %v2301
      %v2391 = vadd.f32 %v1930, %v2303
      %v2392 = vadd.f32 %v1933, %v2305
      %v2393 = vadd.f32 %v1936, %v2307
      %v2394 = vadd.f32 %v1939, %v2309
      %v2395 = vadd.f32 %v1942, %v2311
      %v2396 = vadd.f32 %v1945, %v2313
      %v2397 = vadd.f32 %v1948, %v2315
      %v2398 = vadd.f32 %v1951, %v2317
      %v2399 = vadd.f32 %v1954, %v2319
      %v2400 = vadd.f32 %v1957, %v2321
      %v2401 = vadd.f32 %v1960, %v2323
      %v2402 = vadd.f32 %v1963, %v2325
      %v2403 = vadd.f32 %v1966, %v2327
      %v2404 = vadd.f32 %v1969, %v2329
      %v2405 = vadd.f32 %v1972, %v2331
      %v2406 = vadd.f32 %v1975, %v2333
      %v2407 = vadd.f32 %v1978, %v2335
      %v2408 = vadd.f32 %v1981, %v2337
      %v2409 = vadd.f32 %v1984, %v2339
      %v2410 = vadd.f32 %v1987, %v2341
      %v2411 = vadd.f32 %v1990, %v2343
      %v2412 = vadd.f32 %v1993, %v2345
      %v2413 = vadd.f32 %v1996, %v2347
      %v2414 = vadd.f32 %v1999, %v2349
      %v2415 = vadd.f32 %v2002, %v2351
      %v2416 = vadd.f32 %v2384, %v2161
      %v2417 = vadd.f32 %v2385, %v2164
      %v2418 = vadd.f32 %v2386, %v2167
      %v2419 = vadd.f32 %v2387, %v2170
      %v2420 = vadd.f32 %v2388, %v2173
      %v2421 = vadd.f32 %v2389, %v2176
      %v2422 = vadd.f32 %v2390, %v2179
      %v2423 = vadd.f32 %v2391, %v2182
      %v2424 = vadd.f32 %v2392, %v2185
      %v2425 = vadd.f32 %v2393, %v2188
      %v2426 = vadd.f32 %v2394, %v2191
      %v2427 = vadd.f32 %v2395, %v2194
      %v2428 = vadd.f32 %v2396, %v2197
      %v2429 = vadd.f32 %v2397, %v2200
      %v2430 = vadd.f32 %v2398, %v2203
      %v2431 = vadd.f32 %v2399, %v2206
      %v2432 = vadd.f32 %v2400, %v2209
      %v2433 = vadd.f32 %v2401, %v2212
      %v2434 = vadd.f32 %v2402, %v2215
      %v2435 = vadd.f32 %v2403, %v2218
      %v2436 = vadd.f32 %v2404, %v2221
      %v2437 = vadd.f32 %v2405, %v2224
      %v2438 = vadd.f32 %v2406, %v2227
      %v2439 = vadd.f32 %v2407, %v2230
      %v2440 = vadd.f32 %v2408, %v2233
      %v2441 = vadd.f32 %v2409, %v2236
      %v2442 = vadd.f32 %v2410, %v2239
      %v2443 = vadd.f32 %v2411, %v2242
      %v2444 = vadd.f32 %v2412, %v2245
      %v2445 = vadd.f32 %v2413, %v2248
      %v2446 = vadd.f32 %v2414, %v2251
      %v2447 = vadd.f32 %v2415, %v2254
      %s2448 = scalar_lea.vmem %s3, 1
      %v2449 = vld [vmem:[%s2448] sm:$0x1]
      %v2451 = vperm.slane %v2449, 0
      %v2453 = vmul.f32 %v2416, %v2451
      %v2454 = vmul.f32 %v2417, %v2451
      %v2455 = vmul.f32 %v2418, %v2451
      %v2456 = vmul.f32 %v2419, %v2451
      %v2457 = vmul.f32 %v2420, %v2451
      %v2458 = vmul.f32 %v2421, %v2451
      %v2459 = vmul.f32 %v2422, %v2451
      %v2460 = vmul.f32 %v2423, %v2451
      %v2461 = vmul.f32 %v2424, %v2451
      %v2462 = vmul.f32 %v2425, %v2451
      %v2463 = vmul.f32 %v2426, %v2451
      %v2464 = vmul.f32 %v2427, %v2451
      %v2465 = vmul.f32 %v2428, %v2451
      %v2466 = vmul.f32 %v2429, %v2451
      %v2467 = vmul.f32 %v2430, %v2451
      %v2468 = vmul.f32 %v2431, %v2451
      %v2469 = vmul.f32 %v2432, %v2451
      %v2470 = vmul.f32 %v2433, %v2451
      %v2471 = vmul.f32 %v2434, %v2451
      %v2472 = vmul.f32 %v2435, %v2451
      %v2473 = vmul.f32 %v2436, %v2451
      %v2474 = vmul.f32 %v2437, %v2451
      %v2475 = vmul.f32 %v2438, %v2451
      %v2476 = vmul.f32 %v2439, %v2451
      %v2477 = vmul.f32 %v2440, %v2451
      %v2478 = vmul.f32 %v2441, %v2451
      %v2479 = vmul.f32 %v2442, %v2451
      %v2480 = vmul.f32 %v2443, %v2451
      %v2481 = vmul.f32 %v2444, %v2451
      %v2482 = vmul.f32 %v2445, %v2451
      %v2483 = vmul.f32 %v2446, %v2451
      %v2484 = vmul.f32 %v2447, %v2451
      %s2485 = scalar_lea.vmem %s4, 1
      %v2486 = vld [vmem:[%s2485] sm:$0x1]
      %v2488 = vperm.slane %v2486, 0
      %v2490 = vadd.f32 %v2453, %v2488
      %v2491 = vadd.f32 %v2454, %v2488
      %v2492 = vadd.f32 %v2455, %v2488
      %v2493 = vadd.f32 %v2456, %v2488
      %v2494 = vadd.f32 %v2457, %v2488
      %v2495 = vadd.f32 %v2458, %v2488
      %v2496 = vadd.f32 %v2459, %v2488
      %v2497 = vadd.f32 %v2460, %v2488
      %v2498 = vadd.f32 %v2461, %v2488
      %v2499 = vadd.f32 %v2462, %v2488
      %v2500 = vadd.f32 %v2463, %v2488
      %v2501 = vadd.f32 %v2464, %v2488
      %v2502 = vadd.f32 %v2465, %v2488
      %v2503 = vadd.f32 %v2466, %v2488
      %v2504 = vadd.f32 %v2467, %v2488
      %v2505 = vadd.f32 %v2468, %v2488
      %v2506 = vadd.f32 %v2469, %v2488
      %v2507 = vadd.f32 %v2470, %v2488
      %v2508 = vadd.f32 %v2471, %v2488
      %v2509 = vadd.f32 %v2472, %v2488
      %v2510 = vadd.f32 %v2473, %v2488
      %v2511 = vadd.f32 %v2474, %v2488
      %v2512 = vadd.f32 %v2475, %v2488
      %v2513 = vadd.f32 %v2476, %v2488
      %v2514 = vadd.f32 %v2477, %v2488
      %v2515 = vadd.f32 %v2478, %v2488
      %v2516 = vadd.f32 %v2479, %v2488
      %v2517 = vadd.f32 %v2480, %v2488
      %v2518 = vadd.f32 %v2481, %v2488
      %v2519 = vadd.f32 %v2482, %v2488
      %v2520 = vadd.f32 %v2483, %v2488
      %v2521 = vadd.f32 %v2484, %v2488
      %v2522 = vadd.f32 %v2490, %v1089
      %v2523 = vadd.f32 %v2491, %v1090
      %v2524 = vadd.f32 %v2492, %v1091
      %v2525 = vadd.f32 %v2493, %v1092
      %v2526 = vadd.f32 %v2494, %v1093
      %v2527 = vadd.f32 %v2495, %v1094
      %v2528 = vadd.f32 %v2496, %v1095
      %v2529 = vadd.f32 %v2497, %v1096
      %v2530 = vadd.f32 %v2498, %v1097
      %v2531 = vadd.f32 %v2499, %v1098
      %v2532 = vadd.f32 %v2500, %v1099
      %v2533 = vadd.f32 %v2501, %v1100
      %v2534 = vadd.f32 %v2502, %v1101
      %v2535 = vadd.f32 %v2503, %v1102
      %v2536 = vadd.f32 %v2504, %v1103
      %v2537 = vadd.f32 %v2505, %v1104
      %v2538 = vadd.f32 %v2506, %v1105
      %v2539 = vadd.f32 %v2507, %v1106
      %v2540 = vadd.f32 %v2508, %v1107
      %v2541 = vadd.f32 %v2509, %v1108
      %v2542 = vadd.f32 %v2510, %v1109
      %v2543 = vadd.f32 %v2511, %v1110
      %v2544 = vadd.f32 %v2512, %v1111
      %v2545 = vadd.f32 %v2513, %v1112
      %v2546 = vadd.f32 %v2514, %v1113
      %v2547 = vadd.f32 %v2515, %v1114
      %v2548 = vadd.f32 %v2516, %v1115
      %v2549 = vadd.f32 %v2517, %v1116
      %v2550 = vadd.f32 %v2518, %v1117
      %v2551 = vadd.f32 %v2519, %v1118
      %v2552 = vadd.f32 %v2520, %v1119
      %v2553 = vadd.f32 %v2521, %v1120
      %v2554 = vmax.f32 %v2522, 0.0
      %v2555 = vmax.f32 %v2523, 0.0
      %v2556 = vmax.f32 %v2524, 0.0
      %v2557 = vmax.f32 %v2525, 0.0
      %v2558 = vmax.f32 %v2526, 0.0
      %v2559 = vmax.f32 %v2527, 0.0
      %v2560 = vmax.f32 %v2528, 0.0
      %v2561 = vmax.f32 %v2529, 0.0
      %v2562 = vmax.f32 %v2530, 0.0
      %v2563 = vmax.f32 %v2531, 0.0
      %v2564 = vmax.f32 %v2532, 0.0
      %v2565 = vmax.f32 %v2533, 0.0
      %v2566 = vmax.f32 %v2534, 0.0
      %v2567 = vmax.f32 %v2535, 0.0
      %v2568 = vmax.f32 %v2536, 0.0
      %v2569 = vmax.f32 %v2537, 0.0
      %v2570 = vmax.f32 %v2538, 0.0
      %v2571 = vmax.f32 %v2539, 0.0
      %v2572 = vmax.f32 %v2540, 0.0
      %v2573 = vmax.f32 %v2541, 0.0
      %v2574 = vmax.f32 %v2542, 0.0
      %v2575 = vmax.f32 %v2543, 0.0
      %v2576 = vmax.f32 %v2544, 0.0
      %v2577 = vmax.f32 %v2545, 0.0
      %v2578 = vmax.f32 %v2546, 0.0
      %v2579 = vmax.f32 %v2547, 0.0
      %v2580 = vmax.f32 %v2548, 0.0
      %v2581 = vmax.f32 %v2549, 0.0
      %v2582 = vmax.f32 %v2550, 0.0
      %v2583 = vmax.f32 %v2551, 0.0
      %v2584 = vmax.f32 %v2552, 0.0
      %v2585 = vmax.f32 %v2553, 0.0
      %v2586 = vrot.slane %v2554, 7
      %v2587 = vrot.slane %v2555, 7
      %v2588 = vrot.slane %v2556, 7
      %v2589 = vrot.slane %v2557, 7
      %v2590 = vrot.slane %v2558, 7
      %v2591 = vrot.slane %v2559, 7
      %v2592 = vrot.slane %v2560, 7
      %v2593 = vrot.slane %v2561, 7
      %v2594 = vrot.slane %v2562, 7
      %v2595 = vrot.slane %v2563, 7
      %v2596 = vrot.slane %v2564, 7
      %v2597 = vrot.slane %v2565, 7
      %v2598 = vrot.slane %v2566, 7
      %v2599 = vrot.slane %v2567, 7
      %v2600 = vrot.slane %v2568, 7
      %v2601 = vrot.slane %v2569, 7
      %v2602 = vrot.slane %v2570, 7
      %v2603 = vrot.slane %v2571, 7
      %v2604 = vrot.slane %v2572, 7
      %v2605 = vrot.slane %v2573, 7
      %v2606 = vrot.slane %v2574, 7
      %v2607 = vrot.slane %v2575, 7
      %v2608 = vrot.slane %v2576, 7
      %v2609 = vrot.slane %v2577, 7
      %v2610 = vrot.slane %v2578, 7
      %v2611 = vrot.slane %v2579, 7
      %v2612 = vrot.slane %v2580, 7
      %v2613 = vrot.slane %v2581, 7
      %v2614 = vrot.slane %v2582, 7
      %v2615 = vrot.slane %v2583, 7
      %v2616 = vrot.slane %v2584, 7
      %v2617 = vrot.slane %v2585, 7
      %v2618 = vsel %vm1153, %v2616, %v2617
      %v2619 = vsel %vm1153, %v2615, %v2616
      %v2620 = vsel %vm1153, %v2614, %v2615
      %v2621 = vsel %vm1153, %v2613, %v2614
      %v2622 = vsel %vm1153, %v2612, %v2613
      %v2623 = vsel %vm1153, %v2611, %v2612
      %v2624 = vsel %vm1153, %v2610, %v2611
      %v2625 = vsel %vm1153, %v2609, %v2610
      %v2626 = vsel %vm1153, %v2608, %v2609
      %v2627 = vsel %vm1153, %v2607, %v2608
      %v2628 = vsel %vm1153, %v2606, %v2607
      %v2629 = vsel %vm1153, %v2605, %v2606
      %v2630 = vsel %vm1153, %v2604, %v2605
      %v2631 = vsel %vm1153, %v2603, %v2604
      %v2632 = vsel %vm1153, %v2602, %v2603
      %v2633 = vsel %vm1153, %v2601, %v2602
      %v2634 = vsel %vm1153, %v2600, %v2601
      %v2635 = vsel %vm1153, %v2599, %v2600
      %v2636 = vsel %vm1153, %v2598, %v2599
      %v2637 = vsel %vm1153, %v2597, %v2598
      %v2638 = vsel %vm1153, %v2596, %v2597
      %v2639 = vsel %vm1153, %v2595, %v2596
      %v2640 = vsel %vm1153, %v2594, %v2595
      %v2641 = vsel %vm1153, %v2593, %v2594
      %v2642 = vsel %vm1153, %v2592, %v2593
      %v2643 = vsel %vm1153, %v2591, %v2592
      %v2644 = vsel %vm1153, %v2590, %v2591
      %v2645 = vsel %vm1153, %v2589, %v2590
      %v2646 = vsel %vm1153, %v2588, %v2589
      %v2647 = vsel %vm1153, %v2587, %v2588
      %v2648 = vsel %vm1153, %v2586, %v2587
      %v2649 = vsel %vm1153, %v2617, %v2586
      %v2650 = vsel %vm702, %v2649, 0.0
      %v2651 = vsel %vm703, %v2648, 0.0
      %v2652 = vsel %vm704, %v2647, 0.0
      %v2653 = vsel %vm705, %v2646, 0.0
      %v2654 = vsel %vm706, %v2645, 0.0
      %v2655 = vsel %vm707, %v2644, 0.0
      %v2656 = vsel %vm708, %v2643, 0.0
      %v2657 = vsel %vm709, %v2642, 0.0
      %v2658 = vsel %vm710, %v2641, 0.0
      %v2659 = vsel %vm711, %v2640, 0.0
      %v2660 = vsel %vm712, %v2639, 0.0
      %v2661 = vsel %vm713, %v2638, 0.0
      %v2662 = vsel %vm714, %v2637, 0.0
      %v2663 = vsel %vm715, %v2636, 0.0
      %v2664 = vsel %vm716, %v2635, 0.0
      %v2665 = vsel %vm717, %v2634, 0.0
      %v2666 = vsel %vm718, %v2633, 0.0
      %v2667 = vsel %vm719, %v2632, 0.0
      %v2668 = vsel %vm720, %v2631, 0.0
      %v2669 = vsel %vm721, %v2630, 0.0
      %v2670 = vsel %vm722, %v2629, 0.0
      %v2671 = vsel %vm723, %v2628, 0.0
      %v2672 = vsel %vm724, %v2627, 0.0
      %v2673 = vsel %vm725, %v2626, 0.0
      %v2674 = vsel %vm726, %v2625, 0.0
      %v2675 = vsel %vm727, %v2624, 0.0
      %v2676 = vsel %vm728, %v2623, 0.0
      %v2677 = vsel %vm729, %v2622, 0.0
      %v2678 = vsel %vm730, %v2621, 0.0
      %v2679 = vsel %vm731, %v2620, 0.0
      %v2680 = vsel %vm732, %v2619, 0.0
      %v2681 = vsel %vm733, %v2618, 0.0
      %v2682 = vrot.slane %v2554, 1
      %v2683 = vrot.slane %v2555, 1
      %v2684 = vrot.slane %v2556, 1
      %v2685 = vrot.slane %v2557, 1
      %v2686 = vrot.slane %v2558, 1
      %v2687 = vrot.slane %v2559, 1
      %v2688 = vrot.slane %v2560, 1
      %v2689 = vrot.slane %v2561, 1
      %v2690 = vrot.slane %v2562, 1
      %v2691 = vrot.slane %v2563, 1
      %v2692 = vrot.slane %v2564, 1
      %v2693 = vrot.slane %v2565, 1
      %v2694 = vrot.slane %v2566, 1
      %v2695 = vrot.slane %v2567, 1
      %v2696 = vrot.slane %v2568, 1
      %v2697 = vrot.slane %v2569, 1
      %v2698 = vrot.slane %v2570, 1
      %v2699 = vrot.slane %v2571, 1
      %v2700 = vrot.slane %v2572, 1
      %v2701 = vrot.slane %v2573, 1
      %v2702 = vrot.slane %v2574, 1
      %v2703 = vrot.slane %v2575, 1
      %v2704 = vrot.slane %v2576, 1
      %v2705 = vrot.slane %v2577, 1
      %v2706 = vrot.slane %v2578, 1
      %v2707 = vrot.slane %v2579, 1
      %v2708 = vrot.slane %v2580, 1
      %v2709 = vrot.slane %v2581, 1
      %v2710 = vrot.slane %v2582, 1
      %v2711 = vrot.slane %v2583, 1
      %v2712 = vrot.slane %v2584, 1
      %v2713 = vrot.slane %v2585, 1
      %v2714 = vsel %vm1250, %v2712, %v2713
      %v2715 = vsel %vm1250, %v2711, %v2712
      %v2716 = vsel %vm1250, %v2710, %v2711
      %v2717 = vsel %vm1250, %v2709, %v2710
      %v2718 = vsel %vm1250, %v2708, %v2709
      %v2719 = vsel %vm1250, %v2707, %v2708
      %v2720 = vsel %vm1250, %v2706, %v2707
      %v2721 = vsel %vm1250, %v2705, %v2706
      %v2722 = vsel %vm1250, %v2704, %v2705
      %v2723 = vsel %vm1250, %v2703, %v2704
      %v2724 = vsel %vm1250, %v2702, %v2703
      %v2725 = vsel %vm1250, %v2701, %v2702
      %v2726 = vsel %vm1250, %v2700, %v2701
      %v2727 = vsel %vm1250, %v2699, %v2700
      %v2728 = vsel %vm1250, %v2698, %v2699
      %v2729 = vsel %vm1250, %v2697, %v2698
      %v2730 = vsel %vm1250, %v2696, %v2697
      %v2731 = vsel %vm1250, %v2695, %v2696
      %v2732 = vsel %vm1250, %v2694, %v2695
      %v2733 = vsel %vm1250, %v2693, %v2694
      %v2734 = vsel %vm1250, %v2692, %v2693
      %v2735 = vsel %vm1250, %v2691, %v2692
      %v2736 = vsel %vm1250, %v2690, %v2691
      %v2737 = vsel %vm1250, %v2689, %v2690
      %v2738 = vsel %vm1250, %v2688, %v2689
      %v2739 = vsel %vm1250, %v2687, %v2688
      %v2740 = vsel %vm1250, %v2686, %v2687
      %v2741 = vsel %vm1250, %v2685, %v2686
      %v2742 = vsel %vm1250, %v2684, %v2685
      %v2743 = vsel %vm1250, %v2683, %v2684
      %v2744 = vsel %vm1250, %v2682, %v2683
      %v2745 = vsel %vm1250, %v2713, %v2682
      %v2746 = vsel %vm734, %v2744, 0.0
      %v2747 = vsel %vm735, %v2743, 0.0
      %v2748 = vsel %vm736, %v2742, 0.0
      %v2749 = vsel %vm737, %v2741, 0.0
      %v2750 = vsel %vm738, %v2740, 0.0
      %v2751 = vsel %vm739, %v2739, 0.0
      %v2752 = vsel %vm740, %v2738, 0.0
      %v2753 = vsel %vm741, %v2737, 0.0
      %v2754 = vsel %vm742, %v2736, 0.0
      %v2755 = vsel %vm743, %v2735, 0.0
      %v2756 = vsel %vm744, %v2734, 0.0
      %v2757 = vsel %vm745, %v2733, 0.0
      %v2758 = vsel %vm746, %v2732, 0.0
      %v2759 = vsel %vm747, %v2731, 0.0
      %v2760 = vsel %vm748, %v2730, 0.0
      %v2761 = vsel %vm749, %v2729, 0.0
      %v2762 = vsel %vm750, %v2728, 0.0
      %v2763 = vsel %vm751, %v2727, 0.0
      %v2764 = vsel %vm752, %v2726, 0.0
      %v2765 = vsel %vm753, %v2725, 0.0
      %v2766 = vsel %vm754, %v2724, 0.0
      %v2767 = vsel %vm755, %v2723, 0.0
      %v2768 = vsel %vm756, %v2722, 0.0
      %v2769 = vsel %vm757, %v2721, 0.0
      %v2770 = vsel %vm758, %v2720, 0.0
      %v2771 = vsel %vm759, %v2719, 0.0
      %v2772 = vsel %vm760, %v2718, 0.0
      %v2773 = vsel %vm761, %v2717, 0.0
      %v2774 = vsel %vm762, %v2716, 0.0
      %v2775 = vsel %vm763, %v2715, 0.0
      %v2776 = vsel %vm764, %v2714, 0.0
      %v2777 = vsel %vm765, %v2745, 0.0
      %2810 = vrot.lane.b32.xlu0 %v2554, 64
      %v2811 = vpop.permute.xlu0 %2810
      %2812 = vrot.lane.b32.xlu0 %v2555, 64
      %v2813 = vpop.permute.xlu0 %2812
      %2814 = vrot.lane.b32.xlu0 %v2556, 64
      %v2815 = vpop.permute.xlu0 %2814
      %2816 = vrot.lane.b32.xlu0 %v2557, 64
      %v2817 = vpop.permute.xlu0 %2816
      %2818 = vrot.lane.b32.xlu0 %v2558, 64
      %v2819 = vpop.permute.xlu0 %2818
      %2820 = vrot.lane.b32.xlu0 %v2559, 64
      %v2821 = vpop.permute.xlu0 %2820
      %2822 = vrot.lane.b32.xlu0 %v2560, 64
      %v2823 = vpop.permute.xlu0 %2822
      %2824 = vrot.lane.b32.xlu0 %v2561, 64
      %v2825 = vpop.permute.xlu0 %2824
      %2826 = vrot.lane.b32.xlu0 %v2562, 64
      %v2827 = vpop.permute.xlu0 %2826
      %2828 = vrot.lane.b32.xlu0 %v2563, 64
      %v2829 = vpop.permute.xlu0 %2828
      %2830 = vrot.lane.b32.xlu0 %v2564, 64
      %v2831 = vpop.permute.xlu0 %2830
      %2832 = vrot.lane.b32.xlu0 %v2565, 64
      %v2833 = vpop.permute.xlu0 %2832
      %2834 = vrot.lane.b32.xlu0 %v2566, 64
      %v2835 = vpop.permute.xlu0 %2834
      %2836 = vrot.lane.b32.xlu0 %v2567, 64
      %v2837 = vpop.permute.xlu0 %2836
      %2838 = vrot.lane.b32.xlu0 %v2568, 64
      %v2839 = vpop.permute.xlu0 %2838
      %2840 = vrot.lane.b32.xlu0 %v2569, 64
      %v2841 = vpop.permute.xlu0 %2840
      %2842 = vrot.lane.b32.xlu0 %v2570, 64
      %v2843 = vpop.permute.xlu0 %2842
      %2844 = vrot.lane.b32.xlu0 %v2571, 64
      %v2845 = vpop.permute.xlu0 %2844
      %2846 = vrot.lane.b32.xlu0 %v2572, 64
      %v2847 = vpop.permute.xlu0 %2846
      %2848 = vrot.lane.b32.xlu0 %v2573, 64
      %v2849 = vpop.permute.xlu0 %2848
      %2850 = vrot.lane.b32.xlu0 %v2574, 64
      %v2851 = vpop.permute.xlu0 %2850
      %2852 = vrot.lane.b32.xlu0 %v2575, 64
      %v2853 = vpop.permute.xlu0 %2852
      %2854 = vrot.lane.b32.xlu0 %v2576, 64
      %v2855 = vpop.permute.xlu0 %2854
      %2856 = vrot.lane.b32.xlu0 %v2577, 64
      %v2857 = vpop.permute.xlu0 %2856
      %2858 = vrot.lane.b32.xlu0 %v2578, 64
      %v2859 = vpop.permute.xlu0 %2858
      %2860 = vrot.lane.b32.xlu0 %v2579, 64
      %v2861 = vpop.permute.xlu0 %2860
      %2862 = vrot.lane.b32.xlu0 %v2580, 64
      %v2863 = vpop.permute.xlu0 %2862
      %2864 = vrot.lane.b32.xlu0 %v2581, 64
      %v2865 = vpop.permute.xlu0 %2864
      %2866 = vrot.lane.b32.xlu0 %v2582, 64
      %v2867 = vpop.permute.xlu0 %2866
      %2868 = vrot.lane.b32.xlu0 %v2583, 64
      %v2869 = vpop.permute.xlu0 %2868
      %2870 = vrot.lane.b32.xlu0 %v2584, 64
      %v2871 = vpop.permute.xlu0 %2870
      %2872 = vrot.lane.b32.xlu0 %v2585, 64
      %v2873 = vpop.permute.xlu0 %2872
      %v2906 = vsel %vm276, %v2650, %v2811
      %v2907 = vsel %vm276, %v2651, %v2813
      %v2908 = vsel %vm276, %v2652, %v2815
      %v2909 = vsel %vm276, %v2653, %v2817
      %v2910 = vsel %vm276, %v2654, %v2819
      %v2911 = vsel %vm276, %v2655, %v2821
      %v2912 = vsel %vm276, %v2656, %v2823
      %v2913 = vsel %vm276, %v2657, %v2825
      %v2914 = vsel %vm276, %v2658, %v2827
      %v2915 = vsel %vm276, %v2659, %v2829
      %v2916 = vsel %vm276, %v2660, %v2831
      %v2917 = vsel %vm276, %v2661, %v2833
      %v2918 = vsel %vm276, %v2662, %v2835
      %v2919 = vsel %vm276, %v2663, %v2837
      %v2920 = vsel %vm276, %v2664, %v2839
      %v2921 = vsel %vm276, %v2665, %v2841
      %v2922 = vsel %vm276, %v2666, %v2843
      %v2923 = vsel %vm276, %v2667, %v2845
      %v2924 = vsel %vm276, %v2668, %v2847
      %v2925 = vsel %vm276, %v2669, %v2849
      %v2926 = vsel %vm276, %v2670, %v2851
      %v2927 = vsel %vm276, %v2671, %v2853
      %v2928 = vsel %vm276, %v2672, %v2855
      %v2929 = vsel %vm276, %v2673, %v2857
      %v2930 = vsel %vm276, %v2674, %v2859
      %v2931 = vsel %vm276, %v2675, %v2861
      %v2932 = vsel %vm276, %v2676, %v2863
      %v2933 = vsel %vm276, %v2677, %v2865
      %v2934 = vsel %vm276, %v2678, %v2867
      %v2935 = vsel %vm276, %v2679, %v2869
      %v2936 = vsel %vm276, %v2680, %v2871
      %v2937 = vsel %vm276, %v2681, %v2873
      %2938 = vst [vmem:[%s1475] sm:$0xff] %v2906
      %2939 = vst.msk [vmem:[%s1475 + $0x8] sm:$0xff] %vm276, %v2746
      %2940 = vst [vmem:[%s1475 + $0x10] sm:$0xff] %v2907
      %2941 = vst.msk [vmem:[%s1475 + $0x18] sm:$0xff] %vm276, %v2747
      %2942 = vst [vmem:[%s1475 + $0x20] sm:$0xff] %v2908
      %2943 = vst.msk [vmem:[%s1475 + $0x28] sm:$0xff] %vm276, %v2748
      %2944 = vst [vmem:[%s1475 + $0x30] sm:$0xff] %v2909
      %2945 = vst.msk [vmem:[%s1475 + $0x38] sm:$0xff] %vm276, %v2749
      %2946 = vst [vmem:[%s1475 + $0x40] sm:$0xff] %v2910
      %2947 = vst.msk [vmem:[%s1475 + $0x48] sm:$0xff] %vm276, %v2750
      %2948 = vst [vmem:[%s1475 + $0x50] sm:$0xff] %v2911
      %2949 = vst.msk [vmem:[%s1475 + $0x58] sm:$0xff] %vm276, %v2751
      %2950 = vst [vmem:[%s1475 + $0x60] sm:$0xff] %v2912
      %2951 = vst.msk [vmem:[%s1475 + $0x68] sm:$0xff] %vm276, %v2752
      %2952 = vst [vmem:[%s1475 + $0x70] sm:$0xff] %v2913
      %2953 = vst.msk [vmem:[%s1475 + $0x78] sm:$0xff] %vm276, %v2753
      %2954 = vst [vmem:[%s1475 + $0x80] sm:$0xff] %v2914
      %2955 = vst.msk [vmem:[%s1475 + $0x88] sm:$0xff] %vm276, %v2754
      %2956 = vst [vmem:[%s1475 + $0x90] sm:$0xff] %v2915
      %2957 = vst.msk [vmem:[%s1475 + $0x98] sm:$0xff] %vm276, %v2755
      %2958 = vst [vmem:[%s1475 + $0xa0] sm:$0xff] %v2916
      %2959 = vst.msk [vmem:[%s1475 + $0xa8] sm:$0xff] %vm276, %v2756
      %2960 = vst [vmem:[%s1475 + $0xb0] sm:$0xff] %v2917
      %2961 = vst.msk [vmem:[%s1475 + $0xb8] sm:$0xff] %vm276, %v2757
      %2962 = vst [vmem:[%s1475 + $0xc0] sm:$0xff] %v2918
      %2963 = vst.msk [vmem:[%s1475 + $0xc8] sm:$0xff] %vm276, %v2758
      %2964 = vst [vmem:[%s1475 + $0xd0] sm:$0xff] %v2919
      %2965 = vst.msk [vmem:[%s1475 + $0xd8] sm:$0xff] %vm276, %v2759
      %2966 = vst [vmem:[%s1475 + $0xe0] sm:$0xff] %v2920
      %2967 = vst.msk [vmem:[%s1475 + $0xe8] sm:$0xff] %vm276, %v2760
      %2968 = vst [vmem:[%s1475 + $0xf0] sm:$0xff] %v2921
      %2969 = vst.msk [vmem:[%s1475 + $0xf8] sm:$0xff] %vm276, %v2761
      %2970 = vst [vmem:[%s1475 + $0x100] sm:$0xff] %v2922
      %2971 = vst.msk [vmem:[%s1475 + $0x108] sm:$0xff] %vm276, %v2762
      %2972 = vst [vmem:[%s1475 + $0x110] sm:$0xff] %v2923
      %2973 = vst.msk [vmem:[%s1475 + $0x118] sm:$0xff] %vm276, %v2763
      %2974 = vst [vmem:[%s1475 + $0x120] sm:$0xff] %v2924
      %2975 = vst.msk [vmem:[%s1475 + $0x128] sm:$0xff] %vm276, %v2764
      %2976 = vst [vmem:[%s1475 + $0x130] sm:$0xff] %v2925
      %2977 = vst.msk [vmem:[%s1475 + $0x138] sm:$0xff] %vm276, %v2765
      %2978 = vst [vmem:[%s1475 + $0x140] sm:$0xff] %v2926
      %2979 = vst.msk [vmem:[%s1475 + $0x148] sm:$0xff] %vm276, %v2766
      %2980 = vst [vmem:[%s1475 + $0x150] sm:$0xff] %v2927
      %2981 = vst.msk [vmem:[%s1475 + $0x158] sm:$0xff] %vm276, %v2767
      %2982 = vst [vmem:[%s1475 + $0x160] sm:$0xff] %v2928
      %2983 = vst.msk [vmem:[%s1475 + $0x168] sm:$0xff] %vm276, %v2768
      %2984 = vst [vmem:[%s1475 + $0x170] sm:$0xff] %v2929
      %2985 = vst.msk [vmem:[%s1475 + $0x178] sm:$0xff] %vm276, %v2769
      %2986 = vst [vmem:[%s1475 + $0x180] sm:$0xff] %v2930
      %2987 = vst.msk [vmem:[%s1475 + $0x188] sm:$0xff] %vm276, %v2770
      %2988 = vst [vmem:[%s1475 + $0x190] sm:$0xff] %v2931
      %2989 = vst.msk [vmem:[%s1475 + $0x198] sm:$0xff] %vm276, %v2771
      %2990 = vst [vmem:[%s1475 + $0x1a0] sm:$0xff] %v2932
      %2991 = vst.msk [vmem:[%s1475 + $0x1a8] sm:$0xff] %vm276, %v2772
      %2992 = vst [vmem:[%s1475 + $0x1b0] sm:$0xff] %v2933
      %2993 = vst.msk [vmem:[%s1475 + $0x1b8] sm:$0xff] %vm276, %v2773
      %2994 = vst [vmem:[%s1475 + $0x1c0] sm:$0xff] %v2934
      %2995 = vst.msk [vmem:[%s1475 + $0x1c8] sm:$0xff] %vm276, %v2774
      %2996 = vst [vmem:[%s1475 + $0x1d0] sm:$0xff] %v2935
      %2997 = vst.msk [vmem:[%s1475 + $0x1d8] sm:$0xff] %vm276, %v2775
      %2998 = vst [vmem:[%s1475 + $0x1e0] sm:$0xff] %v2936
      %2999 = vst.msk [vmem:[%s1475 + $0x1e8] sm:$0xff] %vm276, %v2776
      %3000 = vst [vmem:[%s1475 + $0x1f0] sm:$0xff] %v2937
      %3001 = vst.msk [vmem:[%s1475 + $0x1f8] sm:$0xff] %vm276, %v2777
      %v3002 = vld [vmem:[#allocation2] sm:$0xff]
      %v3003 = vld [vmem:[#allocation2 + $0x8] sm:$0xff]
      %v3004 = vld [vmem:[#allocation2 + $0x10] sm:$0xff]
      %v3005 = vld [vmem:[#allocation2 + $0x18] sm:$0xff]
      %v3006 = vld [vmem:[#allocation2 + $0x20] sm:$0xff]
      %v3007 = vld [vmem:[#allocation2 + $0x28] sm:$0xff]
      %v3008 = vld [vmem:[#allocation2 + $0x30] sm:$0xff]
      %v3009 = vld [vmem:[#allocation2 + $0x38] sm:$0xff]
      %v3010 = vld [vmem:[#allocation2 + $0x40] sm:$0xff]
      %v3011 = vld [vmem:[#allocation2 + $0x48] sm:$0xff]
      %v3012 = vld [vmem:[#allocation2 + $0x50] sm:$0xff]
      %v3013 = vld [vmem:[#allocation2 + $0x58] sm:$0xff]
      %v3014 = vld [vmem:[#allocation2 + $0x60] sm:$0xff]
      %v3015 = vld [vmem:[#allocation2 + $0x68] sm:$0xff]
      %v3016 = vld [vmem:[#allocation2 + $0x70] sm:$0xff]
      %v3017 = vld [vmem:[#allocation2 + $0x78] sm:$0xff]
      %v3018 = vld [vmem:[#allocation2 + $0x80] sm:$0xff]
      %v3019 = vld [vmem:[#allocation2 + $0x88] sm:$0xff]
      %v3020 = vld [vmem:[#allocation2 + $0x90] sm:$0xff]
      %v3021 = vld [vmem:[#allocation2 + $0x98] sm:$0xff]
      %v3022 = vld [vmem:[#allocation2 + $0xa0] sm:$0xff]
      %v3023 = vld [vmem:[#allocation2 + $0xa8] sm:$0xff]
      %v3024 = vld [vmem:[#allocation2 + $0xb0] sm:$0xff]
      %v3025 = vld [vmem:[#allocation2 + $0xb8] sm:$0xff]
      %v3026 = vld [vmem:[#allocation2 + $0xc0] sm:$0xff]
      %v3027 = vld [vmem:[#allocation2 + $0xc8] sm:$0xff]
      %v3028 = vld [vmem:[#allocation2 + $0xd0] sm:$0xff]
      %v3029 = vld [vmem:[#allocation2 + $0xd8] sm:$0xff]
      %v3030 = vld [vmem:[#allocation2 + $0xe0] sm:$0xff]
      %v3031 = vld [vmem:[#allocation2 + $0xe8] sm:$0xff]
      %v3032 = vld [vmem:[#allocation2 + $0xf0] sm:$0xff]
      %v3033 = vld [vmem:[#allocation2 + $0xf8] sm:$0xff]
      %v3034 = vld [vmem:[#allocation2 + $0x100] sm:$0xff]
      %v3035 = vld [vmem:[#allocation2 + $0x108] sm:$0xff]
      %v3036 = vld [vmem:[#allocation2 + $0x110] sm:$0xff]
      %v3037 = vld [vmem:[#allocation2 + $0x118] sm:$0xff]
      %v3038 = vld [vmem:[#allocation2 + $0x120] sm:$0xff]
      %v3039 = vld [vmem:[#allocation2 + $0x128] sm:$0xff]
      %v3040 = vld [vmem:[#allocation2 + $0x130] sm:$0xff]
      %v3041 = vld [vmem:[#allocation2 + $0x138] sm:$0xff]
      %v3042 = vld [vmem:[#allocation2 + $0x140] sm:$0xff]
      %v3043 = vld [vmem:[#allocation2 + $0x148] sm:$0xff]
      %v3044 = vld [vmem:[#allocation2 + $0x150] sm:$0xff]
      %v3045 = vld [vmem:[#allocation2 + $0x158] sm:$0xff]
      %v3046 = vld [vmem:[#allocation2 + $0x160] sm:$0xff]
      %v3047 = vld [vmem:[#allocation2 + $0x168] sm:$0xff]
      %v3048 = vld [vmem:[#allocation2 + $0x170] sm:$0xff]
      %v3049 = vld [vmem:[#allocation2 + $0x178] sm:$0xff]
      %v3050 = vld [vmem:[#allocation2 + $0x180] sm:$0xff]
      %v3051 = vld [vmem:[#allocation2 + $0x188] sm:$0xff]
      %v3052 = vld [vmem:[#allocation2 + $0x190] sm:$0xff]
      %v3053 = vld [vmem:[#allocation2 + $0x198] sm:$0xff]
      %v3054 = vld [vmem:[#allocation2 + $0x1a0] sm:$0xff]
      %v3055 = vld [vmem:[#allocation2 + $0x1a8] sm:$0xff]
      %v3056 = vld [vmem:[#allocation2 + $0x1b0] sm:$0xff]
      %v3057 = vld [vmem:[#allocation2 + $0x1b8] sm:$0xff]
      %v3058 = vld [vmem:[#allocation2 + $0x1c0] sm:$0xff]
      %v3059 = vld [vmem:[#allocation2 + $0x1c8] sm:$0xff]
      %v3060 = vld [vmem:[#allocation2 + $0x1d0] sm:$0xff]
      %v3061 = vld [vmem:[#allocation2 + $0x1d8] sm:$0xff]
      %v3062 = vld [vmem:[#allocation2 + $0x1e0] sm:$0xff]
      %v3063 = vld [vmem:[#allocation2 + $0x1e8] sm:$0xff]
      %v3064 = vld [vmem:[#allocation2 + $0x1f0] sm:$0xff]
      %v3065 = vld [vmem:[#allocation2 + $0x1f8] sm:$0xff]
      %v3066 = vld [vmem:[#allocation2 + $0x200] sm:$0xff]
      %v3067 = vld [vmem:[#allocation2 + $0x208] sm:$0xff]
      %v3068 = vld [vmem:[#allocation2 + $0x210] sm:$0xff]
      %v3069 = vld [vmem:[#allocation2 + $0x218] sm:$0xff]
      %v3070 = vld [vmem:[#allocation2 + $0x220] sm:$0xff]
      %v3071 = vld [vmem:[#allocation2 + $0x228] sm:$0xff]
      %v3072 = vld [vmem:[#allocation2 + $0x230] sm:$0xff]
      %v3073 = vld [vmem:[#allocation2 + $0x238] sm:$0xff]
      %s3074 = scalar_lea.vmem %s2, 384
      %v3075 = vld [vmem:[%s3074] sm:$0xff]
      %v3076 = vld [vmem:[%s3074 + $0x8] sm:$0xff]
      %v3077 = vld [vmem:[%s3074 + $0x10] sm:$0xff]
      %v3078 = vld [vmem:[%s3074 + $0x18] sm:$0xff]
      %v3079 = vld [vmem:[%s3074 + $0x20] sm:$0xff]
      %v3080 = vld [vmem:[%s3074 + $0x28] sm:$0xff]
      %v3081 = vld [vmem:[%s3074 + $0x30] sm:$0xff]
      %v3082 = vld [vmem:[%s3074 + $0x38] sm:$0xff]
      %v3083 = vld [vmem:[%s3074 + $0x40] sm:$0xff]
      %v3084 = vld [vmem:[%s3074 + $0x48] sm:$0xff]
      %v3085 = vld [vmem:[%s3074 + $0x50] sm:$0xff]
      %v3086 = vld [vmem:[%s3074 + $0x58] sm:$0xff]
      %v3087 = vld [vmem:[%s3074 + $0x60] sm:$0xff]
      %v3088 = vld [vmem:[%s3074 + $0x68] sm:$0xff]
      %v3089 = vld [vmem:[%s3074 + $0x70] sm:$0xff]
      %v3090 = vld [vmem:[%s3074 + $0x78] sm:$0xff]
      %v3091 = vld [vmem:[%s3074 + $0x80] sm:$0xff]
      %v3092 = vld [vmem:[%s3074 + $0x88] sm:$0xff]
      %v3093 = vld [vmem:[%s3074 + $0x90] sm:$0xff]
      %v3094 = vld [vmem:[%s3074 + $0x98] sm:$0xff]
      %v3095 = vld [vmem:[%s3074 + $0xa0] sm:$0xff]
      %v3096 = vld [vmem:[%s3074 + $0xa8] sm:$0xff]
      %v3097 = vld [vmem:[%s3074 + $0xb0] sm:$0xff]
      %v3098 = vld [vmem:[%s3074 + $0xb8] sm:$0xff]
      %v3099 = vld [vmem:[%s3074 + $0xc0] sm:$0xff]
      %v3100 = vld [vmem:[%s3074 + $0xc8] sm:$0xff]
      %v3101 = vld [vmem:[%s3074 + $0xd0] sm:$0xff]
      %v3102 = vld [vmem:[%s3074 + $0xd8] sm:$0xff]
      %v3103 = vld [vmem:[%s3074 + $0xe0] sm:$0xff]
      %v3104 = vld [vmem:[%s3074 + $0xe8] sm:$0xff]
      %v3105 = vld [vmem:[%s3074 + $0xf0] sm:$0xff]
      %v3106 = vld [vmem:[%s3074 + $0xf8] sm:$0xff]
      %v3107 = vld [vmem:[%s3074 + $0x100] sm:$0xff]
      %v3108 = vld [vmem:[%s3074 + $0x108] sm:$0xff]
      %v3109 = vld [vmem:[%s3074 + $0x110] sm:$0xff]
      %v3110 = vld [vmem:[%s3074 + $0x118] sm:$0xff]
      %v3111 = vld [vmem:[%s3074 + $0x120] sm:$0xff]
      %v3112 = vld [vmem:[%s3074 + $0x128] sm:$0xff]
      %v3113 = vld [vmem:[%s3074 + $0x130] sm:$0xff]
      %v3114 = vld [vmem:[%s3074 + $0x138] sm:$0xff]
      %v3115 = vld [vmem:[%s3074 + $0x140] sm:$0xff]
      %v3116 = vld [vmem:[%s3074 + $0x148] sm:$0xff]
      %v3117 = vld [vmem:[%s3074 + $0x150] sm:$0xff]
      %v3118 = vld [vmem:[%s3074 + $0x158] sm:$0xff]
      %v3119 = vld [vmem:[%s3074 + $0x160] sm:$0xff]
      %v3120 = vld [vmem:[%s3074 + $0x168] sm:$0xff]
      %v3121 = vld [vmem:[%s3074 + $0x170] sm:$0xff]
      %v3122 = vld [vmem:[%s3074 + $0x178] sm:$0xff]
      %v3124 = vsel %vm276, %v3003, 0
      %v3127 = vsel %vm276, %v3005, 0
      %v3130 = vsel %vm276, %v3007, 0
      %v3133 = vsel %vm276, %v3009, 0
      %v3136 = vsel %vm276, %v3011, 0
      %v3139 = vsel %vm276, %v3013, 0
      %v3142 = vsel %vm276, %v3015, 0
      %v3145 = vsel %vm276, %v3017, 0
      %v3148 = vsel %vm276, %v3019, 0
      %v3151 = vsel %vm276, %v3021, 0
      %v3154 = vsel %vm276, %v3023, 0
      %v3157 = vsel %vm276, %v3025, 0
      %v3160 = vsel %vm276, %v3027, 0
      %v3163 = vsel %vm276, %v3029, 0
      %v3166 = vsel %vm276, %v3031, 0
      %v3169 = vsel %vm276, %v3033, 0
      %v3172 = vsel %vm276, %v3035, 0
      %v3175 = vsel %vm276, %v3037, 0
      %v3178 = vsel %vm276, %v3039, 0
      %v3181 = vsel %vm276, %v3041, 0
      %v3184 = vsel %vm276, %v3043, 0
      %v3187 = vsel %vm276, %v3045, 0
      %v3190 = vsel %vm276, %v3047, 0
      %v3193 = vsel %vm276, %v3049, 0
      %v3196 = vsel %vm276, %v3051, 0
      %v3199 = vsel %vm276, %v3053, 0
      %v3202 = vsel %vm276, %v3055, 0
      %v3205 = vsel %vm276, %v3057, 0
      %v3208 = vsel %vm276, %v3059, 0
      %v3211 = vsel %vm276, %v3061, 0
      %v3214 = vsel %vm276, %v3063, 0
      %v3217 = vsel %vm276, %v3065, 0
      %v3220 = vsel %vm276, %v3067, 0
      %v3223 = vsel %vm276, %v3069, 0
      %v3226 = vsel %vm276, %v3071, 0
      %v3229 = vsel %vm276, %v3073, 0
      %3231 = vmatpush.msra.mxu0 %v3105
      %3232 = vmatpush.msra.mxu0 %v3103
      %3233 = vmatpush.msra.mxu0 %v3101
      %3234 = vmatpush.msra.mxu0 %v3099
      %3235 = vmatpush.msra.mxu0 %v3097
      %3236 = vmatpush.msra.mxu0 %v3095
      %3237 = vmatpush.msra.mxu0 %v3093
      %3238 = vmatpush.msra.mxu0 %v3091
      %3239 = vmatpush.msra.mxu0 %v3089
      %3240 = vmatpush.msra.mxu0 %v3087
      %3241 = vmatpush.msra.mxu0 %v3085
      %3242 = vmatpush.msra.mxu0 %v3083
      %3243 = vmatpush.msra.mxu0 %v3081
      %3244 = vmatpush.msra.mxu0 %v3079
      %3245 = vmatpush.msra.mxu0 %v3077
      %3246 = vmatpush.msra.mxu0 %v3075
      %3247 = vmatmul.f32.gmra.mxu0 %v3002
      %v3248 = vpop.f32.mrf.mxu0
      %v3249 = vadd.f32 0.0, %v3248
      %3250 = vmatmul.f32.gmra.mxu0 %v3004
      %v3251 = vpop.f32.mrf.mxu0
      %v3252 = vadd.f32 0.0, %v3251
      %3253 = vmatmul.f32.gmra.mxu0 %v3006
      %v3254 = vpop.f32.mrf.mxu0
      %v3255 = vadd.f32 0.0, %v3254
      %3256 = vmatmul.f32.gmra.mxu0 %v3008
      %v3257 = vpop.f32.mrf.mxu0
      %v3258 = vadd.f32 0.0, %v3257
      %3259 = vmatmul.f32.gmra.mxu0 %v3010
      %v3260 = vpop.f32.mrf.mxu0
      %v3261 = vadd.f32 0.0, %v3260
      %3262 = vmatmul.f32.gmra.mxu0 %v3012
      %v3263 = vpop.f32.mrf.mxu0
      %v3264 = vadd.f32 0.0, %v3263
      %3265 = vmatmul.f32.gmra.mxu0 %v3014
      %v3266 = vpop.f32.mrf.mxu0
      %v3267 = vadd.f32 0.0, %v3266
      %3268 = vmatmul.f32.gmra.mxu0 %v3016
      %v3269 = vpop.f32.mrf.mxu0
      %v3270 = vadd.f32 0.0, %v3269
      %3271 = vmatmul.f32.gmra.mxu0 %v3018
      %v3272 = vpop.f32.mrf.mxu0
      %v3273 = vadd.f32 0.0, %v3272
      %3274 = vmatmul.f32.gmra.mxu0 %v3020
      %v3275 = vpop.f32.mrf.mxu0
      %v3276 = vadd.f32 0.0, %v3275
      %3277 = vmatmul.f32.gmra.mxu0 %v3022
      %v3278 = vpop.f32.mrf.mxu0
      %v3279 = vadd.f32 0.0, %v3278
      %3280 = vmatmul.f32.gmra.mxu0 %v3024
      %v3281 = vpop.f32.mrf.mxu0
      %v3282 = vadd.f32 0.0, %v3281
      %3283 = vmatmul.f32.gmra.mxu0 %v3026
      %v3284 = vpop.f32.mrf.mxu0
      %v3285 = vadd.f32 0.0, %v3284
      %3286 = vmatmul.f32.gmra.mxu0 %v3028
      %v3287 = vpop.f32.mrf.mxu0
      %v3288 = vadd.f32 0.0, %v3287
      %3289 = vmatmul.f32.gmra.mxu0 %v3030
      %v3290 = vpop.f32.mrf.mxu0
      %v3291 = vadd.f32 0.0, %v3290
      %3292 = vmatmul.f32.gmra.mxu0 %v3032
      %v3293 = vpop.f32.mrf.mxu0
      %v3294 = vadd.f32 0.0, %v3293
      %3295 = vmatmul.f32.gmra.mxu0 %v3034
      %v3296 = vpop.f32.mrf.mxu0
      %v3297 = vadd.f32 0.0, %v3296
      %3298 = vmatmul.f32.gmra.mxu0 %v3036
      %v3299 = vpop.f32.mrf.mxu0
      %v3300 = vadd.f32 0.0, %v3299
      %3301 = vmatmul.f32.gmra.mxu0 %v3038
      %v3302 = vpop.f32.mrf.mxu0
      %v3303 = vadd.f32 0.0, %v3302
      %3304 = vmatmul.f32.gmra.mxu0 %v3040
      %v3305 = vpop.f32.mrf.mxu0
      %v3306 = vadd.f32 0.0, %v3305
      %3307 = vmatmul.f32.gmra.mxu0 %v3042
      %v3308 = vpop.f32.mrf.mxu0
      %v3309 = vadd.f32 0.0, %v3308
      %3310 = vmatmul.f32.gmra.mxu0 %v3044
      %v3311 = vpop.f32.mrf.mxu0
      %v3312 = vadd.f32 0.0, %v3311
      %3313 = vmatmul.f32.gmra.mxu0 %v3046
      %v3314 = vpop.f32.mrf.mxu0
      %v3315 = vadd.f32 0.0, %v3314
      %3316 = vmatmul.f32.gmra.mxu0 %v3048
      %v3317 = vpop.f32.mrf.mxu0
      %v3318 = vadd.f32 0.0, %v3317
      %3319 = vmatmul.f32.gmra.mxu0 %v3050
      %v3320 = vpop.f32.mrf.mxu0
      %v3321 = vadd.f32 0.0, %v3320
      %3322 = vmatmul.f32.gmra.mxu0 %v3052
      %v3323 = vpop.f32.mrf.mxu0
      %v3324 = vadd.f32 0.0, %v3323
      %3325 = vmatmul.f32.gmra.mxu0 %v3054
      %v3326 = vpop.f32.mrf.mxu0
      %v3327 = vadd.f32 0.0, %v3326
      %3328 = vmatmul.f32.gmra.mxu0 %v3056
      %v3329 = vpop.f32.mrf.mxu0
      %v3330 = vadd.f32 0.0, %v3329
      %3331 = vmatmul.f32.gmra.mxu0 %v3058
      %v3332 = vpop.f32.mrf.mxu0
      %v3333 = vadd.f32 0.0, %v3332
      %3334 = vmatmul.f32.gmra.mxu0 %v3060
      %v3335 = vpop.f32.mrf.mxu0
      %v3336 = vadd.f32 0.0, %v3335
      %3337 = vmatmul.f32.gmra.mxu0 %v3062
      %v3338 = vpop.f32.mrf.mxu0
      %v3339 = vadd.f32 0.0, %v3338
      %3340 = vmatmul.f32.gmra.mxu0 %v3064
      %v3341 = vpop.f32.mrf.mxu0
      %v3342 = vadd.f32 0.0, %v3341
      %3343 = vmatmul.f32.gmra.mxu0 %v3066
      %v3344 = vpop.f32.mrf.mxu0
      %v3345 = vadd.f32 0.0, %v3344
      %3346 = vmatmul.f32.gmra.mxu0 %v3068
      %v3347 = vpop.f32.mrf.mxu0
      %v3348 = vadd.f32 0.0, %v3347
      %3349 = vmatmul.f32.gmra.mxu0 %v3070
      %v3350 = vpop.f32.mrf.mxu0
      %3351 = vmatmul.f32.gmra.mxu0 %v3072
      %v3352 = vpop.f32.mrf.mxu0
      %3353 = vdwg.mxu0
      %3354 = vmatpush.msra.mxu0 0.0
      %3355 = vmatpush.msra.mxu0 0.0
      %3356 = vmatpush.msra.mxu0 0.0
      %3357 = vmatpush.msra.mxu0 0.0
      %3358 = vmatpush.msra.mxu0 0.0
      %3359 = vmatpush.msra.mxu0 0.0
      %3360 = vmatpush.msra.mxu0 0.0
      %3361 = vmatpush.msra.mxu0 0.0
      %3362 = vmatpush.msra.mxu0 %v3121
      %3363 = vmatpush.msra.mxu0 %v3119
      %3364 = vmatpush.msra.mxu0 %v3117
      %3365 = vmatpush.msra.mxu0 %v3115
      %3366 = vmatpush.msra.mxu0 %v3113
      %3367 = vmatpush.msra.mxu0 %v3111
      %3368 = vmatpush.msra.mxu0 %v3109
      %3369 = vmatpush.msra.mxu0 %v3107
      %3370 = vmatmul.f32.gmra.mxu0 %v3124
      %v3371 = vpop.f32.mrf.mxu0
      %v3372 = vadd.f32 %v3249, %v3371
      %3373 = vmatmul.f32.gmra.mxu0 %v3127
      %v3374 = vpop.f32.mrf.mxu0
      %v3375 = vadd.f32 %v3252, %v3374
      %3376 = vmatmul.f32.gmra.mxu0 %v3130
      %v3377 = vpop.f32.mrf.mxu0
      %v3378 = vadd.f32 %v3255, %v3377
      %3379 = vmatmul.f32.gmra.mxu0 %v3133
      %v3380 = vpop.f32.mrf.mxu0
      %v3381 = vadd.f32 %v3258, %v3380
      %3382 = vmatmul.f32.gmra.mxu0 %v3136
      %v3383 = vpop.f32.mrf.mxu0
      %v3384 = vadd.f32 %v3261, %v3383
      %3385 = vmatmul.f32.gmra.mxu0 %v3139
      %v3386 = vpop.f32.mrf.mxu0
      %v3387 = vadd.f32 %v3264, %v3386
      %3388 = vmatmul.f32.gmra.mxu0 %v3142
      %v3389 = vpop.f32.mrf.mxu0
      %v3390 = vadd.f32 %v3267, %v3389
      %3391 = vmatmul.f32.gmra.mxu0 %v3145
      %v3392 = vpop.f32.mrf.mxu0
      %v3393 = vadd.f32 %v3270, %v3392
      %3394 = vmatmul.f32.gmra.mxu0 %v3148
      %v3395 = vpop.f32.mrf.mxu0
      %v3396 = vadd.f32 %v3273, %v3395
      %3397 = vmatmul.f32.gmra.mxu0 %v3151
      %v3398 = vpop.f32.mrf.mxu0
      %v3399 = vadd.f32 %v3276, %v3398
      %3400 = vmatmul.f32.gmra.mxu0 %v3154
      %v3401 = vpop.f32.mrf.mxu0
      %v3402 = vadd.f32 %v3279, %v3401
      %3403 = vmatmul.f32.gmra.mxu0 %v3157
      %v3404 = vpop.f32.mrf.mxu0
      %v3405 = vadd.f32 %v3282, %v3404
      %3406 = vmatmul.f32.gmra.mxu0 %v3160
      %v3407 = vpop.f32.mrf.mxu0
      %v3408 = vadd.f32 %v3285, %v3407
      %3409 = vmatmul.f32.gmra.mxu0 %v3163
      %v3410 = vpop.f32.mrf.mxu0
      %v3411 = vadd.f32 %v3288, %v3410
      %3412 = vmatmul.f32.gmra.mxu0 %v3166
      %v3413 = vpop.f32.mrf.mxu0
      %v3414 = vadd.f32 %v3291, %v3413
      %3415 = vmatmul.f32.gmra.mxu0 %v3169
      %v3416 = vpop.f32.mrf.mxu0
      %v3417 = vadd.f32 %v3294, %v3416
      %3418 = vmatmul.f32.gmra.mxu0 %v3172
      %v3419 = vpop.f32.mrf.mxu0
      %v3420 = vadd.f32 %v3297, %v3419
      %3421 = vmatmul.f32.gmra.mxu0 %v3175
      %v3422 = vpop.f32.mrf.mxu0
      %v3423 = vadd.f32 %v3300, %v3422
      %3424 = vmatmul.f32.gmra.mxu0 %v3178
      %v3425 = vpop.f32.mrf.mxu0
      %v3426 = vadd.f32 %v3303, %v3425
      %3427 = vmatmul.f32.gmra.mxu0 %v3181
      %v3428 = vpop.f32.mrf.mxu0
      %v3429 = vadd.f32 %v3306, %v3428
      %3430 = vmatmul.f32.gmra.mxu0 %v3184
      %v3431 = vpop.f32.mrf.mxu0
      %v3432 = vadd.f32 %v3309, %v3431
      %3433 = vmatmul.f32.gmra.mxu0 %v3187
      %v3434 = vpop.f32.mrf.mxu0
      %v3435 = vadd.f32 %v3312, %v3434
      %3436 = vmatmul.f32.gmra.mxu0 %v3190
      %v3437 = vpop.f32.mrf.mxu0
      %v3438 = vadd.f32 %v3315, %v3437
      %3439 = vmatmul.f32.gmra.mxu0 %v3193
      %v3440 = vpop.f32.mrf.mxu0
      %v3441 = vadd.f32 %v3318, %v3440
      %3442 = vmatmul.f32.gmra.mxu0 %v3196
      %v3443 = vpop.f32.mrf.mxu0
      %v3444 = vadd.f32 %v3321, %v3443
      %3445 = vmatmul.f32.gmra.mxu0 %v3199
      %v3446 = vpop.f32.mrf.mxu0
      %v3447 = vadd.f32 %v3324, %v3446
      %3448 = vmatmul.f32.gmra.mxu0 %v3202
      %v3449 = vpop.f32.mrf.mxu0
      %v3450 = vadd.f32 %v3327, %v3449
      %3451 = vmatmul.f32.gmra.mxu0 %v3205
      %v3452 = vpop.f32.mrf.mxu0
      %v3453 = vadd.f32 %v3330, %v3452
      %3454 = vmatmul.f32.gmra.mxu0 %v3208
      %v3455 = vpop.f32.mrf.mxu0
      %v3456 = vadd.f32 %v3333, %v3455
      %3457 = vmatmul.f32.gmra.mxu0 %v3211
      %v3458 = vpop.f32.mrf.mxu0
      %v3459 = vadd.f32 %v3336, %v3458
      %3460 = vmatmul.f32.gmra.mxu0 %v3214
      %v3461 = vpop.f32.mrf.mxu0
      %v3462 = vadd.f32 %v3339, %v3461
      %3463 = vmatmul.f32.gmra.mxu0 %v3217
      %v3464 = vpop.f32.mrf.mxu0
      %v3465 = vadd.f32 %v3342, %v3464
      %3466 = vmatmul.f32.gmra.mxu0 %v3220
      %v3467 = vpop.f32.mrf.mxu0
      %v3468 = vadd.f32 %v3345, %v3467
      %3469 = vmatmul.f32.gmra.mxu0 %v3223
      %v3470 = vpop.f32.mrf.mxu0
      %v3471 = vadd.f32 %v3348, %v3470
      %3472 = vmatmul.f32.gmra.mxu0 %v3226
      %v3473 = vpop.f32.mrf.mxu0
      %3474 = vmatmul.f32.gmra.mxu0 %v3229
      %v3475 = vpop.f32.mrf.mxu0
      %3476 = vdwg.mxu0
      %3477 = vmatpush.msra.mxu0 %v3106
      %3478 = vmatpush.msra.mxu0 %v3104
      %3479 = vmatpush.msra.mxu0 %v3102
      %3480 = vmatpush.msra.mxu0 %v3100
      %3481 = vmatpush.msra.mxu0 %v3098
      %3482 = vmatpush.msra.mxu0 %v3096
      %3483 = vmatpush.msra.mxu0 %v3094
      %3484 = vmatpush.msra.mxu0 %v3092
      %3485 = vmatpush.msra.mxu0 %v3090
      %3486 = vmatpush.msra.mxu0 %v3088
      %3487 = vmatpush.msra.mxu0 %v3086
      %3488 = vmatpush.msra.mxu0 %v3084
      %3489 = vmatpush.msra.mxu0 %v3082
      %3490 = vmatpush.msra.mxu0 %v3080
      %3491 = vmatpush.msra.mxu0 %v3078
      %3492 = vmatpush.msra.mxu0 %v3076
      %3493 = vmatmul.f32.gmra.mxu0 %v3002
      %v3494 = vpop.f32.mrf.mxu0
      %3495 = vmatmul.f32.gmra.mxu0 %v3004
      %v3496 = vpop.f32.mrf.mxu0
      %3497 = vmatmul.f32.gmra.mxu0 %v3006
      %v3498 = vpop.f32.mrf.mxu0
      %3499 = vmatmul.f32.gmra.mxu0 %v3008
      %v3500 = vpop.f32.mrf.mxu0
      %3501 = vmatmul.f32.gmra.mxu0 %v3010
      %v3502 = vpop.f32.mrf.mxu0
      %v3503 = vadd.f32 0.0, %v3502
      %3504 = vmatmul.f32.gmra.mxu0 %v3012
      %v3505 = vpop.f32.mrf.mxu0
      %v3506 = vadd.f32 0.0, %v3505
      %3507 = vmatmul.f32.gmra.mxu0 %v3014
      %v3508 = vpop.f32.mrf.mxu0
      %v3509 = vadd.f32 0.0, %v3508
      %3510 = vmatmul.f32.gmra.mxu0 %v3016
      %v3511 = vpop.f32.mrf.mxu0
      %v3512 = vadd.f32 0.0, %v3511
      %3513 = vmatmul.f32.gmra.mxu0 %v3018
      %v3514 = vpop.f32.mrf.mxu0
      %v3515 = vadd.f32 0.0, %v3514
      %3516 = vmatmul.f32.gmra.mxu0 %v3020
      %v3517 = vpop.f32.mrf.mxu0
      %v3518 = vadd.f32 0.0, %v3517
      %3519 = vmatmul.f32.gmra.mxu0 %v3022
      %v3520 = vpop.f32.mrf.mxu0
      %v3521 = vadd.f32 0.0, %v3520
      %3522 = vmatmul.f32.gmra.mxu0 %v3024
      %v3523 = vpop.f32.mrf.mxu0
      %v3524 = vadd.f32 0.0, %v3523
      %3525 = vmatmul.f32.gmra.mxu0 %v3026
      %v3526 = vpop.f32.mrf.mxu0
      %v3527 = vadd.f32 0.0, %v3526
      %3528 = vmatmul.f32.gmra.mxu0 %v3028
      %v3529 = vpop.f32.mrf.mxu0
      %v3530 = vadd.f32 0.0, %v3529
      %3531 = vmatmul.f32.gmra.mxu0 %v3030
      %v3532 = vpop.f32.mrf.mxu0
      %v3533 = vadd.f32 0.0, %v3532
      %3534 = vmatmul.f32.gmra.mxu0 %v3032
      %v3535 = vpop.f32.mrf.mxu0
      %v3536 = vadd.f32 0.0, %v3535
      %3537 = vmatmul.f32.gmra.mxu0 %v3034
      %v3538 = vpop.f32.mrf.mxu0
      %v3539 = vadd.f32 0.0, %v3538
      %3540 = vmatmul.f32.gmra.mxu0 %v3036
      %v3541 = vpop.f32.mrf.mxu0
      %v3542 = vadd.f32 0.0, %v3541
      %3543 = vmatmul.f32.gmra.mxu0 %v3038
      %v3544 = vpop.f32.mrf.mxu0
      %v3545 = vadd.f32 0.0, %v3544
      %3546 = vmatmul.f32.gmra.mxu0 %v3040
      %v3547 = vpop.f32.mrf.mxu0
      %v3548 = vadd.f32 0.0, %v3547
      %3549 = vmatmul.f32.gmra.mxu0 %v3042
      %v3550 = vpop.f32.mrf.mxu0
      %v3551 = vadd.f32 0.0, %v3550
      %3552 = vmatmul.f32.gmra.mxu0 %v3044
      %v3553 = vpop.f32.mrf.mxu0
      %v3554 = vadd.f32 0.0, %v3553
      %3555 = vmatmul.f32.gmra.mxu0 %v3046
      %v3556 = vpop.f32.mrf.mxu0
      %v3557 = vadd.f32 0.0, %v3556
      %3558 = vmatmul.f32.gmra.mxu0 %v3048
      %v3559 = vpop.f32.mrf.mxu0
      %v3560 = vadd.f32 0.0, %v3559
      %3561 = vmatmul.f32.gmra.mxu0 %v3050
      %v3562 = vpop.f32.mrf.mxu0
      %v3563 = vadd.f32 0.0, %v3562
      %3564 = vmatmul.f32.gmra.mxu0 %v3052
      %v3565 = vpop.f32.mrf.mxu0
      %v3566 = vadd.f32 0.0, %v3565
      %3567 = vmatmul.f32.gmra.mxu0 %v3054
      %v3568 = vpop.f32.mrf.mxu0
      %v3569 = vadd.f32 0.0, %v3568
      %3570 = vmatmul.f32.gmra.mxu0 %v3056
      %v3571 = vpop.f32.mrf.mxu0
      %v3572 = vadd.f32 0.0, %v3571
      %3573 = vmatmul.f32.gmra.mxu0 %v3058
      %v3574 = vpop.f32.mrf.mxu0
      %v3575 = vadd.f32 0.0, %v3574
      %3576 = vmatmul.f32.gmra.mxu0 %v3060
      %v3577 = vpop.f32.mrf.mxu0
      %v3578 = vadd.f32 0.0, %v3577
      %3579 = vmatmul.f32.gmra.mxu0 %v3062
      %v3580 = vpop.f32.mrf.mxu0
      %v3581 = vadd.f32 0.0, %v3580
      %3582 = vmatmul.f32.gmra.mxu0 %v3064
      %v3583 = vpop.f32.mrf.mxu0
      %v3584 = vadd.f32 0.0, %v3583
      %3585 = vmatmul.f32.gmra.mxu0 %v3066
      %v3586 = vpop.f32.mrf.mxu0
      %v3587 = vadd.f32 0.0, %v3586
      %3588 = vmatmul.f32.gmra.mxu0 %v3068
      %v3589 = vpop.f32.mrf.mxu0
      %v3590 = vadd.f32 0.0, %v3589
      %3591 = vmatmul.f32.gmra.mxu0 %v3070
      %v3592 = vpop.f32.mrf.mxu0
      %v3593 = vadd.f32 0.0, %v3592
      %3594 = vmatmul.f32.gmra.mxu0 %v3072
      %v3595 = vpop.f32.mrf.mxu0
      %v3596 = vadd.f32 0.0, %v3595
      %3597 = vdwg.mxu0
      %3598 = vmatpush.msra.mxu0 0.0
      %3599 = vmatpush.msra.mxu0 0.0
      %3600 = vmatpush.msra.mxu0 0.0
      %3601 = vmatpush.msra.mxu0 0.0
      %3602 = vmatpush.msra.mxu0 0.0
      %3603 = vmatpush.msra.mxu0 0.0
      %3604 = vmatpush.msra.mxu0 0.0
      %3605 = vmatpush.msra.mxu0 0.0
      %3606 = vmatpush.msra.mxu0 %v3122
      %3607 = vmatpush.msra.mxu0 %v3120
      %3608 = vmatpush.msra.mxu0 %v3118
      %3609 = vmatpush.msra.mxu0 %v3116
      %3610 = vmatpush.msra.mxu0 %v3114
      %3611 = vmatpush.msra.mxu0 %v3112
      %3612 = vmatpush.msra.mxu0 %v3110
      %3613 = vmatpush.msra.mxu0 %v3108
      %3614 = vmatmul.f32.gmra.mxu0 %v3124
      %v3615 = vpop.f32.mrf.mxu0
      %3616 = vmatmul.f32.gmra.mxu0 %v3127
      %v3617 = vpop.f32.mrf.mxu0
      %3618 = vmatmul.f32.gmra.mxu0 %v3130
      %v3619 = vpop.f32.mrf.mxu0
      %3620 = vmatmul.f32.gmra.mxu0 %v3133
      %v3621 = vpop.f32.mrf.mxu0
      %3622 = vmatmul.f32.gmra.mxu0 %v3136
      %v3623 = vpop.f32.mrf.mxu0
      %v3624 = vadd.f32 %v3503, %v3623
      %3625 = vmatmul.f32.gmra.mxu0 %v3139
      %v3626 = vpop.f32.mrf.mxu0
      %v3627 = vadd.f32 %v3506, %v3626
      %3628 = vmatmul.f32.gmra.mxu0 %v3142
      %v3629 = vpop.f32.mrf.mxu0
      %v3630 = vadd.f32 %v3509, %v3629
      %3631 = vmatmul.f32.gmra.mxu0 %v3145
      %v3632 = vpop.f32.mrf.mxu0
      %v3633 = vadd.f32 %v3512, %v3632
      %3634 = vmatmul.f32.gmra.mxu0 %v3148
      %v3635 = vpop.f32.mrf.mxu0
      %v3636 = vadd.f32 %v3515, %v3635
      %3637 = vmatmul.f32.gmra.mxu0 %v3151
      %v3638 = vpop.f32.mrf.mxu0
      %v3639 = vadd.f32 %v3518, %v3638
      %3640 = vmatmul.f32.gmra.mxu0 %v3154
      %v3641 = vpop.f32.mrf.mxu0
      %v3642 = vadd.f32 %v3521, %v3641
      %3643 = vmatmul.f32.gmra.mxu0 %v3157
      %v3644 = vpop.f32.mrf.mxu0
      %v3645 = vadd.f32 %v3524, %v3644
      %3646 = vmatmul.f32.gmra.mxu0 %v3160
      %v3647 = vpop.f32.mrf.mxu0
      %v3648 = vadd.f32 %v3527, %v3647
      %3649 = vmatmul.f32.gmra.mxu0 %v3163
      %v3650 = vpop.f32.mrf.mxu0
      %v3651 = vadd.f32 %v3530, %v3650
      %3652 = vmatmul.f32.gmra.mxu0 %v3166
      %v3653 = vpop.f32.mrf.mxu0
      %v3654 = vadd.f32 %v3533, %v3653
      %3655 = vmatmul.f32.gmra.mxu0 %v3169
      %v3656 = vpop.f32.mrf.mxu0
      %v3657 = vadd.f32 %v3536, %v3656
      %3658 = vmatmul.f32.gmra.mxu0 %v3172
      %v3659 = vpop.f32.mrf.mxu0
      %v3660 = vadd.f32 %v3539, %v3659
      %3661 = vmatmul.f32.gmra.mxu0 %v3175
      %v3662 = vpop.f32.mrf.mxu0
      %v3663 = vadd.f32 %v3542, %v3662
      %3664 = vmatmul.f32.gmra.mxu0 %v3178
      %v3665 = vpop.f32.mrf.mxu0
      %v3666 = vadd.f32 %v3545, %v3665
      %3667 = vmatmul.f32.gmra.mxu0 %v3181
      %v3668 = vpop.f32.mrf.mxu0
      %v3669 = vadd.f32 %v3548, %v3668
      %3670 = vmatmul.f32.gmra.mxu0 %v3184
      %v3671 = vpop.f32.mrf.mxu0
      %v3672 = vadd.f32 %v3551, %v3671
      %3673 = vmatmul.f32.gmra.mxu0 %v3187
      %v3674 = vpop.f32.mrf.mxu0
      %v3675 = vadd.f32 %v3554, %v3674
      %3676 = vmatmul.f32.gmra.mxu0 %v3190
      %v3677 = vpop.f32.mrf.mxu0
      %v3678 = vadd.f32 %v3557, %v3677
      %3679 = vmatmul.f32.gmra.mxu0 %v3193
      %v3680 = vpop.f32.mrf.mxu0
      %v3681 = vadd.f32 %v3560, %v3680
      %3682 = vmatmul.f32.gmra.mxu0 %v3196
      %v3683 = vpop.f32.mrf.mxu0
      %v3684 = vadd.f32 %v3563, %v3683
      %3685 = vmatmul.f32.gmra.mxu0 %v3199
      %v3686 = vpop.f32.mrf.mxu0
      %v3687 = vadd.f32 %v3566, %v3686
      %3688 = vmatmul.f32.gmra.mxu0 %v3202
      %v3689 = vpop.f32.mrf.mxu0
      %v3690 = vadd.f32 %v3569, %v3689
      %3691 = vmatmul.f32.gmra.mxu0 %v3205
      %v3692 = vpop.f32.mrf.mxu0
      %v3693 = vadd.f32 %v3572, %v3692
      %3694 = vmatmul.f32.gmra.mxu0 %v3208
      %v3695 = vpop.f32.mrf.mxu0
      %v3696 = vadd.f32 %v3575, %v3695
      %3697 = vmatmul.f32.gmra.mxu0 %v3211
      %v3698 = vpop.f32.mrf.mxu0
      %v3699 = vadd.f32 %v3578, %v3698
      %3700 = vmatmul.f32.gmra.mxu0 %v3214
      %v3701 = vpop.f32.mrf.mxu0
      %v3702 = vadd.f32 %v3581, %v3701
      %3703 = vmatmul.f32.gmra.mxu0 %v3217
      %v3704 = vpop.f32.mrf.mxu0
      %v3705 = vadd.f32 %v3584, %v3704
      %3706 = vmatmul.f32.gmra.mxu0 %v3220
      %v3707 = vpop.f32.mrf.mxu0
      %v3708 = vadd.f32 %v3587, %v3707
      %3709 = vmatmul.f32.gmra.mxu0 %v3223
      %v3710 = vpop.f32.mrf.mxu0
      %v3711 = vadd.f32 %v3590, %v3710
      %3712 = vmatmul.f32.gmra.mxu0 %v3226
      %v3713 = vpop.f32.mrf.mxu0
      %v3714 = vadd.f32 %v3593, %v3713
      %3715 = vmatmul.f32.gmra.mxu0 %v3229
      %v3716 = vpop.f32.mrf.mxu0
      %v3717 = vadd.f32 %v3596, %v3716
      %3718 = vdwg.mxu0
      %3751 = vrot.lane.b32.xlu0 %v3378, 64
      %v3752 = vpop.permute.xlu0 %3751
      %3753 = vrot.lane.b32.xlu0 %v3381, 64
      %v3754 = vpop.permute.xlu0 %3753
      %3755 = vrot.lane.b32.xlu0 %v3384, 64
      %v3756 = vpop.permute.xlu0 %3755
      %3757 = vrot.lane.b32.xlu0 %v3387, 64
      %v3758 = vpop.permute.xlu0 %3757
      %3759 = vrot.lane.b32.xlu0 %v3390, 64
      %v3760 = vpop.permute.xlu0 %3759
      %3761 = vrot.lane.b32.xlu0 %v3393, 64
      %v3762 = vpop.permute.xlu0 %3761
      %3763 = vrot.lane.b32.xlu0 %v3396, 64
      %v3764 = vpop.permute.xlu0 %3763
      %3765 = vrot.lane.b32.xlu0 %v3399, 64
      %v3766 = vpop.permute.xlu0 %3765
      %3767 = vrot.lane.b32.xlu0 %v3402, 64
      %v3768 = vpop.permute.xlu0 %3767
      %3769 = vrot.lane.b32.xlu0 %v3405, 64
      %v3770 = vpop.permute.xlu0 %3769
      %3771 = vrot.lane.b32.xlu0 %v3408, 64
      %v3772 = vpop.permute.xlu0 %3771
      %3773 = vrot.lane.b32.xlu0 %v3411, 64
      %v3774 = vpop.permute.xlu0 %3773
      %3775 = vrot.lane.b32.xlu0 %v3414, 64
      %v3776 = vpop.permute.xlu0 %3775
      %3777 = vrot.lane.b32.xlu0 %v3417, 64
      %v3778 = vpop.permute.xlu0 %3777
      %3779 = vrot.lane.b32.xlu0 %v3420, 64
      %v3780 = vpop.permute.xlu0 %3779
      %3781 = vrot.lane.b32.xlu0 %v3423, 64
      %v3782 = vpop.permute.xlu0 %3781
      %3783 = vrot.lane.b32.xlu0 %v3426, 64
      %v3784 = vpop.permute.xlu0 %3783
      %3785 = vrot.lane.b32.xlu0 %v3429, 64
      %v3786 = vpop.permute.xlu0 %3785
      %3787 = vrot.lane.b32.xlu0 %v3432, 64
      %v3788 = vpop.permute.xlu0 %3787
      %3789 = vrot.lane.b32.xlu0 %v3435, 64
      %v3790 = vpop.permute.xlu0 %3789
      %3791 = vrot.lane.b32.xlu0 %v3438, 64
      %v3792 = vpop.permute.xlu0 %3791
      %3793 = vrot.lane.b32.xlu0 %v3441, 64
      %v3794 = vpop.permute.xlu0 %3793
      %3795 = vrot.lane.b32.xlu0 %v3444, 64
      %v3796 = vpop.permute.xlu0 %3795
      %3797 = vrot.lane.b32.xlu0 %v3447, 64
      %v3798 = vpop.permute.xlu0 %3797
      %3799 = vrot.lane.b32.xlu0 %v3450, 64
      %v3800 = vpop.permute.xlu0 %3799
      %3801 = vrot.lane.b32.xlu0 %v3453, 64
      %v3802 = vpop.permute.xlu0 %3801
      %3803 = vrot.lane.b32.xlu0 %v3456, 64
      %v3804 = vpop.permute.xlu0 %3803
      %3805 = vrot.lane.b32.xlu0 %v3459, 64
      %v3806 = vpop.permute.xlu0 %3805
      %3807 = vrot.lane.b32.xlu0 %v3462, 64
      %v3808 = vpop.permute.xlu0 %3807
      %3809 = vrot.lane.b32.xlu0 %v3465, 64
      %v3810 = vpop.permute.xlu0 %3809
      %3811 = vrot.lane.b32.xlu0 %v3468, 64
      %v3812 = vpop.permute.xlu0 %3811
      %3813 = vrot.lane.b32.xlu0 %v3471, 64
      %v3814 = vpop.permute.xlu0 %3813
      %v3847 = vadd.f32 %v3372, %v3752
      %v3848 = vadd.f32 %v3375, %v3754
      %v3849 = vadd.f32 %v3378, %v3756
      %v3850 = vadd.f32 %v3381, %v3758
      %v3851 = vadd.f32 %v3384, %v3760
      %v3852 = vadd.f32 %v3387, %v3762
      %v3853 = vadd.f32 %v3390, %v3764
      %v3854 = vadd.f32 %v3393, %v3766
      %v3855 = vadd.f32 %v3396, %v3768
      %v3856 = vadd.f32 %v3399, %v3770
      %v3857 = vadd.f32 %v3402, %v3772
      %v3858 = vadd.f32 %v3405, %v3774
      %v3859 = vadd.f32 %v3408, %v3776
      %v3860 = vadd.f32 %v3411, %v3778
      %v3861 = vadd.f32 %v3414, %v3780
      %v3862 = vadd.f32 %v3417, %v3782
      %v3863 = vadd.f32 %v3420, %v3784
      %v3864 = vadd.f32 %v3423, %v3786
      %v3865 = vadd.f32 %v3426, %v3788
      %v3866 = vadd.f32 %v3429, %v3790
      %v3867 = vadd.f32 %v3432, %v3792
      %v3868 = vadd.f32 %v3435, %v3794
      %v3869 = vadd.f32 %v3438, %v3796
      %v3870 = vadd.f32 %v3441, %v3798
      %v3871 = vadd.f32 %v3444, %v3800
      %v3872 = vadd.f32 %v3447, %v3802
      %v3873 = vadd.f32 %v3450, %v3804
      %v3874 = vadd.f32 %v3453, %v3806
      %v3875 = vadd.f32 %v3456, %v3808
      %v3876 = vadd.f32 %v3459, %v3810
      %v3877 = vadd.f32 %v3462, %v3812
      %v3878 = vadd.f32 %v3465, %v3814
      %v3879 = vadd.f32 %v3847, %v3624
      %v3880 = vadd.f32 %v3848, %v3627
      %v3881 = vadd.f32 %v3849, %v3630
      %v3882 = vadd.f32 %v3850, %v3633
      %v3883 = vadd.f32 %v3851, %v3636
      %v3884 = vadd.f32 %v3852, %v3639
      %v3885 = vadd.f32 %v3853, %v3642
      %v3886 = vadd.f32 %v3854, %v3645
      %v3887 = vadd.f32 %v3855, %v3648
      %v3888 = vadd.f32 %v3856, %v3651
      %v3889 = vadd.f32 %v3857, %v3654
      %v3890 = vadd.f32 %v3858, %v3657
      %v3891 = vadd.f32 %v3859, %v3660
      %v3892 = vadd.f32 %v3860, %v3663
      %v3893 = vadd.f32 %v3861, %v3666
      %v3894 = vadd.f32 %v3862, %v3669
      %v3895 = vadd.f32 %v3863, %v3672
      %v3896 = vadd.f32 %v3864, %v3675
      %v3897 = vadd.f32 %v3865, %v3678
      %v3898 = vadd.f32 %v3866, %v3681
      %v3899 = vadd.f32 %v3867, %v3684
      %v3900 = vadd.f32 %v3868, %v3687
      %v3901 = vadd.f32 %v3869, %v3690
      %v3902 = vadd.f32 %v3870, %v3693
      %v3903 = vadd.f32 %v3871, %v3696
      %v3904 = vadd.f32 %v3872, %v3699
      %v3905 = vadd.f32 %v3873, %v3702
      %v3906 = vadd.f32 %v3874, %v3705
      %v3907 = vadd.f32 %v3875, %v3708
      %v3908 = vadd.f32 %v3876, %v3711
      %v3909 = vadd.f32 %v3877, %v3714
      %v3910 = vadd.f32 %v3878, %v3717
      %s3911 = scalar_lea.vmem %s3, 2
      %v3912 = vld [vmem:[%s3911] sm:$0x1]
      %v3914 = vperm.slane %v3912, 0
      %v3916 = vmul.f32 %v3879, %v3914
      %v3917 = vmul.f32 %v3880, %v3914
      %v3918 = vmul.f32 %v3881, %v3914
      %v3919 = vmul.f32 %v3882, %v3914
      %v3920 = vmul.f32 %v3883, %v3914
      %v3921 = vmul.f32 %v3884, %v3914
      %v3922 = vmul.f32 %v3885, %v3914
      %v3923 = vmul.f32 %v3886, %v3914
      %v3924 = vmul.f32 %v3887, %v3914
      %v3925 = vmul.f32 %v3888, %v3914
      %v3926 = vmul.f32 %v3889, %v3914
      %v3927 = vmul.f32 %v3890, %v3914
      %v3928 = vmul.f32 %v3891, %v3914
      %v3929 = vmul.f32 %v3892, %v3914
      %v3930 = vmul.f32 %v3893, %v3914
      %v3931 = vmul.f32 %v3894, %v3914
      %v3932 = vmul.f32 %v3895, %v3914
      %v3933 = vmul.f32 %v3896, %v3914
      %v3934 = vmul.f32 %v3897, %v3914
      %v3935 = vmul.f32 %v3898, %v3914
      %v3936 = vmul.f32 %v3899, %v3914
      %v3937 = vmul.f32 %v3900, %v3914
      %v3938 = vmul.f32 %v3901, %v3914
      %v3939 = vmul.f32 %v3902, %v3914
      %v3940 = vmul.f32 %v3903, %v3914
      %v3941 = vmul.f32 %v3904, %v3914
      %v3942 = vmul.f32 %v3905, %v3914
      %v3943 = vmul.f32 %v3906, %v3914
      %v3944 = vmul.f32 %v3907, %v3914
      %v3945 = vmul.f32 %v3908, %v3914
      %v3946 = vmul.f32 %v3909, %v3914
      %v3947 = vmul.f32 %v3910, %v3914
      %s3948 = scalar_lea.vmem %s4, 2
      %v3949 = vld [vmem:[%s3948] sm:$0x1]
      %v3951 = vperm.slane %v3949, 0
      %v3953 = vadd.f32 %v3916, %v3951
      %v3954 = vadd.f32 %v3917, %v3951
      %v3955 = vadd.f32 %v3918, %v3951
      %v3956 = vadd.f32 %v3919, %v3951
      %v3957 = vadd.f32 %v3920, %v3951
      %v3958 = vadd.f32 %v3921, %v3951
      %v3959 = vadd.f32 %v3922, %v3951
      %v3960 = vadd.f32 %v3923, %v3951
      %v3961 = vadd.f32 %v3924, %v3951
      %v3962 = vadd.f32 %v3925, %v3951
      %v3963 = vadd.f32 %v3926, %v3951
      %v3964 = vadd.f32 %v3927, %v3951
      %v3965 = vadd.f32 %v3928, %v3951
      %v3966 = vadd.f32 %v3929, %v3951
      %v3967 = vadd.f32 %v3930, %v3951
      %v3968 = vadd.f32 %v3931, %v3951
      %v3969 = vadd.f32 %v3932, %v3951
      %v3970 = vadd.f32 %v3933, %v3951
      %v3971 = vadd.f32 %v3934, %v3951
      %v3972 = vadd.f32 %v3935, %v3951
      %v3973 = vadd.f32 %v3936, %v3951
      %v3974 = vadd.f32 %v3937, %v3951
      %v3975 = vadd.f32 %v3938, %v3951
      %v3976 = vadd.f32 %v3939, %v3951
      %v3977 = vadd.f32 %v3940, %v3951
      %v3978 = vadd.f32 %v3941, %v3951
      %v3979 = vadd.f32 %v3942, %v3951
      %v3980 = vadd.f32 %v3943, %v3951
      %v3981 = vadd.f32 %v3944, %v3951
      %v3982 = vadd.f32 %v3945, %v3951
      %v3983 = vadd.f32 %v3946, %v3951
      %v3984 = vadd.f32 %v3947, %v3951
      %v3985 = vadd.f32 %v3953, %v2554
      %v3986 = vadd.f32 %v3954, %v2555
      %v3987 = vadd.f32 %v3955, %v2556
      %v3988 = vadd.f32 %v3956, %v2557
      %v3989 = vadd.f32 %v3957, %v2558
      %v3990 = vadd.f32 %v3958, %v2559
      %v3991 = vadd.f32 %v3959, %v2560
      %v3992 = vadd.f32 %v3960, %v2561
      %v3993 = vadd.f32 %v3961, %v2562
      %v3994 = vadd.f32 %v3962, %v2563
      %v3995 = vadd.f32 %v3963, %v2564
      %v3996 = vadd.f32 %v3964, %v2565
      %v3997 = vadd.f32 %v3965, %v2566
      %v3998 = vadd.f32 %v3966, %v2567
      %v3999 = vadd.f32 %v3967, %v2568
      %v4000 = vadd.f32 %v3968, %v2569
      %v4001 = vadd.f32 %v3969, %v2570
      %v4002 = vadd.f32 %v3970, %v2571
      %v4003 = vadd.f32 %v3971, %v2572
      %v4004 = vadd.f32 %v3972, %v2573
      %v4005 = vadd.f32 %v3973, %v2574
      %v4006 = vadd.f32 %v3974, %v2575
      %v4007 = vadd.f32 %v3975, %v2576
      %v4008 = vadd.f32 %v3976, %v2577
      %v4009 = vadd.f32 %v3977, %v2578
      %v4010 = vadd.f32 %v3978, %v2579
      %v4011 = vadd.f32 %v3979, %v2580
      %v4012 = vadd.f32 %v3980, %v2581
      %v4013 = vadd.f32 %v3981, %v2582
      %v4014 = vadd.f32 %v3982, %v2583
      %v4015 = vadd.f32 %v3983, %v2584
      %v4016 = vadd.f32 %v3984, %v2585
      %v4017 = vmax.f32 %v3985, 0.0
      %v4018 = vmax.f32 %v3986, 0.0
      %v4019 = vmax.f32 %v3987, 0.0
      %v4020 = vmax.f32 %v3988, 0.0
      %v4021 = vmax.f32 %v3989, 0.0
      %v4022 = vmax.f32 %v3990, 0.0
      %v4023 = vmax.f32 %v3991, 0.0
      %v4024 = vmax.f32 %v3992, 0.0
      %v4025 = vmax.f32 %v3993, 0.0
      %v4026 = vmax.f32 %v3994, 0.0
      %v4027 = vmax.f32 %v3995, 0.0
      %v4028 = vmax.f32 %v3996, 0.0
      %v4029 = vmax.f32 %v3997, 0.0
      %v4030 = vmax.f32 %v3998, 0.0
      %v4031 = vmax.f32 %v3999, 0.0
      %v4032 = vmax.f32 %v4000, 0.0
      %v4033 = vmax.f32 %v4001, 0.0
      %v4034 = vmax.f32 %v4002, 0.0
      %v4035 = vmax.f32 %v4003, 0.0
      %v4036 = vmax.f32 %v4004, 0.0
      %v4037 = vmax.f32 %v4005, 0.0
      %v4038 = vmax.f32 %v4006, 0.0
      %v4039 = vmax.f32 %v4007, 0.0
      %v4040 = vmax.f32 %v4008, 0.0
      %v4041 = vmax.f32 %v4009, 0.0
      %v4042 = vmax.f32 %v4010, 0.0
      %v4043 = vmax.f32 %v4011, 0.0
      %v4044 = vmax.f32 %v4012, 0.0
      %v4045 = vmax.f32 %v4013, 0.0
      %v4046 = vmax.f32 %v4014, 0.0
      %v4047 = vmax.f32 %v4015, 0.0
      %v4048 = vmax.f32 %v4016, 0.0
      %v4049 = vrot.slane %v4017, 7
      %v4050 = vrot.slane %v4018, 7
      %v4051 = vrot.slane %v4019, 7
      %v4052 = vrot.slane %v4020, 7
      %v4053 = vrot.slane %v4021, 7
      %v4054 = vrot.slane %v4022, 7
      %v4055 = vrot.slane %v4023, 7
      %v4056 = vrot.slane %v4024, 7
      %v4057 = vrot.slane %v4025, 7
      %v4058 = vrot.slane %v4026, 7
      %v4059 = vrot.slane %v4027, 7
      %v4060 = vrot.slane %v4028, 7
      %v4061 = vrot.slane %v4029, 7
      %v4062 = vrot.slane %v4030, 7
      %v4063 = vrot.slane %v4031, 7
      %v4064 = vrot.slane %v4032, 7
      %v4065 = vrot.slane %v4033, 7
      %v4066 = vrot.slane %v4034, 7
      %v4067 = vrot.slane %v4035, 7
      %v4068 = vrot.slane %v4036, 7
      %v4069 = vrot.slane %v4037, 7
      %v4070 = vrot.slane %v4038, 7
      %v4071 = vrot.slane %v4039, 7
      %v4072 = vrot.slane %v4040, 7
      %v4073 = vrot.slane %v4041, 7
      %v4074 = vrot.slane %v4042, 7
      %v4075 = vrot.slane %v4043, 7
      %v4076 = vrot.slane %v4044, 7
      %v4077 = vrot.slane %v4045, 7
      %v4078 = vrot.slane %v4046, 7
      %v4079 = vrot.slane %v4047, 7
      %v4080 = vrot.slane %v4048, 7
      %v4081 = vsel %vm1153, %v4079, %v4080
      %v4082 = vsel %vm1153, %v4078, %v4079
      %v4083 = vsel %vm1153, %v4077, %v4078
      %v4084 = vsel %vm1153, %v4076, %v4077
      %v4085 = vsel %vm1153, %v4075, %v4076
      %v4086 = vsel %vm1153, %v4074, %v4075
      %v4087 = vsel %vm1153, %v4073, %v4074
      %v4088 = vsel %vm1153, %v4072, %v4073
      %v4089 = vsel %vm1153, %v4071, %v4072
      %v4090 = vsel %vm1153, %v4070, %v4071
      %v4091 = vsel %vm1153, %v4069, %v4070
      %v4092 = vsel %vm1153, %v4068, %v4069
      %v4093 = vsel %vm1153, %v4067, %v4068
      %v4094 = vsel %vm1153, %v4066, %v4067
      %v4095 = vsel %vm1153, %v4065, %v4066
      %v4096 = vsel %vm1153, %v4064, %v4065
      %v4097 = vsel %vm1153, %v4063, %v4064
      %v4098 = vsel %vm1153, %v4062, %v4063
      %v4099 = vsel %vm1153, %v4061, %v4062
      %v4100 = vsel %vm1153, %v4060, %v4061
      %v4101 = vsel %vm1153, %v4059, %v4060
      %v4102 = vsel %vm1153, %v4058, %v4059
      %v4103 = vsel %vm1153, %v4057, %v4058
      %v4104 = vsel %vm1153, %v4056, %v4057
      %v4105 = vsel %vm1153, %v4055, %v4056
      %v4106 = vsel %vm1153, %v4054, %v4055
      %v4107 = vsel %vm1153, %v4053, %v4054
      %v4108 = vsel %vm1153, %v4052, %v4053
      %v4109 = vsel %vm1153, %v4051, %v4052
      %v4110 = vsel %vm1153, %v4050, %v4051
      %v4111 = vsel %vm1153, %v4049, %v4050
      %v4112 = vsel %vm1153, %v4080, %v4049
      %v4113 = vsel %vm702, %v4112, 0.0
      %v4114 = vsel %vm703, %v4111, 0.0
      %v4115 = vsel %vm704, %v4110, 0.0
      %v4116 = vsel %vm705, %v4109, 0.0
      %v4117 = vsel %vm706, %v4108, 0.0
      %v4118 = vsel %vm707, %v4107, 0.0
      %v4119 = vsel %vm708, %v4106, 0.0
      %v4120 = vsel %vm709, %v4105, 0.0
      %v4121 = vsel %vm710, %v4104, 0.0
      %v4122 = vsel %vm711, %v4103, 0.0
      %v4123 = vsel %vm712, %v4102, 0.0
      %v4124 = vsel %vm713, %v4101, 0.0
      %v4125 = vsel %vm714, %v4100, 0.0
      %v4126 = vsel %vm715, %v4099, 0.0
      %v4127 = vsel %vm716, %v4098, 0.0
      %v4128 = vsel %vm717, %v4097, 0.0
      %v4129 = vsel %vm718, %v4096, 0.0
      %v4130 = vsel %vm719, %v4095, 0.0
      %v4131 = vsel %vm720, %v4094, 0.0
      %v4132 = vsel %vm721, %v4093, 0.0
      %v4133 = vsel %vm722, %v4092, 0.0
      %v4134 = vsel %vm723, %v4091, 0.0
      %v4135 = vsel %vm724, %v4090, 0.0
      %v4136 = vsel %vm725, %v4089, 0.0
      %v4137 = vsel %vm726, %v4088, 0.0
      %v4138 = vsel %vm727, %v4087, 0.0
      %v4139 = vsel %vm728, %v4086, 0.0
      %v4140 = vsel %vm729, %v4085, 0.0
      %v4141 = vsel %vm730, %v4084, 0.0
      %v4142 = vsel %vm731, %v4083, 0.0
      %v4143 = vsel %vm732, %v4082, 0.0
      %v4144 = vsel %vm733, %v4081, 0.0
      %v4145 = vrot.slane %v4017, 1
      %v4146 = vrot.slane %v4018, 1
      %v4147 = vrot.slane %v4019, 1
      %v4148 = vrot.slane %v4020, 1
      %v4149 = vrot.slane %v4021, 1
      %v4150 = vrot.slane %v4022, 1
      %v4151 = vrot.slane %v4023, 1
      %v4152 = vrot.slane %v4024, 1
      %v4153 = vrot.slane %v4025, 1
      %v4154 = vrot.slane %v4026, 1
      %v4155 = vrot.slane %v4027, 1
      %v4156 = vrot.slane %v4028, 1
      %v4157 = vrot.slane %v4029, 1
      %v4158 = vrot.slane %v4030, 1
      %v4159 = vrot.slane %v4031, 1
      %v4160 = vrot.slane %v4032, 1
      %v4161 = vrot.slane %v4033, 1
      %v4162 = vrot.slane %v4034, 1
      %v4163 = vrot.slane %v4035, 1
      %v4164 = vrot.slane %v4036, 1
      %v4165 = vrot.slane %v4037, 1
      %v4166 = vrot.slane %v4038, 1
      %v4167 = vrot.slane %v4039, 1
      %v4168 = vrot.slane %v4040, 1
      %v4169 = vrot.slane %v4041, 1
      %v4170 = vrot.slane %v4042, 1
      %v4171 = vrot.slane %v4043, 1
      %v4172 = vrot.slane %v4044, 1
      %v4173 = vrot.slane %v4045, 1
      %v4174 = vrot.slane %v4046, 1
      %v4175 = vrot.slane %v4047, 1
      %v4176 = vrot.slane %v4048, 1
      %v4177 = vsel %vm1250, %v4175, %v4176
      %v4178 = vsel %vm1250, %v4174, %v4175
      %v4179 = vsel %vm1250, %v4173, %v4174
      %v4180 = vsel %vm1250, %v4172, %v4173
      %v4181 = vsel %vm1250, %v4171, %v4172
      %v4182 = vsel %vm1250, %v4170, %v4171
      %v4183 = vsel %vm1250, %v4169, %v4170
      %v4184 = vsel %vm1250, %v4168, %v4169
      %v4185 = vsel %vm1250, %v4167, %v4168
      %v4186 = vsel %vm1250, %v4166, %v4167
      %v4187 = vsel %vm1250, %v4165, %v4166
      %v4188 = vsel %vm1250, %v4164, %v4165
      %v4189 = vsel %vm1250, %v4163, %v4164
      %v4190 = vsel %vm1250, %v4162, %v4163
      %v4191 = vsel %vm1250, %v4161, %v4162
      %v4192 = vsel %vm1250, %v4160, %v4161
      %v4193 = vsel %vm1250, %v4159, %v4160
      %v4194 = vsel %vm1250, %v4158, %v4159
      %v4195 = vsel %vm1250, %v4157, %v4158
      %v4196 = vsel %vm1250, %v4156, %v4157
      %v4197 = vsel %vm1250, %v4155, %v4156
      %v4198 = vsel %vm1250, %v4154, %v4155
      %v4199 = vsel %vm1250, %v4153, %v4154
      %v4200 = vsel %vm1250, %v4152, %v4153
      %v4201 = vsel %vm1250, %v4151, %v4152
      %v4202 = vsel %vm1250, %v4150, %v4151
      %v4203 = vsel %vm1250, %v4149, %v4150
      %v4204 = vsel %vm1250, %v4148, %v4149
      %v4205 = vsel %vm1250, %v4147, %v4148
      %v4206 = vsel %vm1250, %v4146, %v4147
      %v4207 = vsel %vm1250, %v4145, %v4146
      %v4208 = vsel %vm1250, %v4176, %v4145
      %v4209 = vsel %vm734, %v4207, 0.0
      %v4210 = vsel %vm735, %v4206, 0.0
      %v4211 = vsel %vm736, %v4205, 0.0
      %v4212 = vsel %vm737, %v4204, 0.0
      %v4213 = vsel %vm738, %v4203, 0.0
      %v4214 = vsel %vm739, %v4202, 0.0
      %v4215 = vsel %vm740, %v4201, 0.0
      %v4216 = vsel %vm741, %v4200, 0.0
      %v4217 = vsel %vm742, %v4199, 0.0
      %v4218 = vsel %vm743, %v4198, 0.0
      %v4219 = vsel %vm744, %v4197, 0.0
      %v4220 = vsel %vm745, %v4196, 0.0
      %v4221 = vsel %vm746, %v4195, 0.0
      %v4222 = vsel %vm747, %v4194, 0.0
      %v4223 = vsel %vm748, %v4193, 0.0
      %v4224 = vsel %vm749, %v4192, 0.0
      %v4225 = vsel %vm750, %v4191, 0.0
      %v4226 = vsel %vm751, %v4190, 0.0
      %v4227 = vsel %vm752, %v4189, 0.0
      %v4228 = vsel %vm753, %v4188, 0.0
      %v4229 = vsel %vm754, %v4187, 0.0
      %v4230 = vsel %vm755, %v4186, 0.0
      %v4231 = vsel %vm756, %v4185, 0.0
      %v4232 = vsel %vm757, %v4184, 0.0
      %v4233 = vsel %vm758, %v4183, 0.0
      %v4234 = vsel %vm759, %v4182, 0.0
      %v4235 = vsel %vm760, %v4181, 0.0
      %v4236 = vsel %vm761, %v4180, 0.0
      %v4237 = vsel %vm762, %v4179, 0.0
      %v4238 = vsel %vm763, %v4178, 0.0
      %v4239 = vsel %vm764, %v4177, 0.0
      %v4240 = vsel %vm765, %v4208, 0.0
      %4273 = vrot.lane.b32.xlu0 %v4017, 64
      %v4274 = vpop.permute.xlu0 %4273
      %4275 = vrot.lane.b32.xlu0 %v4018, 64
      %v4276 = vpop.permute.xlu0 %4275
      %4277 = vrot.lane.b32.xlu0 %v4019, 64
      %v4278 = vpop.permute.xlu0 %4277
      %4279 = vrot.lane.b32.xlu0 %v4020, 64
      %v4280 = vpop.permute.xlu0 %4279
      %4281 = vrot.lane.b32.xlu0 %v4021, 64
      %v4282 = vpop.permute.xlu0 %4281
      %4283 = vrot.lane.b32.xlu0 %v4022, 64
      %v4284 = vpop.permute.xlu0 %4283
      %4285 = vrot.lane.b32.xlu0 %v4023, 64
      %v4286 = vpop.permute.xlu0 %4285
      %4287 = vrot.lane.b32.xlu0 %v4024, 64
      %v4288 = vpop.permute.xlu0 %4287
      %4289 = vrot.lane.b32.xlu0 %v4025, 64
      %v4290 = vpop.permute.xlu0 %4289
      %4291 = vrot.lane.b32.xlu0 %v4026, 64
      %v4292 = vpop.permute.xlu0 %4291
      %4293 = vrot.lane.b32.xlu0 %v4027, 64
      %v4294 = vpop.permute.xlu0 %4293
      %4295 = vrot.lane.b32.xlu0 %v4028, 64
      %v4296 = vpop.permute.xlu0 %4295
      %4297 = vrot.lane.b32.xlu0 %v4029, 64
      %v4298 = vpop.permute.xlu0 %4297
      %4299 = vrot.lane.b32.xlu0 %v4030, 64
      %v4300 = vpop.permute.xlu0 %4299
      %4301 = vrot.lane.b32.xlu0 %v4031, 64
      %v4302 = vpop.permute.xlu0 %4301
      %4303 = vrot.lane.b32.xlu0 %v4032, 64
      %v4304 = vpop.permute.xlu0 %4303
      %4305 = vrot.lane.b32.xlu0 %v4033, 64
      %v4306 = vpop.permute.xlu0 %4305
      %4307 = vrot.lane.b32.xlu0 %v4034, 64
      %v4308 = vpop.permute.xlu0 %4307
      %4309 = vrot.lane.b32.xlu0 %v4035, 64
      %v4310 = vpop.permute.xlu0 %4309
      %4311 = vrot.lane.b32.xlu0 %v4036, 64
      %v4312 = vpop.permute.xlu0 %4311
      %4313 = vrot.lane.b32.xlu0 %v4037, 64
      %v4314 = vpop.permute.xlu0 %4313
      %4315 = vrot.lane.b32.xlu0 %v4038, 64
      %v4316 = vpop.permute.xlu0 %4315
      %4317 = vrot.lane.b32.xlu0 %v4039, 64
      %v4318 = vpop.permute.xlu0 %4317
      %4319 = vrot.lane.b32.xlu0 %v4040, 64
      %v4320 = vpop.permute.xlu0 %4319
      %4321 = vrot.lane.b32.xlu0 %v4041, 64
      %v4322 = vpop.permute.xlu0 %4321
      %4323 = vrot.lane.b32.xlu0 %v4042, 64
      %v4324 = vpop.permute.xlu0 %4323
      %4325 = vrot.lane.b32.xlu0 %v4043, 64
      %v4326 = vpop.permute.xlu0 %4325
      %4327 = vrot.lane.b32.xlu0 %v4044, 64
      %v4328 = vpop.permute.xlu0 %4327
      %4329 = vrot.lane.b32.xlu0 %v4045, 64
      %v4330 = vpop.permute.xlu0 %4329
      %4331 = vrot.lane.b32.xlu0 %v4046, 64
      %v4332 = vpop.permute.xlu0 %4331
      %4333 = vrot.lane.b32.xlu0 %v4047, 64
      %v4334 = vpop.permute.xlu0 %4333
      %4335 = vrot.lane.b32.xlu0 %v4048, 64
      %v4336 = vpop.permute.xlu0 %4335
      %v4369 = vsel %vm276, %v4113, %v4274
      %v4370 = vsel %vm276, %v4114, %v4276
      %v4371 = vsel %vm276, %v4115, %v4278
      %v4372 = vsel %vm276, %v4116, %v4280
      %v4373 = vsel %vm276, %v4117, %v4282
      %v4374 = vsel %vm276, %v4118, %v4284
      %v4375 = vsel %vm276, %v4119, %v4286
      %v4376 = vsel %vm276, %v4120, %v4288
      %v4377 = vsel %vm276, %v4121, %v4290
      %v4378 = vsel %vm276, %v4122, %v4292
      %v4379 = vsel %vm276, %v4123, %v4294
      %v4380 = vsel %vm276, %v4124, %v4296
      %v4381 = vsel %vm276, %v4125, %v4298
      %v4382 = vsel %vm276, %v4126, %v4300
      %v4383 = vsel %vm276, %v4127, %v4302
      %v4384 = vsel %vm276, %v4128, %v4304
      %v4385 = vsel %vm276, %v4129, %v4306
      %v4386 = vsel %vm276, %v4130, %v4308
      %v4387 = vsel %vm276, %v4131, %v4310
      %v4388 = vsel %vm276, %v4132, %v4312
      %v4389 = vsel %vm276, %v4133, %v4314
      %v4390 = vsel %vm276, %v4134, %v4316
      %v4391 = vsel %vm276, %v4135, %v4318
      %v4392 = vsel %vm276, %v4136, %v4320
      %v4393 = vsel %vm276, %v4137, %v4322
      %v4394 = vsel %vm276, %v4138, %v4324
      %v4395 = vsel %vm276, %v4139, %v4326
      %v4396 = vsel %vm276, %v4140, %v4328
      %v4397 = vsel %vm276, %v4141, %v4330
      %v4398 = vsel %vm276, %v4142, %v4332
      %v4399 = vsel %vm276, %v4143, %v4334
      %v4400 = vsel %vm276, %v4144, %v4336
      %4401 = vst [vmem:[%s1475] sm:$0xff] %v4369
      %4402 = vst.msk [vmem:[%s1475 + $0x8] sm:$0xff] %vm276, %v4209
      %4403 = vst [vmem:[%s1475 + $0x10] sm:$0xff] %v4370
      %4404 = vst.msk [vmem:[%s1475 + $0x18] sm:$0xff] %vm276, %v4210
      %4405 = vst [vmem:[%s1475 + $0x20] sm:$0xff] %v4371
      %4406 = vst.msk [vmem:[%s1475 + $0x28] sm:$0xff] %vm276, %v4211
      %4407 = vst [vmem:[%s1475 + $0x30] sm:$0xff] %v4372
      %4408 = vst.msk [vmem:[%s1475 + $0x38] sm:$0xff] %vm276, %v4212
      %4409 = vst [vmem:[%s1475 + $0x40] sm:$0xff] %v4373
      %4410 = vst.msk [vmem:[%s1475 + $0x48] sm:$0xff] %vm276, %v4213
      %4411 = vst [vmem:[%s1475 + $0x50] sm:$0xff] %v4374
      %4412 = vst.msk [vmem:[%s1475 + $0x58] sm:$0xff] %vm276, %v4214
      %4413 = vst [vmem:[%s1475 + $0x60] sm:$0xff] %v4375
      %4414 = vst.msk [vmem:[%s1475 + $0x68] sm:$0xff] %vm276, %v4215
      %4415 = vst [vmem:[%s1475 + $0x70] sm:$0xff] %v4376
      %4416 = vst.msk [vmem:[%s1475 + $0x78] sm:$0xff] %vm276, %v4216
      %4417 = vst [vmem:[%s1475 + $0x80] sm:$0xff] %v4377
      %4418 = vst.msk [vmem:[%s1475 + $0x88] sm:$0xff] %vm276, %v4217
      %4419 = vst [vmem:[%s1475 + $0x90] sm:$0xff] %v4378
      %4420 = vst.msk [vmem:[%s1475 + $0x98] sm:$0xff] %vm276, %v4218
      %4421 = vst [vmem:[%s1475 + $0xa0] sm:$0xff] %v4379
      %4422 = vst.msk [vmem:[%s1475 + $0xa8] sm:$0xff] %vm276, %v4219
      %4423 = vst [vmem:[%s1475 + $0xb0] sm:$0xff] %v4380
      %4424 = vst.msk [vmem:[%s1475 + $0xb8] sm:$0xff] %vm276, %v4220
      %4425 = vst [vmem:[%s1475 + $0xc0] sm:$0xff] %v4381
      %4426 = vst.msk [vmem:[%s1475 + $0xc8] sm:$0xff] %vm276, %v4221
      %4427 = vst [vmem:[%s1475 + $0xd0] sm:$0xff] %v4382
      %4428 = vst.msk [vmem:[%s1475 + $0xd8] sm:$0xff] %vm276, %v4222
      %4429 = vst [vmem:[%s1475 + $0xe0] sm:$0xff] %v4383
      %4430 = vst.msk [vmem:[%s1475 + $0xe8] sm:$0xff] %vm276, %v4223
      %4431 = vst [vmem:[%s1475 + $0xf0] sm:$0xff] %v4384
      %4432 = vst.msk [vmem:[%s1475 + $0xf8] sm:$0xff] %vm276, %v4224
      %4433 = vst [vmem:[%s1475 + $0x100] sm:$0xff] %v4385
      %4434 = vst.msk [vmem:[%s1475 + $0x108] sm:$0xff] %vm276, %v4225
      %4435 = vst [vmem:[%s1475 + $0x110] sm:$0xff] %v4386
      %4436 = vst.msk [vmem:[%s1475 + $0x118] sm:$0xff] %vm276, %v4226
      %4437 = vst [vmem:[%s1475 + $0x120] sm:$0xff] %v4387
      %4438 = vst.msk [vmem:[%s1475 + $0x128] sm:$0xff] %vm276, %v4227
      %4439 = vst [vmem:[%s1475 + $0x130] sm:$0xff] %v4388
      %4440 = vst.msk [vmem:[%s1475 + $0x138] sm:$0xff] %vm276, %v4228
      %4441 = vst [vmem:[%s1475 + $0x140] sm:$0xff] %v4389
      %4442 = vst.msk [vmem:[%s1475 + $0x148] sm:$0xff] %vm276, %v4229
      %4443 = vst [vmem:[%s1475 + $0x150] sm:$0xff] %v4390
      %4444 = vst.msk [vmem:[%s1475 + $0x158] sm:$0xff] %vm276, %v4230
      %4445 = vst [vmem:[%s1475 + $0x160] sm:$0xff] %v4391
      %4446 = vst.msk [vmem:[%s1475 + $0x168] sm:$0xff] %vm276, %v4231
      %4447 = vst [vmem:[%s1475 + $0x170] sm:$0xff] %v4392
      %4448 = vst.msk [vmem:[%s1475 + $0x178] sm:$0xff] %vm276, %v4232
      %4449 = vst [vmem:[%s1475 + $0x180] sm:$0xff] %v4393
      %4450 = vst.msk [vmem:[%s1475 + $0x188] sm:$0xff] %vm276, %v4233
      %4451 = vst [vmem:[%s1475 + $0x190] sm:$0xff] %v4394
      %4452 = vst.msk [vmem:[%s1475 + $0x198] sm:$0xff] %vm276, %v4234
      %4453 = vst [vmem:[%s1475 + $0x1a0] sm:$0xff] %v4395
      %4454 = vst.msk [vmem:[%s1475 + $0x1a8] sm:$0xff] %vm276, %v4235
      %4455 = vst [vmem:[%s1475 + $0x1b0] sm:$0xff] %v4396
      %4456 = vst.msk [vmem:[%s1475 + $0x1b8] sm:$0xff] %vm276, %v4236
      %4457 = vst [vmem:[%s1475 + $0x1c0] sm:$0xff] %v4397
      %4458 = vst.msk [vmem:[%s1475 + $0x1c8] sm:$0xff] %vm276, %v4237
      %4459 = vst [vmem:[%s1475 + $0x1d0] sm:$0xff] %v4398
      %4460 = vst.msk [vmem:[%s1475 + $0x1d8] sm:$0xff] %vm276, %v4238
      %4461 = vst [vmem:[%s1475 + $0x1e0] sm:$0xff] %v4399
      %4462 = vst.msk [vmem:[%s1475 + $0x1e8] sm:$0xff] %vm276, %v4239
      %4463 = vst [vmem:[%s1475 + $0x1f0] sm:$0xff] %v4400
      %4464 = vst.msk [vmem:[%s1475 + $0x1f8] sm:$0xff] %vm276, %v4240
      %v4465 = vld [vmem:[#allocation2] sm:$0xff]
      %v4466 = vld [vmem:[#allocation2 + $0x8] sm:$0xff]
      %v4467 = vld [vmem:[#allocation2 + $0x10] sm:$0xff]
      %v4468 = vld [vmem:[#allocation2 + $0x18] sm:$0xff]
      %v4469 = vld [vmem:[#allocation2 + $0x20] sm:$0xff]
      %v4470 = vld [vmem:[#allocation2 + $0x28] sm:$0xff]
      %v4471 = vld [vmem:[#allocation2 + $0x30] sm:$0xff]
      %v4472 = vld [vmem:[#allocation2 + $0x38] sm:$0xff]
      %v4473 = vld [vmem:[#allocation2 + $0x40] sm:$0xff]
      %v4474 = vld [vmem:[#allocation2 + $0x48] sm:$0xff]
      %v4475 = vld [vmem:[#allocation2 + $0x50] sm:$0xff]
      %v4476 = vld [vmem:[#allocation2 + $0x58] sm:$0xff]
      %v4477 = vld [vmem:[#allocation2 + $0x60] sm:$0xff]
      %v4478 = vld [vmem:[#allocation2 + $0x68] sm:$0xff]
      %v4479 = vld [vmem:[#allocation2 + $0x70] sm:$0xff]
      %v4480 = vld [vmem:[#allocation2 + $0x78] sm:$0xff]
      %v4481 = vld [vmem:[#allocation2 + $0x80] sm:$0xff]
      %v4482 = vld [vmem:[#allocation2 + $0x88] sm:$0xff]
      %v4483 = vld [vmem:[#allocation2 + $0x90] sm:$0xff]
      %v4484 = vld [vmem:[#allocation2 + $0x98] sm:$0xff]
      %v4485 = vld [vmem:[#allocation2 + $0xa0] sm:$0xff]
      %v4486 = vld [vmem:[#allocation2 + $0xa8] sm:$0xff]
      %v4487 = vld [vmem:[#allocation2 + $0xb0] sm:$0xff]
      %v4488 = vld [vmem:[#allocation2 + $0xb8] sm:$0xff]
      %v4489 = vld [vmem:[#allocation2 + $0xc0] sm:$0xff]
      %v4490 = vld [vmem:[#allocation2 + $0xc8] sm:$0xff]
      %v4491 = vld [vmem:[#allocation2 + $0xd0] sm:$0xff]
      %v4492 = vld [vmem:[#allocation2 + $0xd8] sm:$0xff]
      %v4493 = vld [vmem:[#allocation2 + $0xe0] sm:$0xff]
      %v4494 = vld [vmem:[#allocation2 + $0xe8] sm:$0xff]
      %v4495 = vld [vmem:[#allocation2 + $0xf0] sm:$0xff]
      %v4496 = vld [vmem:[#allocation2 + $0xf8] sm:$0xff]
      %v4497 = vld [vmem:[#allocation2 + $0x100] sm:$0xff]
      %v4498 = vld [vmem:[#allocation2 + $0x108] sm:$0xff]
      %v4499 = vld [vmem:[#allocation2 + $0x110] sm:$0xff]
      %v4500 = vld [vmem:[#allocation2 + $0x118] sm:$0xff]
      %v4501 = vld [vmem:[#allocation2 + $0x120] sm:$0xff]
      %v4502 = vld [vmem:[#allocation2 + $0x128] sm:$0xff]
      %v4503 = vld [vmem:[#allocation2 + $0x130] sm:$0xff]
      %v4504 = vld [vmem:[#allocation2 + $0x138] sm:$0xff]
      %v4505 = vld [vmem:[#allocation2 + $0x140] sm:$0xff]
      %v4506 = vld [vmem:[#allocation2 + $0x148] sm:$0xff]
      %v4507 = vld [vmem:[#allocation2 + $0x150] sm:$0xff]
      %v4508 = vld [vmem:[#allocation2 + $0x158] sm:$0xff]
      %v4509 = vld [vmem:[#allocation2 + $0x160] sm:$0xff]
      %v4510 = vld [vmem:[#allocation2 + $0x168] sm:$0xff]
      %v4511 = vld [vmem:[#allocation2 + $0x170] sm:$0xff]
      %v4512 = vld [vmem:[#allocation2 + $0x178] sm:$0xff]
      %v4513 = vld [vmem:[#allocation2 + $0x180] sm:$0xff]
      %v4514 = vld [vmem:[#allocation2 + $0x188] sm:$0xff]
      %v4515 = vld [vmem:[#allocation2 + $0x190] sm:$0xff]
      %v4516 = vld [vmem:[#allocation2 + $0x198] sm:$0xff]
      %v4517 = vld [vmem:[#allocation2 + $0x1a0] sm:$0xff]
      %v4518 = vld [vmem:[#allocation2 + $0x1a8] sm:$0xff]
      %v4519 = vld [vmem:[#allocation2 + $0x1b0] sm:$0xff]
      %v4520 = vld [vmem:[#allocation2 + $0x1b8] sm:$0xff]
      %v4521 = vld [vmem:[#allocation2 + $0x1c0] sm:$0xff]
      %v4522 = vld [vmem:[#allocation2 + $0x1c8] sm:$0xff]
      %v4523 = vld [vmem:[#allocation2 + $0x1d0] sm:$0xff]
      %v4524 = vld [vmem:[#allocation2 + $0x1d8] sm:$0xff]
      %v4525 = vld [vmem:[#allocation2 + $0x1e0] sm:$0xff]
      %v4526 = vld [vmem:[#allocation2 + $0x1e8] sm:$0xff]
      %v4527 = vld [vmem:[#allocation2 + $0x1f0] sm:$0xff]
      %v4528 = vld [vmem:[#allocation2 + $0x1f8] sm:$0xff]
      %v4529 = vld [vmem:[#allocation2 + $0x200] sm:$0xff]
      %v4530 = vld [vmem:[#allocation2 + $0x208] sm:$0xff]
      %v4531 = vld [vmem:[#allocation2 + $0x210] sm:$0xff]
      %v4532 = vld [vmem:[#allocation2 + $0x218] sm:$0xff]
      %v4533 = vld [vmem:[#allocation2 + $0x220] sm:$0xff]
      %v4534 = vld [vmem:[#allocation2 + $0x228] sm:$0xff]
      %v4535 = vld [vmem:[#allocation2 + $0x230] sm:$0xff]
      %v4536 = vld [vmem:[#allocation2 + $0x238] sm:$0xff]
      %s4537 = scalar_lea.vmem %s2, 768
      %v4538 = vld [vmem:[%s4537] sm:$0xff]
      %v4539 = vld [vmem:[%s4537 + $0x8] sm:$0xff]
      %v4540 = vld [vmem:[%s4537 + $0x10] sm:$0xff]
      %v4541 = vld [vmem:[%s4537 + $0x18] sm:$0xff]
      %v4542 = vld [vmem:[%s4537 + $0x20] sm:$0xff]
      %v4543 = vld [vmem:[%s4537 + $0x28] sm:$0xff]
      %v4544 = vld [vmem:[%s4537 + $0x30] sm:$0xff]
      %v4545 = vld [vmem:[%s4537 + $0x38] sm:$0xff]
      %v4546 = vld [vmem:[%s4537 + $0x40] sm:$0xff]
      %v4547 = vld [vmem:[%s4537 + $0x48] sm:$0xff]
      %v4548 = vld [vmem:[%s4537 + $0x50] sm:$0xff]
      %v4549 = vld [vmem:[%s4537 + $0x58] sm:$0xff]
      %v4550 = vld [vmem:[%s4537 + $0x60] sm:$0xff]
      %v4551 = vld [vmem:[%s4537 + $0x68] sm:$0xff]
      %v4552 = vld [vmem:[%s4537 + $0x70] sm:$0xff]
      %v4553 = vld [vmem:[%s4537 + $0x78] sm:$0xff]
      %v4554 = vld [vmem:[%s4537 + $0x80] sm:$0xff]
      %v4555 = vld [vmem:[%s4537 + $0x88] sm:$0xff]
      %v4556 = vld [vmem:[%s4537 + $0x90] sm:$0xff]
      %v4557 = vld [vmem:[%s4537 + $0x98] sm:$0xff]
      %v4558 = vld [vmem:[%s4537 + $0xa0] sm:$0xff]
      %v4559 = vld [vmem:[%s4537 + $0xa8] sm:$0xff]
      %v4560 = vld [vmem:[%s4537 + $0xb0] sm:$0xff]
      %v4561 = vld [vmem:[%s4537 + $0xb8] sm:$0xff]
      %v4562 = vld [vmem:[%s4537 + $0xc0] sm:$0xff]
      %v4563 = vld [vmem:[%s4537 + $0xc8] sm:$0xff]
      %v4564 = vld [vmem:[%s4537 + $0xd0] sm:$0xff]
      %v4565 = vld [vmem:[%s4537 + $0xd8] sm:$0xff]
      %v4566 = vld [vmem:[%s4537 + $0xe0] sm:$0xff]
      %v4567 = vld [vmem:[%s4537 + $0xe8] sm:$0xff]
      %v4568 = vld [vmem:[%s4537 + $0xf0] sm:$0xff]
      %v4569 = vld [vmem:[%s4537 + $0xf8] sm:$0xff]
      %v4570 = vld [vmem:[%s4537 + $0x100] sm:$0xff]
      %v4571 = vld [vmem:[%s4537 + $0x108] sm:$0xff]
      %v4572 = vld [vmem:[%s4537 + $0x110] sm:$0xff]
      %v4573 = vld [vmem:[%s4537 + $0x118] sm:$0xff]
      %v4574 = vld [vmem:[%s4537 + $0x120] sm:$0xff]
      %v4575 = vld [vmem:[%s4537 + $0x128] sm:$0xff]
      %v4576 = vld [vmem:[%s4537 + $0x130] sm:$0xff]
      %v4577 = vld [vmem:[%s4537 + $0x138] sm:$0xff]
      %v4578 = vld [vmem:[%s4537 + $0x140] sm:$0xff]
      %v4579 = vld [vmem:[%s4537 + $0x148] sm:$0xff]
      %v4580 = vld [vmem:[%s4537 + $0x150] sm:$0xff]
      %v4581 = vld [vmem:[%s4537 + $0x158] sm:$0xff]
      %v4582 = vld [vmem:[%s4537 + $0x160] sm:$0xff]
      %v4583 = vld [vmem:[%s4537 + $0x168] sm:$0xff]
      %v4584 = vld [vmem:[%s4537 + $0x170] sm:$0xff]
      %v4585 = vld [vmem:[%s4537 + $0x178] sm:$0xff]
      %v4587 = vsel %vm276, %v4466, 0
      %v4590 = vsel %vm276, %v4468, 0
      %v4593 = vsel %vm276, %v4470, 0
      %v4596 = vsel %vm276, %v4472, 0
      %v4599 = vsel %vm276, %v4474, 0
      %v4602 = vsel %vm276, %v4476, 0
      %v4605 = vsel %vm276, %v4478, 0
      %v4608 = vsel %vm276, %v4480, 0
      %v4611 = vsel %vm276, %v4482, 0
      %v4614 = vsel %vm276, %v4484, 0
      %v4617 = vsel %vm276, %v4486, 0
      %v4620 = vsel %vm276, %v4488, 0
      %v4623 = vsel %vm276, %v4490, 0
      %v4626 = vsel %vm276, %v4492, 0
      %v4629 = vsel %vm276, %v4494, 0
      %v4632 = vsel %vm276, %v4496, 0
      %v4635 = vsel %vm276, %v4498, 0
      %v4638 = vsel %vm276, %v4500, 0
      %v4641 = vsel %vm276, %v4502, 0
      %v4644 = vsel %vm276, %v4504, 0
      %v4647 = vsel %vm276, %v4506, 0
      %v4650 = vsel %vm276, %v4508, 0
      %v4653 = vsel %vm276, %v4510, 0
      %v4656 = vsel %vm276, %v4512, 0
      %v4659 = vsel %vm276, %v4514, 0
      %v4662 = vsel %vm276, %v4516, 0
      %v4665 = vsel %vm276, %v4518, 0
      %v4668 = vsel %vm276, %v4520, 0
      %v4671 = vsel %vm276, %v4522, 0
      %v4674 = vsel %vm276, %v4524, 0
      %v4677 = vsel %vm276, %v4526, 0
      %v4680 = vsel %vm276, %v4528, 0
      %v4683 = vsel %vm276, %v4530, 0
      %v4686 = vsel %vm276, %v4532, 0
      %v4689 = vsel %vm276, %v4534, 0
      %v4692 = vsel %vm276, %v4536, 0
      %4694 = vmatpush.msra.mxu0 %v4568
      %4695 = vmatpush.msra.mxu0 %v4566
      %4696 = vmatpush.msra.mxu0 %v4564
      %4697 = vmatpush.msra.mxu0 %v4562
      %4698 = vmatpush.msra.mxu0 %v4560
      %4699 = vmatpush.msra.mxu0 %v4558
      %4700 = vmatpush.msra.mxu0 %v4556
      %4701 = vmatpush.msra.mxu0 %v4554
      %4702 = vmatpush.msra.mxu0 %v4552
      %4703 = vmatpush.msra.mxu0 %v4550
      %4704 = vmatpush.msra.mxu0 %v4548
      %4705 = vmatpush.msra.mxu0 %v4546
      %4706 = vmatpush.msra.mxu0 %v4544
      %4707 = vmatpush.msra.mxu0 %v4542
      %4708 = vmatpush.msra.mxu0 %v4540
      %4709 = vmatpush.msra.mxu0 %v4538
      %4710 = vmatmul.f32.gmra.mxu0 %v4465
      %v4711 = vpop.f32.mrf.mxu0
      %v4712 = vadd.f32 0.0, %v4711
      %4713 = vmatmul.f32.gmra.mxu0 %v4467
      %v4714 = vpop.f32.mrf.mxu0
      %v4715 = vadd.f32 0.0, %v4714
      %4716 = vmatmul.f32.gmra.mxu0 %v4469
      %v4717 = vpop.f32.mrf.mxu0
      %v4718 = vadd.f32 0.0, %v4717
      %4719 = vmatmul.f32.gmra.mxu0 %v4471
      %v4720 = vpop.f32.mrf.mxu0
      %v4721 = vadd.f32 0.0, %v4720
      %4722 = vmatmul.f32.gmra.mxu0 %v4473
      %v4723 = vpop.f32.mrf.mxu0
      %v4724 = vadd.f32 0.0, %v4723
      %4725 = vmatmul.f32.gmra.mxu0 %v4475
      %v4726 = vpop.f32.mrf.mxu0
      %v4727 = vadd.f32 0.0, %v4726
      %4728 = vmatmul.f32.gmra.mxu0 %v4477
      %v4729 = vpop.f32.mrf.mxu0
      %v4730 = vadd.f32 0.0, %v4729
      %4731 = vmatmul.f32.gmra.mxu0 %v4479
      %v4732 = vpop.f32.mrf.mxu0
      %v4733 = vadd.f32 0.0, %v4732
      %4734 = vmatmul.f32.gmra.mxu0 %v4481
      %v4735 = vpop.f32.mrf.mxu0
      %v4736 = vadd.f32 0.0, %v4735
      %4737 = vmatmul.f32.gmra.mxu0 %v4483
      %v4738 = vpop.f32.mrf.mxu0
      %v4739 = vadd.f32 0.0, %v4738
      %4740 = vmatmul.f32.gmra.mxu0 %v4485
      %v4741 = vpop.f32.mrf.mxu0
      %v4742 = vadd.f32 0.0, %v4741
      %4743 = vmatmul.f32.gmra.mxu0 %v4487
      %v4744 = vpop.f32.mrf.mxu0
      %v4745 = vadd.f32 0.0, %v4744
      %4746 = vmatmul.f32.gmra.mxu0 %v4489
      %v4747 = vpop.f32.mrf.mxu0
      %v4748 = vadd.f32 0.0, %v4747
      %4749 = vmatmul.f32.gmra.mxu0 %v4491
      %v4750 = vpop.f32.mrf.mxu0
      %v4751 = vadd.f32 0.0, %v4750
      %4752 = vmatmul.f32.gmra.mxu0 %v4493
      %v4753 = vpop.f32.mrf.mxu0
      %v4754 = vadd.f32 0.0, %v4753
      %4755 = vmatmul.f32.gmra.mxu0 %v4495
      %v4756 = vpop.f32.mrf.mxu0
      %v4757 = vadd.f32 0.0, %v4756
      %4758 = vmatmul.f32.gmra.mxu0 %v4497
      %v4759 = vpop.f32.mrf.mxu0
      %v4760 = vadd.f32 0.0, %v4759
      %4761 = vmatmul.f32.gmra.mxu0 %v4499
      %v4762 = vpop.f32.mrf.mxu0
      %v4763 = vadd.f32 0.0, %v4762
      %4764 = vmatmul.f32.gmra.mxu0 %v4501
      %v4765 = vpop.f32.mrf.mxu0
      %v4766 = vadd.f32 0.0, %v4765
      %4767 = vmatmul.f32.gmra.mxu0 %v4503
      %v4768 = vpop.f32.mrf.mxu0
      %v4769 = vadd.f32 0.0, %v4768
      %4770 = vmatmul.f32.gmra.mxu0 %v4505
      %v4771 = vpop.f32.mrf.mxu0
      %v4772 = vadd.f32 0.0, %v4771
      %4773 = vmatmul.f32.gmra.mxu0 %v4507
      %v4774 = vpop.f32.mrf.mxu0
      %v4775 = vadd.f32 0.0, %v4774
      %4776 = vmatmul.f32.gmra.mxu0 %v4509
      %v4777 = vpop.f32.mrf.mxu0
      %v4778 = vadd.f32 0.0, %v4777
      %4779 = vmatmul.f32.gmra.mxu0 %v4511
      %v4780 = vpop.f32.mrf.mxu0
      %v4781 = vadd.f32 0.0, %v4780
      %4782 = vmatmul.f32.gmra.mxu0 %v4513
      %v4783 = vpop.f32.mrf.mxu0
      %v4784 = vadd.f32 0.0, %v4783
      %4785 = vmatmul.f32.gmra.mxu0 %v4515
      %v4786 = vpop.f32.mrf.mxu0
      %v4787 = vadd.f32 0.0, %v4786
      %4788 = vmatmul.f32.gmra.mxu0 %v4517
      %v4789 = vpop.f32.mrf.mxu0
      %v4790 = vadd.f32 0.0, %v4789
      %4791 = vmatmul.f32.gmra.mxu0 %v4519
      %v4792 = vpop.f32.mrf.mxu0
      %v4793 = vadd.f32 0.0, %v4792
      %4794 = vmatmul.f32.gmra.mxu0 %v4521
      %v4795 = vpop.f32.mrf.mxu0
      %v4796 = vadd.f32 0.0, %v4795
      %4797 = vmatmul.f32.gmra.mxu0 %v4523
      %v4798 = vpop.f32.mrf.mxu0
      %v4799 = vadd.f32 0.0, %v4798
      %4800 = vmatmul.f32.gmra.mxu0 %v4525
      %v4801 = vpop.f32.mrf.mxu0
      %v4802 = vadd.f32 0.0, %v4801
      %4803 = vmatmul.f32.gmra.mxu0 %v4527
      %v4804 = vpop.f32.mrf.mxu0
      %v4805 = vadd.f32 0.0, %v4804
      %4806 = vmatmul.f32.gmra.mxu0 %v4529
      %v4807 = vpop.f32.mrf.mxu0
      %v4808 = vadd.f32 0.0, %v4807
      %4809 = vmatmul.f32.gmra.mxu0 %v4531
      %v4810 = vpop.f32.mrf.mxu0
      %v4811 = vadd.f32 0.0, %v4810
      %4812 = vmatmul.f32.gmra.mxu0 %v4533
      %v4813 = vpop.f32.mrf.mxu0
      %4814 = vmatmul.f32.gmra.mxu0 %v4535
      %v4815 = vpop.f32.mrf.mxu0
      %4816 = vdwg.mxu0
      %4817 = vmatpush.msra.mxu0 0.0
      %4818 = vmatpush.msra.mxu0 0.0
      %4819 = vmatpush.msra.mxu0 0.0
      %4820 = vmatpush.msra.mxu0 0.0
      %4821 = vmatpush.msra.mxu0 0.0
      %4822 = vmatpush.msra.mxu0 0.0
      %4823 = vmatpush.msra.mxu0 0.0
      %4824 = vmatpush.msra.mxu0 0.0
      %4825 = vmatpush.msra.mxu0 %v4584
      %4826 = vmatpush.msra.mxu0 %v4582
      %4827 = vmatpush.msra.mxu0 %v4580
      %4828 = vmatpush.msra.mxu0 %v4578
      %4829 = vmatpush.msra.mxu0 %v4576
      %4830 = vmatpush.msra.mxu0 %v4574
      %4831 = vmatpush.msra.mxu0 %v4572
      %4832 = vmatpush.msra.mxu0 %v4570
      %4833 = vmatmul.f32.gmra.mxu0 %v4587
      %v4834 = vpop.f32.mrf.mxu0
      %v4835 = vadd.f32 %v4712, %v4834
      %4836 = vmatmul.f32.gmra.mxu0 %v4590
      %v4837 = vpop.f32.mrf.mxu0
      %v4838 = vadd.f32 %v4715, %v4837
      %4839 = vmatmul.f32.gmra.mxu0 %v4593
      %v4840 = vpop.f32.mrf.mxu0
      %v4841 = vadd.f32 %v4718, %v4840
      %4842 = vmatmul.f32.gmra.mxu0 %v4596
      %v4843 = vpop.f32.mrf.mxu0
      %v4844 = vadd.f32 %v4721, %v4843
      %4845 = vmatmul.f32.gmra.mxu0 %v4599
      %v4846 = vpop.f32.mrf.mxu0
      %v4847 = vadd.f32 %v4724, %v4846
      %4848 = vmatmul.f32.gmra.mxu0 %v4602
      %v4849 = vpop.f32.mrf.mxu0
      %v4850 = vadd.f32 %v4727, %v4849
      %4851 = vmatmul.f32.gmra.mxu0 %v4605
      %v4852 = vpop.f32.mrf.mxu0
      %v4853 = vadd.f32 %v4730, %v4852
      %4854 = vmatmul.f32.gmra.mxu0 %v4608
      %v4855 = vpop.f32.mrf.mxu0
      %v4856 = vadd.f32 %v4733, %v4855
      %4857 = vmatmul.f32.gmra.mxu0 %v4611
      %v4858 = vpop.f32.mrf.mxu0
      %v4859 = vadd.f32 %v4736, %v4858
      %4860 = vmatmul.f32.gmra.mxu0 %v4614
      %v4861 = vpop.f32.mrf.mxu0
      %v4862 = vadd.f32 %v4739, %v4861
      %4863 = vmatmul.f32.gmra.mxu0 %v4617
      %v4864 = vpop.f32.mrf.mxu0
      %v4865 = vadd.f32 %v4742, %v4864
      %4866 = vmatmul.f32.gmra.mxu0 %v4620
      %v4867 = vpop.f32.mrf.mxu0
      %v4868 = vadd.f32 %v4745, %v4867
      %4869 = vmatmul.f32.gmra.mxu0 %v4623
      %v4870 = vpop.f32.mrf.mxu0
      %v4871 = vadd.f32 %v4748, %v4870
      %4872 = vmatmul.f32.gmra.mxu0 %v4626
      %v4873 = vpop.f32.mrf.mxu0
      %v4874 = vadd.f32 %v4751, %v4873
      %4875 = vmatmul.f32.gmra.mxu0 %v4629
      %v4876 = vpop.f32.mrf.mxu0
      %v4877 = vadd.f32 %v4754, %v4876
      %4878 = vmatmul.f32.gmra.mxu0 %v4632
      %v4879 = vpop.f32.mrf.mxu0
      %v4880 = vadd.f32 %v4757, %v4879
      %4881 = vmatmul.f32.gmra.mxu0 %v4635
      %v4882 = vpop.f32.mrf.mxu0
      %v4883 = vadd.f32 %v4760, %v4882
      %4884 = vmatmul.f32.gmra.mxu0 %v4638
      %v4885 = vpop.f32.mrf.mxu0
      %v4886 = vadd.f32 %v4763, %v4885
      %4887 = vmatmul.f32.gmra.mxu0 %v4641
      %v4888 = vpop.f32.mrf.mxu0
      %v4889 = vadd.f32 %v4766, %v4888
      %4890 = vmatmul.f32.gmra.mxu0 %v4644
      %v4891 = vpop.f32.mrf.mxu0
      %v4892 = vadd.f32 %v4769, %v4891
      %4893 = vmatmul.f32.gmra.mxu0 %v4647
      %v4894 = vpop.f32.mrf.mxu0
      %v4895 = vadd.f32 %v4772, %v4894
      %4896 = vmatmul.f32.gmra.mxu0 %v4650
      %v4897 = vpop.f32.mrf.mxu0
      %v4898 = vadd.f32 %v4775, %v4897
      %4899 = vmatmul.f32.gmra.mxu0 %v4653
      %v4900 = vpop.f32.mrf.mxu0
      %v4901 = vadd.f32 %v4778, %v4900
      %4902 = vmatmul.f32.gmra.mxu0 %v4656
      %v4903 = vpop.f32.mrf.mxu0
      %v4904 = vadd.f32 %v4781, %v4903
      %4905 = vmatmul.f32.gmra.mxu0 %v4659
      %v4906 = vpop.f32.mrf.mxu0
      %v4907 = vadd.f32 %v4784, %v4906
      %4908 = vmatmul.f32.gmra.mxu0 %v4662
      %v4909 = vpop.f32.mrf.mxu0
      %v4910 = vadd.f32 %v4787, %v4909
      %4911 = vmatmul.f32.gmra.mxu0 %v4665
      %v4912 = vpop.f32.mrf.mxu0
      %v4913 = vadd.f32 %v4790, %v4912
      %4914 = vmatmul.f32.gmra.mxu0 %v4668
      %v4915 = vpop.f32.mrf.mxu0
      %v4916 = vadd.f32 %v4793, %v4915
      %4917 = vmatmul.f32.gmra.mxu0 %v4671
      %v4918 = vpop.f32.mrf.mxu0
      %v4919 = vadd.f32 %v4796, %v4918
      %4920 = vmatmul.f32.gmra.mxu0 %v4674
      %v4921 = vpop.f32.mrf.mxu0
      %v4922 = vadd.f32 %v4799, %v4921
      %4923 = vmatmul.f32.gmra.mxu0 %v4677
      %v4924 = vpop.f32.mrf.mxu0
      %v4925 = vadd.f32 %v4802, %v4924
      %4926 = vmatmul.f32.gmra.mxu0 %v4680
      %v4927 = vpop.f32.mrf.mxu0
      %v4928 = vadd.f32 %v4805, %v4927
      %4929 = vmatmul.f32.gmra.mxu0 %v4683
      %v4930 = vpop.f32.mrf.mxu0
      %v4931 = vadd.f32 %v4808, %v4930
      %4932 = vmatmul.f32.gmra.mxu0 %v4686
      %v4933 = vpop.f32.mrf.mxu0
      %v4934 = vadd.f32 %v4811, %v4933
      %4935 = vmatmul.f32.gmra.mxu0 %v4689
      %v4936 = vpop.f32.mrf.mxu0
      %4937 = vmatmul.f32.gmra.mxu0 %v4692
      %v4938 = vpop.f32.mrf.mxu0
      %4939 = vdwg.mxu0
      %4940 = vmatpush.msra.mxu0 %v4569
      %4941 = vmatpush.msra.mxu0 %v4567
      %4942 = vmatpush.msra.mxu0 %v4565
      %4943 = vmatpush.msra.mxu0 %v4563
      %4944 = vmatpush.msra.mxu0 %v4561
      %4945 = vmatpush.msra.mxu0 %v4559
      %4946 = vmatpush.msra.mxu0 %v4557
      %4947 = vmatpush.msra.mxu0 %v4555
      %4948 = vmatpush.msra.mxu0 %v4553
      %4949 = vmatpush.msra.mxu0 %v4551
      %4950 = vmatpush.msra.mxu0 %v4549
      %4951 = vmatpush.msra.mxu0 %v4547
      %4952 = vmatpush.msra.mxu0 %v4545
      %4953 = vmatpush.msra.mxu0 %v4543
      %4954 = vmatpush.msra.mxu0 %v4541
      %4955 = vmatpush.msra.mxu0 %v4539
      %4956 = vmatmul.f32.gmra.mxu0 %v4465
      %v4957 = vpop.f32.mrf.mxu0
      %4958 = vmatmul.f32.gmra.mxu0 %v4467
      %v4959 = vpop.f32.mrf.mxu0
      %4960 = vmatmul.f32.gmra.mxu0 %v4469
      %v4961 = vpop.f32.mrf.mxu0
      %4962 = vmatmul.f32.gmra.mxu0 %v4471
      %v4963 = vpop.f32.mrf.mxu0
      %4964 = vmatmul.f32.gmra.mxu0 %v4473
      %v4965 = vpop.f32.mrf.mxu0
      %v4966 = vadd.f32 0.0, %v4965
      %4967 = vmatmul.f32.gmra.mxu0 %v4475
      %v4968 = vpop.f32.mrf.mxu0
      %v4969 = vadd.f32 0.0, %v4968
      %4970 = vmatmul.f32.gmra.mxu0 %v4477
      %v4971 = vpop.f32.mrf.mxu0
      %v4972 = vadd.f32 0.0, %v4971
      %4973 = vmatmul.f32.gmra.mxu0 %v4479
      %v4974 = vpop.f32.mrf.mxu0
      %v4975 = vadd.f32 0.0, %v4974
      %4976 = vmatmul.f32.gmra.mxu0 %v4481
      %v4977 = vpop.f32.mrf.mxu0
      %v4978 = vadd.f32 0.0, %v4977
      %4979 = vmatmul.f32.gmra.mxu0 %v4483
      %v4980 = vpop.f32.mrf.mxu0
      %v4981 = vadd.f32 0.0, %v4980
      %4982 = vmatmul.f32.gmra.mxu0 %v4485
      %v4983 = vpop.f32.mrf.mxu0
      %v4984 = vadd.f32 0.0, %v4983
      %4985 = vmatmul.f32.gmra.mxu0 %v4487
      %v4986 = vpop.f32.mrf.mxu0
      %v4987 = vadd.f32 0.0, %v4986
      %4988 = vmatmul.f32.gmra.mxu0 %v4489
      %v4989 = vpop.f32.mrf.mxu0
      %v4990 = vadd.f32 0.0, %v4989
      %4991 = vmatmul.f32.gmra.mxu0 %v4491
      %v4992 = vpop.f32.mrf.mxu0
      %v4993 = vadd.f32 0.0, %v4992
      %4994 = vmatmul.f32.gmra.mxu0 %v4493
      %v4995 = vpop.f32.mrf.mxu0
      %v4996 = vadd.f32 0.0, %v4995
      %4997 = vmatmul.f32.gmra.mxu0 %v4495
      %v4998 = vpop.f32.mrf.mxu0
      %v4999 = vadd.f32 0.0, %v4998
      %5000 = vmatmul.f32.gmra.mxu0 %v4497
      %v5001 = vpop.f32.mrf.mxu0
      %v5002 = vadd.f32 0.0, %v5001
      %5003 = vmatmul.f32.gmra.mxu0 %v4499
      %v5004 = vpop.f32.mrf.mxu0
      %v5005 = vadd.f32 0.0, %v5004
      %5006 = vmatmul.f32.gmra.mxu0 %v4501
      %v5007 = vpop.f32.mrf.mxu0
      %v5008 = vadd.f32 0.0, %v5007
      %5009 = vmatmul.f32.gmra.mxu0 %v4503
      %v5010 = vpop.f32.mrf.mxu0
      %v5011 = vadd.f32 0.0, %v5010
      %5012 = vmatmul.f32.gmra.mxu0 %v4505
      %v5013 = vpop.f32.mrf.mxu0
      %v5014 = vadd.f32 0.0, %v5013
      %5015 = vmatmul.f32.gmra.mxu0 %v4507
      %v5016 = vpop.f32.mrf.mxu0
      %v5017 = vadd.f32 0.0, %v5016
      %5018 = vmatmul.f32.gmra.mxu0 %v4509
      %v5019 = vpop.f32.mrf.mxu0
      %v5020 = vadd.f32 0.0, %v5019
      %5021 = vmatmul.f32.gmra.mxu0 %v4511
      %v5022 = vpop.f32.mrf.mxu0
      %v5023 = vadd.f32 0.0, %v5022
      %5024 = vmatmul.f32.gmra.mxu0 %v4513
      %v5025 = vpop.f32.mrf.mxu0
      %v5026 = vadd.f32 0.0, %v5025
      %5027 = vmatmul.f32.gmra.mxu0 %v4515
      %v5028 = vpop.f32.mrf.mxu0
      %v5029 = vadd.f32 0.0, %v5028
      %5030 = vmatmul.f32.gmra.mxu0 %v4517
      %v5031 = vpop.f32.mrf.mxu0
      %v5032 = vadd.f32 0.0, %v5031
      %5033 = vmatmul.f32.gmra.mxu0 %v4519
      %v5034 = vpop.f32.mrf.mxu0
      %v5035 = vadd.f32 0.0, %v5034
      %5036 = vmatmul.f32.gmra.mxu0 %v4521
      %v5037 = vpop.f32.mrf.mxu0
      %v5038 = vadd.f32 0.0, %v5037
      %5039 = vmatmul.f32.gmra.mxu0 %v4523
      %v5040 = vpop.f32.mrf.mxu0
      %v5041 = vadd.f32 0.0, %v5040
      %5042 = vmatmul.f32.gmra.mxu0 %v4525
      %v5043 = vpop.f32.mrf.mxu0
      %v5044 = vadd.f32 0.0, %v5043
      %5045 = vmatmul.f32.gmra.mxu0 %v4527
      %v5046 = vpop.f32.mrf.mxu0
      %v5047 = vadd.f32 0.0, %v5046
      %5048 = vmatmul.f32.gmra.mxu0 %v4529
      %v5049 = vpop.f32.mrf.mxu0
      %v5050 = vadd.f32 0.0, %v5049
      %5051 = vmatmul.f32.gmra.mxu0 %v4531
      %v5052 = vpop.f32.mrf.mxu0
      %v5053 = vadd.f32 0.0, %v5052
      %5054 = vmatmul.f32.gmra.mxu0 %v4533
      %v5055 = vpop.f32.mrf.mxu0
      %v5056 = vadd.f32 0.0, %v5055
      %5057 = vmatmul.f32.gmra.mxu0 %v4535
      %v5058 = vpop.f32.mrf.mxu0
      %v5059 = vadd.f32 0.0, %v5058
      %5060 = vdwg.mxu0
      %5061 = vmatpush.msra.mxu0 0.0
      %5062 = vmatpush.msra.mxu0 0.0
      %5063 = vmatpush.msra.mxu0 0.0
      %5064 = vmatpush.msra.mxu0 0.0
      %5065 = vmatpush.msra.mxu0 0.0
      %5066 = vmatpush.msra.mxu0 0.0
      %5067 = vmatpush.msra.mxu0 0.0
      %5068 = vmatpush.msra.mxu0 0.0
      %5069 = vmatpush.msra.mxu0 %v4585
      %5070 = vmatpush.msra.mxu0 %v4583
      %5071 = vmatpush.msra.mxu0 %v4581
      %5072 = vmatpush.msra.mxu0 %v4579
      %5073 = vmatpush.msra.mxu0 %v4577
      %5074 = vmatpush.msra.mxu0 %v4575
      %5075 = vmatpush.msra.mxu0 %v4573
      %5076 = vmatpush.msra.mxu0 %v4571
      %5077 = vmatmul.f32.gmra.mxu0 %v4587
      %v5078 = vpop.f32.mrf.mxu0
      %5079 = vmatmul.f32.gmra.mxu0 %v4590
      %v5080 = vpop.f32.mrf.mxu0
      %5081 = vmatmul.f32.gmra.mxu0 %v4593
      %v5082 = vpop.f32.mrf.mxu0
      %5083 = vmatmul.f32.gmra.mxu0 %v4596
      %v5084 = vpop.f32.mrf.mxu0
      %5085 = vmatmul.f32.gmra.mxu0 %v4599
      %v5086 = vpop.f32.mrf.mxu0
      %v5087 = vadd.f32 %v4966, %v5086
      %5088 = vmatmul.f32.gmra.mxu0 %v4602
      %v5089 = vpop.f32.mrf.mxu0
      %v5090 = vadd.f32 %v4969, %v5089
      %5091 = vmatmul.f32.gmra.mxu0 %v4605
      %v5092 = vpop.f32.mrf.mxu0
      %v5093 = vadd.f32 %v4972, %v5092
      %5094 = vmatmul.f32.gmra.mxu0 %v4608
      %v5095 = vpop.f32.mrf.mxu0
      %v5096 = vadd.f32 %v4975, %v5095
      %5097 = vmatmul.f32.gmra.mxu0 %v4611
      %v5098 = vpop.f32.mrf.mxu0
      %v5099 = vadd.f32 %v4978, %v5098
      %5100 = vmatmul.f32.gmra.mxu0 %v4614
      %v5101 = vpop.f32.mrf.mxu0
      %v5102 = vadd.f32 %v4981, %v5101
      %5103 = vmatmul.f32.gmra.mxu0 %v4617
      %v5104 = vpop.f32.mrf.mxu0
      %v5105 = vadd.f32 %v4984, %v5104
      %5106 = vmatmul.f32.gmra.mxu0 %v4620
      %v5107 = vpop.f32.mrf.mxu0
      %v5108 = vadd.f32 %v4987, %v5107
      %5109 = vmatmul.f32.gmra.mxu0 %v4623
      %v5110 = vpop.f32.mrf.mxu0
      %v5111 = vadd.f32 %v4990, %v5110
      %5112 = vmatmul.f32.gmra.mxu0 %v4626
      %v5113 = vpop.f32.mrf.mxu0
      %v5114 = vadd.f32 %v4993, %v5113
      %5115 = vmatmul.f32.gmra.mxu0 %v4629
      %v5116 = vpop.f32.mrf.mxu0
      %v5117 = vadd.f32 %v4996, %v5116
      %5118 = vmatmul.f32.gmra.mxu0 %v4632
      %v5119 = vpop.f32.mrf.mxu0
      %v5120 = vadd.f32 %v4999, %v5119
      %5121 = vmatmul.f32.gmra.mxu0 %v4635
      %v5122 = vpop.f32.mrf.mxu0
      %v5123 = vadd.f32 %v5002, %v5122
      %5124 = vmatmul.f32.gmra.mxu0 %v4638
      %v5125 = vpop.f32.mrf.mxu0
      %v5126 = vadd.f32 %v5005, %v5125
      %5127 = vmatmul.f32.gmra.mxu0 %v4641
      %v5128 = vpop.f32.mrf.mxu0
      %v5129 = vadd.f32 %v5008, %v5128
      %5130 = vmatmul.f32.gmra.mxu0 %v4644
      %v5131 = vpop.f32.mrf.mxu0
      %v5132 = vadd.f32 %v5011, %v5131
      %5133 = vmatmul.f32.gmra.mxu0 %v4647
      %v5134 = vpop.f32.mrf.mxu0
      %v5135 = vadd.f32 %v5014, %v5134
      %5136 = vmatmul.f32.gmra.mxu0 %v4650
      %v5137 = vpop.f32.mrf.mxu0
      %v5138 = vadd.f32 %v5017, %v5137
      %5139 = vmatmul.f32.gmra.mxu0 %v4653
      %v5140 = vpop.f32.mrf.mxu0
      %v5141 = vadd.f32 %v5020, %v5140
      %5142 = vmatmul.f32.gmra.mxu0 %v4656
      %v5143 = vpop.f32.mrf.mxu0
      %v5144 = vadd.f32 %v5023, %v5143
      %5145 = vmatmul.f32.gmra.mxu0 %v4659
      %v5146 = vpop.f32.mrf.mxu0
      %v5147 = vadd.f32 %v5026, %v5146
      %5148 = vmatmul.f32.gmra.mxu0 %v4662
      %v5149 = vpop.f32.mrf.mxu0
      %v5150 = vadd.f32 %v5029, %v5149
      %5151 = vmatmul.f32.gmra.mxu0 %v4665
      %v5152 = vpop.f32.mrf.mxu0
      %v5153 = vadd.f32 %v5032, %v5152
      %5154 = vmatmul.f32.gmra.mxu0 %v4668
      %v5155 = vpop.f32.mrf.mxu0
      %v5156 = vadd.f32 %v5035, %v5155
      %5157 = vmatmul.f32.gmra.mxu0 %v4671
      %v5158 = vpop.f32.mrf.mxu0
      %v5159 = vadd.f32 %v5038, %v5158
      %5160 = vmatmul.f32.gmra.mxu0 %v4674
      %v5161 = vpop.f32.mrf.mxu0
      %v5162 = vadd.f32 %v5041, %v5161
      %5163 = vmatmul.f32.gmra.mxu0 %v4677
      %v5164 = vpop.f32.mrf.mxu0
      %v5165 = vadd.f32 %v5044, %v5164
      %5166 = vmatmul.f32.gmra.mxu0 %v4680
      %v5167 = vpop.f32.mrf.mxu0
      %v5168 = vadd.f32 %v5047, %v5167
      %5169 = vmatmul.f32.gmra.mxu0 %v4683
      %v5170 = vpop.f32.mrf.mxu0
      %v5171 = vadd.f32 %v5050, %v5170
      %5172 = vmatmul.f32.gmra.mxu0 %v4686
      %v5173 = vpop.f32.mrf.mxu0
      %v5174 = vadd.f32 %v5053, %v5173
      %5175 = vmatmul.f32.gmra.mxu0 %v4689
      %v5176 = vpop.f32.mrf.mxu0
      %v5177 = vadd.f32 %v5056, %v5176
      %5178 = vmatmul.f32.gmra.mxu0 %v4692
      %v5179 = vpop.f32.mrf.mxu0
      %v5180 = vadd.f32 %v5059, %v5179
      %5181 = vdwg.mxu0
      %5214 = vrot.lane.b32.xlu0 %v4841, 64
      %v5215 = vpop.permute.xlu0 %5214
      %5216 = vrot.lane.b32.xlu0 %v4844, 64
      %v5217 = vpop.permute.xlu0 %5216
      %5218 = vrot.lane.b32.xlu0 %v4847, 64
      %v5219 = vpop.permute.xlu0 %5218
      %5220 = vrot.lane.b32.xlu0 %v4850, 64
      %v5221 = vpop.permute.xlu0 %5220
      %5222 = vrot.lane.b32.xlu0 %v4853, 64
      %v5223 = vpop.permute.xlu0 %5222
      %5224 = vrot.lane.b32.xlu0 %v4856, 64
      %v5225 = vpop.permute.xlu0 %5224
      %5226 = vrot.lane.b32.xlu0 %v4859, 64
      %v5227 = vpop.permute.xlu0 %5226
      %5228 = vrot.lane.b32.xlu0 %v4862, 64
      %v5229 = vpop.permute.xlu0 %5228
      %5230 = vrot.lane.b32.xlu0 %v4865, 64
      %v5231 = vpop.permute.xlu0 %5230
      %5232 = vrot.lane.b32.xlu0 %v4868, 64
      %v5233 = vpop.permute.xlu0 %5232
      %5234 = vrot.lane.b32.xlu0 %v4871, 64
      %v5235 = vpop.permute.xlu0 %5234
      %5236 = vrot.lane.b32.xlu0 %v4874, 64
      %v5237 = vpop.permute.xlu0 %5236
      %5238 = vrot.lane.b32.xlu0 %v4877, 64
      %v5239 = vpop.permute.xlu0 %5238
      %5240 = vrot.lane.b32.xlu0 %v4880, 64
      %v5241 = vpop.permute.xlu0 %5240
      %5242 = vrot.lane.b32.xlu0 %v4883, 64
      %v5243 = vpop.permute.xlu0 %5242
      %5244 = vrot.lane.b32.xlu0 %v4886, 64
      %v5245 = vpop.permute.xlu0 %5244
      %5246 = vrot.lane.b32.xlu0 %v4889, 64
      %v5247 = vpop.permute.xlu0 %5246
      %5248 = vrot.lane.b32.xlu0 %v4892, 64
      %v5249 = vpop.permute.xlu0 %5248
      %5250 = vrot.lane.b32.xlu0 %v4895, 64
      %v5251 = vpop.permute.xlu0 %5250
      %5252 = vrot.lane.b32.xlu0 %v4898, 64
      %v5253 = vpop.permute.xlu0 %5252
      %5254 = vrot.lane.b32.xlu0 %v4901, 64
      %v5255 = vpop.permute.xlu0 %5254
      %5256 = vrot.lane.b32.xlu0 %v4904, 64
      %v5257 = vpop.permute.xlu0 %5256
      %5258 = vrot.lane.b32.xlu0 %v4907, 64
      %v5259 = vpop.permute.xlu0 %5258
      %5260 = vrot.lane.b32.xlu0 %v4910, 64
      %v5261 = vpop.permute.xlu0 %5260
      %5262 = vrot.lane.b32.xlu0 %v4913, 64
      %v5263 = vpop.permute.xlu0 %5262
      %5264 = vrot.lane.b32.xlu0 %v4916, 64
      %v5265 = vpop.permute.xlu0 %5264
      %5266 = vrot.lane.b32.xlu0 %v4919, 64
      %v5267 = vpop.permute.xlu0 %5266
      %5268 = vrot.lane.b32.xlu0 %v4922, 64
      %v5269 = vpop.permute.xlu0 %5268
      %5270 = vrot.lane.b32.xlu0 %v4925, 64
      %v5271 = vpop.permute.xlu0 %5270
      %5272 = vrot.lane.b32.xlu0 %v4928, 64
      %v5273 = vpop.permute.xlu0 %5272
      %5274 = vrot.lane.b32.xlu0 %v4931, 64
      %v5275 = vpop.permute.xlu0 %5274
      %5276 = vrot.lane.b32.xlu0 %v4934, 64
      %v5277 = vpop.permute.xlu0 %5276
      %v5310 = vadd.f32 %v4835, %v5215
      %v5311 = vadd.f32 %v4838, %v5217
      %v5312 = vadd.f32 %v4841, %v5219
      %v5313 = vadd.f32 %v4844, %v5221
      %v5314 = vadd.f32 %v4847, %v5223
      %v5315 = vadd.f32 %v4850, %v5225
      %v5316 = vadd.f32 %v4853, %v5227
      %v5317 = vadd.f32 %v4856, %v5229
      %v5318 = vadd.f32 %v4859, %v5231
      %v5319 = vadd.f32 %v4862, %v5233
      %v5320 = vadd.f32 %v4865, %v5235
      %v5321 = vadd.f32 %v4868, %v5237
      %v5322 = vadd.f32 %v4871, %v5239
      %v5323 = vadd.f32 %v4874, %v5241
      %v5324 = vadd.f32 %v4877, %v5243
      %v5325 = vadd.f32 %v4880, %v5245
      %v5326 = vadd.f32 %v4883, %v5247
      %v5327 = vadd.f32 %v4886, %v5249
      %v5328 = vadd.f32 %v4889, %v5251
      %v5329 = vadd.f32 %v4892, %v5253
      %v5330 = vadd.f32 %v4895, %v5255
      %v5331 = vadd.f32 %v4898, %v5257
      %v5332 = vadd.f32 %v4901, %v5259
      %v5333 = vadd.f32 %v4904, %v5261
      %v5334 = vadd.f32 %v4907, %v5263
      %v5335 = vadd.f32 %v4910, %v5265
      %v5336 = vadd.f32 %v4913, %v5267
      %v5337 = vadd.f32 %v4916, %v5269
      %v5338 = vadd.f32 %v4919, %v5271
      %v5339 = vadd.f32 %v4922, %v5273
      %v5340 = vadd.f32 %v4925, %v5275
      %v5341 = vadd.f32 %v4928, %v5277
      %v5342 = vadd.f32 %v5310, %v5087
      %v5343 = vadd.f32 %v5311, %v5090
      %v5344 = vadd.f32 %v5312, %v5093
      %v5345 = vadd.f32 %v5313, %v5096
      %v5346 = vadd.f32 %v5314, %v5099
      %v5347 = vadd.f32 %v5315, %v5102
      %v5348 = vadd.f32 %v5316, %v5105
      %v5349 = vadd.f32 %v5317, %v5108
      %v5350 = vadd.f32 %v5318, %v5111
      %v5351 = vadd.f32 %v5319, %v5114
      %v5352 = vadd.f32 %v5320, %v5117
      %v5353 = vadd.f32 %v5321, %v5120
      %v5354 = vadd.f32 %v5322, %v5123
      %v5355 = vadd.f32 %v5323, %v5126
      %v5356 = vadd.f32 %v5324, %v5129
      %v5357 = vadd.f32 %v5325, %v5132
      %v5358 = vadd.f32 %v5326, %v5135
      %v5359 = vadd.f32 %v5327, %v5138
      %v5360 = vadd.f32 %v5328, %v5141
      %v5361 = vadd.f32 %v5329, %v5144
      %v5362 = vadd.f32 %v5330, %v5147
      %v5363 = vadd.f32 %v5331, %v5150
      %v5364 = vadd.f32 %v5332, %v5153
      %v5365 = vadd.f32 %v5333, %v5156
      %v5366 = vadd.f32 %v5334, %v5159
      %v5367 = vadd.f32 %v5335, %v5162
      %v5368 = vadd.f32 %v5336, %v5165
      %v5369 = vadd.f32 %v5337, %v5168
      %v5370 = vadd.f32 %v5338, %v5171
      %v5371 = vadd.f32 %v5339, %v5174
      %v5372 = vadd.f32 %v5340, %v5177
      %v5373 = vadd.f32 %v5341, %v5180
      %s5374 = scalar_lea.vmem %s3, 3
      %v5375 = vld [vmem:[%s5374] sm:$0x1]
      %v5377 = vperm.slane %v5375, 0
      %v5379 = vmul.f32 %v5342, %v5377
      %v5380 = vmul.f32 %v5343, %v5377
      %v5381 = vmul.f32 %v5344, %v5377
      %v5382 = vmul.f32 %v5345, %v5377
      %v5383 = vmul.f32 %v5346, %v5377
      %v5384 = vmul.f32 %v5347, %v5377
      %v5385 = vmul.f32 %v5348, %v5377
      %v5386 = vmul.f32 %v5349, %v5377
      %v5387 = vmul.f32 %v5350, %v5377
      %v5388 = vmul.f32 %v5351, %v5377
      %v5389 = vmul.f32 %v5352, %v5377
      %v5390 = vmul.f32 %v5353, %v5377
      %v5391 = vmul.f32 %v5354, %v5377
      %v5392 = vmul.f32 %v5355, %v5377
      %v5393 = vmul.f32 %v5356, %v5377
      %v5394 = vmul.f32 %v5357, %v5377
      %v5395 = vmul.f32 %v5358, %v5377
      %v5396 = vmul.f32 %v5359, %v5377
      %v5397 = vmul.f32 %v5360, %v5377
      %v5398 = vmul.f32 %v5361, %v5377
      %v5399 = vmul.f32 %v5362, %v5377
      %v5400 = vmul.f32 %v5363, %v5377
      %v5401 = vmul.f32 %v5364, %v5377
      %v5402 = vmul.f32 %v5365, %v5377
      %v5403 = vmul.f32 %v5366, %v5377
      %v5404 = vmul.f32 %v5367, %v5377
      %v5405 = vmul.f32 %v5368, %v5377
      %v5406 = vmul.f32 %v5369, %v5377
      %v5407 = vmul.f32 %v5370, %v5377
      %v5408 = vmul.f32 %v5371, %v5377
      %v5409 = vmul.f32 %v5372, %v5377
      %v5410 = vmul.f32 %v5373, %v5377
      %s5411 = scalar_lea.vmem %s4, 3
      %v5412 = vld [vmem:[%s5411] sm:$0x1]
      %v5414 = vperm.slane %v5412, 0
      %v5416 = vadd.f32 %v5379, %v5414
      %v5417 = vadd.f32 %v5380, %v5414
      %v5418 = vadd.f32 %v5381, %v5414
      %v5419 = vadd.f32 %v5382, %v5414
      %v5420 = vadd.f32 %v5383, %v5414
      %v5421 = vadd.f32 %v5384, %v5414
      %v5422 = vadd.f32 %v5385, %v5414
      %v5423 = vadd.f32 %v5386, %v5414
      %v5424 = vadd.f32 %v5387, %v5414
      %v5425 = vadd.f32 %v5388, %v5414
      %v5426 = vadd.f32 %v5389, %v5414
      %v5427 = vadd.f32 %v5390, %v5414
      %v5428 = vadd.f32 %v5391, %v5414
      %v5429 = vadd.f32 %v5392, %v5414
      %v5430 = vadd.f32 %v5393, %v5414
      %v5431 = vadd.f32 %v5394, %v5414
      %v5432 = vadd.f32 %v5395, %v5414
      %v5433 = vadd.f32 %v5396, %v5414
      %v5434 = vadd.f32 %v5397, %v5414
      %v5435 = vadd.f32 %v5398, %v5414
      %v5436 = vadd.f32 %v5399, %v5414
      %v5437 = vadd.f32 %v5400, %v5414
      %v5438 = vadd.f32 %v5401, %v5414
      %v5439 = vadd.f32 %v5402, %v5414
      %v5440 = vadd.f32 %v5403, %v5414
      %v5441 = vadd.f32 %v5404, %v5414
      %v5442 = vadd.f32 %v5405, %v5414
      %v5443 = vadd.f32 %v5406, %v5414
      %v5444 = vadd.f32 %v5407, %v5414
      %v5445 = vadd.f32 %v5408, %v5414
      %v5446 = vadd.f32 %v5409, %v5414
      %v5447 = vadd.f32 %v5410, %v5414
      %v5448 = vadd.f32 %v5416, %v4017
      %v5449 = vadd.f32 %v5417, %v4018
      %v5450 = vadd.f32 %v5418, %v4019
      %v5451 = vadd.f32 %v5419, %v4020
      %v5452 = vadd.f32 %v5420, %v4021
      %v5453 = vadd.f32 %v5421, %v4022
      %v5454 = vadd.f32 %v5422, %v4023
      %v5455 = vadd.f32 %v5423, %v4024
      %v5456 = vadd.f32 %v5424, %v4025
      %v5457 = vadd.f32 %v5425, %v4026
      %v5458 = vadd.f32 %v5426, %v4027
      %v5459 = vadd.f32 %v5427, %v4028
      %v5460 = vadd.f32 %v5428, %v4029
      %v5461 = vadd.f32 %v5429, %v4030
      %v5462 = vadd.f32 %v5430, %v4031
      %v5463 = vadd.f32 %v5431, %v4032
      %v5464 = vadd.f32 %v5432, %v4033
      %v5465 = vadd.f32 %v5433, %v4034
      %v5466 = vadd.f32 %v5434, %v4035
      %v5467 = vadd.f32 %v5435, %v4036
      %v5468 = vadd.f32 %v5436, %v4037
      %v5469 = vadd.f32 %v5437, %v4038
      %v5470 = vadd.f32 %v5438, %v4039
      %v5471 = vadd.f32 %v5439, %v4040
      %v5472 = vadd.f32 %v5440, %v4041
      %v5473 = vadd.f32 %v5441, %v4042
      %v5474 = vadd.f32 %v5442, %v4043
      %v5475 = vadd.f32 %v5443, %v4044
      %v5476 = vadd.f32 %v5444, %v4045
      %v5477 = vadd.f32 %v5445, %v4046
      %v5478 = vadd.f32 %v5446, %v4047
      %v5479 = vadd.f32 %v5447, %v4048
      %v5480 = vmax.f32 %v5448, 0.0
      %v5481 = vmax.f32 %v5449, 0.0
      %v5482 = vmax.f32 %v5450, 0.0
      %v5483 = vmax.f32 %v5451, 0.0
      %v5484 = vmax.f32 %v5452, 0.0
      %v5485 = vmax.f32 %v5453, 0.0
      %v5486 = vmax.f32 %v5454, 0.0
      %v5487 = vmax.f32 %v5455, 0.0
      %v5488 = vmax.f32 %v5456, 0.0
      %v5489 = vmax.f32 %v5457, 0.0
      %v5490 = vmax.f32 %v5458, 0.0
      %v5491 = vmax.f32 %v5459, 0.0
      %v5492 = vmax.f32 %v5460, 0.0
      %v5493 = vmax.f32 %v5461, 0.0
      %v5494 = vmax.f32 %v5462, 0.0
      %v5495 = vmax.f32 %v5463, 0.0
      %v5496 = vmax.f32 %v5464, 0.0
      %v5497 = vmax.f32 %v5465, 0.0
      %v5498 = vmax.f32 %v5466, 0.0
      %v5499 = vmax.f32 %v5467, 0.0
      %v5500 = vmax.f32 %v5468, 0.0
      %v5501 = vmax.f32 %v5469, 0.0
      %v5502 = vmax.f32 %v5470, 0.0
      %v5503 = vmax.f32 %v5471, 0.0
      %v5504 = vmax.f32 %v5472, 0.0
      %v5505 = vmax.f32 %v5473, 0.0
      %v5506 = vmax.f32 %v5474, 0.0
      %v5507 = vmax.f32 %v5475, 0.0
      %v5508 = vmax.f32 %v5476, 0.0
      %v5509 = vmax.f32 %v5477, 0.0
      %v5510 = vmax.f32 %v5478, 0.0
      %v5511 = vmax.f32 %v5479, 0.0
      %v5512 = vrot.slane %v5480, 7
      %v5513 = vrot.slane %v5481, 7
      %v5514 = vrot.slane %v5482, 7
      %v5515 = vrot.slane %v5483, 7
      %v5516 = vrot.slane %v5484, 7
      %v5517 = vrot.slane %v5485, 7
      %v5518 = vrot.slane %v5486, 7
      %v5519 = vrot.slane %v5487, 7
      %v5520 = vrot.slane %v5488, 7
      %v5521 = vrot.slane %v5489, 7
      %v5522 = vrot.slane %v5490, 7
      %v5523 = vrot.slane %v5491, 7
      %v5524 = vrot.slane %v5492, 7
      %v5525 = vrot.slane %v5493, 7
      %v5526 = vrot.slane %v5494, 7
      %v5527 = vrot.slane %v5495, 7
      %v5528 = vrot.slane %v5496, 7
      %v5529 = vrot.slane %v5497, 7
      %v5530 = vrot.slane %v5498, 7
      %v5531 = vrot.slane %v5499, 7
      %v5532 = vrot.slane %v5500, 7
      %v5533 = vrot.slane %v5501, 7
      %v5534 = vrot.slane %v5502, 7
      %v5535 = vrot.slane %v5503, 7
      %v5536 = vrot.slane %v5504, 7
      %v5537 = vrot.slane %v5505, 7
      %v5538 = vrot.slane %v5506, 7
      %v5539 = vrot.slane %v5507, 7
      %v5540 = vrot.slane %v5508, 7
      %v5541 = vrot.slane %v5509, 7
      %v5542 = vrot.slane %v5510, 7
      %v5543 = vrot.slane %v5511, 7
      %v5544 = vsel %vm1153, %v5542, %v5543
      %v5545 = vsel %vm1153, %v5541, %v5542
      %v5546 = vsel %vm1153, %v5540, %v5541
      %v5547 = vsel %vm1153, %v5539, %v5540
      %v5548 = vsel %vm1153, %v5538, %v5539
      %v5549 = vsel %vm1153, %v5537, %v5538
      %v5550 = vsel %vm1153, %v5536, %v5537
      %v5551 = vsel %vm1153, %v5535, %v5536
      %v5552 = vsel %vm1153, %v5534, %v5535
      %v5553 = vsel %vm1153, %v5533, %v5534
      %v5554 = vsel %vm1153, %v5532, %v5533
      %v5555 = vsel %vm1153, %v5531, %v5532
      %v5556 = vsel %vm1153, %v5530, %v5531
      %v5557 = vsel %vm1153, %v5529, %v5530
      %v5558 = vsel %vm1153, %v5528, %v5529
      %v5559 = vsel %vm1153, %v5527, %v5528
      %v5560 = vsel %vm1153, %v5526, %v5527
      %v5561 = vsel %vm1153, %v5525, %v5526
      %v5562 = vsel %vm1153, %v5524, %v5525
      %v5563 = vsel %vm1153, %v5523, %v5524
      %v5564 = vsel %vm1153, %v5522, %v5523
      %v5565 = vsel %vm1153, %v5521, %v5522
      %v5566 = vsel %vm1153, %v5520, %v5521
      %v5567 = vsel %vm1153, %v5519, %v5520
      %v5568 = vsel %vm1153, %v5518, %v5519
      %v5569 = vsel %vm1153, %v5517, %v5518
      %v5570 = vsel %vm1153, %v5516, %v5517
      %v5571 = vsel %vm1153, %v5515, %v5516
      %v5572 = vsel %vm1153, %v5514, %v5515
      %v5573 = vsel %vm1153, %v5513, %v5514
      %v5574 = vsel %vm1153, %v5512, %v5513
      %v5575 = vsel %vm1153, %v5543, %v5512
      %v5576 = vsel %vm702, %v5575, 0.0
      %v5577 = vsel %vm703, %v5574, 0.0
      %v5578 = vsel %vm704, %v5573, 0.0
      %v5579 = vsel %vm705, %v5572, 0.0
      %v5580 = vsel %vm706, %v5571, 0.0
      %v5581 = vsel %vm707, %v5570, 0.0
      %v5582 = vsel %vm708, %v5569, 0.0
      %v5583 = vsel %vm709, %v5568, 0.0
      %v5584 = vsel %vm710, %v5567, 0.0
      %v5585 = vsel %vm711, %v5566, 0.0
      %v5586 = vsel %vm712, %v5565, 0.0
      %v5587 = vsel %vm713, %v5564, 0.0
      %v5588 = vsel %vm714, %v5563, 0.0
      %v5589 = vsel %vm715, %v5562, 0.0
      %v5590 = vsel %vm716, %v5561, 0.0
      %v5591 = vsel %vm717, %v5560, 0.0
      %v5592 = vsel %vm718, %v5559, 0.0
      %v5593 = vsel %vm719, %v5558, 0.0
      %v5594 = vsel %vm720, %v5557, 0.0
      %v5595 = vsel %vm721, %v5556, 0.0
      %v5596 = vsel %vm722, %v5555, 0.0
      %v5597 = vsel %vm723, %v5554, 0.0
      %v5598 = vsel %vm724, %v5553, 0.0
      %v5599 = vsel %vm725, %v5552, 0.0
      %v5600 = vsel %vm726, %v5551, 0.0
      %v5601 = vsel %vm727, %v5550, 0.0
      %v5602 = vsel %vm728, %v5549, 0.0
      %v5603 = vsel %vm729, %v5548, 0.0
      %v5604 = vsel %vm730, %v5547, 0.0
      %v5605 = vsel %vm731, %v5546, 0.0
      %v5606 = vsel %vm732, %v5545, 0.0
      %v5607 = vsel %vm733, %v5544, 0.0
      %v5608 = vrot.slane %v5480, 1
      %v5609 = vrot.slane %v5481, 1
      %v5610 = vrot.slane %v5482, 1
      %v5611 = vrot.slane %v5483, 1
      %v5612 = vrot.slane %v5484, 1
      %v5613 = vrot.slane %v5485, 1
      %v5614 = vrot.slane %v5486, 1
      %v5615 = vrot.slane %v5487, 1
      %v5616 = vrot.slane %v5488, 1
      %v5617 = vrot.slane %v5489, 1
      %v5618 = vrot.slane %v5490, 1
      %v5619 = vrot.slane %v5491, 1
      %v5620 = vrot.slane %v5492, 1
      %v5621 = vrot.slane %v5493, 1
      %v5622 = vrot.slane %v5494, 1
      %v5623 = vrot.slane %v5495, 1
      %v5624 = vrot.slane %v5496, 1
      %v5625 = vrot.slane %v5497, 1
      %v5626 = vrot.slane %v5498, 1
      %v5627 = vrot.slane %v5499, 1
      %v5628 = vrot.slane %v5500, 1
      %v5629 = vrot.slane %v5501, 1
      %v5630 = vrot.slane %v5502, 1
      %v5631 = vrot.slane %v5503, 1
      %v5632 = vrot.slane %v5504, 1
      %v5633 = vrot.slane %v5505, 1
      %v5634 = vrot.slane %v5506, 1
      %v5635 = vrot.slane %v5507, 1
      %v5636 = vrot.slane %v5508, 1
      %v5637 = vrot.slane %v5509, 1
      %v5638 = vrot.slane %v5510, 1
      %v5639 = vrot.slane %v5511, 1
      %v5640 = vsel %vm1250, %v5638, %v5639
      %v5641 = vsel %vm1250, %v5637, %v5638
      %v5642 = vsel %vm1250, %v5636, %v5637
      %v5643 = vsel %vm1250, %v5635, %v5636
      %v5644 = vsel %vm1250, %v5634, %v5635
      %v5645 = vsel %vm1250, %v5633, %v5634
      %v5646 = vsel %vm1250, %v5632, %v5633
      %v5647 = vsel %vm1250, %v5631, %v5632
      %v5648 = vsel %vm1250, %v5630, %v5631
      %v5649 = vsel %vm1250, %v5629, %v5630
      %v5650 = vsel %vm1250, %v5628, %v5629
      %v5651 = vsel %vm1250, %v5627, %v5628
      %v5652 = vsel %vm1250, %v5626, %v5627
      %v5653 = vsel %vm1250, %v5625, %v5626
      %v5654 = vsel %vm1250, %v5624, %v5625
      %v5655 = vsel %vm1250, %v5623, %v5624
      %v5656 = vsel %vm1250, %v5622, %v5623
      %v5657 = vsel %vm1250, %v5621, %v5622
      %v5658 = vsel %vm1250, %v5620, %v5621
      %v5659 = vsel %vm1250, %v5619, %v5620
      %v5660 = vsel %vm1250, %v5618, %v5619
      %v5661 = vsel %vm1250, %v5617, %v5618
      %v5662 = vsel %vm1250, %v5616, %v5617
      %v5663 = vsel %vm1250, %v5615, %v5616
      %v5664 = vsel %vm1250, %v5614, %v5615
      %v5665 = vsel %vm1250, %v5613, %v5614
      %v5666 = vsel %vm1250, %v5612, %v5613
      %v5667 = vsel %vm1250, %v5611, %v5612
      %v5668 = vsel %vm1250, %v5610, %v5611
      %v5669 = vsel %vm1250, %v5609, %v5610
      %v5670 = vsel %vm1250, %v5608, %v5609
      %v5671 = vsel %vm1250, %v5639, %v5608
      %v5672 = vsel %vm734, %v5670, 0.0
      %v5673 = vsel %vm735, %v5669, 0.0
      %v5674 = vsel %vm736, %v5668, 0.0
      %v5675 = vsel %vm737, %v5667, 0.0
      %v5676 = vsel %vm738, %v5666, 0.0
      %v5677 = vsel %vm739, %v5665, 0.0
      %v5678 = vsel %vm740, %v5664, 0.0
      %v5679 = vsel %vm741, %v5663, 0.0
      %v5680 = vsel %vm742, %v5662, 0.0
      %v5681 = vsel %vm743, %v5661, 0.0
      %v5682 = vsel %vm744, %v5660, 0.0
      %v5683 = vsel %vm745, %v5659, 0.0
      %v5684 = vsel %vm746, %v5658, 0.0
      %v5685 = vsel %vm747, %v5657, 0.0
      %v5686 = vsel %vm748, %v5656, 0.0
      %v5687 = vsel %vm749, %v5655, 0.0
      %v5688 = vsel %vm750, %v5654, 0.0
      %v5689 = vsel %vm751, %v5653, 0.0
      %v5690 = vsel %vm752, %v5652, 0.0
      %v5691 = vsel %vm753, %v5651, 0.0
      %v5692 = vsel %vm754, %v5650, 0.0
      %v5693 = vsel %vm755, %v5649, 0.0
      %v5694 = vsel %vm756, %v5648, 0.0
      %v5695 = vsel %vm757, %v5647, 0.0
      %v5696 = vsel %vm758, %v5646, 0.0
      %v5697 = vsel %vm759, %v5645, 0.0
      %v5698 = vsel %vm760, %v5644, 0.0
      %v5699 = vsel %vm761, %v5643, 0.0
      %v5700 = vsel %vm762, %v5642, 0.0
      %v5701 = vsel %vm763, %v5641, 0.0
      %v5702 = vsel %vm764, %v5640, 0.0
      %v5703 = vsel %vm765, %v5671, 0.0
      %5736 = vrot.lane.b32.xlu0 %v5480, 64
      %v5737 = vpop.permute.xlu0 %5736
      %5738 = vrot.lane.b32.xlu0 %v5481, 64
      %v5739 = vpop.permute.xlu0 %5738
      %5740 = vrot.lane.b32.xlu0 %v5482, 64
      %v5741 = vpop.permute.xlu0 %5740
      %5742 = vrot.lane.b32.xlu0 %v5483, 64
      %v5743 = vpop.permute.xlu0 %5742
      %5744 = vrot.lane.b32.xlu0 %v5484, 64
      %v5745 = vpop.permute.xlu0 %5744
      %5746 = vrot.lane.b32.xlu0 %v5485, 64
      %v5747 = vpop.permute.xlu0 %5746
      %5748 = vrot.lane.b32.xlu0 %v5486, 64
      %v5749 = vpop.permute.xlu0 %5748
      %5750 = vrot.lane.b32.xlu0 %v5487, 64
      %v5751 = vpop.permute.xlu0 %5750
      %5752 = vrot.lane.b32.xlu0 %v5488, 64
      %v5753 = vpop.permute.xlu0 %5752
      %5754 = vrot.lane.b32.xlu0 %v5489, 64
      %v5755 = vpop.permute.xlu0 %5754
      %5756 = vrot.lane.b32.xlu0 %v5490, 64
      %v5757 = vpop.permute.xlu0 %5756
      %5758 = vrot.lane.b32.xlu0 %v5491, 64
      %v5759 = vpop.permute.xlu0 %5758
      %5760 = vrot.lane.b32.xlu0 %v5492, 64
      %v5761 = vpop.permute.xlu0 %5760
      %5762 = vrot.lane.b32.xlu0 %v5493, 64
      %v5763 = vpop.permute.xlu0 %5762
      %5764 = vrot.lane.b32.xlu0 %v5494, 64
      %v5765 = vpop.permute.xlu0 %5764
      %5766 = vrot.lane.b32.xlu0 %v5495, 64
      %v5767 = vpop.permute.xlu0 %5766
      %5768 = vrot.lane.b32.xlu0 %v5496, 64
      %v5769 = vpop.permute.xlu0 %5768
      %5770 = vrot.lane.b32.xlu0 %v5497, 64
      %v5771 = vpop.permute.xlu0 %5770
      %5772 = vrot.lane.b32.xlu0 %v5498, 64
      %v5773 = vpop.permute.xlu0 %5772
      %5774 = vrot.lane.b32.xlu0 %v5499, 64
      %v5775 = vpop.permute.xlu0 %5774
      %5776 = vrot.lane.b32.xlu0 %v5500, 64
      %v5777 = vpop.permute.xlu0 %5776
      %5778 = vrot.lane.b32.xlu0 %v5501, 64
      %v5779 = vpop.permute.xlu0 %5778
      %5780 = vrot.lane.b32.xlu0 %v5502, 64
      %v5781 = vpop.permute.xlu0 %5780
      %5782 = vrot.lane.b32.xlu0 %v5503, 64
      %v5783 = vpop.permute.xlu0 %5782
      %5784 = vrot.lane.b32.xlu0 %v5504, 64
      %v5785 = vpop.permute.xlu0 %5784
      %5786 = vrot.lane.b32.xlu0 %v5505, 64
      %v5787 = vpop.permute.xlu0 %5786
      %5788 = vrot.lane.b32.xlu0 %v5506, 64
      %v5789 = vpop.permute.xlu0 %5788
      %5790 = vrot.lane.b32.xlu0 %v5507, 64
      %v5791 = vpop.permute.xlu0 %5790
      %5792 = vrot.lane.b32.xlu0 %v5508, 64
      %v5793 = vpop.permute.xlu0 %5792
      %5794 = vrot.lane.b32.xlu0 %v5509, 64
      %v5795 = vpop.permute.xlu0 %5794
      %5796 = vrot.lane.b32.xlu0 %v5510, 64
      %v5797 = vpop.permute.xlu0 %5796
      %5798 = vrot.lane.b32.xlu0 %v5511, 64
      %v5799 = vpop.permute.xlu0 %5798
      %v5832 = vsel %vm276, %v5576, %v5737
      %v5833 = vsel %vm276, %v5577, %v5739
      %v5834 = vsel %vm276, %v5578, %v5741
      %v5835 = vsel %vm276, %v5579, %v5743
      %v5836 = vsel %vm276, %v5580, %v5745
      %v5837 = vsel %vm276, %v5581, %v5747
      %v5838 = vsel %vm276, %v5582, %v5749
      %v5839 = vsel %vm276, %v5583, %v5751
      %v5840 = vsel %vm276, %v5584, %v5753
      %v5841 = vsel %vm276, %v5585, %v5755
      %v5842 = vsel %vm276, %v5586, %v5757
      %v5843 = vsel %vm276, %v5587, %v5759
      %v5844 = vsel %vm276, %v5588, %v5761
      %v5845 = vsel %vm276, %v5589, %v5763
      %v5846 = vsel %vm276, %v5590, %v5765
      %v5847 = vsel %vm276, %v5591, %v5767
      %v5848 = vsel %vm276, %v5592, %v5769
      %v5849 = vsel %vm276, %v5593, %v5771
      %v5850 = vsel %vm276, %v5594, %v5773
      %v5851 = vsel %vm276, %v5595, %v5775
      %v5852 = vsel %vm276, %v5596, %v5777
      %v5853 = vsel %vm276, %v5597, %v5779
      %v5854 = vsel %vm276, %v5598, %v5781
      %v5855 = vsel %vm276, %v5599, %v5783
      %v5856 = vsel %vm276, %v5600, %v5785
      %v5857 = vsel %vm276, %v5601, %v5787
      %v5858 = vsel %vm276, %v5602, %v5789
      %v5859 = vsel %vm276, %v5603, %v5791
      %v5860 = vsel %vm276, %v5604, %v5793
      %v5861 = vsel %vm276, %v5605, %v5795
      %v5862 = vsel %vm276, %v5606, %v5797
      %v5863 = vsel %vm276, %v5607, %v5799
      %5864 = vst [vmem:[%s1475] sm:$0xff] %v5832
      %5865 = vst.msk [vmem:[%s1475 + $0x8] sm:$0xff] %vm276, %v5672
      %5866 = vst [vmem:[%s1475 + $0x10] sm:$0xff] %v5833
      %5867 = vst.msk [vmem:[%s1475 + $0x18] sm:$0xff] %vm276, %v5673
      %5868 = vst [vmem:[%s1475 + $0x20] sm:$0xff] %v5834
      %5869 = vst.msk [vmem:[%s1475 + $0x28] sm:$0xff] %vm276, %v5674
      %5870 = vst [vmem:[%s1475 + $0x30] sm:$0xff] %v5835
      %5871 = vst.msk [vmem:[%s1475 + $0x38] sm:$0xff] %vm276, %v5675
      %5872 = vst [vmem:[%s1475 + $0x40] sm:$0xff] %v5836
      %5873 = vst.msk [vmem:[%s1475 + $0x48] sm:$0xff] %vm276, %v5676
      %5874 = vst [vmem:[%s1475 + $0x50] sm:$0xff] %v5837
      %5875 = vst.msk [vmem:[%s1475 + $0x58] sm:$0xff] %vm276, %v5677
      %5876 = vst [vmem:[%s1475 + $0x60] sm:$0xff] %v5838
      %5877 = vst.msk [vmem:[%s1475 + $0x68] sm:$0xff] %vm276, %v5678
      %5878 = vst [vmem:[%s1475 + $0x70] sm:$0xff] %v5839
      %5879 = vst.msk [vmem:[%s1475 + $0x78] sm:$0xff] %vm276, %v5679
      %5880 = vst [vmem:[%s1475 + $0x80] sm:$0xff] %v5840
      %5881 = vst.msk [vmem:[%s1475 + $0x88] sm:$0xff] %vm276, %v5680
      %5882 = vst [vmem:[%s1475 + $0x90] sm:$0xff] %v5841
      %5883 = vst.msk [vmem:[%s1475 + $0x98] sm:$0xff] %vm276, %v5681
      %5884 = vst [vmem:[%s1475 + $0xa0] sm:$0xff] %v5842
      %5885 = vst.msk [vmem:[%s1475 + $0xa8] sm:$0xff] %vm276, %v5682
      %5886 = vst [vmem:[%s1475 + $0xb0] sm:$0xff] %v5843
      %5887 = vst.msk [vmem:[%s1475 + $0xb8] sm:$0xff] %vm276, %v5683
      %5888 = vst [vmem:[%s1475 + $0xc0] sm:$0xff] %v5844
      %5889 = vst.msk [vmem:[%s1475 + $0xc8] sm:$0xff] %vm276, %v5684
      %5890 = vst [vmem:[%s1475 + $0xd0] sm:$0xff] %v5845
      %5891 = vst.msk [vmem:[%s1475 + $0xd8] sm:$0xff] %vm276, %v5685
      %5892 = vst [vmem:[%s1475 + $0xe0] sm:$0xff] %v5846
      %5893 = vst.msk [vmem:[%s1475 + $0xe8] sm:$0xff] %vm276, %v5686
      %5894 = vst [vmem:[%s1475 + $0xf0] sm:$0xff] %v5847
      %5895 = vst.msk [vmem:[%s1475 + $0xf8] sm:$0xff] %vm276, %v5687
      %5896 = vst [vmem:[%s1475 + $0x100] sm:$0xff] %v5848
      %5897 = vst.msk [vmem:[%s1475 + $0x108] sm:$0xff] %vm276, %v5688
      %5898 = vst [vmem:[%s1475 + $0x110] sm:$0xff] %v5849
      %5899 = vst.msk [vmem:[%s1475 + $0x118] sm:$0xff] %vm276, %v5689
      %5900 = vst [vmem:[%s1475 + $0x120] sm:$0xff] %v5850
      %5901 = vst.msk [vmem:[%s1475 + $0x128] sm:$0xff] %vm276, %v5690
      %5902 = vst [vmem:[%s1475 + $0x130] sm:$0xff] %v5851
      %5903 = vst.msk [vmem:[%s1475 + $0x138] sm:$0xff] %vm276, %v5691
      %5904 = vst [vmem:[%s1475 + $0x140] sm:$0xff] %v5852
      %5905 = vst.msk [vmem:[%s1475 + $0x148] sm:$0xff] %vm276, %v5692
      %5906 = vst [vmem:[%s1475 + $0x150] sm:$0xff] %v5853
      %5907 = vst.msk [vmem:[%s1475 + $0x158] sm:$0xff] %vm276, %v5693
      %5908 = vst [vmem:[%s1475 + $0x160] sm:$0xff] %v5854
      %5909 = vst.msk [vmem:[%s1475 + $0x168] sm:$0xff] %vm276, %v5694
      %5910 = vst [vmem:[%s1475 + $0x170] sm:$0xff] %v5855
      %5911 = vst.msk [vmem:[%s1475 + $0x178] sm:$0xff] %vm276, %v5695
      %5912 = vst [vmem:[%s1475 + $0x180] sm:$0xff] %v5856
      %5913 = vst.msk [vmem:[%s1475 + $0x188] sm:$0xff] %vm276, %v5696
      %5914 = vst [vmem:[%s1475 + $0x190] sm:$0xff] %v5857
      %5915 = vst.msk [vmem:[%s1475 + $0x198] sm:$0xff] %vm276, %v5697
      %5916 = vst [vmem:[%s1475 + $0x1a0] sm:$0xff] %v5858
      %5917 = vst.msk [vmem:[%s1475 + $0x1a8] sm:$0xff] %vm276, %v5698
      %5918 = vst [vmem:[%s1475 + $0x1b0] sm:$0xff] %v5859
      %5919 = vst.msk [vmem:[%s1475 + $0x1b8] sm:$0xff] %vm276, %v5699
      %5920 = vst [vmem:[%s1475 + $0x1c0] sm:$0xff] %v5860
      %5921 = vst.msk [vmem:[%s1475 + $0x1c8] sm:$0xff] %vm276, %v5700
      %5922 = vst [vmem:[%s1475 + $0x1d0] sm:$0xff] %v5861
      %5923 = vst.msk [vmem:[%s1475 + $0x1d8] sm:$0xff] %vm276, %v5701
      %5924 = vst [vmem:[%s1475 + $0x1e0] sm:$0xff] %v5862
      %5925 = vst.msk [vmem:[%s1475 + $0x1e8] sm:$0xff] %vm276, %v5702
      %5926 = vst [vmem:[%s1475 + $0x1f0] sm:$0xff] %v5863
      %5927 = vst.msk [vmem:[%s1475 + $0x1f8] sm:$0xff] %vm276, %v5703
      %v5928 = vld [vmem:[#allocation2] sm:$0xff]
      %v5929 = vld [vmem:[#allocation2 + $0x8] sm:$0xff]
      %v5930 = vld [vmem:[#allocation2 + $0x10] sm:$0xff]
      %v5931 = vld [vmem:[#allocation2 + $0x18] sm:$0xff]
      %v5932 = vld [vmem:[#allocation2 + $0x20] sm:$0xff]
      %v5933 = vld [vmem:[#allocation2 + $0x28] sm:$0xff]
      %v5934 = vld [vmem:[#allocation2 + $0x30] sm:$0xff]
      %v5935 = vld [vmem:[#allocation2 + $0x38] sm:$0xff]
      %v5936 = vld [vmem:[#allocation2 + $0x40] sm:$0xff]
      %v5937 = vld [vmem:[#allocation2 + $0x48] sm:$0xff]
      %v5938 = vld [vmem:[#allocation2 + $0x50] sm:$0xff]
      %v5939 = vld [vmem:[#allocation2 + $0x58] sm:$0xff]
      %v5940 = vld [vmem:[#allocation2 + $0x60] sm:$0xff]
      %v5941 = vld [vmem:[#allocation2 + $0x68] sm:$0xff]
      %v5942 = vld [vmem:[#allocation2 + $0x70] sm:$0xff]
      %v5943 = vld [vmem:[#allocation2 + $0x78] sm:$0xff]
      %v5944 = vld [vmem:[#allocation2 + $0x80] sm:$0xff]
      %v5945 = vld [vmem:[#allocation2 + $0x88] sm:$0xff]
      %v5946 = vld [vmem:[#allocation2 + $0x90] sm:$0xff]
      %v5947 = vld [vmem:[#allocation2 + $0x98] sm:$0xff]
      %v5948 = vld [vmem:[#allocation2 + $0xa0] sm:$0xff]
      %v5949 = vld [vmem:[#allocation2 + $0xa8] sm:$0xff]
      %v5950 = vld [vmem:[#allocation2 + $0xb0] sm:$0xff]
      %v5951 = vld [vmem:[#allocation2 + $0xb8] sm:$0xff]
      %v5952 = vld [vmem:[#allocation2 + $0xc0] sm:$0xff]
      %v5953 = vld [vmem:[#allocation2 + $0xc8] sm:$0xff]
      %v5954 = vld [vmem:[#allocation2 + $0xd0] sm:$0xff]
      %v5955 = vld [vmem:[#allocation2 + $0xd8] sm:$0xff]
      %v5956 = vld [vmem:[#allocation2 + $0xe0] sm:$0xff]
      %v5957 = vld [vmem:[#allocation2 + $0xe8] sm:$0xff]
      %v5958 = vld [vmem:[#allocation2 + $0xf0] sm:$0xff]
      %v5959 = vld [vmem:[#allocation2 + $0xf8] sm:$0xff]
      %v5960 = vld [vmem:[#allocation2 + $0x100] sm:$0xff]
      %v5961 = vld [vmem:[#allocation2 + $0x108] sm:$0xff]
      %v5962 = vld [vmem:[#allocation2 + $0x110] sm:$0xff]
      %v5963 = vld [vmem:[#allocation2 + $0x118] sm:$0xff]
      %v5964 = vld [vmem:[#allocation2 + $0x120] sm:$0xff]
      %v5965 = vld [vmem:[#allocation2 + $0x128] sm:$0xff]
      %v5966 = vld [vmem:[#allocation2 + $0x130] sm:$0xff]
      %v5967 = vld [vmem:[#allocation2 + $0x138] sm:$0xff]
      %v5968 = vld [vmem:[#allocation2 + $0x140] sm:$0xff]
      %v5969 = vld [vmem:[#allocation2 + $0x148] sm:$0xff]
      %v5970 = vld [vmem:[#allocation2 + $0x150] sm:$0xff]
      %v5971 = vld [vmem:[#allocation2 + $0x158] sm:$0xff]
      %v5972 = vld [vmem:[#allocation2 + $0x160] sm:$0xff]
      %v5973 = vld [vmem:[#allocation2 + $0x168] sm:$0xff]
      %v5974 = vld [vmem:[#allocation2 + $0x170] sm:$0xff]
      %v5975 = vld [vmem:[#allocation2 + $0x178] sm:$0xff]
      %v5976 = vld [vmem:[#allocation2 + $0x180] sm:$0xff]
      %v5977 = vld [vmem:[#allocation2 + $0x188] sm:$0xff]
      %v5978 = vld [vmem:[#allocation2 + $0x190] sm:$0xff]
      %v5979 = vld [vmem:[#allocation2 + $0x198] sm:$0xff]
      %v5980 = vld [vmem:[#allocation2 + $0x1a0] sm:$0xff]
      %v5981 = vld [vmem:[#allocation2 + $0x1a8] sm:$0xff]
      %v5982 = vld [vmem:[#allocation2 + $0x1b0] sm:$0xff]
      %v5983 = vld [vmem:[#allocation2 + $0x1b8] sm:$0xff]
      %v5984 = vld [vmem:[#allocation2 + $0x1c0] sm:$0xff]
      %v5985 = vld [vmem:[#allocation2 + $0x1c8] sm:$0xff]
      %v5986 = vld [vmem:[#allocation2 + $0x1d0] sm:$0xff]
      %v5987 = vld [vmem:[#allocation2 + $0x1d8] sm:$0xff]
      %v5988 = vld [vmem:[#allocation2 + $0x1e0] sm:$0xff]
      %v5989 = vld [vmem:[#allocation2 + $0x1e8] sm:$0xff]
      %v5990 = vld [vmem:[#allocation2 + $0x1f0] sm:$0xff]
      %v5991 = vld [vmem:[#allocation2 + $0x1f8] sm:$0xff]
      %v5992 = vld [vmem:[#allocation2 + $0x200] sm:$0xff]
      %v5993 = vld [vmem:[#allocation2 + $0x208] sm:$0xff]
      %v5994 = vld [vmem:[#allocation2 + $0x210] sm:$0xff]
      %v5995 = vld [vmem:[#allocation2 + $0x218] sm:$0xff]
      %v5996 = vld [vmem:[#allocation2 + $0x220] sm:$0xff]
      %v5997 = vld [vmem:[#allocation2 + $0x228] sm:$0xff]
      %v5998 = vld [vmem:[#allocation2 + $0x230] sm:$0xff]
      %v5999 = vld [vmem:[#allocation2 + $0x238] sm:$0xff]
      %s6000 = scalar_lea.vmem %s2, 1152
      %v6001 = vld [vmem:[%s6000] sm:$0xff]
      %v6002 = vld [vmem:[%s6000 + $0x8] sm:$0xff]
      %v6003 = vld [vmem:[%s6000 + $0x10] sm:$0xff]
      %v6004 = vld [vmem:[%s6000 + $0x18] sm:$0xff]
      %v6005 = vld [vmem:[%s6000 + $0x20] sm:$0xff]
      %v6006 = vld [vmem:[%s6000 + $0x28] sm:$0xff]
      %v6007 = vld [vmem:[%s6000 + $0x30] sm:$0xff]
      %v6008 = vld [vmem:[%s6000 + $0x38] sm:$0xff]
      %v6009 = vld [vmem:[%s6000 + $0x40] sm:$0xff]
      %v6010 = vld [vmem:[%s6000 + $0x48] sm:$0xff]
      %v6011 = vld [vmem:[%s6000 + $0x50] sm:$0xff]
      %v6012 = vld [vmem:[%s6000 + $0x58] sm:$0xff]
      %v6013 = vld [vmem:[%s6000 + $0x60] sm:$0xff]
      %v6014 = vld [vmem:[%s6000 + $0x68] sm:$0xff]
      %v6015 = vld [vmem:[%s6000 + $0x70] sm:$0xff]
      %v6016 = vld [vmem:[%s6000 + $0x78] sm:$0xff]
      %v6017 = vld [vmem:[%s6000 + $0x80] sm:$0xff]
      %v6018 = vld [vmem:[%s6000 + $0x88] sm:$0xff]
      %v6019 = vld [vmem:[%s6000 + $0x90] sm:$0xff]
      %v6020 = vld [vmem:[%s6000 + $0x98] sm:$0xff]
      %v6021 = vld [vmem:[%s6000 + $0xa0] sm:$0xff]
      %v6022 = vld [vmem:[%s6000 + $0xa8] sm:$0xff]
      %v6023 = vld [vmem:[%s6000 + $0xb0] sm:$0xff]
      %v6024 = vld [vmem:[%s6000 + $0xb8] sm:$0xff]
      %v6025 = vld [vmem:[%s6000 + $0xc0] sm:$0xff]
      %v6026 = vld [vmem:[%s6000 + $0xc8] sm:$0xff]
      %v6027 = vld [vmem:[%s6000 + $0xd0] sm:$0xff]
      %v6028 = vld [vmem:[%s6000 + $0xd8] sm:$0xff]
      %v6029 = vld [vmem:[%s6000 + $0xe0] sm:$0xff]
      %v6030 = vld [vmem:[%s6000 + $0xe8] sm:$0xff]
      %v6031 = vld [vmem:[%s6000 + $0xf0] sm:$0xff]
      %v6032 = vld [vmem:[%s6000 + $0xf8] sm:$0xff]
      %v6033 = vld [vmem:[%s6000 + $0x100] sm:$0xff]
      %v6034 = vld [vmem:[%s6000 + $0x108] sm:$0xff]
      %v6035 = vld [vmem:[%s6000 + $0x110] sm:$0xff]
      %v6036 = vld [vmem:[%s6000 + $0x118] sm:$0xff]
      %v6037 = vld [vmem:[%s6000 + $0x120] sm:$0xff]
      %v6038 = vld [vmem:[%s6000 + $0x128] sm:$0xff]
      %v6039 = vld [vmem:[%s6000 + $0x130] sm:$0xff]
      %v6040 = vld [vmem:[%s6000 + $0x138] sm:$0xff]
      %v6041 = vld [vmem:[%s6000 + $0x140] sm:$0xff]
      %v6042 = vld [vmem:[%s6000 + $0x148] sm:$0xff]
      %v6043 = vld [vmem:[%s6000 + $0x150] sm:$0xff]
      %v6044 = vld [vmem:[%s6000 + $0x158] sm:$0xff]
      %v6045 = vld [vmem:[%s6000 + $0x160] sm:$0xff]
      %v6046 = vld [vmem:[%s6000 + $0x168] sm:$0xff]
      %v6047 = vld [vmem:[%s6000 + $0x170] sm:$0xff]
      %v6048 = vld [vmem:[%s6000 + $0x178] sm:$0xff]
      %v6050 = vsel %vm276, %v5929, 0
      %v6053 = vsel %vm276, %v5931, 0
      %v6056 = vsel %vm276, %v5933, 0
      %v6059 = vsel %vm276, %v5935, 0
      %v6062 = vsel %vm276, %v5937, 0
      %v6065 = vsel %vm276, %v5939, 0
      %v6068 = vsel %vm276, %v5941, 0
      %v6071 = vsel %vm276, %v5943, 0
      %v6074 = vsel %vm276, %v5945, 0
      %v6077 = vsel %vm276, %v5947, 0
      %v6080 = vsel %vm276, %v5949, 0
      %v6083 = vsel %vm276, %v5951, 0
      %v6086 = vsel %vm276, %v5953, 0
      %v6089 = vsel %vm276, %v5955, 0
      %v6092 = vsel %vm276, %v5957, 0
      %v6095 = vsel %vm276, %v5959, 0
      %v6098 = vsel %vm276, %v5961, 0
      %v6101 = vsel %vm276, %v5963, 0
      %v6104 = vsel %vm276, %v5965, 0
      %v6107 = vsel %vm276, %v5967, 0
      %v6110 = vsel %vm276, %v5969, 0
      %v6113 = vsel %vm276, %v5971, 0
      %v6116 = vsel %vm276, %v5973, 0
      %v6119 = vsel %vm276, %v5975, 0
      %v6122 = vsel %vm276, %v5977, 0
      %v6125 = vsel %vm276, %v5979, 0
      %v6128 = vsel %vm276, %v5981, 0
      %v6131 = vsel %vm276, %v5983, 0
      %v6134 = vsel %vm276, %v5985, 0
      %v6137 = vsel %vm276, %v5987, 0
      %v6140 = vsel %vm276, %v5989, 0
      %v6143 = vsel %vm276, %v5991, 0
      %v6146 = vsel %vm276, %v5993, 0
      %v6149 = vsel %vm276, %v5995, 0
      %v6152 = vsel %vm276, %v5997, 0
      %v6155 = vsel %vm276, %v5999, 0
      %6157 = vmatpush.msra.mxu0 %v6031
      %6158 = vmatpush.msra.mxu0 %v6029
      %6159 = vmatpush.msra.mxu0 %v6027
      %6160 = vmatpush.msra.mxu0 %v6025
      %6161 = vmatpush.msra.mxu0 %v6023
      %6162 = vmatpush.msra.mxu0 %v6021
      %6163 = vmatpush.msra.mxu0 %v6019
      %6164 = vmatpush.msra.mxu0 %v6017
      %6165 = vmatpush.msra.mxu0 %v6015
      %6166 = vmatpush.msra.mxu0 %v6013
      %6167 = vmatpush.msra.mxu0 %v6011
      %6168 = vmatpush.msra.mxu0 %v6009
      %6169 = vmatpush.msra.mxu0 %v6007
      %6170 = vmatpush.msra.mxu0 %v6005
      %6171 = vmatpush.msra.mxu0 %v6003
      %6172 = vmatpush.msra.mxu0 %v6001
      %6173 = vmatmul.f32.gmra.mxu0 %v5928
      %v6174 = vpop.f32.mrf.mxu0
      %v6175 = vadd.f32 0.0, %v6174
      %6176 = vmatmul.f32.gmra.mxu0 %v5930
      %v6177 = vpop.f32.mrf.mxu0
      %v6178 = vadd.f32 0.0, %v6177
      %6179 = vmatmul.f32.gmra.mxu0 %v5932
      %v6180 = vpop.f32.mrf.mxu0
      %v6181 = vadd.f32 0.0, %v6180
      %6182 = vmatmul.f32.gmra.mxu0 %v5934
      %v6183 = vpop.f32.mrf.mxu0
      %v6184 = vadd.f32 0.0, %v6183
      %6185 = vmatmul.f32.gmra.mxu0 %v5936
      %v6186 = vpop.f32.mrf.mxu0
      %v6187 = vadd.f32 0.0, %v6186
      %6188 = vmatmul.f32.gmra.mxu0 %v5938
      %v6189 = vpop.f32.mrf.mxu0
      %v6190 = vadd.f32 0.0, %v6189
      %6191 = vmatmul.f32.gmra.mxu0 %v5940
      %v6192 = vpop.f32.mrf.mxu0
      %v6193 = vadd.f32 0.0, %v6192
      %6194 = vmatmul.f32.gmra.mxu0 %v5942
      %v6195 = vpop.f32.mrf.mxu0
      %v6196 = vadd.f32 0.0, %v6195
      %6197 = vmatmul.f32.gmra.mxu0 %v5944
      %v6198 = vpop.f32.mrf.mxu0
      %v6199 = vadd.f32 0.0, %v6198
      %6200 = vmatmul.f32.gmra.mxu0 %v5946
      %v6201 = vpop.f32.mrf.mxu0
      %v6202 = vadd.f32 0.0, %v6201
      %6203 = vmatmul.f32.gmra.mxu0 %v5948
      %v6204 = vpop.f32.mrf.mxu0
      %v6205 = vadd.f32 0.0, %v6204
      %6206 = vmatmul.f32.gmra.mxu0 %v5950
      %v6207 = vpop.f32.mrf.mxu0
      %v6208 = vadd.f32 0.0, %v6207
      %6209 = vmatmul.f32.gmra.mxu0 %v5952
      %v6210 = vpop.f32.mrf.mxu0
      %v6211 = vadd.f32 0.0, %v6210
      %6212 = vmatmul.f32.gmra.mxu0 %v5954
      %v6213 = vpop.f32.mrf.mxu0
      %v6214 = vadd.f32 0.0, %v6213
      %6215 = vmatmul.f32.gmra.mxu0 %v5956
      %v6216 = vpop.f32.mrf.mxu0
      %v6217 = vadd.f32 0.0, %v6216
      %6218 = vmatmul.f32.gmra.mxu0 %v5958
      %v6219 = vpop.f32.mrf.mxu0
      %v6220 = vadd.f32 0.0, %v6219
      %6221 = vmatmul.f32.gmra.mxu0 %v5960
      %v6222 = vpop.f32.mrf.mxu0
      %v6223 = vadd.f32 0.0, %v6222
      %6224 = vmatmul.f32.gmra.mxu0 %v5962
      %v6225 = vpop.f32.mrf.mxu0
      %v6226 = vadd.f32 0.0, %v6225
      %6227 = vmatmul.f32.gmra.mxu0 %v5964
      %v6228 = vpop.f32.mrf.mxu0
      %v6229 = vadd.f32 0.0, %v6228
      %6230 = vmatmul.f32.gmra.mxu0 %v5966
      %v6231 = vpop.f32.mrf.mxu0
      %v6232 = vadd.f32 0.0, %v6231
      %6233 = vmatmul.f32.gmra.mxu0 %v5968
      %v6234 = vpop.f32.mrf.mxu0
      %v6235 = vadd.f32 0.0, %v6234
      %6236 = vmatmul.f32.gmra.mxu0 %v5970
      %v6237 = vpop.f32.mrf.mxu0
      %v6238 = vadd.f32 0.0, %v6237
      %6239 = vmatmul.f32.gmra.mxu0 %v5972
      %v6240 = vpop.f32.mrf.mxu0
      %v6241 = vadd.f32 0.0, %v6240
      %6242 = vmatmul.f32.gmra.mxu0 %v5974
      %v6243 = vpop.f32.mrf.mxu0
      %v6244 = vadd.f32 0.0, %v6243
      %6245 = vmatmul.f32.gmra.mxu0 %v5976
      %v6246 = vpop.f32.mrf.mxu0
      %v6247 = vadd.f32 0.0, %v6246
      %6248 = vmatmul.f32.gmra.mxu0 %v5978
      %v6249 = vpop.f32.mrf.mxu0
      %v6250 = vadd.f32 0.0, %v6249
      %6251 = vmatmul.f32.gmra.mxu0 %v5980
      %v6252 = vpop.f32.mrf.mxu0
      %v6253 = vadd.f32 0.0, %v6252
      %6254 = vmatmul.f32.gmra.mxu0 %v5982
      %v6255 = vpop.f32.mrf.mxu0
      %v6256 = vadd.f32 0.0, %v6255
      %6257 = vmatmul.f32.gmra.mxu0 %v5984
      %v6258 = vpop.f32.mrf.mxu0
      %v6259 = vadd.f32 0.0, %v6258
      %6260 = vmatmul.f32.gmra.mxu0 %v5986
      %v6261 = vpop.f32.mrf.mxu0
      %v6262 = vadd.f32 0.0, %v6261
      %6263 = vmatmul.f32.gmra.mxu0 %v5988
      %v6264 = vpop.f32.mrf.mxu0
      %v6265 = vadd.f32 0.0, %v6264
      %6266 = vmatmul.f32.gmra.mxu0 %v5990
      %v6267 = vpop.f32.mrf.mxu0
      %v6268 = vadd.f32 0.0, %v6267
      %6269 = vmatmul.f32.gmra.mxu0 %v5992
      %v6270 = vpop.f32.mrf.mxu0
      %v6271 = vadd.f32 0.0, %v6270
      %6272 = vmatmul.f32.gmra.mxu0 %v5994
      %v6273 = vpop.f32.mrf.mxu0
      %v6274 = vadd.f32 0.0, %v6273
      %6275 = vmatmul.f32.gmra.mxu0 %v5996
      %v6276 = vpop.f32.mrf.mxu0
      %6277 = vmatmul.f32.gmra.mxu0 %v5998
      %v6278 = vpop.f32.mrf.mxu0
      %6279 = vdwg.mxu0
      %6280 = vmatpush.msra.mxu0 0.0
      %6281 = vmatpush.msra.mxu0 0.0
      %6282 = vmatpush.msra.mxu0 0.0
      %6283 = vmatpush.msra.mxu0 0.0
      %6284 = vmatpush.msra.mxu0 0.0
      %6285 = vmatpush.msra.mxu0 0.0
      %6286 = vmatpush.msra.mxu0 0.0
      %6287 = vmatpush.msra.mxu0 0.0
      %6288 = vmatpush.msra.mxu0 %v6047
      %6289 = vmatpush.msra.mxu0 %v6045
      %6290 = vmatpush.msra.mxu0 %v6043
      %6291 = vmatpush.msra.mxu0 %v6041
      %6292 = vmatpush.msra.mxu0 %v6039
      %6293 = vmatpush.msra.mxu0 %v6037
      %6294 = vmatpush.msra.mxu0 %v6035
      %6295 = vmatpush.msra.mxu0 %v6033
      %6296 = vmatmul.f32.gmra.mxu0 %v6050
      %v6297 = vpop.f32.mrf.mxu0
      %v6298 = vadd.f32 %v6175, %v6297
      %6299 = vmatmul.f32.gmra.mxu0 %v6053
      %v6300 = vpop.f32.mrf.mxu0
      %v6301 = vadd.f32 %v6178, %v6300
      %6302 = vmatmul.f32.gmra.mxu0 %v6056
      %v6303 = vpop.f32.mrf.mxu0
      %v6304 = vadd.f32 %v6181, %v6303
      %6305 = vmatmul.f32.gmra.mxu0 %v6059
      %v6306 = vpop.f32.mrf.mxu0
      %v6307 = vadd.f32 %v6184, %v6306
      %6308 = vmatmul.f32.gmra.mxu0 %v6062
      %v6309 = vpop.f32.mrf.mxu0
      %v6310 = vadd.f32 %v6187, %v6309
      %6311 = vmatmul.f32.gmra.mxu0 %v6065
      %v6312 = vpop.f32.mrf.mxu0
      %v6313 = vadd.f32 %v6190, %v6312
      %6314 = vmatmul.f32.gmra.mxu0 %v6068
      %v6315 = vpop.f32.mrf.mxu0
      %v6316 = vadd.f32 %v6193, %v6315
      %6317 = vmatmul.f32.gmra.mxu0 %v6071
      %v6318 = vpop.f32.mrf.mxu0
      %v6319 = vadd.f32 %v6196, %v6318
      %6320 = vmatmul.f32.gmra.mxu0 %v6074
      %v6321 = vpop.f32.mrf.mxu0
      %v6322 = vadd.f32 %v6199, %v6321
      %6323 = vmatmul.f32.gmra.mxu0 %v6077
      %v6324 = vpop.f32.mrf.mxu0
      %v6325 = vadd.f32 %v6202, %v6324
      %6326 = vmatmul.f32.gmra.mxu0 %v6080
      %v6327 = vpop.f32.mrf.mxu0
      %v6328 = vadd.f32 %v6205, %v6327
      %6329 = vmatmul.f32.gmra.mxu0 %v6083
      %v6330 = vpop.f32.mrf.mxu0
      %v6331 = vadd.f32 %v6208, %v6330
      %6332 = vmatmul.f32.gmra.mxu0 %v6086
      %v6333 = vpop.f32.mrf.mxu0
      %v6334 = vadd.f32 %v6211, %v6333
      %6335 = vmatmul.f32.gmra.mxu0 %v6089
      %v6336 = vpop.f32.mrf.mxu0
      %v6337 = vadd.f32 %v6214, %v6336
      %6338 = vmatmul.f32.gmra.mxu0 %v6092
      %v6339 = vpop.f32.mrf.mxu0
      %v6340 = vadd.f32 %v6217, %v6339
      %6341 = vmatmul.f32.gmra.mxu0 %v6095
      %v6342 = vpop.f32.mrf.mxu0
      %v6343 = vadd.f32 %v6220, %v6342
      %6344 = vmatmul.f32.gmra.mxu0 %v6098
      %v6345 = vpop.f32.mrf.mxu0
      %v6346 = vadd.f32 %v6223, %v6345
      %6347 = vmatmul.f32.gmra.mxu0 %v6101
      %v6348 = vpop.f32.mrf.mxu0
      %v6349 = vadd.f32 %v6226, %v6348
      %6350 = vmatmul.f32.gmra.mxu0 %v6104
      %v6351 = vpop.f32.mrf.mxu0
      %v6352 = vadd.f32 %v6229, %v6351
      %6353 = vmatmul.f32.gmra.mxu0 %v6107
      %v6354 = vpop.f32.mrf.mxu0
      %v6355 = vadd.f32 %v6232, %v6354
      %6356 = vmatmul.f32.gmra.mxu0 %v6110
      %v6357 = vpop.f32.mrf.mxu0
      %v6358 = vadd.f32 %v6235, %v6357
      %6359 = vmatmul.f32.gmra.mxu0 %v6113
      %v6360 = vpop.f32.mrf.mxu0
      %v6361 = vadd.f32 %v6238, %v6360
      %6362 = vmatmul.f32.gmra.mxu0 %v6116
      %v6363 = vpop.f32.mrf.mxu0
      %v6364 = vadd.f32 %v6241, %v6363
      %6365 = vmatmul.f32.gmra.mxu0 %v6119
      %v6366 = vpop.f32.mrf.mxu0
      %v6367 = vadd.f32 %v6244, %v6366
      %6368 = vmatmul.f32.gmra.mxu0 %v6122
      %v6369 = vpop.f32.mrf.mxu0
      %v6370 = vadd.f32 %v6247, %v6369
      %6371 = vmatmul.f32.gmra.mxu0 %v6125
      %v6372 = vpop.f32.mrf.mxu0
      %v6373 = vadd.f32 %v6250, %v6372
      %6374 = vmatmul.f32.gmra.mxu0 %v6128
      %v6375 = vpop.f32.mrf.mxu0
      %v6376 = vadd.f32 %v6253, %v6375
      %6377 = vmatmul.f32.gmra.mxu0 %v6131
      %v6378 = vpop.f32.mrf.mxu0
      %v6379 = vadd.f32 %v6256, %v6378
      %6380 = vmatmul.f32.gmra.mxu0 %v6134
      %v6381 = vpop.f32.mrf.mxu0
      %v6382 = vadd.f32 %v6259, %v6381
      %6383 = vmatmul.f32.gmra.mxu0 %v6137
      %v6384 = vpop.f32.mrf.mxu0
      %v6385 = vadd.f32 %v6262, %v6384
      %6386 = vmatmul.f32.gmra.mxu0 %v6140
      %v6387 = vpop.f32.mrf.mxu0
      %v6388 = vadd.f32 %v6265, %v6387
      %6389 = vmatmul.f32.gmra.mxu0 %v6143
      %v6390 = vpop.f32.mrf.mxu0
      %v6391 = vadd.f32 %v6268, %v6390
      %6392 = vmatmul.f32.gmra.mxu0 %v6146
      %v6393 = vpop.f32.mrf.mxu0
      %v6394 = vadd.f32 %v6271, %v6393
      %6395 = vmatmul.f32.gmra.mxu0 %v6149
      %v6396 = vpop.f32.mrf.mxu0
      %v6397 = vadd.f32 %v6274, %v6396
      %6398 = vmatmul.f32.gmra.mxu0 %v6152
      %v6399 = vpop.f32.mrf.mxu0
      %6400 = vmatmul.f32.gmra.mxu0 %v6155
      %v6401 = vpop.f32.mrf.mxu0
      %6402 = vdwg.mxu0
      %6403 = vmatpush.msra.mxu0 %v6032
      %6404 = vmatpush.msra.mxu0 %v6030
      %6405 = vmatpush.msra.mxu0 %v6028
      %6406 = vmatpush.msra.mxu0 %v6026
      %6407 = vmatpush.msra.mxu0 %v6024
      %6408 = vmatpush.msra.mxu0 %v6022
      %6409 = vmatpush.msra.mxu0 %v6020
      %6410 = vmatpush.msra.mxu0 %v6018
      %6411 = vmatpush.msra.mxu0 %v6016
      %6412 = vmatpush.msra.mxu0 %v6014
      %6413 = vmatpush.msra.mxu0 %v6012
      %6414 = vmatpush.msra.mxu0 %v6010
      %6415 = vmatpush.msra.mxu0 %v6008
      %6416 = vmatpush.msra.mxu0 %v6006
      %6417 = vmatpush.msra.mxu0 %v6004
      %6418 = vmatpush.msra.mxu0 %v6002
      %6419 = vmatmul.f32.gmra.mxu0 %v5928
      %v6420 = vpop.f32.mrf.mxu0
      %6421 = vmatmul.f32.gmra.mxu0 %v5930
      %v6422 = vpop.f32.mrf.mxu0
      %6423 = vmatmul.f32.gmra.mxu0 %v5932
      %v6424 = vpop.f32.mrf.mxu0
      %6425 = vmatmul.f32.gmra.mxu0 %v5934
      %v6426 = vpop.f32.mrf.mxu0
      %6427 = vmatmul.f32.gmra.mxu0 %v5936
      %v6428 = vpop.f32.mrf.mxu0
      %v6429 = vadd.f32 0.0, %v6428
      %6430 = vmatmul.f32.gmra.mxu0 %v5938
      %v6431 = vpop.f32.mrf.mxu0
      %v6432 = vadd.f32 0.0, %v6431
      %6433 = vmatmul.f32.gmra.mxu0 %v5940
      %v6434 = vpop.f32.mrf.mxu0
      %v6435 = vadd.f32 0.0, %v6434
      %6436 = vmatmul.f32.gmra.mxu0 %v5942
      %v6437 = vpop.f32.mrf.mxu0
      %v6438 = vadd.f32 0.0, %v6437
      %6439 = vmatmul.f32.gmra.mxu0 %v5944
      %v6440 = vpop.f32.mrf.mxu0
      %v6441 = vadd.f32 0.0, %v6440
      %6442 = vmatmul.f32.gmra.mxu0 %v5946
      %v6443 = vpop.f32.mrf.mxu0
      %v6444 = vadd.f32 0.0, %v6443
      %6445 = vmatmul.f32.gmra.mxu0 %v5948
      %v6446 = vpop.f32.mrf.mxu0
      %v6447 = vadd.f32 0.0, %v6446
      %6448 = vmatmul.f32.gmra.mxu0 %v5950
      %v6449 = vpop.f32.mrf.mxu0
      %v6450 = vadd.f32 0.0, %v6449
      %6451 = vmatmul.f32.gmra.mxu0 %v5952
      %v6452 = vpop.f32.mrf.mxu0
      %v6453 = vadd.f32 0.0, %v6452
      %6454 = vmatmul.f32.gmra.mxu0 %v5954
      %v6455 = vpop.f32.mrf.mxu0
      %v6456 = vadd.f32 0.0, %v6455
      %6457 = vmatmul.f32.gmra.mxu0 %v5956
      %v6458 = vpop.f32.mrf.mxu0
      %v6459 = vadd.f32 0.0, %v6458
      %6460 = vmatmul.f32.gmra.mxu0 %v5958
      %v6461 = vpop.f32.mrf.mxu0
      %v6462 = vadd.f32 0.0, %v6461
      %6463 = vmatmul.f32.gmra.mxu0 %v5960
      %v6464 = vpop.f32.mrf.mxu0
      %v6465 = vadd.f32 0.0, %v6464
      %6466 = vmatmul.f32.gmra.mxu0 %v5962
      %v6467 = vpop.f32.mrf.mxu0
      %v6468 = vadd.f32 0.0, %v6467
      %6469 = vmatmul.f32.gmra.mxu0 %v5964
      %v6470 = vpop.f32.mrf.mxu0
      %v6471 = vadd.f32 0.0, %v6470
      %6472 = vmatmul.f32.gmra.mxu0 %v5966
      %v6473 = vpop.f32.mrf.mxu0
      %v6474 = vadd.f32 0.0, %v6473
      %6475 = vmatmul.f32.gmra.mxu0 %v5968
      %v6476 = vpop.f32.mrf.mxu0
      %v6477 = vadd.f32 0.0, %v6476
      %6478 = vmatmul.f32.gmra.mxu0 %v5970
      %v6479 = vpop.f32.mrf.mxu0
      %v6480 = vadd.f32 0.0, %v6479
      %6481 = vmatmul.f32.gmra.mxu0 %v5972
      %v6482 = vpop.f32.mrf.mxu0
      %v6483 = vadd.f32 0.0, %v6482
      %6484 = vmatmul.f32.gmra.mxu0 %v5974
      %v6485 = vpop.f32.mrf.mxu0
      %v6486 = vadd.f32 0.0, %v6485
      %6487 = vmatmul.f32.gmra.mxu0 %v5976
      %v6488 = vpop.f32.mrf.mxu0
      %v6489 = vadd.f32 0.0, %v6488
      %6490 = vmatmul.f32.gmra.mxu0 %v5978
      %v6491 = vpop.f32.mrf.mxu0
      %v6492 = vadd.f32 0.0, %v6491
      %6493 = vmatmul.f32.gmra.mxu0 %v5980
      %v6494 = vpop.f32.mrf.mxu0
      %v6495 = vadd.f32 0.0, %v6494
      %6496 = vmatmul.f32.gmra.mxu0 %v5982
      %v6497 = vpop.f32.mrf.mxu0
      %v6498 = vadd.f32 0.0, %v6497
      %6499 = vmatmul.f32.gmra.mxu0 %v5984
      %v6500 = vpop.f32.mrf.mxu0
      %v6501 = vadd.f32 0.0, %v6500
      %6502 = vmatmul.f32.gmra.mxu0 %v5986
      %v6503 = vpop.f32.mrf.mxu0
      %v6504 = vadd.f32 0.0, %v6503
      %6505 = vmatmul.f32.gmra.mxu0 %v5988
      %v6506 = vpop.f32.mrf.mxu0
      %v6507 = vadd.f32 0.0, %v6506
      %6508 = vmatmul.f32.gmra.mxu0 %v5990
      %v6509 = vpop.f32.mrf.mxu0
      %v6510 = vadd.f32 0.0, %v6509
      %6511 = vmatmul.f32.gmra.mxu0 %v5992
      %v6512 = vpop.f32.mrf.mxu0
      %v6513 = vadd.f32 0.0, %v6512
      %6514 = vmatmul.f32.gmra.mxu0 %v5994
      %v6515 = vpop.f32.mrf.mxu0
      %v6516 = vadd.f32 0.0, %v6515
      %6517 = vmatmul.f32.gmra.mxu0 %v5996
      %v6518 = vpop.f32.mrf.mxu0
      %v6519 = vadd.f32 0.0, %v6518
      %6520 = vmatmul.f32.gmra.mxu0 %v5998
      %v6521 = vpop.f32.mrf.mxu0
      %v6522 = vadd.f32 0.0, %v6521
      %6523 = vdwg.mxu0
      %6524 = vmatpush.msra.mxu0 0.0
      %6525 = vmatpush.msra.mxu0 0.0
      %6526 = vmatpush.msra.mxu0 0.0
      %6527 = vmatpush.msra.mxu0 0.0
      %6528 = vmatpush.msra.mxu0 0.0
      %6529 = vmatpush.msra.mxu0 0.0
      %6530 = vmatpush.msra.mxu0 0.0
      %6531 = vmatpush.msra.mxu0 0.0
      %6532 = vmatpush.msra.mxu0 %v6048
      %6533 = vmatpush.msra.mxu0 %v6046
      %6534 = vmatpush.msra.mxu0 %v6044
      %6535 = vmatpush.msra.mxu0 %v6042
      %6536 = vmatpush.msra.mxu0 %v6040
      %6537 = vmatpush.msra.mxu0 %v6038
      %6538 = vmatpush.msra.mxu0 %v6036
      %6539 = vmatpush.msra.mxu0 %v6034
      %6540 = vmatmul.f32.gmra.mxu0 %v6050
      %v6541 = vpop.f32.mrf.mxu0
      %6542 = vmatmul.f32.gmra.mxu0 %v6053
      %v6543 = vpop.f32.mrf.mxu0
      %6544 = vmatmul.f32.gmra.mxu0 %v6056
      %v6545 = vpop.f32.mrf.mxu0
      %6546 = vmatmul.f32.gmra.mxu0 %v6059
      %v6547 = vpop.f32.mrf.mxu0
      %6548 = vmatmul.f32.gmra.mxu0 %v6062
      %v6549 = vpop.f32.mrf.mxu0
      %v6550 = vadd.f32 %v6429, %v6549
      %6551 = vmatmul.f32.gmra.mxu0 %v6065
      %v6552 = vpop.f32.mrf.mxu0
      %v6553 = vadd.f32 %v6432, %v6552
      %6554 = vmatmul.f32.gmra.mxu0 %v6068
      %v6555 = vpop.f32.mrf.mxu0
      %v6556 = vadd.f32 %v6435, %v6555
      %6557 = vmatmul.f32.gmra.mxu0 %v6071
      %v6558 = vpop.f32.mrf.mxu0
      %v6559 = vadd.f32 %v6438, %v6558
      %6560 = vmatmul.f32.gmra.mxu0 %v6074
      %v6561 = vpop.f32.mrf.mxu0
      %v6562 = vadd.f32 %v6441, %v6561
      %6563 = vmatmul.f32.gmra.mxu0 %v6077
      %v6564 = vpop.f32.mrf.mxu0
      %v6565 = vadd.f32 %v6444, %v6564
      %6566 = vmatmul.f32.gmra.mxu0 %v6080
      %v6567 = vpop.f32.mrf.mxu0
      %v6568 = vadd.f32 %v6447, %v6567
      %6569 = vmatmul.f32.gmra.mxu0 %v6083
      %v6570 = vpop.f32.mrf.mxu0
      %v6571 = vadd.f32 %v6450, %v6570
      %6572 = vmatmul.f32.gmra.mxu0 %v6086
      %v6573 = vpop.f32.mrf.mxu0
      %v6574 = vadd.f32 %v6453, %v6573
      %6575 = vmatmul.f32.gmra.mxu0 %v6089
      %v6576 = vpop.f32.mrf.mxu0
      %v6577 = vadd.f32 %v6456, %v6576
      %6578 = vmatmul.f32.gmra.mxu0 %v6092
      %v6579 = vpop.f32.mrf.mxu0
      %v6580 = vadd.f32 %v6459, %v6579
      %6581 = vmatmul.f32.gmra.mxu0 %v6095
      %v6582 = vpop.f32.mrf.mxu0
      %v6583 = vadd.f32 %v6462, %v6582
      %6584 = vmatmul.f32.gmra.mxu0 %v6098
      %v6585 = vpop.f32.mrf.mxu0
      %v6586 = vadd.f32 %v6465, %v6585
      %6587 = vmatmul.f32.gmra.mxu0 %v6101
      %v6588 = vpop.f32.mrf.mxu0
      %v6589 = vadd.f32 %v6468, %v6588
      %6590 = vmatmul.f32.gmra.mxu0 %v6104
      %v6591 = vpop.f32.mrf.mxu0
      %v6592 = vadd.f32 %v6471, %v6591
      %6593 = vmatmul.f32.gmra.mxu0 %v6107
      %v6594 = vpop.f32.mrf.mxu0
      %v6595 = vadd.f32 %v6474, %v6594
      %6596 = vmatmul.f32.gmra.mxu0 %v6110
      %v6597 = vpop.f32.mrf.mxu0
      %v6598 = vadd.f32 %v6477, %v6597
      %6599 = vmatmul.f32.gmra.mxu0 %v6113
      %v6600 = vpop.f32.mrf.mxu0
      %v6601 = vadd.f32 %v6480, %v6600
      %6602 = vmatmul.f32.gmra.mxu0 %v6116
      %v6603 = vpop.f32.mrf.mxu0
      %v6604 = vadd.f32 %v6483, %v6603
      %6605 = vmatmul.f32.gmra.mxu0 %v6119
      %v6606 = vpop.f32.mrf.mxu0
      %v6607 = vadd.f32 %v6486, %v6606
      %6608 = vmatmul.f32.gmra.mxu0 %v6122
      %v6609 = vpop.f32.mrf.mxu0
      %v6610 = vadd.f32 %v6489, %v6609
      %6611 = vmatmul.f32.gmra.mxu0 %v6125
      %v6612 = vpop.f32.mrf.mxu0
      %v6613 = vadd.f32 %v6492, %v6612
      %6614 = vmatmul.f32.gmra.mxu0 %v6128
      %v6615 = vpop.f32.mrf.mxu0
      %v6616 = vadd.f32 %v6495, %v6615
      %6617 = vmatmul.f32.gmra.mxu0 %v6131
      %v6618 = vpop.f32.mrf.mxu0
      %v6619 = vadd.f32 %v6498, %v6618
      %6620 = vmatmul.f32.gmra.mxu0 %v6134
      %v6621 = vpop.f32.mrf.mxu0
      %v6622 = vadd.f32 %v6501, %v6621
      %6623 = vmatmul.f32.gmra.mxu0 %v6137
      %v6624 = vpop.f32.mrf.mxu0
      %v6625 = vadd.f32 %v6504, %v6624
      %6626 = vmatmul.f32.gmra.mxu0 %v6140
      %v6627 = vpop.f32.mrf.mxu0
      %v6628 = vadd.f32 %v6507, %v6627
      %6629 = vmatmul.f32.gmra.mxu0 %v6143
      %v6630 = vpop.f32.mrf.mxu0
      %v6631 = vadd.f32 %v6510, %v6630
      %6632 = vmatmul.f32.gmra.mxu0 %v6146
      %v6633 = vpop.f32.mrf.mxu0
      %v6634 = vadd.f32 %v6513, %v6633
      %6635 = vmatmul.f32.gmra.mxu0 %v6149
      %v6636 = vpop.f32.mrf.mxu0
      %v6637 = vadd.f32 %v6516, %v6636
      %6638 = vmatmul.f32.gmra.mxu0 %v6152
      %v6639 = vpop.f32.mrf.mxu0
      %v6640 = vadd.f32 %v6519, %v6639
      %6641 = vmatmul.f32.gmra.mxu0 %v6155
      %v6642 = vpop.f32.mrf.mxu0
      %v6643 = vadd.f32 %v6522, %v6642
      %6644 = vdwg.mxu0
      %6677 = vrot.lane.b32.xlu0 %v6304, 64
      %v6678 = vpop.permute.xlu0 %6677
      %6679 = vrot.lane.b32.xlu0 %v6307, 64
      %v6680 = vpop.permute.xlu0 %6679
      %6681 = vrot.lane.b32.xlu0 %v6310, 64
      %v6682 = vpop.permute.xlu0 %6681
      %6683 = vrot.lane.b32.xlu0 %v6313, 64
      %v6684 = vpop.permute.xlu0 %6683
      %6685 = vrot.lane.b32.xlu0 %v6316, 64
      %v6686 = vpop.permute.xlu0 %6685
      %6687 = vrot.lane.b32.xlu0 %v6319, 64
      %v6688 = vpop.permute.xlu0 %6687
      %6689 = vrot.lane.b32.xlu0 %v6322, 64
      %v6690 = vpop.permute.xlu0 %6689
      %6691 = vrot.lane.b32.xlu0 %v6325, 64
      %v6692 = vpop.permute.xlu0 %6691
      %6693 = vrot.lane.b32.xlu0 %v6328, 64
      %v6694 = vpop.permute.xlu0 %6693
      %6695 = vrot.lane.b32.xlu0 %v6331, 64
      %v6696 = vpop.permute.xlu0 %6695
      %6697 = vrot.lane.b32.xlu0 %v6334, 64
      %v6698 = vpop.permute.xlu0 %6697
      %6699 = vrot.lane.b32.xlu0 %v6337, 64
      %v6700 = vpop.permute.xlu0 %6699
      %6701 = vrot.lane.b32.xlu0 %v6340, 64
      %v6702 = vpop.permute.xlu0 %6701
      %6703 = vrot.lane.b32.xlu0 %v6343, 64
      %v6704 = vpop.permute.xlu0 %6703
      %6705 = vrot.lane.b32.xlu0 %v6346, 64
      %v6706 = vpop.permute.xlu0 %6705
      %6707 = vrot.lane.b32.xlu0 %v6349, 64
      %v6708 = vpop.permute.xlu0 %6707
      %6709 = vrot.lane.b32.xlu0 %v6352, 64
      %v6710 = vpop.permute.xlu0 %6709
      %6711 = vrot.lane.b32.xlu0 %v6355, 64
      %v6712 = vpop.permute.xlu0 %6711
      %6713 = vrot.lane.b32.xlu0 %v6358, 64
      %v6714 = vpop.permute.xlu0 %6713
      %6715 = vrot.lane.b32.xlu0 %v6361, 64
      %v6716 = vpop.permute.xlu0 %6715
      %6717 = vrot.lane.b32.xlu0 %v6364, 64
      %v6718 = vpop.permute.xlu0 %6717
      %6719 = vrot.lane.b32.xlu0 %v6367, 64
      %v6720 = vpop.permute.xlu0 %6719
      %6721 = vrot.lane.b32.xlu0 %v6370, 64
      %v6722 = vpop.permute.xlu0 %6721
      %6723 = vrot.lane.b32.xlu0 %v6373, 64
      %v6724 = vpop.permute.xlu0 %6723
      %6725 = vrot.lane.b32.xlu0 %v6376, 64
      %v6726 = vpop.permute.xlu0 %6725
      %6727 = vrot.lane.b32.xlu0 %v6379, 64
      %v6728 = vpop.permute.xlu0 %6727
      %6729 = vrot.lane.b32.xlu0 %v6382, 64
      %v6730 = vpop.permute.xlu0 %6729
      %6731 = vrot.lane.b32.xlu0 %v6385, 64
      %v6732 = vpop.permute.xlu0 %6731
      %6733 = vrot.lane.b32.xlu0 %v6388, 64
      %v6734 = vpop.permute.xlu0 %6733
      %6735 = vrot.lane.b32.xlu0 %v6391, 64
      %v6736 = vpop.permute.xlu0 %6735
      %6737 = vrot.lane.b32.xlu0 %v6394, 64
      %v6738 = vpop.permute.xlu0 %6737
      %6739 = vrot.lane.b32.xlu0 %v6397, 64
      %v6740 = vpop.permute.xlu0 %6739
      %v6773 = vadd.f32 %v6298, %v6678
      %v6774 = vadd.f32 %v6301, %v6680
      %v6775 = vadd.f32 %v6304, %v6682
      %v6776 = vadd.f32 %v6307, %v6684
      %v6777 = vadd.f32 %v6310, %v6686
      %v6778 = vadd.f32 %v6313, %v6688
      %v6779 = vadd.f32 %v6316, %v6690
      %v6780 = vadd.f32 %v6319, %v6692
      %v6781 = vadd.f32 %v6322, %v6694
      %v6782 = vadd.f32 %v6325, %v6696
      %v6783 = vadd.f32 %v6328, %v6698
      %v6784 = vadd.f32 %v6331, %v6700
      %v6785 = vadd.f32 %v6334, %v6702
      %v6786 = vadd.f32 %v6337, %v6704
      %v6787 = vadd.f32 %v6340, %v6706
      %v6788 = vadd.f32 %v6343, %v6708
      %v6789 = vadd.f32 %v6346, %v6710
      %v6790 = vadd.f32 %v6349, %v6712
      %v6791 = vadd.f32 %v6352, %v6714
      %v6792 = vadd.f32 %v6355, %v6716
      %v6793 = vadd.f32 %v6358, %v6718
      %v6794 = vadd.f32 %v6361, %v6720
      %v6795 = vadd.f32 %v6364, %v6722
      %v6796 = vadd.f32 %v6367, %v6724
      %v6797 = vadd.f32 %v6370, %v6726
      %v6798 = vadd.f32 %v6373, %v6728
      %v6799 = vadd.f32 %v6376, %v6730
      %v6800 = vadd.f32 %v6379, %v6732
      %v6801 = vadd.f32 %v6382, %v6734
      %v6802 = vadd.f32 %v6385, %v6736
      %v6803 = vadd.f32 %v6388, %v6738
      %v6804 = vadd.f32 %v6391, %v6740
      %v6805 = vadd.f32 %v6773, %v6550
      %v6806 = vadd.f32 %v6774, %v6553
      %v6807 = vadd.f32 %v6775, %v6556
      %v6808 = vadd.f32 %v6776, %v6559
      %v6809 = vadd.f32 %v6777, %v6562
      %v6810 = vadd.f32 %v6778, %v6565
      %v6811 = vadd.f32 %v6779, %v6568
      %v6812 = vadd.f32 %v6780, %v6571
      %v6813 = vadd.f32 %v6781, %v6574
      %v6814 = vadd.f32 %v6782, %v6577
      %v6815 = vadd.f32 %v6783, %v6580
      %v6816 = vadd.f32 %v6784, %v6583
      %v6817 = vadd.f32 %v6785, %v6586
      %v6818 = vadd.f32 %v6786, %v6589
      %v6819 = vadd.f32 %v6787, %v6592
      %v6820 = vadd.f32 %v6788, %v6595
      %v6821 = vadd.f32 %v6789, %v6598
      %v6822 = vadd.f32 %v6790, %v6601
      %v6823 = vadd.f32 %v6791, %v6604
      %v6824 = vadd.f32 %v6792, %v6607
      %v6825 = vadd.f32 %v6793, %v6610
      %v6826 = vadd.f32 %v6794, %v6613
      %v6827 = vadd.f32 %v6795, %v6616
      %v6828 = vadd.f32 %v6796, %v6619
      %v6829 = vadd.f32 %v6797, %v6622
      %v6830 = vadd.f32 %v6798, %v6625
      %v6831 = vadd.f32 %v6799, %v6628
      %v6832 = vadd.f32 %v6800, %v6631
      %v6833 = vadd.f32 %v6801, %v6634
      %v6834 = vadd.f32 %v6802, %v6637
      %v6835 = vadd.f32 %v6803, %v6640
      %v6836 = vadd.f32 %v6804, %v6643
      %s6837 = scalar_lea.vmem %s3, 4
      %v6838 = vld [vmem:[%s6837] sm:$0x1]
      %v6840 = vperm.slane %v6838, 0
      %v6842 = vmul.f32 %v6805, %v6840
      %v6843 = vmul.f32 %v6806, %v6840
      %v6844 = vmul.f32 %v6807, %v6840
      %v6845 = vmul.f32 %v6808, %v6840
      %v6846 = vmul.f32 %v6809, %v6840
      %v6847 = vmul.f32 %v6810, %v6840
      %v6848 = vmul.f32 %v6811, %v6840
      %v6849 = vmul.f32 %v6812, %v6840
      %v6850 = vmul.f32 %v6813, %v6840
      %v6851 = vmul.f32 %v6814, %v6840
      %v6852 = vmul.f32 %v6815, %v6840
      %v6853 = vmul.f32 %v6816, %v6840
      %v6854 = vmul.f32 %v6817, %v6840
      %v6855 = vmul.f32 %v6818, %v6840
      %v6856 = vmul.f32 %v6819, %v6840
      %v6857 = vmul.f32 %v6820, %v6840
      %v6858 = vmul.f32 %v6821, %v6840
      %v6859 = vmul.f32 %v6822, %v6840
      %v6860 = vmul.f32 %v6823, %v6840
      %v6861 = vmul.f32 %v6824, %v6840
      %v6862 = vmul.f32 %v6825, %v6840
      %v6863 = vmul.f32 %v6826, %v6840
      %v6864 = vmul.f32 %v6827, %v6840
      %v6865 = vmul.f32 %v6828, %v6840
      %v6866 = vmul.f32 %v6829, %v6840
      %v6867 = vmul.f32 %v6830, %v6840
      %v6868 = vmul.f32 %v6831, %v6840
      %v6869 = vmul.f32 %v6832, %v6840
      %v6870 = vmul.f32 %v6833, %v6840
      %v6871 = vmul.f32 %v6834, %v6840
      %v6872 = vmul.f32 %v6835, %v6840
      %v6873 = vmul.f32 %v6836, %v6840
      %s6874 = scalar_lea.vmem %s4, 4
      %v6875 = vld [vmem:[%s6874] sm:$0x1]
      %v6877 = vperm.slane %v6875, 0
      %v6879 = vadd.f32 %v6842, %v6877
      %v6880 = vadd.f32 %v6843, %v6877
      %v6881 = vadd.f32 %v6844, %v6877
      %v6882 = vadd.f32 %v6845, %v6877
      %v6883 = vadd.f32 %v6846, %v6877
      %v6884 = vadd.f32 %v6847, %v6877
      %v6885 = vadd.f32 %v6848, %v6877
      %v6886 = vadd.f32 %v6849, %v6877
      %v6887 = vadd.f32 %v6850, %v6877
      %v6888 = vadd.f32 %v6851, %v6877
      %v6889 = vadd.f32 %v6852, %v6877
      %v6890 = vadd.f32 %v6853, %v6877
      %v6891 = vadd.f32 %v6854, %v6877
      %v6892 = vadd.f32 %v6855, %v6877
      %v6893 = vadd.f32 %v6856, %v6877
      %v6894 = vadd.f32 %v6857, %v6877
      %v6895 = vadd.f32 %v6858, %v6877
      %v6896 = vadd.f32 %v6859, %v6877
      %v6897 = vadd.f32 %v6860, %v6877
      %v6898 = vadd.f32 %v6861, %v6877
      %v6899 = vadd.f32 %v6862, %v6877
      %v6900 = vadd.f32 %v6863, %v6877
      %v6901 = vadd.f32 %v6864, %v6877
      %v6902 = vadd.f32 %v6865, %v6877
      %v6903 = vadd.f32 %v6866, %v6877
      %v6904 = vadd.f32 %v6867, %v6877
      %v6905 = vadd.f32 %v6868, %v6877
      %v6906 = vadd.f32 %v6869, %v6877
      %v6907 = vadd.f32 %v6870, %v6877
      %v6908 = vadd.f32 %v6871, %v6877
      %v6909 = vadd.f32 %v6872, %v6877
      %v6910 = vadd.f32 %v6873, %v6877
      %v6911 = vadd.f32 %v6879, %v5480
      %v6912 = vadd.f32 %v6880, %v5481
      %v6913 = vadd.f32 %v6881, %v5482
      %v6914 = vadd.f32 %v6882, %v5483
      %v6915 = vadd.f32 %v6883, %v5484
      %v6916 = vadd.f32 %v6884, %v5485
      %v6917 = vadd.f32 %v6885, %v5486
      %v6918 = vadd.f32 %v6886, %v5487
      %v6919 = vadd.f32 %v6887, %v5488
      %v6920 = vadd.f32 %v6888, %v5489
      %v6921 = vadd.f32 %v6889, %v5490
      %v6922 = vadd.f32 %v6890, %v5491
      %v6923 = vadd.f32 %v6891, %v5492
      %v6924 = vadd.f32 %v6892, %v5493
      %v6925 = vadd.f32 %v6893, %v5494
      %v6926 = vadd.f32 %v6894, %v5495
      %v6927 = vadd.f32 %v6895, %v5496
      %v6928 = vadd.f32 %v6896, %v5497
      %v6929 = vadd.f32 %v6897, %v5498
      %v6930 = vadd.f32 %v6898, %v5499
      %v6931 = vadd.f32 %v6899, %v5500
      %v6932 = vadd.f32 %v6900, %v5501
      %v6933 = vadd.f32 %v6901, %v5502
      %v6934 = vadd.f32 %v6902, %v5503
      %v6935 = vadd.f32 %v6903, %v5504
      %v6936 = vadd.f32 %v6904, %v5505
      %v6937 = vadd.f32 %v6905, %v5506
      %v6938 = vadd.f32 %v6906, %v5507
      %v6939 = vadd.f32 %v6907, %v5508
      %v6940 = vadd.f32 %v6908, %v5509
      %v6941 = vadd.f32 %v6909, %v5510
      %v6942 = vadd.f32 %v6910, %v5511
      %v6943 = vmax.f32 %v6911, 0.0
      %v6944 = vmax.f32 %v6912, 0.0
      %v6945 = vmax.f32 %v6913, 0.0
      %v6946 = vmax.f32 %v6914, 0.0
      %v6947 = vmax.f32 %v6915, 0.0
      %v6948 = vmax.f32 %v6916, 0.0
      %v6949 = vmax.f32 %v6917, 0.0
      %v6950 = vmax.f32 %v6918, 0.0
      %v6951 = vmax.f32 %v6919, 0.0
      %v6952 = vmax.f32 %v6920, 0.0
      %v6953 = vmax.f32 %v6921, 0.0
      %v6954 = vmax.f32 %v6922, 0.0
      %v6955 = vmax.f32 %v6923, 0.0
      %v6956 = vmax.f32 %v6924, 0.0
      %v6957 = vmax.f32 %v6925, 0.0
      %v6958 = vmax.f32 %v6926, 0.0
      %v6959 = vmax.f32 %v6927, 0.0
      %v6960 = vmax.f32 %v6928, 0.0
      %v6961 = vmax.f32 %v6929, 0.0
      %v6962 = vmax.f32 %v6930, 0.0
      %v6963 = vmax.f32 %v6931, 0.0
      %v6964 = vmax.f32 %v6932, 0.0
      %v6965 = vmax.f32 %v6933, 0.0
      %v6966 = vmax.f32 %v6934, 0.0
      %v6967 = vmax.f32 %v6935, 0.0
      %v6968 = vmax.f32 %v6936, 0.0
      %v6969 = vmax.f32 %v6937, 0.0
      %v6970 = vmax.f32 %v6938, 0.0
      %v6971 = vmax.f32 %v6939, 0.0
      %v6972 = vmax.f32 %v6940, 0.0
      %v6973 = vmax.f32 %v6941, 0.0
      %v6974 = vmax.f32 %v6942, 0.0
      %v6975 = vsel %vm276, %v6943, 0.0
      %v6976 = vsel %vm276, %v6944, 0.0
      %v6977 = vadd.f32 %v6975, %v6976
      %v6978 = vsel %vm276, %v6945, 0.0
      %v6979 = vadd.f32 %v6977, %v6978
      %v6980 = vsel %vm276, %v6946, 0.0
      %v6981 = vadd.f32 %v6979, %v6980
      %v6982 = vsel %vm276, %v6947, 0.0
      %v6983 = vadd.f32 %v6981, %v6982
      %v6984 = vsel %vm276, %v6948, 0.0
      %v6985 = vadd.f32 %v6983, %v6984
      %v6986 = vsel %vm276, %v6949, 0.0
      %v6987 = vadd.f32 %v6985, %v6986
      %v6988 = vsel %vm276, %v6950, 0.0
      %v6989 = vadd.f32 %v6987, %v6988
      %v6990 = vsel %vm276, %v6951, 0.0
      %v6991 = vadd.f32 %v6989, %v6990
      %v6992 = vsel %vm276, %v6952, 0.0
      %v6993 = vadd.f32 %v6991, %v6992
      %v6994 = vsel %vm276, %v6953, 0.0
      %v6995 = vadd.f32 %v6993, %v6994
      %v6996 = vsel %vm276, %v6954, 0.0
      %v6997 = vadd.f32 %v6995, %v6996
      %v6998 = vsel %vm276, %v6955, 0.0
      %v6999 = vadd.f32 %v6997, %v6998
      %v7000 = vsel %vm276, %v6956, 0.0
      %v7001 = vadd.f32 %v6999, %v7000
      %v7002 = vsel %vm276, %v6957, 0.0
      %v7003 = vadd.f32 %v7001, %v7002
      %v7004 = vsel %vm276, %v6958, 0.0
      %v7005 = vadd.f32 %v7003, %v7004
      %v7006 = vsel %vm276, %v6959, 0.0
      %v7007 = vadd.f32 %v7005, %v7006
      %v7008 = vsel %vm276, %v6960, 0.0
      %v7009 = vadd.f32 %v7007, %v7008
      %v7010 = vsel %vm276, %v6961, 0.0
      %v7011 = vadd.f32 %v7009, %v7010
      %v7012 = vsel %vm276, %v6962, 0.0
      %v7013 = vadd.f32 %v7011, %v7012
      %v7014 = vsel %vm276, %v6963, 0.0
      %v7015 = vadd.f32 %v7013, %v7014
      %v7016 = vsel %vm276, %v6964, 0.0
      %v7017 = vadd.f32 %v7015, %v7016
      %v7018 = vsel %vm276, %v6965, 0.0
      %v7019 = vadd.f32 %v7017, %v7018
      %v7020 = vsel %vm276, %v6966, 0.0
      %v7021 = vadd.f32 %v7019, %v7020
      %v7022 = vsel %vm276, %v6967, 0.0
      %v7023 = vadd.f32 %v7021, %v7022
      %v7024 = vsel %vm276, %v6968, 0.0
      %v7025 = vadd.f32 %v7023, %v7024
      %v7026 = vsel %vm276, %v6969, 0.0
      %v7027 = vadd.f32 %v7025, %v7026
      %v7028 = vsel %vm276, %v6970, 0.0
      %v7029 = vadd.f32 %v7027, %v7028
      %v7030 = vsel %vm276, %v6971, 0.0
      %v7031 = vadd.f32 %v7029, %v7030
      %v7032 = vsel %vm276, %v6972, 0.0
      %v7033 = vadd.f32 %v7031, %v7032
      %v7034 = vsel %vm276, %v6973, 0.0
      %v7035 = vadd.f32 %v7033, %v7034
      %v7036 = vsel %vm276, %v6974, 0.0
      %v7037 = vadd.f32 %v7035, %v7036
      %v7038 = vrot.slane %v7037, 4
      %v7039 = vadd.f32 %v7037, %v7038
      %v7040 = vrot.slane %v7039, 2
      %v7041 = vadd.f32 %v7039, %v7040
      %v7042 = vrot.slane %v7041, 1
      %v7043 = vadd.f32 %v7041, %v7042
      %v7044 = vrcp.pop 256.0
      %v7045 = vmul.f32 256.0, %v7044
      %v7046 = vsub.f32 1.0, %v7045
      %v7047 = vmul.f32 %v7044, %v7046
      %v7048 = vadd.f32 %v7044, %v7047
      %vm7049 = vweird.f32 %v7044
      %v7050 = vsel %vm7049, %v7044, %v7048
      %v7051 = vmul.f32 %v7043, %v7050
      %v7052 = vld [vmem:[%s5] sm:$0xff]
      %v7053 = vld [vmem:[%s5 + $0x8] sm:$0xff]
      %v7054 = vld [vmem:[%s5 + $0x10] sm:$0xff]
      %v7055 = vld [vmem:[%s5 + $0x18] sm:$0xff]
      %v7056 = vld [vmem:[%s5 + $0x20] sm:$0xff]
      %v7057 = vld [vmem:[%s5 + $0x28] sm:$0xff]
      %v7058 = vld [vmem:[%s5 + $0x30] sm:$0xff]
      %v7059 = vld [vmem:[%s5 + $0x38] sm:$0xff]
      %v7060 = vld [vmem:[%s6] sm:$0x1]
      %v7062 = vsel %vm276, %v7051, 0
      %7064 = vmatpush.msra.mxu0 0.0
      %7065 = vmatpush.msra.mxu0 0.0
      %7066 = vmatpush.msra.mxu0 0.0
      %7067 = vmatpush.msra.mxu0 0.0
      %7068 = vmatpush.msra.mxu0 0.0
      %7069 = vmatpush.msra.mxu0 0.0
      %7070 = vmatpush.msra.mxu0 0.0
      %7071 = vmatpush.msra.mxu0 0.0
      %7072 = vmatpush.msra.mxu0 %v7059
      %7073 = vmatpush.msra.mxu0 %v7058
      %7074 = vmatpush.msra.mxu0 %v7057
      %7075 = vmatpush.msra.mxu0 %v7056
      %7076 = vmatpush.msra.mxu0 %v7055
      %7077 = vmatpush.msra.mxu0 %v7054
      %7078 = vmatpush.msra.mxu0 %v7053
      %7079 = vmatpush.msra.mxu0 %v7052
      %7080 = vmatmul.f32.gmra.mxu0 %v7062
      %v7081 = vpop.f32.mrf.mxu0
      %v7082 = vadd.f32 %v7060, %v7081
      %7083 = vdwg.mxu0
      %v7084 = vlaneseq
      %v7085 = vand.u32 %v7084, 127
      %vm7086 = vcmp.lt.s32.totalorder %v7085, 8
      %v7087 = vmax.f32 %v7082, 0.0
      %v7088 = vsel %vm7086, %v7087, %v7082
      %7089 = vst [vmem:[%s274] sm:$0x1] %v7088
      %p7090 = scmp.lt.s32.totalorder %s18, 1
      %s7091 = scalar_select %p7090, %s18, 1
      %s7092 = scalar_lea.vmem %s7, %s7091
      // Predicated region
      $region49: #{classification_network_forward.1} parent=47 // pred_check
        %p7093 = pneg %p188
      $region50: #{classification_network_forward.1} parent=47 // pred_check_branch
        %7095 = sbr.rel (%p7093) target = $region52
      $region51: #{classification_network_forward.1} parent=47 // pred_region
        _
      $region52: #{classification_network_forward.1} parent=47 // pred_fallthru
        _
    $region48: #{classification_network_forward.1} parent=5 // pred_fallthru
      _
    %p7096 = scmp.le.s32.totalorder 2, %s13
    // Predicated region
    $region53: #{classification_network_forward.1} parent=5 // pred_check
      %p7097 = pneg %p7096
    $region54: #{classification_network_forward.1} parent=5 // pred_check_branch
      %7099 = sbr.rel (%p7097) target = $region56
    $region55: #{classification_network_forward.1} parent=5 // pred_region
      %s7100 = ssub.s32 %s13, 2
      // Predicated region
      $region57: #{classification_network_forward.1} parent=55 // pred_check
        %p7101 = pneg %p194
      $region58: #{classification_network_forward.1} parent=55 // pred_check_branch
        %7103 = sbr.rel (%p7101) target = $region60
      $region59: #{classification_network_forward.1} parent=55 // pred_region
        %p7104 = scmp.lt.s32.totalorder %s19, 1
        %s7105 = scalar_select %p7104, %s19, 1
        %s7106 = scalar_lea.vmem %s7, %s7105
      $region60: #{classification_network_forward.1} parent=55 // pred_fallthru
        _
    $region56: #{classification_network_forward.1} parent=5 // pred_fallthru
      _
  $region6: #{classification_network_forward.1} parent=0 // loop_footer
    %s17 = sadd.s32 1, %s13
  $region7: #{classification_network_forward.1} parent=0 // loop_footer_branch
    %12 = sbr.rel target = $region3
  $region8: #{classification_network_forward.1} parent=0 // loop_exit
    _

</llo_original>
